<compile_context>
chip_gen: v5e
topology: v5e:2x2
jax: 0.10.0
libtpu: 0.0.40
codegen_flags: <defaults>
</compile_context>

<pallas_src>
import functools
import math

import jax
import jax.numpy as jnp
from jax.experimental import pallas as pl
from jax.experimental.pallas import tpu as pltpu

EPS = 1e-6


def _vmem_limit_bytes():
    try:
        kind = jax.devices()[0].device_kind.lower()
    except Exception:  # pragma: no cover - CPU fallback
        kind = ""
    if "v7" in kind:                       # v7x: 64 MiB physical VMEM per TC
        return 48 * 1024 * 1024
    return 96 * 1024 * 1024                # v5e / v6e: 128 MiB physical


_VMEM_LIMIT = _vmem_limit_bytes()


# ----------------------------- in-kernel helpers ---------------------------- #

def _layer_norm_f32(x, a, b):
    """Annotated-Transformer LayerNorm: a*(x-mean)/(std+eps)+b, unbiased std."""
    d = x.shape[-1]
    mean = jnp.mean(x, axis=-1, keepdims=True)
    var = jnp.sum((x - mean) ** 2, axis=-1, keepdims=True) / (d - 1)
    inv = pl.reciprocal(jnp.sqrt(var) + EPS, approx=False)
    return a * (x - mean) * inv + b


def _mha_heads(q, k, v, bias, n_heads):
    """Head-batched attention core.

    q: [tq, D] f32 (already scaled), k/v: [S, D] f32, bias: [1 or tq, S] f32
    additive mask bias.  Returns lane-dense context [tq, D] f32.
    """
    tq, D = q.shape
    S = k.shape[0]
    dk = D // n_heads
    q3 = q.reshape(tq, n_heads, dk).astype(jnp.bfloat16)
    k3 = k.reshape(S, n_heads, dk).astype(jnp.bfloat16)
    v3 = v.reshape(S, n_heads, dk).astype(jnp.bfloat16)
    # One batched MXU pass over all heads (no per-head lane slices / concat).
    s = jnp.einsum("qhd,khd->hqk", q3, k3,
                   preferred_element_type=jnp.float32)            # [h, tq, S]
    s = s + bias[None, :, :]
    m = jnp.max(s, axis=-1, keepdims=True)
    e = jnp.exp(s - m)
    p = e * pl.reciprocal(jnp.sum(e, axis=-1, keepdims=True), approx=False)
    ctx = jnp.einsum("hqk,khd->qhd", p.astype(jnp.bfloat16), v3,
                     preferred_element_type=jnp.float32)          # [tq, h, dk]
    return ctx.reshape(tq, D)                                     # lane-dense slab


# ----------------------------- Pallas kernels ------------------------------ #

def self_attn_block_kernel(x_ref, mask_ref, a_ref, b_ref, wqkv_ref, bqkv_ref,
                           wo_ref, bo_ref, o_ref, *, n_heads, scale, q_tile):
    """out[b, qi*tq:(qi+1)*tq] = x + SelfAttn(LN(x)) for one (batch, q-tile)."""
    T, D = x_ref.shape[1], x_ref.shape[2]
    x_full = x_ref[0].astype(jnp.float32)                         # [T, D]
    a = a_ref[...]
    b = b_ref[...]
    xn_full = _layer_norm_f32(x_full, a, b)

    w = wqkv_ref[...]                                             # bf16 [D, 3D]
    bqkv = bqkv_ref[0]                                            # f32  [3D]
    # K/V over the full sequence (keys/values are shared by all query tiles).
    kv = jnp.dot(xn_full.astype(jnp.bfloat16), w[:, D:],
                 preferred_element_type=jnp.float32) + bqkv[D:]   # [T, 2D]

    if q_tile == T:                                               # single query tile
        x_tile, xn_tile = x_full, xn_full
    else:
        q_start = pl.multiple_of(pl.program_id(1) * q_tile, q_tile)
        x_tile = x_ref[0, pl.ds(q_start, q_tile), :].astype(jnp.float32)
        xn_tile = _layer_norm_f32(x_tile, a, b)
    q = (jnp.dot(xn_tile.astype(jnp.bfloat16), w[:, :D],
                 preferred_element_type=jnp.float32) + bqkv[:D]) * scale

    # Additive mask bias built once per program (not per head).
    bias = jnp.where(mask_ref[0] == 0.0, jnp.float32(-1e9), jnp.float32(0.0))
    ctx = _mha_heads(q, kv[:, :D], kv[:, D:], bias, n_heads)
    out = jnp.dot(ctx.astype(jnp.bfloat16), wo_ref[...],
                  preferred_element_type=jnp.float32) + bo_ref[...]
    o_ref[0] = (x_tile + out).astype(o_ref.dtype)


def cross_attn_block_kernel(x_ref, mem_ref, mask_ref, a_ref, b_ref,
                            wq_ref, bq_ref, wkv_ref, bkv_ref, wo_ref, bo_ref,
                            o_ref, *, n_heads, scale, q_tile):
    """out[b, q-tile] = x + CrossAttn(LN(x), memory, memory)."""
    T, D = x_ref.shape[1], x_ref.shape[2]
    if q_tile == T:
        x_tile = x_ref[0].astype(jnp.float32)
    else:
        q_start = pl.multiple_of(pl.program_id(1) * q_tile, q_tile)
        x_tile = x_ref[0, pl.ds(q_start, q_tile), :].astype(jnp.float32)
    xn = _layer_norm_f32(x_tile, a_ref[...], b_ref[...])
    q = (jnp.dot(xn.astype(jnp.bfloat16), wq_ref[...],
                 preferred_element_type=jnp.float32) + bq_ref[...]) * scale

    mem = mem_ref[0].astype(jnp.bfloat16)                         # [S, D]
    # TODO(synk): KV projection of memory is recomputed per query tile; hoist /
    #             cache it per batch when T // q_tile is large.
    kv = jnp.dot(mem, wkv_ref[...],
                 preferred_element_type=jnp.float32) + bkv_ref[0]  # [S, 2D]

    bias = jnp.where(mask_ref[0] == 0.0, jnp.float32(-1e9), jnp.float32(0.0))
    ctx = _mha_heads(q, kv[:, :D], kv[:, D:], bias, n_heads)
    out = jnp.dot(ctx.astype(jnp.bfloat16), wo_ref[...],
                  preferred_element_type=jnp.float32) + bo_ref[...]
    o_ref[0] = (x_tile + out).astype(o_ref.dtype)


def ln_ffn_block_kernel(x_ref, a_ref, b_ref, w1_ref, b1_ref, w2_ref, b2_ref,
                        *rest, apply_final_ln):
    """x + W2(ReLU(W1(LN(x)))) for a row tile; [tm,d_ff] stays in VMEM.
    Optionally applies the decoder's final LayerNorm (last layer only)."""
    if apply_final_ln:
        fa_ref, fb_ref, o_ref = rest
    else:
        (o_ref,) = rest
    x = x_ref[...].astype(jnp.float32)                            # [tm, D]
    xn = _layer_norm_f32(x, a_ref[...], b_ref[...])
    h = jnp.dot(xn.astype(jnp.bfloat16), w1_ref[...],
                preferred_element_type=jnp.float32) + b1_ref[...]
    h = jnp.maximum(h, 0.0)                                       # ReLU (f32 VPU)
    y = x + jnp.dot(h.astype(jnp.bfloat16), w2_ref[...],
                    preferred_element_type=jnp.float32) + b2_ref[...]
    if apply_final_ln:
        y = _layer_norm_f32(y, fa_ref[...], fb_ref[...])
    o_ref[...] = y.astype(o_ref.dtype)


def layernorm_kernel(x_ref, a_ref, b_ref, o_ref):
    o_ref[...] = _layer_norm_f32(x_ref[...].astype(jnp.float32),
                                 a_ref[...], b_ref[...]).astype(o_ref.dtype)


# ----------------------------- Pallas wrappers ----------------------------- #

def _pick_tile(n, max_tile):
    """Largest tile <= max_tile that divides n and is a multiple of 8, else n."""
    if n <= max_tile:
        return n
    for t in range(max_tile, 7, -8):
        if n % t == 0:
            return t
    return n


def _const_spec(shape):
    """Constant-index operand (weights / biases / LN params): same block for
    every grid point, so no per-step re-DMA."""
    nd = len(shape)
    return pl.BlockSpec(shape, lambda *_: (0,) * nd)


def _mask_spec(mask, q_tile):
    """Compact mask [Bm in {1,B}, Rm in {1,T}, L] -> per-program block spec."""
    b_many = mask.shape[0] > 1
    r_many = mask.shape[1] > 1
    block_r = q_tile if r_many else 1

    def idx(b, qi):
        return (b if b_many else 0, qi if r_many else 0, 0)

    return pl.BlockSpec((1, block_r, mask.shape[2]), idx)


def fused_self_attention(x, tgt_mask, ap, h):
    B, T, D = x.shape
    tq = _pick_tile(T, 256)
    scale = 1.0 / math.sqrt(D // h)
    kern = functools.partial(self_attn_block_kernel, n_heads=h, scale=scale,
                             q_tile=tq)
    return pl.pallas_call(
        kern,
        out_shape=jax.ShapeDtypeStruct((B, T, D), x.dtype),
        grid=(B, T // tq),
        in_specs=[
            pl.BlockSpec((1, T, D), lambda b, qi: (b, 0, 0)),     # full seq (K/V)
            _mask_spec(tgt_mask, tq),
            _const_spec((1, D)), _const_spec((1, D)),             # LN a, b
            _const_spec((D, 3 * D)), _const_spec((1, 3 * D)),     # Wqkv, bqkv
            _const_spec((D, D)), _const_spec((1, D)),             # Wo, bo
        ],
        out_specs=pl.BlockSpec((1, tq, D), lambda b, qi: (b, qi, 0)),
        compiler_params=pltpu.CompilerParams(
            dimension_semantics=("parallel", "parallel"),
            vmem_limit_bytes=_VMEM_LIMIT),
    )(x, tgt_mask, ap["ln_a"].reshape(1, D), ap["ln_b"].reshape(1, D),
      ap["wqkv"], ap["bqkv"].reshape(1, 3 * D), ap["wo"], ap["bo"].reshape(1, D))


def fused_cross_attention(x, memory, src_mask, ap, h):
    B, T, D = x.shape
    S = memory.shape[1]
    tq = _pick_tile(T, 256)
    scale = 1.0 / math.sqrt(D // h)
    kern = functools.partial(cross_attn_block_kernel, n_heads=h, scale=scale,
                             q_tile=tq)
    return pl.pallas_call(
        kern,
        out_shape=jax.ShapeDtypeStruct((B, T, D), x.dtype),
        grid=(B, T // tq),
        in_specs=[
            pl.BlockSpec((1, T, D), lambda b, qi: (b, 0, 0)),     # queries (full)
            pl.BlockSpec((1, S, D), lambda b, qi: (b, 0, 0)),     # memory (full)
            _mask_spec(src_mask, tq),
            _const_spec((1, D)), _const_spec((1, D)),             # LN a, b
            _const_spec((D, D)), _const_spec((1, D)),             # Wq, bq
            _const_spec((D, 2 * D)), _const_spec((1, 2 * D)),     # Wkv, bkv
            _const_spec((D, D)), _const_spec((1, D)),             # Wo, bo
        ],
        out_specs=pl.BlockSpec((1, tq, D), lambda b, qi: (b, qi, 0)),
        compiler_params=pltpu.CompilerParams(
            dimension_semantics=("parallel", "parallel"),
            vmem_limit_bytes=_VMEM_LIMIT),
    )(x, memory, src_mask, ap["ln_a"].reshape(1, D), ap["ln_b"].reshape(1, D),
      ap["wq"], ap["bq"].reshape(1, D), ap["wkv"], ap["bkv"].reshape(1, 2 * D),
      ap["wo"], ap["bo"].reshape(1, D))


def fused_ln_ffn(x, fp, final_ln=None):
    B, T, D = x.shape
    d_ff = fp["w1"].shape[1]
    x2 = x.reshape(-1, D)
    rows = x2.shape[0]
    tm = _pick_tile(rows, 512)
    kern = functools.partial(ln_ffn_block_kernel,
                             apply_final_ln=final_ln is not None)
    in_specs = [
        pl.BlockSpec((tm, D), lambda i: (i, 0)),
        _const_spec((1, D)), _const_spec((1, D)),
        _const_spec((D, d_ff)), _const_spec((1, d_ff)),
        _const_spec((d_ff, D)), _const_spec((1, D)),
    ]
    args = [x2, fp["ln_a"].reshape(1, D), fp["ln_b"].reshape(1, D),
            fp["w1"], fp["b1"].reshape(1, d_ff), fp["w2"], fp["b2"].reshape(1, D)]
    if final_ln is not None:
        fa, fb = final_ln
        in_specs += [_const_spec((1, D)), _const_spec((1, D))]
        args += [fa.reshape(1, D), fb.reshape(1, D)]
    out = pl.pallas_call(
        kern,
        out_shape=jax.ShapeDtypeStruct((rows, D), x.dtype),
        grid=(rows // tm,),
        in_specs=in_specs,
        out_specs=pl.BlockSpec((tm, D), lambda i: (i, 0)),
        compiler_params=pltpu.CompilerParams(
            dimension_semantics=("parallel",),
            vmem_limit_bytes=_VMEM_LIMIT),
    )(*args)
    return out.reshape(B, T, D)


def pallas_layernorm(x, a, b):
    """Standalone final LayerNorm (only used when there are no decoder layers)."""
    B, T, D = x.shape
    x2 = x.reshape(-1, D)
    rows = x2.shape[0]
    tm = _pick_tile(rows, 512)
    out = pl.pallas_call(
        layernorm_kernel,
        out_shape=jax.ShapeDtypeStruct((rows, D), x.dtype),
        grid=(rows // tm,),
        in_specs=[pl.BlockSpec((tm, D), lambda i: (i, 0)),
                  _const_spec((1, D)), _const_spec((1, D))],
        out_specs=pl.BlockSpec((tm, D), lambda i: (i, 0)),
        compiler_params=pltpu.CompilerParams(
            dimension_semantics=("parallel",),
            vmem_limit_bytes=_VMEM_LIMIT),
    )(x2, a.reshape(1, D), b.reshape(1, D))
    return out.reshape(B, T, D)


# ----------------------------- Model (glue) -------------------------------- #

def _normalize_mask(mask, last):
    """Masks kept compact: [Bm in {1,B}, Rm in {1,T}, last], f32, no head dup."""
    m = jnp.asarray(mask, jnp.float32)
    if m.ndim == 2:
        m = m[None]
    assert m.ndim == 3 and m.shape[-1] == last
    return m


def decoder_forward(params, x, memory, src_mask, tgt_mask, h):
    B, T, _ = x.shape
    S = memory.shape[1]
    tgt_mask3 = _normalize_mask(tgt_mask, T)
    src_mask3 = _normalize_mask(src_mask, S)
    layers = params["layers"]
    if not layers:
        return pallas_layernorm(x, params["norm_a"], params["norm_b"])
    n = len(layers)
    for li, lp in enumerate(layers):
        # SublayerConnection: x + sublayer(norm(x))  (dropout == identity)
        x = fused_self_attention(x, tgt_mask3, lp["self_attn"], h)
        x = fused_cross_attention(x, memory, src_mask3, lp["src_attn"], h)
        final_ln = (params["norm_a"], params["norm_b"]) if li == n - 1 else None
        x = fused_ln_ffn(x, lp["ffn"], final_ln=final_ln)
    return x


# ----------------------------- Param init ----------------------------------- #

def init_linear(key, din, dout):
    k1, k2 = jax.random.split(key)
    bound = 1.0 / math.sqrt(din)
    w = jax.random.uniform(k1, (din, dout), jnp.float32, -bound, bound)
    b = jax.random.uniform(k2, (dout,), jnp.float32, -bound, bound)
    return w, b


def init_self_attention(key, d_model):
    ks = jax.random.split(key, 4)
    wq, bq = init_linear(ks[0], d_model, d_model)
    wk, bk = init_linear(ks[1], d_model, d_model)
    wv, bv = init_linear(ks[2], d_model, d_model)
    wo, bo = init_linear(ks[3], d_model, d_model)
    return dict(ln_a=jnp.ones((d_model,), jnp.float32),
                ln_b=jnp.zeros((d_model,), jnp.float32),
                wqkv=jnp.concatenate([wq, wk, wv], axis=1).astype(jnp.bfloat16),
                bqkv=jnp.concatenate([bq, bk, bv]),
                wo=wo.astype(jnp.bfloat16), bo=bo)


def init_cross_attention(key, d_model):
    ks = jax.random.split(key, 4)
    wq, bq = init_linear(ks[0], d_model, d_model)
    wk, bk = init_linear(ks[1], d_model, d_model)
    wv, bv = init_linear(ks[2], d_model, d_model)
    wo, bo = init_linear(ks[3], d_model, d_model)
    return dict(ln_a=jnp.ones((d_model,), jnp.float32),
                ln_b=jnp.zeros((d_model,), jnp.float32),
                wq=wq.astype(jnp.bfloat16), bq=bq,
                wkv=jnp.concatenate([wk, wv], axis=1).astype(jnp.bfloat16),
                bkv=jnp.concatenate([bk, bv]),
                wo=wo.astype(jnp.bfloat16), bo=bo)


def init_ffn(key, d_model, d_ff):
    k1, k2 = jax.random.split(key)
    w1, b1 = init_linear(k1, d_model, d_ff)
    w2, b2 = init_linear(k2, d_ff, d_model)
    return dict(ln_a=jnp.ones((d_model,), jnp.float32),
                ln_b=jnp.zeros((d_model,), jnp.float32),
                w1=w1.astype(jnp.bfloat16), b1=b1,
                w2=w2.astype(jnp.bfloat16), b2=b2)


def init_decoder(key, d_model, d_ff, n_layers):
    layers = []
    for _ in range(n_layers):
        key, k_sa, k_ca, k_ff = jax.random.split(key, 4)
        layers.append(dict(self_attn=init_self_attention(k_sa, d_model),
                           src_attn=init_cross_attention(k_ca, d_model),
                           ffn=init_ffn(k_ff, d_model, d_ff)))
    return dict(layers=layers,
                norm_a=jnp.ones((d_model,), jnp.float32),
                norm_b=jnp.zeros((d_model,), jnp.float32))


# ----------------------------- Main ----------------------------------------- #

if __name__ == "__main__":
    B, T, S, D, H, D_FF, N = 2, 8, 8, 32, 4, 64, 2

    key = jax.random.PRNGKey(0)
    k_x, k_mem, k_params = jax.random.split(key, 3)

    x = jax.random.normal(k_x, (B, T, D), jnp.float32)
    memory = jax.random.normal(k_mem, (B, S, D), jnp.float32)
    # tgt_mask: causal (subsequent) mask, shared across batch -> compact [1,T,T].
    # src_mask: padding mask per batch, compact [B,1,S].
    tgt_mask = jnp.tril(jnp.ones((T, T), jnp.float32))[None]
    src_mask = jnp.ones((B, 1, S), jnp.float32)

    params = init_decoder(k_params, D, D_FF, N)

    fwd = jax.jit(functools.partial(decoder_forward, h=H))
    out = fwd(params, x, memory, src_mask, tgt_mask)
    out = jax.block_until_ready(out)

    assert out.shape == (B, T, D) and out.dtype == jnp.float32
    assert bool(jnp.all(jnp.isfinite(out)))
    print("KERNEL_OK")
</pallas_src>

<mosaic_0001>
module attributes {stable_mosaic.version = 11 : i64} {
  func.func @cross_attn_block_kernel(%arg0: i32, %arg1: i32, %arg2: memref<1x8x32xf32, #tpu.memory_space<vmem>>, %arg3: memref<1x8x32xf32, #tpu.memory_space<vmem>>, %arg4: memref<1x1x8xf32, #tpu.memory_space<vmem>>, %arg5: memref<1x32xf32, #tpu.memory_space<vmem>>, %arg6: memref<1x32xf32, #tpu.memory_space<vmem>>, %arg7: memref<32x32xbf16, #tpu.memory_space<vmem>>, %arg8: memref<1x32xf32, #tpu.memory_space<vmem>>, %arg9: memref<32x64xbf16, #tpu.memory_space<vmem>>, %arg10: memref<1x64xf32, #tpu.memory_space<vmem>>, %arg11: memref<32x32xbf16, #tpu.memory_space<vmem>>, %arg12: memref<1x32xf32, #tpu.memory_space<vmem>>, %arg13: memref<1x8x32xf32, #tpu.memory_space<vmem>>) attributes {dimension_semantics = [#tpu.dimension_semantics<parallel>, #tpu.dimension_semantics<parallel>], iteration_bounds = array<i64: 2, 1>, scalar_prefetch = 0 : i64, scratch_operands = 0 : i64, tpu.core_type = #tpu.core_type<tc>, window_params = [{transform_indices = @transform_0, window_bounds = array<i64: 1, 8, 32>}, {transform_indices = @transform_1, window_bounds = array<i64: 1, 8, 32>}, {transform_indices = @transform_2, window_bounds = array<i64: 1, 1, 8>}, {pipeline_mode = #tpu.pipeline_mode<synchronous>, transform_indices = @transform_3, window_bounds = array<i64: 1, 32>}, {pipeline_mode = #tpu.pipeline_mode<synchronous>, transform_indices = @transform_4, window_bounds = array<i64: 1, 32>}, {pipeline_mode = #tpu.pipeline_mode<synchronous>, transform_indices = @transform_5, window_bounds = array<i64: 32, 32>}, {pipeline_mode = #tpu.pipeline_mode<synchronous>, transform_indices = @transform_6, window_bounds = array<i64: 1, 32>}, {pipeline_mode = #tpu.pipeline_mode<synchronous>, transform_indices = @transform_7, window_bounds = array<i64: 32, 64>}, {pipeline_mode = #tpu.pipeline_mode<synchronous>, transform_indices = @transform_8, window_bounds = array<i64: 1, 64>}, {pipeline_mode = #tpu.pipeline_mode<synchronous>, transform_indices = @transform_9, window_bounds = array<i64: 32, 32>}, {pipeline_mode = #tpu.pipeline_mode<synchronous>, transform_indices = @transform_10, window_bounds = array<i64: 1, 32>}, {transform_indices = @transform_11, window_bounds = array<i64: 1, 8, 32>}]} {
    %c0 = arith.constant 0 : index
    %c0_0 = arith.constant 0 : index
    %c0_1 = arith.constant 0 : index
    %0 = vector.load %arg2[%c0, %c0_0, %c0_1] : memref<1x8x32xf32, #tpu.memory_space<vmem>>, vector<1x8x32xf32>
    %1 = vector.shape_cast %0 : vector<1x8x32xf32> to vector<8x32xf32>
    %c0_2 = arith.constant 0 : index
    %c0_3 = arith.constant 0 : index
    %2 = vector.load %arg5[%c0_2, %c0_3] : memref<1x32xf32, #tpu.memory_space<vmem>>, vector<1x32xf32>
    %c0_4 = arith.constant 0 : index
    %c0_5 = arith.constant 0 : index
    %3 = vector.load %arg6[%c0_4, %c0_5] : memref<1x32xf32, #tpu.memory_space<vmem>>, vector<1x32xf32>
    %cst = arith.constant dense<0.000000e+00> : vector<8xf32>
    %4 = vector.multi_reduction <add>, %1, %cst [1] : vector<8x32xf32> to vector<8xf32>
    %5 = vector.shape_cast %4 : vector<8xf32> to vector<8x1xf32>
    %cst_6 = arith.constant 3.200000e+01 : f32
    %6 = vector.broadcast %cst_6 : f32 to vector<8x1xf32>
    %7 = arith.divf %5, %6 : vector<8x1xf32>
    %8 = vector.broadcast %7 : vector<8x1xf32> to vector<8x32xf32>
    %9 = arith.subf %1, %8 : vector<8x32xf32>
    %10 = arith.mulf %9, %9 : vector<8x32xf32>
    %cst_7 = arith.constant dense<0.000000e+00> : vector<8xf32>
    %11 = vector.multi_reduction <add>, %10, %cst_7 [1] : vector<8x32xf32> to vector<8xf32>
    %12 = vector.shape_cast %11 : vector<8xf32> to vector<8x1xf32>
    %cst_8 = arith.constant 3.100000e+01 : f32
    %13 = vector.broadcast %cst_8 : f32 to vector<8x1xf32>
    %14 = arith.divf %12, %13 : vector<8x1xf32>
    %15 = math.sqrt %14 : vector<8x1xf32>
    %cst_9 = arith.constant 9.99999997E-7 : f32
    %16 = vector.broadcast %cst_9 : f32 to vector<8x1xf32>
    %17 = arith.addf %15, %16 : vector<8x1xf32>
    %18 = tpu.reciprocal %17 : vector<8x1xf32> -> vector<8x1xf32>
    %19 = vector.broadcast %7 : vector<8x1xf32> to vector<8x32xf32>
    %20 = arith.subf %1, %19 : vector<8x32xf32>
    %21 = vector.broadcast %2 : vector<1x32xf32> to vector<8x32xf32>
    %22 = arith.mulf %21, %20 : vector<8x32xf32>
    %23 = vector.broadcast %18 : vector<8x1xf32> to vector<8x32xf32>
    %24 = arith.mulf %22, %23 : vector<8x32xf32>
    %25 = vector.broadcast %3 : vector<1x32xf32> to vector<8x32xf32>
    %26 = arith.addf %24, %25 : vector<8x32xf32>
    %27 = arith.truncf %26 : vector<8x32xf32> to vector<8x32xbf16>
    %c0_10 = arith.constant 0 : index
    %c0_11 = arith.constant 0 : index
    %28 = vector.load %arg7[%c0_10, %c0_11] : memref<32x32xbf16, #tpu.memory_space<vmem>>, vector<32x32xbf16>
    %cst_12 = arith.constant dense<0.000000e+00> : vector<8x32xf32>
    %29 = tpu.matmul %27, %28, %cst_12 {dimension_numbers = #tpu.dot_dimension_numbers<[1], [0], [0], [1], [0, 0, 1, 1], [], []>} : vector<8x32xbf16>, vector<32x32xbf16>, vector<8x32xf32> -> vector<8x32xf32>
    %c0_13 = arith.constant 0 : index
    %c0_14 = arith.constant 0 : index
    %30 = vector.load %arg8[%c0_13, %c0_14] : memref<1x32xf32, #tpu.memory_space<vmem>>, vector<1x32xf32>
    %31 = vector.broadcast %30 : vector<1x32xf32> to vector<8x32xf32>
    %32 = arith.addf %29, %31 : vector<8x32xf32>
    %cst_15 = arith.constant 0.353553385 : f32
    %33 = vector.broadcast %cst_15 : f32 to vector<8x32xf32>
    %34 = arith.mulf %32, %33 : vector<8x32xf32>
    %c0_16 = arith.constant 0 : index
    %c0_17 = arith.constant 0 : index
    %c0_18 = arith.constant 0 : index
    %35 = vector.load %arg3[%c0_16, %c0_17, %c0_18] : memref<1x8x32xf32, #tpu.memory_space<vmem>>, vector<1x8x32xf32>
    %36 = vector.shape_cast %35 : vector<1x8x32xf32> to vector<8x32xf32>
    %37 = arith.truncf %36 : vector<8x32xf32> to vector<8x32xbf16>
    %c0_19 = arith.constant 0 : index
    %c0_20 = arith.constant 0 : index
    %38 = vector.load %arg9[%c0_19, %c0_20] : memref<32x64xbf16, #tpu.memory_space<vmem>>, vector<32x64xbf16>
    %cst_21 = arith.constant dense<0.000000e+00> : vector<8x64xf32>
    %39 = tpu.matmul %37, %38, %cst_21 {dimension_numbers = #tpu.dot_dimension_numbers<[1], [0], [0], [1], [0, 0, 1, 1], [], []>} : vector<8x32xbf16>, vector<32x64xbf16>, vector<8x64xf32> -> vector<8x64xf32>
    %c0_22 = arith.constant 0 : index
    %c0_23 = arith.constant 0 : index
    %40 = vector.load %arg10[%c0_22, %c0_23] : memref<1x64xf32, #tpu.memory_space<vmem>>, vector<1x64xf32>
    %41 = vector.shape_cast %40 : vector<1x64xf32> to vector<64xf32>
    %42 = vector.shape_cast %41 : vector<64xf32> to vector<1x64xf32>
    %43 = vector.broadcast %42 : vector<1x64xf32> to vector<8x64xf32>
    %44 = arith.addf %39, %43 : vector<8x64xf32>
    %c0_24 = arith.constant 0 : index
    %c0_25 = arith.constant 0 : index
    %c0_26 = arith.constant 0 : index
    %45 = vector.load %arg4[%c0_24, %c0_25, %c0_26] : memref<1x1x8xf32, #tpu.memory_space<vmem>>, vector<1x1x8xf32>
    %46 = vector.shape_cast %45 : vector<1x1x8xf32> to vector<1x8xf32>
    %cst_27 = arith.constant 0.000000e+00 : f32
    %47 = vector.broadcast %cst_27 : f32 to vector<1x8xf32>
    %48 = arith.cmpf oeq, %46, %47 : vector<1x8xf32>
    %cst_28 = arith.constant -1.000000e+09 : f32
    %cst_29 = arith.constant 0.000000e+00 : f32
    %49 = vector.broadcast %cst_28 : f32 to vector<1x8xf32>
    %50 = vector.broadcast %cst_29 : f32 to vector<1x8xf32>
    %51 = arith.select %48, %49, %50 : vector<1x8xi1>, vector<1x8xf32>
    %52 = vector.extract_strided_slice %44 {offsets = [0, 0], sizes = [8, 32], strides = [1, 1]} : vector<8x64xf32> to vector<8x32xf32>
    %53 = vector.extract_strided_slice %44 {offsets = [0, 32], sizes = [8, 32], strides = [1, 1]} : vector<8x64xf32> to vector<8x32xf32>
    %54 = vector.shape_cast %34 : vector<8x32xf32> to vector<8x4x8xf32>
    %55 = arith.truncf %54 : vector<8x4x8xf32> to vector<8x4x8xbf16>
    %56 = vector.shape_cast %52 : vector<8x32xf32> to vector<8x4x8xf32>
    %57 = arith.truncf %56 : vector<8x4x8xf32> to vector<8x4x8xbf16>
    %58 = vector.shape_cast %53 : vector<8x32xf32> to vector<8x4x8xf32>
    %59 = arith.truncf %58 : vector<8x4x8xf32> to vector<8x4x8xbf16>
    "tpu.trace_start"() <{level = 10 : i32, message = "qhd,khd->hqk"}> : () -> ()
    %cst_30 = arith.constant dense<0.000000e+00> : vector<4x8x8xf32>
    %60 = tpu.matmul %55, %57, %cst_30 {dimension_numbers = #tpu.dot_dimension_numbers<[2], [2], [0], [0], [0, 1, 0, 0, 1, 0], [1], [1]>} : vector<8x4x8xbf16>, vector<8x4x8xbf16>, vector<4x8x8xf32> -> vector<4x8x8xf32>
    "tpu.trace_stop"() : () -> ()
    %61 = vector.shape_cast %51 : vector<1x8xf32> to vector<1x1x8xf32>
    %62 = vector.broadcast %61 : vector<1x1x8xf32> to vector<4x8x8xf32>
    %63 = arith.addf %60, %62 : vector<4x8x8xf32>
    %cst_31 = arith.constant dense<0xFF800000> : vector<4x8xf32>
    %64 = vector.multi_reduction <maximumf>, %63, %cst_31 [2] : vector<4x8x8xf32> to vector<4x8xf32>
    %65 = vector.shape_cast %64 : vector<4x8xf32> to vector<4x8x1xf32>
    %66 = vector.broadcast %65 : vector<4x8x1xf32> to vector<4x8x8xf32>
    %67 = arith.subf %63, %66 : vector<4x8x8xf32>
    %68 = math.exp %67 : vector<4x8x8xf32>
    %cst_32 = arith.constant dense<0.000000e+00> : vector<4x8xf32>
    %69 = vector.multi_reduction <add>, %68, %cst_32 [2] : vector<4x8x8xf32> to vector<4x8xf32>
    %70 = vector.shape_cast %69 : vector<4x8xf32> to vector<4x8x1xf32>
    %71 = tpu.reciprocal %70 : vector<4x8x1xf32> -> vector<4x8x1xf32>
    %72 = vector.broadcast %71 : vector<4x8x1xf32> to vector<4x8x8xf32>
    %73 = arith.mulf %68, %72 : vector<4x8x8xf32>
    %74 = arith.truncf %73 : vector<4x8x8xf32> to vector<4x8x8xbf16>
    "tpu.trace_start"() <{level = 10 : i32, message = "hqk,khd->qhd"}> : () -> ()
    %cst_33 = arith.constant dense<0.000000e+00> : vector<4x8x8xf32>
    %75 = tpu.matmul %59, %74, %cst_33 {dimension_numbers = #tpu.dot_dimension_numbers<[0], [2], [2], [1], [0, 1, 0, 2, 1, 1], [1], [0]>} : vector<8x4x8xbf16>, vector<4x8x8xbf16>, vector<4x8x8xf32> -> vector<4x8x8xf32>
    %76 = tpu.transpose %75, [2, 0, 1] : vector<4x8x8xf32> -> vector<8x4x8xf32>
    "tpu.trace_stop"() : () -> ()
    %77 = vector.shape_cast %76 : vector<8x4x8xf32> to vector<8x32xf32>
    %78 = arith.truncf %77 : vector<8x32xf32> to vector<8x32xbf16>
    %c0_34 = arith.constant 0 : index
    %c0_35 = arith.constant 0 : index
    %79 = vector.load %arg11[%c0_34, %c0_35] : memref<32x32xbf16, #tpu.memory_space<vmem>>, vector<32x32xbf16>
    %cst_36 = arith.constant dense<0.000000e+00> : vector<8x32xf32>
    %80 = tpu.matmul %78, %79, %cst_36 {dimension_numbers = #tpu.dot_dimension_numbers<[1], [0], [0], [1], [0, 0, 1, 1], [], []>} : vector<8x32xbf16>, vector<32x32xbf16>, vector<8x32xf32> -> vector<8x32xf32>
    %c0_37 = arith.constant 0 : index
    %c0_38 = arith.constant 0 : index
    %81 = vector.load %arg12[%c0_37, %c0_38] : memref<1x32xf32, #tpu.memory_space<vmem>>, vector<1x32xf32>
    %82 = vector.broadcast %81 : vector<1x32xf32> to vector<8x32xf32>
    %83 = arith.addf %80, %82 : vector<8x32xf32>
    %84 = arith.addf %1, %83 : vector<8x32xf32>
    %c0_39 = arith.constant 0 : index
    %c0_40 = arith.constant 0 : index
    %c0_41 = arith.constant 0 : index
    %85 = vector.load %arg13[%c0_39, %c0_40, %c0_41] : memref<1x8x32xf32, #tpu.memory_space<vmem>>, vector<1x8x32xf32>
    %86 = vector.shape_cast %85 : vector<1x8x32xf32> to vector<8x32xf32>
    %87 = vector.shape_cast %84 : vector<8x32xf32> to vector<1x8x32xf32>
    tpu.vector_store %arg13[%c0_39, %c0_40, %c0_41], %87 {strides = array<i32>} : memref<1x8x32xf32, #tpu.memory_space<vmem>>, vector<1x8x32xf32>,
    return
  }
  func.func @transform_0(%arg0: i32, %arg1: i32) -> (i32, i32, i32) {
    %c0_i32 = arith.constant 0 : i32
    %c0_i32_0 = arith.constant 0 : i32
    %c0_i32_1 = arith.constant 0 : i32
    return %arg0, %c0_i32, %c0_i32_0 : i32, i32, i32
  }
  func.func @transform_1(%arg0: i32, %arg1: i32) -> (i32, i32, i32) {
    %c0_i32 = arith.constant 0 : i32
    %c0_i32_0 = arith.constant 0 : i32
    %c0_i32_1 = arith.constant 0 : i32
    return %arg0, %c0_i32, %c0_i32_0 : i32, i32, i32
  }
  func.func @transform_2(%arg0: i32, %arg1: i32) -> (i32, i32, i32) {
    %c0_i32 = arith.constant 0 : i32
    %c0_i32_0 = arith.constant 0 : i32
    %c0_i32_1 = arith.constant 0 : i32
    return %arg0, %c0_i32, %c0_i32_0 : i32, i32, i32
  }
  func.func @transform_3(%arg0: i32, %arg1: i32) -> (i32, i32) {
    %c0_i32 = arith.constant 0 : i32
    %c0_i32_0 = arith.constant 0 : i32
    %c0_i32_1 = arith.constant 0 : i32
    return %c0_i32, %c0_i32_0 : i32, i32
  }
  func.func @transform_4(%arg0: i32, %arg1: i32) -> (i32, i32) {
    %c0_i32 = arith.constant 0 : i32
    %c0_i32_0 = arith.constant 0 : i32
    %c0_i32_1 = arith.constant 0 : i32
    return %c0_i32, %c0_i32_0 : i32, i32
  }
  func.func @transform_5(%arg0: i32, %arg1: i32) -> (i32, i32) {
    %c0_i32 = arith.constant 0 : i32
    %c0_i32_0 = arith.constant 0 : i32
    %c0_i32_1 = arith.constant 0 : i32
    return %c0_i32, %c0_i32_0 : i32, i32
  }
  func.func @transform_6(%arg0: i32, %arg1: i32) -> (i32, i32) {
    %c0_i32 = arith.constant 0 : i32
    %c0_i32_0 = arith.constant 0 : i32
    %c0_i32_1 = arith.constant 0 : i32
    return %c0_i32, %c0_i32_0 : i32, i32
  }
  func.func @transform_7(%arg0: i32, %arg1: i32) -> (i32, i32) {
    %c0_i32 = arith.constant 0 : i32
    %c0_i32_0 = arith.constant 0 : i32
    %c0_i32_1 = arith.constant 0 : i32
    return %c0_i32, %c0_i32_0 : i32, i32
  }
  func.func @transform_8(%arg0: i32, %arg1: i32) -> (i32, i32) {
    %c0_i32 = arith.constant 0 : i32
    %c0_i32_0 = arith.constant 0 : i32
    %c0_i32_1 = arith.constant 0 : i32
    return %c0_i32, %c0_i32_0 : i32, i32
  }
  func.func @transform_9(%arg0: i32, %arg1: i32) -> (i32, i32) {
    %c0_i32 = arith.constant 0 : i32
    %c0_i32_0 = arith.constant 0 : i32
    %c0_i32_1 = arith.constant 0 : i32
    return %c0_i32, %c0_i32_0 : i32, i32
  }
  func.func @transform_10(%arg0: i32, %arg1: i32) -> (i32, i32) {
    %c0_i32 = arith.constant 0 : i32
    %c0_i32_0 = arith.constant 0 : i32
    %c0_i32_1 = arith.constant 0 : i32
    return %c0_i32, %c0_i32_0 : i32, i32
  }
  func.func @transform_11(%arg0: i32, %arg1: i32) -> (i32, i32, i32) {
    %c0_i32 = arith.constant 0 : i32
    %c0_i32_0 = arith.constant 0 : i32
    return %arg0, %arg1, %c0_i32 : i32, i32, i32
  }
}

module attributes {stable_mosaic.version = 11 : i64} {
  func.func @self_attn_block_kernel(%arg0: i32, %arg1: i32, %arg2: memref<1x8x32xf32, #tpu.memory_space<vmem>>, %arg3: memref<1x8x8xf32, #tpu.memory_space<vmem>>, %arg4: memref<1x32xf32, #tpu.memory_space<vmem>>, %arg5: memref<1x32xf32, #tpu.memory_space<vmem>>, %arg6: memref<32x96xbf16, #tpu.memory_space<vmem>>, %arg7: memref<1x96xf32, #tpu.memory_space<vmem>>, %arg8: memref<32x32xbf16, #tpu.memory_space<vmem>>, %arg9: memref<1x32xf32, #tpu.memory_space<vmem>>, %arg10: memref<1x8x32xf32, #tpu.memory_space<vmem>>) attributes {dimension_semantics = [#tpu.dimension_semantics<parallel>, #tpu.dimension_semantics<parallel>], iteration_bounds = array<i64: 2, 1>, scalar_prefetch = 0 : i64, scratch_operands = 0 : i64, tpu.core_type = #tpu.core_type<tc>, window_params = [{transform_indices = @transform_0, window_bounds = array<i64: 1, 8, 32>}, {transform_indices = @transform_1, window_bounds = array<i64: 1, 8, 8>}, {pipeline_mode = #tpu.pipeline_mode<synchronous>, transform_indices = @transform_2, window_bounds = array<i64: 1, 32>}, {pipeline_mode = #tpu.pipeline_mode<synchronous>, transform_indices = @transform_3, window_bounds = array<i64: 1, 32>}, {pipeline_mode = #tpu.pipeline_mode<synchronous>, transform_indices = @transform_4, window_bounds = array<i64: 32, 96>}, {pipeline_mode = #tpu.pipeline_mode<synchronous>, transform_indices = @transform_5, window_bounds = array<i64: 1, 96>}, {pipeline_mode = #tpu.pipeline_mode<synchronous>, transform_indices = @transform_6, window_bounds = array<i64: 32, 32>}, {pipeline_mode = #tpu.pipeline_mode<synchronous>, transform_indices = @transform_7, window_bounds = array<i64: 1, 32>}, {transform_indices = @transform_8, window_bounds = array<i64: 1, 8, 32>}]} {
    %c0 = arith.constant 0 : index
    %c0_0 = arith.constant 0 : index
    %c0_1 = arith.constant 0 : index
    %0 = vector.load %arg2[%c0, %c0_0, %c0_1] : memref<1x8x32xf32, #tpu.memory_space<vmem>>, vector<1x8x32xf32>
    %1 = vector.shape_cast %0 : vector<1x8x32xf32> to vector<8x32xf32>
    %c0_2 = arith.constant 0 : index
    %c0_3 = arith.constant 0 : index
    %2 = vector.load %arg4[%c0_2, %c0_3] : memref<1x32xf32, #tpu.memory_space<vmem>>, vector<1x32xf32>
    %c0_4 = arith.constant 0 : index
    %c0_5 = arith.constant 0 : index
    %3 = vector.load %arg5[%c0_4, %c0_5] : memref<1x32xf32, #tpu.memory_space<vmem>>, vector<1x32xf32>
    %cst = arith.constant dense<0.000000e+00> : vector<8xf32>
    %4 = vector.multi_reduction <add>, %1, %cst [1] : vector<8x32xf32> to vector<8xf32>
    %5 = vector.shape_cast %4 : vector<8xf32> to vector<8x1xf32>
    %cst_6 = arith.constant 3.200000e+01 : f32
    %6 = vector.broadcast %cst_6 : f32 to vector<8x1xf32>
    %7 = arith.divf %5, %6 : vector<8x1xf32>
    %8 = vector.broadcast %7 : vector<8x1xf32> to vector<8x32xf32>
    %9 = arith.subf %1, %8 : vector<8x32xf32>
    %10 = arith.mulf %9, %9 : vector<8x32xf32>
    %cst_7 = arith.constant dense<0.000000e+00> : vector<8xf32>
    %11 = vector.multi_reduction <add>, %10, %cst_7 [1] : vector<8x32xf32> to vector<8xf32>
    %12 = vector.shape_cast %11 : vector<8xf32> to vector<8x1xf32>
    %cst_8 = arith.constant 3.100000e+01 : f32
    %13 = vector.broadcast %cst_8 : f32 to vector<8x1xf32>
    %14 = arith.divf %12, %13 : vector<8x1xf32>
    %15 = math.sqrt %14 : vector<8x1xf32>
    %cst_9 = arith.constant 9.99999997E-7 : f32
    %16 = vector.broadcast %cst_9 : f32 to vector<8x1xf32>
    %17 = arith.addf %15, %16 : vector<8x1xf32>
    %18 = tpu.reciprocal %17 : vector<8x1xf32> -> vector<8x1xf32>
    %19 = vector.broadcast %7 : vector<8x1xf32> to vector<8x32xf32>
    %20 = arith.subf %1, %19 : vector<8x32xf32>
    %21 = vector.broadcast %2 : vector<1x32xf32> to vector<8x32xf32>
    %22 = arith.mulf %21, %20 : vector<8x32xf32>
    %23 = vector.broadcast %18 : vector<8x1xf32> to vector<8x32xf32>
    %24 = arith.mulf %22, %23 : vector<8x32xf32>
    %25 = vector.broadcast %3 : vector<1x32xf32> to vector<8x32xf32>
    %26 = arith.addf %24, %25 : vector<8x32xf32>
    %c0_10 = arith.constant 0 : index
    %c0_11 = arith.constant 0 : index
    %27 = vector.load %arg6[%c0_10, %c0_11] : memref<32x96xbf16, #tpu.memory_space<vmem>>, vector<32x96xbf16>
    %c0_12 = arith.constant 0 : index
    %c0_13 = arith.constant 0 : index
    %28 = vector.load %arg7[%c0_12, %c0_13] : memref<1x96xf32, #tpu.memory_space<vmem>>, vector<1x96xf32>
    %29 = vector.shape_cast %28 : vector<1x96xf32> to vector<96xf32>
    %30 = arith.truncf %26 : vector<8x32xf32> to vector<8x32xbf16>
    %31 = vector.extract_strided_slice %27 {offsets = [0, 32], sizes = [32, 64], strides = [1, 1]} : vector<32x96xbf16> to vector<32x64xbf16>
    %cst_14 = arith.constant dense<0.000000e+00> : vector<8x64xf32>
    %32 = tpu.matmul %30, %31, %cst_14 {dimension_numbers = #tpu.dot_dimension_numbers<[1], [0], [0], [1], [0, 0, 1, 1], [], []>} : vector<8x32xbf16>, vector<32x64xbf16>, vector<8x64xf32> -> vector<8x64xf32>
    %33 = vector.extract_strided_slice %29 {offsets = [32], sizes = [64], strides = [1]} : vector<96xf32> to vector<64xf32>
    %34 = vector.shape_cast %33 : vector<64xf32> to vector<1x64xf32>
    %35 = vector.broadcast %34 : vector<1x64xf32> to vector<8x64xf32>
    %36 = arith.addf %32, %35 : vector<8x64xf32>
    %37 = arith.truncf %26 : vector<8x32xf32> to vector<8x32xbf16>
    %38 = vector.extract_strided_slice %27 {offsets = [0, 0], sizes = [32, 32], strides = [1, 1]} : vector<32x96xbf16> to vector<32x32xbf16>
    %cst_15 = arith.constant dense<0.000000e+00> : vector<8x32xf32>
    %39 = tpu.matmul %37, %38, %cst_15 {dimension_numbers = #tpu.dot_dimension_numbers<[1], [0], [0], [1], [0, 0, 1, 1], [], []>} : vector<8x32xbf16>, vector<32x32xbf16>, vector<8x32xf32> -> vector<8x32xf32>
    %40 = vector.extract_strided_slice %29 {offsets = [0], sizes = [32], strides = [1]} : vector<96xf32> to vector<32xf32>
    %41 = vector.shape_cast %40 : vector<32xf32> to vector<1x32xf32>
    %42 = vector.broadcast %41 : vector<1x32xf32> to vector<8x32xf32>
    %43 = arith.addf %39, %42 : vector<8x32xf32>
    %cst_16 = arith.constant 0.353553385 : f32
    %44 = vector.broadcast %cst_16 : f32 to vector<8x32xf32>
    %45 = arith.mulf %43, %44 : vector<8x32xf32>
    %c0_17 = arith.constant 0 : index
    %c0_18 = arith.constant 0 : index
    %c0_19 = arith.constant 0 : index
    %46 = vector.load %arg3[%c0_17, %c0_18, %c0_19] : memref<1x8x8xf32, #tpu.memory_space<vmem>>, vector<1x8x8xf32>
    %47 = vector.shape_cast %46 : vector<1x8x8xf32> to vector<8x8xf32>
    %cst_20 = arith.constant 0.000000e+00 : f32
    %48 = vector.broadcast %cst_20 : f32 to vector<8x8xf32>
    %49 = arith.cmpf oeq, %47, %48 : vector<8x8xf32>
    %cst_21 = arith.constant -1.000000e+09 : f32
    %cst_22 = arith.constant 0.000000e+00 : f32
    %50 = vector.broadcast %cst_21 : f32 to vector<8x8xf32>
    %51 = vector.broadcast %cst_22 : f32 to vector<8x8xf32>
    %52 = arith.select %49, %50, %51 : vector<8x8xi1>, vector<8x8xf32>
    %53 = vector.extract_strided_slice %36 {offsets = [0, 0], sizes = [8, 32], strides = [1, 1]} : vector<8x64xf32> to vector<8x32xf32>
    %54 = vector.extract_strided_slice %36 {offsets = [0, 32], sizes = [8, 32], strides = [1, 1]} : vector<8x64xf32> to vector<8x32xf32>
    %55 = vector.shape_cast %45 : vector<8x32xf32> to vector<8x4x8xf32>
    %56 = arith.truncf %55 : vector<8x4x8xf32> to vector<8x4x8xbf16>
    %57 = vector.shape_cast %53 : vector<8x32xf32> to vector<8x4x8xf32>
    %58 = arith.truncf %57 : vector<8x4x8xf32> to vector<8x4x8xbf16>
    %59 = vector.shape_cast %54 : vector<8x32xf32> to vector<8x4x8xf32>
    %60 = arith.truncf %59 : vector<8x4x8xf32> to vector<8x4x8xbf16>
    "tpu.trace_start"() <{level = 10 : i32, message = "qhd,khd->hqk"}> : () -> ()
    %cst_23 = arith.constant dense<0.000000e+00> : vector<4x8x8xf32>
    %61 = tpu.matmul %56, %58, %cst_23 {dimension_numbers = #tpu.dot_dimension_numbers<[2], [2], [0], [0], [0, 1, 0, 0, 1, 0], [1], [1]>} : vector<8x4x8xbf16>, vector<8x4x8xbf16>, vector<4x8x8xf32> -> vector<4x8x8xf32>
    "tpu.trace_stop"() : () -> ()
    %62 = vector.shape_cast %52 : vector<8x8xf32> to vector<1x8x8xf32>
    %63 = vector.broadcast %62 : vector<1x8x8xf32> to vector<4x8x8xf32>
    %64 = arith.addf %61, %63 : vector<4x8x8xf32>
    %cst_24 = arith.constant dense<0xFF800000> : vector<4x8xf32>
    %65 = vector.multi_reduction <maximumf>, %64, %cst_24 [2] : vector<4x8x8xf32> to vector<4x8xf32>
    %66 = vector.shape_cast %65 : vector<4x8xf32> to vector<4x8x1xf32>
    %67 = vector.broadcast %66 : vector<4x8x1xf32> to vector<4x8x8xf32>
    %68 = arith.subf %64, %67 : vector<4x8x8xf32>
    %69 = math.exp %68 : vector<4x8x8xf32>
    %cst_25 = arith.constant dense<0.000000e+00> : vector<4x8xf32>
    %70 = vector.multi_reduction <add>, %69, %cst_25 [2] : vector<4x8x8xf32> to vector<4x8xf32>
    %71 = vector.shape_cast %70 : vector<4x8xf32> to vector<4x8x1xf32>
    %72 = tpu.reciprocal %71 : vector<4x8x1xf32> -> vector<4x8x1xf32>
    %73 = vector.broadcast %72 : vector<4x8x1xf32> to vector<4x8x8xf32>
    %74 = arith.mulf %69, %73 : vector<4x8x8xf32>
    %75 = arith.truncf %74 : vector<4x8x8xf32> to vector<4x8x8xbf16>
    "tpu.trace_start"() <{level = 10 : i32, message = "hqk,khd->qhd"}> : () -> ()
    %cst_26 = arith.constant dense<0.000000e+00> : vector<4x8x8xf32>
    %76 = tpu.matmul %60, %75, %cst_26 {dimension_numbers = #tpu.dot_dimension_numbers<[0], [2], [2], [1], [0, 1, 0, 2, 1, 1], [1], [0]>} : vector<8x4x8xbf16>, vector<4x8x8xbf16>, vector<4x8x8xf32> -> vector<4x8x8xf32>
    %77 = tpu.transpose %76, [2, 0, 1] : vector<4x8x8xf32> -> vector<8x4x8xf32>
    "tpu.trace_stop"() : () -> ()
    %78 = vector.shape_cast %77 : vector<8x4x8xf32> to vector<8x32xf32>
    %79 = arith.truncf %78 : vector<8x32xf32> to vector<8x32xbf16>
    %c0_27 = arith.constant 0 : index
    %c0_28 = arith.constant 0 : index
    %80 = vector.load %arg8[%c0_27, %c0_28] : memref<32x32xbf16, #tpu.memory_space<vmem>>, vector<32x32xbf16>
    %cst_29 = arith.constant dense<0.000000e+00> : vector<8x32xf32>
    %81 = tpu.matmul %79, %80, %cst_29 {dimension_numbers = #tpu.dot_dimension_numbers<[1], [0], [0], [1], [0, 0, 1, 1], [], []>} : vector<8x32xbf16>, vector<32x32xbf16>, vector<8x32xf32> -> vector<8x32xf32>
    %c0_30 = arith.constant 0 : index
    %c0_31 = arith.constant 0 : index
    %82 = vector.load %arg9[%c0_30, %c0_31] : memref<1x32xf32, #tpu.memory_space<vmem>>, vector<1x32xf32>
    %83 = vector.broadcast %82 : vector<1x32xf32> to vector<8x32xf32>
    %84 = arith.addf %81, %83 : vector<8x32xf32>
    %85 = arith.addf %1, %84 : vector<8x32xf32>
    %c0_32 = arith.constant 0 : index
    %c0_33 = arith.constant 0 : index
    %c0_34 = arith.constant 0 : index
    %86 = vector.load %arg10[%c0_32, %c0_33, %c0_34] : memref<1x8x32xf32, #tpu.memory_space<vmem>>, vector<1x8x32xf32>
    %87 = vector.shape_cast %86 : vector<1x8x32xf32> to vector<8x32xf32>
    %88 = vector.shape_cast %85 : vector<8x32xf32> to vector<1x8x32xf32>
    tpu.vector_store %arg10[%c0_32, %c0_33, %c0_34], %88 {strides = array<i32>} : memref<1x8x32xf32, #tpu.memory_space<vmem>>, vector<1x8x32xf32>,
    return
  }
  func.func @transform_0(%arg0: i32, %arg1: i32) -> (i32, i32, i32) {
    %c0_i32 = arith.constant 0 : i32
    %c0_i32_0 = arith.constant 0 : i32
    %c0_i32_1 = arith.constant 0 : i32
    return %arg0, %c0_i32, %c0_i32_0 : i32, i32, i32
  }
  func.func @transform_1(%arg0: i32, %arg1: i32) -> (i32, i32, i32) {
    %c0_i32 = arith.constant 0 : i32
    %c0_i32_0 = arith.constant 0 : i32
    %c0_i32_1 = arith.constant 0 : i32
    return %c0_i32, %arg1, %c0_i32_0 : i32, i32, i32
  }
  func.func @transform_2(%arg0: i32, %arg1: i32) -> (i32, i32) {
    %c0_i32 = arith.constant 0 : i32
    %c0_i32_0 = arith.constant 0 : i32
    %c0_i32_1 = arith.constant 0 : i32
    return %c0_i32, %c0_i32_0 : i32, i32
  }
  func.func @transform_3(%arg0: i32, %arg1: i32) -> (i32, i32) {
    %c0_i32 = arith.constant 0 : i32
    %c0_i32_0 = arith.constant 0 : i32
    %c0_i32_1 = arith.constant 0 : i32
    return %c0_i32, %c0_i32_0 : i32, i32
  }
  func.func @transform_4(%arg0: i32, %arg1: i32) -> (i32, i32) {
    %c0_i32 = arith.constant 0 : i32
    %c0_i32_0 = arith.constant 0 : i32
    %c0_i32_1 = arith.constant 0 : i32
    return %c0_i32, %c0_i32_0 : i32, i32
  }
  func.func @transform_5(%arg0: i32, %arg1: i32) -> (i32, i32) {
    %c0_i32 = arith.constant 0 : i32
    %c0_i32_0 = arith.constant 0 : i32
    %c0_i32_1 = arith.constant 0 : i32
    return %c0_i32, %c0_i32_0 : i32, i32
  }
  func.func @transform_6(%arg0: i32, %arg1: i32) -> (i32, i32) {
    %c0_i32 = arith.constant 0 : i32
    %c0_i32_0 = arith.constant 0 : i32
    %c0_i32_1 = arith.constant 0 : i32
    return %c0_i32, %c0_i32_0 : i32, i32
  }
  func.func @transform_7(%arg0: i32, %arg1: i32) -> (i32, i32) {
    %c0_i32 = arith.constant 0 : i32
    %c0_i32_0 = arith.constant 0 : i32
    %c0_i32_1 = arith.constant 0 : i32
    return %c0_i32, %c0_i32_0 : i32, i32
  }
  func.func @transform_8(%arg0: i32, %arg1: i32) -> (i32, i32, i32) {
    %c0_i32 = arith.constant 0 : i32
    %c0_i32_0 = arith.constant 0 : i32
    return %arg0, %arg1, %c0_i32 : i32, i32, i32
  }
}

module attributes {stable_mosaic.version = 11 : i64} {
  func.func @ln_ffn_block_kernel(%arg0: i32, %arg1: memref<16x32xf32, #tpu.memory_space<vmem>>, %arg2: memref<1x32xf32, #tpu.memory_space<vmem>>, %arg3: memref<1x32xf32, #tpu.memory_space<vmem>>, %arg4: memref<32x64xbf16, #tpu.memory_space<vmem>>, %arg5: memref<1x64xf32, #tpu.memory_space<vmem>>, %arg6: memref<64x32xbf16, #tpu.memory_space<vmem>>, %arg7: memref<1x32xf32, #tpu.memory_space<vmem>>, %arg8: memref<16x32xf32, #tpu.memory_space<vmem>>) attributes {dimension_semantics = [#tpu.dimension_semantics<parallel>], iteration_bounds = array<i64: 1>, scalar_prefetch = 0 : i64, scratch_operands = 0 : i64, tpu.core_type = #tpu.core_type<tc>, window_params = [{transform_indices = @transform_0, window_bounds = array<i64: 16, 32>}, {pipeline_mode = #tpu.pipeline_mode<synchronous>, transform_indices = @transform_1, window_bounds = array<i64: 1, 32>}, {pipeline_mode = #tpu.pipeline_mode<synchronous>, transform_indices = @transform_2, window_bounds = array<i64: 1, 32>}, {pipeline_mode = #tpu.pipeline_mode<synchronous>, transform_indices = @transform_3, window_bounds = array<i64: 32, 64>}, {pipeline_mode = #tpu.pipeline_mode<synchronous>, transform_indices = @transform_4, window_bounds = array<i64: 1, 64>}, {pipeline_mode = #tpu.pipeline_mode<synchronous>, transform_indices = @transform_5, window_bounds = array<i64: 64, 32>}, {pipeline_mode = #tpu.pipeline_mode<synchronous>, transform_indices = @transform_6, window_bounds = array<i64: 1, 32>}, {transform_indices = @transform_7, window_bounds = array<i64: 16, 32>}]} {
    %c0 = arith.constant 0 : index
    %c0_0 = arith.constant 0 : index
    %0 = vector.load %arg1[%c0, %c0_0] : memref<16x32xf32, #tpu.memory_space<vmem>>, vector<16x32xf32>
    %c0_1 = arith.constant 0 : index
    %c0_2 = arith.constant 0 : index
    %1 = vector.load %arg2[%c0_1, %c0_2] : memref<1x32xf32, #tpu.memory_space<vmem>>, vector<1x32xf32>
    %c0_3 = arith.constant 0 : index
    %c0_4 = arith.constant 0 : index
    %2 = vector.load %arg3[%c0_3, %c0_4] : memref<1x32xf32, #tpu.memory_space<vmem>>, vector<1x32xf32>
    %cst = arith.constant dense<0.000000e+00> : vector<16xf32>
    %3 = vector.multi_reduction <add>, %0, %cst [1] : vector<16x32xf32> to vector<16xf32>
    %4 = vector.shape_cast %3 : vector<16xf32> to vector<16x1xf32>
    %cst_5 = arith.constant 3.200000e+01 : f32
    %5 = vector.broadcast %cst_5 : f32 to vector<16x1xf32>
    %6 = arith.divf %4, %5 : vector<16x1xf32>
    %7 = vector.broadcast %6 : vector<16x1xf32> to vector<16x32xf32>
    %8 = arith.subf %0, %7 : vector<16x32xf32>
    %9 = arith.mulf %8, %8 : vector<16x32xf32>
    %cst_6 = arith.constant dense<0.000000e+00> : vector<16xf32>
    %10 = vector.multi_reduction <add>, %9, %cst_6 [1] : vector<16x32xf32> to vector<16xf32>
    %11 = vector.shape_cast %10 : vector<16xf32> to vector<16x1xf32>
    %cst_7 = arith.constant 3.100000e+01 : f32
    %12 = vector.broadcast %cst_7 : f32 to vector<16x1xf32>
    %13 = arith.divf %11, %12 : vector<16x1xf32>
    %14 = math.sqrt %13 : vector<16x1xf32>
    %cst_8 = arith.constant 9.99999997E-7 : f32
    %15 = vector.broadcast %cst_8 : f32 to vector<16x1xf32>
    %16 = arith.addf %14, %15 : vector<16x1xf32>
    %17 = tpu.reciprocal %16 : vector<16x1xf32> -> vector<16x1xf32>
    %18 = vector.broadcast %6 : vector<16x1xf32> to vector<16x32xf32>
    %19 = arith.subf %0, %18 : vector<16x32xf32>
    %20 = vector.broadcast %1 : vector<1x32xf32> to vector<16x32xf32>
    %21 = arith.mulf %20, %19 : vector<16x32xf32>
    %22 = vector.broadcast %17 : vector<16x1xf32> to vector<16x32xf32>
    %23 = arith.mulf %21, %22 : vector<16x32xf32>
    %24 = vector.broadcast %2 : vector<1x32xf32> to vector<16x32xf32>
    %25 = arith.addf %23, %24 : vector<16x32xf32>
    %26 = arith.truncf %25 : vector<16x32xf32> to vector<16x32xbf16>
    %c0_9 = arith.constant 0 : index
    %c0_10 = arith.constant 0 : index
    %27 = vector.load %arg4[%c0_9, %c0_10] : memref<32x64xbf16, #tpu.memory_space<vmem>>, vector<32x64xbf16>
    %cst_11 = arith.constant dense<0.000000e+00> : vector<16x64xf32>
    %28 = tpu.matmul %26, %27, %cst_11 {dimension_numbers = #tpu.dot_dimension_numbers<[1], [0], [0], [1], [0, 0, 1, 1], [], []>} : vector<16x32xbf16>, vector<32x64xbf16>, vector<16x64xf32> -> vector<16x64xf32>
    %c0_12 = arith.constant 0 : index
    %c0_13 = arith.constant 0 : index
    %29 = vector.load %arg5[%c0_12, %c0_13] : memref<1x64xf32, #tpu.memory_space<vmem>>, vector<1x64xf32>
    %30 = vector.broadcast %29 : vector<1x64xf32> to vector<16x64xf32>
    %31 = arith.addf %28, %30 : vector<16x64xf32>
    %cst_14 = arith.constant 0.000000e+00 : f32
    %32 = vector.broadcast %cst_14 : f32 to vector<16x64xf32>
    %33 = arith.maximumf %31, %32 : vector<16x64xf32>
    %34 = arith.truncf %33 : vector<16x64xf32> to vector<16x64xbf16>
    %c0_15 = arith.constant 0 : index
    %c0_16 = arith.constant 0 : index
    %35 = vector.load %arg6[%c0_15, %c0_16] : memref<64x32xbf16, #tpu.memory_space<vmem>>, vector<64x32xbf16>
    %cst_17 = arith.constant dense<0.000000e+00> : vector<16x32xf32>
    %36 = tpu.matmul %34, %35, %cst_17 {dimension_numbers = #tpu.dot_dimension_numbers<[1], [0], [0], [1], [0, 0, 1, 1], [], []>} : vector<16x64xbf16>, vector<64x32xbf16>, vector<16x32xf32> -> vector<16x32xf32>
    %37 = arith.addf %0, %36 : vector<16x32xf32>
    %c0_18 = arith.constant 0 : index
    %c0_19 = arith.constant 0 : index
    %38 = vector.load %arg7[%c0_18, %c0_19] : memref<1x32xf32, #tpu.memory_space<vmem>>, vector<1x32xf32>
    %39 = vector.broadcast %38 : vector<1x32xf32> to vector<16x32xf32>
    %40 = arith.addf %37, %39 : vector<16x32xf32>
    %c0_20 = arith.constant 0 : index
    %c0_21 = arith.constant 0 : index
    %41 = vector.load %arg8[%c0_20, %c0_21] : memref<16x32xf32, #tpu.memory_space<vmem>>, vector<16x32xf32>
    tpu.vector_store %arg8[%c0_20, %c0_21], %40 {strides = array<i32>} : memref<16x32xf32, #tpu.memory_space<vmem>>, vector<16x32xf32>,
    return
  }
  func.func @transform_0(%arg0: i32) -> (i32, i32) {
    %c0_i32 = arith.constant 0 : i32
    %c0_i32_0 = arith.constant 0 : i32
    return %arg0, %c0_i32 : i32, i32
  }
  func.func @transform_1(%arg0: i32) -> (i32, i32) {
    %c0_i32 = arith.constant 0 : i32
    %c0_i32_0 = arith.constant 0 : i32
    %c0_i32_1 = arith.constant 0 : i32
    return %c0_i32, %c0_i32_0 : i32, i32
  }
  func.func @transform_2(%arg0: i32) -> (i32, i32) {
    %c0_i32 = arith.constant 0 : i32
    %c0_i32_0 = arith.constant 0 : i32
    %c0_i32_1 = arith.constant 0 : i32
    return %c0_i32, %c0_i32_0 : i32, i32
  }
  func.func @transform_3(%arg0: i32) -> (i32, i32) {
    %c0_i32 = arith.constant 0 : i32
    %c0_i32_0 = arith.constant 0 : i32
    %c0_i32_1 = arith.constant 0 : i32
    return %c0_i32, %c0_i32_0 : i32, i32
  }
  func.func @transform_4(%arg0: i32) -> (i32, i32) {
    %c0_i32 = arith.constant 0 : i32
    %c0_i32_0 = arith.constant 0 : i32
    %c0_i32_1 = arith.constant 0 : i32
    return %c0_i32, %c0_i32_0 : i32, i32
  }
  func.func @transform_5(%arg0: i32) -> (i32, i32) {
    %c0_i32 = arith.constant 0 : i32
    %c0_i32_0 = arith.constant 0 : i32
    %c0_i32_1 = arith.constant 0 : i32
    return %c0_i32, %c0_i32_0 : i32, i32
  }
  func.func @transform_6(%arg0: i32) -> (i32, i32) {
    %c0_i32 = arith.constant 0 : i32
    %c0_i32_0 = arith.constant 0 : i32
    %c0_i32_1 = arith.constant 0 : i32
    return %c0_i32, %c0_i32_0 : i32, i32
  }
  func.func @transform_7(%arg0: i32) -> (i32, i32) {
    %c0_i32 = arith.constant 0 : i32
    %c0_i32_0 = arith.constant 0 : i32
    return %arg0, %c0_i32 : i32, i32
  }
}

module attributes {stable_mosaic.version = 11 : i64} {
  func.func @self_attn_block_kernel(%arg0: i32, %arg1: i32, %arg2: memref<1x8x32xf32, #tpu.memory_space<vmem>>, %arg3: memref<1x8x8xf32, #tpu.memory_space<vmem>>, %arg4: memref<1x32xf32, #tpu.memory_space<vmem>>, %arg5: memref<1x32xf32, #tpu.memory_space<vmem>>, %arg6: memref<32x96xbf16, #tpu.memory_space<vmem>>, %arg7: memref<1x96xf32, #tpu.memory_space<vmem>>, %arg8: memref<32x32xbf16, #tpu.memory_space<vmem>>, %arg9: memref<1x32xf32, #tpu.memory_space<vmem>>, %arg10: memref<1x8x32xf32, #tpu.memory_space<vmem>>) attributes {dimension_semantics = [#tpu.dimension_semantics<parallel>, #tpu.dimension_semantics<parallel>], iteration_bounds = array<i64: 2, 1>, scalar_prefetch = 0 : i64, scratch_operands = 0 : i64, tpu.core_type = #tpu.core_type<tc>, window_params = [{transform_indices = @transform_0, window_bounds = array<i64: 1, 8, 32>}, {transform_indices = @transform_1, window_bounds = array<i64: 1, 8, 8>}, {pipeline_mode = #tpu.pipeline_mode<synchronous>, transform_indices = @transform_2, window_bounds = array<i64: 1, 32>}, {pipeline_mode = #tpu.pipeline_mode<synchronous>, transform_indices = @transform_3, window_bounds = array<i64: 1, 32>}, {pipeline_mode = #tpu.pipeline_mode<synchronous>, transform_indices = @transform_4, window_bounds = array<i64: 32, 96>}, {pipeline_mode = #tpu.pipeline_mode<synchronous>, transform_indices = @transform_5, window_bounds = array<i64: 1, 96>}, {pipeline_mode = #tpu.pipeline_mode<synchronous>, transform_indices = @transform_6, window_bounds = array<i64: 32, 32>}, {pipeline_mode = #tpu.pipeline_mode<synchronous>, transform_indices = @transform_7, window_bounds = array<i64: 1, 32>}, {transform_indices = @transform_8, window_bounds = array<i64: 1, 8, 32>}]} {
    %c0 = arith.constant 0 : index
    %c0_0 = arith.constant 0 : index
    %c0_1 = arith.constant 0 : index
    %0 = vector.load %arg2[%c0, %c0_0, %c0_1] : memref<1x8x32xf32, #tpu.memory_space<vmem>>, vector<1x8x32xf32>
    %1 = vector.shape_cast %0 : vector<1x8x32xf32> to vector<8x32xf32>
    %c0_2 = arith.constant 0 : index
    %c0_3 = arith.constant 0 : index
    %2 = vector.load %arg4[%c0_2, %c0_3] : memref<1x32xf32, #tpu.memory_space<vmem>>, vector<1x32xf32>
    %c0_4 = arith.constant 0 : index
    %c0_5 = arith.constant 0 : index
    %3 = vector.load %arg5[%c0_4, %c0_5] : memref<1x32xf32, #tpu.memory_space<vmem>>, vector<1x32xf32>
    %cst = arith.constant dense<0.000000e+00> : vector<8xf32>
    %4 = vector.multi_reduction <add>, %1, %cst [1] : vector<8x32xf32> to vector<8xf32>
    %5 = vector.shape_cast %4 : vector<8xf32> to vector<8x1xf32>
    %cst_6 = arith.constant 3.200000e+01 : f32
    %6 = vector.broadcast %cst_6 : f32 to vector<8x1xf32>
    %7 = arith.divf %5, %6 : vector<8x1xf32>
    %8 = vector.broadcast %7 : vector<8x1xf32> to vector<8x32xf32>
    %9 = arith.subf %1, %8 : vector<8x32xf32>
    %10 = arith.mulf %9, %9 : vector<8x32xf32>
    %cst_7 = arith.constant dense<0.000000e+00> : vector<8xf32>
    %11 = vector.multi_reduction <add>, %10, %cst_7 [1] : vector<8x32xf32> to vector<8xf32>
    %12 = vector.shape_cast %11 : vector<8xf32> to vector<8x1xf32>
    %cst_8 = arith.constant 3.100000e+01 : f32
    %13 = vector.broadcast %cst_8 : f32 to vector<8x1xf32>
    %14 = arith.divf %12, %13 : vector<8x1xf32>
    %15 = math.sqrt %14 : vector<8x1xf32>
    %cst_9 = arith.constant 9.99999997E-7 : f32
    %16 = vector.broadcast %cst_9 : f32 to vector<8x1xf32>
    %17 = arith.addf %15, %16 : vector<8x1xf32>
    %18 = tpu.reciprocal %17 : vector<8x1xf32> -> vector<8x1xf32>
    %19 = vector.broadcast %7 : vector<8x1xf32> to vector<8x32xf32>
    %20 = arith.subf %1, %19 : vector<8x32xf32>
    %21 = vector.broadcast %2 : vector<1x32xf32> to vector<8x32xf32>
    %22 = arith.mulf %21, %20 : vector<8x32xf32>
    %23 = vector.broadcast %18 : vector<8x1xf32> to vector<8x32xf32>
    %24 = arith.mulf %22, %23 : vector<8x32xf32>
    %25 = vector.broadcast %3 : vector<1x32xf32> to vector<8x32xf32>
    %26 = arith.addf %24, %25 : vector<8x32xf32>
    %c0_10 = arith.constant 0 : index
    %c0_11 = arith.constant 0 : index
    %27 = vector.load %arg6[%c0_10, %c0_11] : memref<32x96xbf16, #tpu.memory_space<vmem>>, vector<32x96xbf16>
    %c0_12 = arith.constant 0 : index
    %c0_13 = arith.constant 0 : index
    %28 = vector.load %arg7[%c0_12, %c0_13] : memref<1x96xf32, #tpu.memory_space<vmem>>, vector<1x96xf32>
    %29 = vector.shape_cast %28 : vector<1x96xf32> to vector<96xf32>
    %30 = arith.truncf %26 : vector<8x32xf32> to vector<8x32xbf16>
    %31 = vector.extract_strided_slice %27 {offsets = [0, 32], sizes = [32, 64], strides = [1, 1]} : vector<32x96xbf16> to vector<32x64xbf16>
    %cst_14 = arith.constant dense<0.000000e+00> : vector<8x64xf32>
    %32 = tpu.matmul %30, %31, %cst_14 {dimension_numbers = #tpu.dot_dimension_numbers<[1], [0], [0], [1], [0, 0, 1, 1], [], []>} : vector<8x32xbf16>, vector<32x64xbf16>, vector<8x64xf32> -> vector<8x64xf32>
    %33 = vector.extract_strided_slice %29 {offsets = [32], sizes = [64], strides = [1]} : vector<96xf32> to vector<64xf32>
    %34 = vector.shape_cast %33 : vector<64xf32> to vector<1x64xf32>
    %35 = vector.broadcast %34 : vector<1x64xf32> to vector<8x64xf32>
    %36 = arith.addf %32, %35 : vector<8x64xf32>
    %37 = arith.truncf %26 : vector<8x32xf32> to vector<8x32xbf16>
    %38 = vector.extract_strided_slice %27 {offsets = [0, 0], sizes = [32, 32], strides = [1, 1]} : vector<32x96xbf16> to vector<32x32xbf16>
    %cst_15 = arith.constant dense<0.000000e+00> : vector<8x32xf32>
    %39 = tpu.matmul %37, %38, %cst_15 {dimension_numbers = #tpu.dot_dimension_numbers<[1], [0], [0], [1], [0, 0, 1, 1], [], []>} : vector<8x32xbf16>, vector<32x32xbf16>, vector<8x32xf32> -> vector<8x32xf32>
    %40 = vector.extract_strided_slice %29 {offsets = [0], sizes = [32], strides = [1]} : vector<96xf32> to vector<32xf32>
    %41 = vector.shape_cast %40 : vector<32xf32> to vector<1x32xf32>
    %42 = vector.broadcast %41 : vector<1x32xf32> to vector<8x32xf32>
    %43 = arith.addf %39, %42 : vector<8x32xf32>
    %cst_16 = arith.constant 0.353553385 : f32
    %44 = vector.broadcast %cst_16 : f32 to vector<8x32xf32>
    %45 = arith.mulf %43, %44 : vector<8x32xf32>
    %c0_17 = arith.constant 0 : index
    %c0_18 = arith.constant 0 : index
    %c0_19 = arith.constant 0 : index
    %46 = vector.load %arg3[%c0_17, %c0_18, %c0_19] : memref<1x8x8xf32, #tpu.memory_space<vmem>>, vector<1x8x8xf32>
    %47 = vector.shape_cast %46 : vector<1x8x8xf32> to vector<8x8xf32>
    %cst_20 = arith.constant 0.000000e+00 : f32
    %48 = vector.broadcast %cst_20 : f32 to vector<8x8xf32>
    %49 = arith.cmpf oeq, %47, %48 : vector<8x8xf32>
    %cst_21 = arith.constant -1.000000e+09 : f32
    %cst_22 = arith.constant 0.000000e+00 : f32
    %50 = vector.broadcast %cst_21 : f32 to vector<8x8xf32>
    %51 = vector.broadcast %cst_22 : f32 to vector<8x8xf32>
    %52 = arith.select %49, %50, %51 : vector<8x8xi1>, vector<8x8xf32>
    %53 = vector.extract_strided_slice %36 {offsets = [0, 0], sizes = [8, 32], strides = [1, 1]} : vector<8x64xf32> to vector<8x32xf32>
    %54 = vector.extract_strided_slice %36 {offsets = [0, 32], sizes = [8, 32], strides = [1, 1]} : vector<8x64xf32> to vector<8x32xf32>
    %55 = vector.shape_cast %45 : vector<8x32xf32> to vector<8x4x8xf32>
    %56 = arith.truncf %55 : vector<8x4x8xf32> to vector<8x4x8xbf16>
    %57 = vector.shape_cast %53 : vector<8x32xf32> to vector<8x4x8xf32>
    %58 = arith.truncf %57 : vector<8x4x8xf32> to vector<8x4x8xbf16>
    %59 = vector.shape_cast %54 : vector<8x32xf32> to vector<8x4x8xf32>
    %60 = arith.truncf %59 : vector<8x4x8xf32> to vector<8x4x8xbf16>
    "tpu.trace_start"() <{level = 10 : i32, message = "qhd,khd->hqk"}> : () -> ()
    %cst_23 = arith.constant dense<0.000000e+00> : vector<4x8x8xf32>
    %61 = tpu.matmul %56, %58, %cst_23 {dimension_numbers = #tpu.dot_dimension_numbers<[2], [2], [0], [0], [0, 1, 0, 0, 1, 0], [1], [1]>} : vector<8x4x8xbf16>, vector<8x4x8xbf16>, vector<4x8x8xf32> -> vector<4x8x8xf32>
    "tpu.trace_stop"() : () -> ()
    %62 = vector.shape_cast %52 : vector<8x8xf32> to vector<1x8x8xf32>
    %63 = vector.broadcast %62 : vector<1x8x8xf32> to vector<4x8x8xf32>
    %64 = arith.addf %61, %63 : vector<4x8x8xf32>
    %cst_24 = arith.constant dense<0xFF800000> : vector<4x8xf32>
    %65 = vector.multi_reduction <maximumf>, %64, %cst_24 [2] : vector<4x8x8xf32> to vector<4x8xf32>
    %66 = vector.shape_cast %65 : vector<4x8xf32> to vector<4x8x1xf32>
    %67 = vector.broadcast %66 : vector<4x8x1xf32> to vector<4x8x8xf32>
    %68 = arith.subf %64, %67 : vector<4x8x8xf32>
    %69 = math.exp %68 : vector<4x8x8xf32>
    %cst_25 = arith.constant dense<0.000000e+00> : vector<4x8xf32>
    %70 = vector.multi_reduction <add>, %69, %cst_25 [2] : vector<4x8x8xf32> to vector<4x8xf32>
    %71 = vector.shape_cast %70 : vector<4x8xf32> to vector<4x8x1xf32>
    %72 = tpu.reciprocal %71 : vector<4x8x1xf32> -> vector<4x8x1xf32>
    %73 = vector.broadcast %72 : vector<4x8x1xf32> to vector<4x8x8xf32>
    %74 = arith.mulf %69, %73 : vector<4x8x8xf32>
    %75 = arith.truncf %74 : vector<4x8x8xf32> to vector<4x8x8xbf16>
    "tpu.trace_start"() <{level = 10 : i32, message = "hqk,khd->qhd"}> : () -> ()
    %cst_26 = arith.constant dense<0.000000e+00> : vector<4x8x8xf32>
    %76 = tpu.matmul %60, %75, %cst_26 {dimension_numbers = #tpu.dot_dimension_numbers<[0], [2], [2], [1], [0, 1, 0, 2, 1, 1], [1], [0]>} : vector<8x4x8xbf16>, vector<4x8x8xbf16>, vector<4x8x8xf32> -> vector<4x8x8xf32>
    %77 = tpu.transpose %76, [2, 0, 1] : vector<4x8x8xf32> -> vector<8x4x8xf32>
    "tpu.trace_stop"() : () -> ()
    %78 = vector.shape_cast %77 : vector<8x4x8xf32> to vector<8x32xf32>
    %79 = arith.truncf %78 : vector<8x32xf32> to vector<8x32xbf16>
    %c0_27 = arith.constant 0 : index
    %c0_28 = arith.constant 0 : index
    %80 = vector.load %arg8[%c0_27, %c0_28] : memref<32x32xbf16, #tpu.memory_space<vmem>>, vector<32x32xbf16>
    %cst_29 = arith.constant dense<0.000000e+00> : vector<8x32xf32>
    %81 = tpu.matmul %79, %80, %cst_29 {dimension_numbers = #tpu.dot_dimension_numbers<[1], [0], [0], [1], [0, 0, 1, 1], [], []>} : vector<8x32xbf16>, vector<32x32xbf16>, vector<8x32xf32> -> vector<8x32xf32>
    %c0_30 = arith.constant 0 : index
    %c0_31 = arith.constant 0 : index
    %82 = vector.load %arg9[%c0_30, %c0_31] : memref<1x32xf32, #tpu.memory_space<vmem>>, vector<1x32xf32>
    %83 = vector.broadcast %82 : vector<1x32xf32> to vector<8x32xf32>
    %84 = arith.addf %81, %83 : vector<8x32xf32>
    %85 = arith.addf %1, %84 : vector<8x32xf32>
    %c0_32 = arith.constant 0 : index
    %c0_33 = arith.constant 0 : index
    %c0_34 = arith.constant 0 : index
    %86 = vector.load %arg10[%c0_32, %c0_33, %c0_34] : memref<1x8x32xf32, #tpu.memory_space<vmem>>, vector<1x8x32xf32>
    %87 = vector.shape_cast %86 : vector<1x8x32xf32> to vector<8x32xf32>
    %88 = vector.shape_cast %85 : vector<8x32xf32> to vector<1x8x32xf32>
    tpu.vector_store %arg10[%c0_32, %c0_33, %c0_34], %88 {strides = array<i32>} : memref<1x8x32xf32, #tpu.memory_space<vmem>>, vector<1x8x32xf32>,
    return
  }
  func.func @transform_0(%arg0: i32, %arg1: i32) -> (i32, i32, i32) {
    %c0_i32 = arith.constant 0 : i32
    %c0_i32_0 = arith.constant 0 : i32
    %c0_i32_1 = arith.constant 0 : i32
    return %arg0, %c0_i32, %c0_i32_0 : i32, i32, i32
  }
  func.func @transform_1(%arg0: i32, %arg1: i32) -> (i32, i32, i32) {
    %c0_i32 = arith.constant 0 : i32
    %c0_i32_0 = arith.constant 0 : i32
    %c0_i32_1 = arith.constant 0 : i32
    return %c0_i32, %arg1, %c0_i32_0 : i32, i32, i32
  }
  func.func @transform_2(%arg0: i32, %arg1: i32) -> (i32, i32) {
    %c0_i32 = arith.constant 0 : i32
    %c0_i32_0 = arith.constant 0 : i32
    %c0_i32_1 = arith.constant 0 : i32
    return %c0_i32, %c0_i32_0 : i32, i32
  }
  func.func @transform_3(%arg0: i32, %arg1: i32) -> (i32, i32) {
    %c0_i32 = arith.constant 0 : i32
    %c0_i32_0 = arith.constant 0 : i32
    %c0_i32_1 = arith.constant 0 : i32
    return %c0_i32, %c0_i32_0 : i32, i32
  }
  func.func @transform_4(%arg0: i32, %arg1: i32) -> (i32, i32) {
    %c0_i32 = arith.constant 0 : i32
    %c0_i32_0 = arith.constant 0 : i32
    %c0_i32_1 = arith.constant 0 : i32
    return %c0_i32, %c0_i32_0 : i32, i32
  }
  func.func @transform_5(%arg0: i32, %arg1: i32) -> (i32, i32) {
    %c0_i32 = arith.constant 0 : i32
    %c0_i32_0 = arith.constant 0 : i32
    %c0_i32_1 = arith.constant 0 : i32
    return %c0_i32, %c0_i32_0 : i32, i32
  }
  func.func @transform_6(%arg0: i32, %arg1: i32) -> (i32, i32) {
    %c0_i32 = arith.constant 0 : i32
    %c0_i32_0 = arith.constant 0 : i32
    %c0_i32_1 = arith.constant 0 : i32
    return %c0_i32, %c0_i32_0 : i32, i32
  }
  func.func @transform_7(%arg0: i32, %arg1: i32) -> (i32, i32) {
    %c0_i32 = arith.constant 0 : i32
    %c0_i32_0 = arith.constant 0 : i32
    %c0_i32_1 = arith.constant 0 : i32
    return %c0_i32, %c0_i32_0 : i32, i32
  }
  func.func @transform_8(%arg0: i32, %arg1: i32) -> (i32, i32, i32) {
    %c0_i32 = arith.constant 0 : i32
    %c0_i32_0 = arith.constant 0 : i32
    return %arg0, %arg1, %c0_i32 : i32, i32, i32
  }
}

module attributes {stable_mosaic.version = 11 : i64} {
  func.func @cross_attn_block_kernel(%arg0: i32, %arg1: i32, %arg2: memref<1x8x32xf32, #tpu.memory_space<vmem>>, %arg3: memref<1x8x32xf32, #tpu.memory_space<vmem>>, %arg4: memref<1x1x8xf32, #tpu.memory_space<vmem>>, %arg5: memref<1x32xf32, #tpu.memory_space<vmem>>, %arg6: memref<1x32xf32, #tpu.memory_space<vmem>>, %arg7: memref<32x32xbf16, #tpu.memory_space<vmem>>, %arg8: memref<1x32xf32, #tpu.memory_space<vmem>>, %arg9: memref<32x64xbf16, #tpu.memory_space<vmem>>, %arg10: memref<1x64xf32, #tpu.memory_space<vmem>>, %arg11: memref<32x32xbf16, #tpu.memory_space<vmem>>, %arg12: memref<1x32xf32, #tpu.memory_space<vmem>>, %arg13: memref<1x8x32xf32, #tpu.memory_space<vmem>>) attributes {dimension_semantics = [#tpu.dimension_semantics<parallel>, #tpu.dimension_semantics<parallel>], iteration_bounds = array<i64: 2, 1>, scalar_prefetch = 0 : i64, scratch_operands = 0 : i64, tpu.core_type = #tpu.core_type<tc>, window_params = [{transform_indices = @transform_0, window_bounds = array<i64: 1, 8, 32>}, {transform_indices = @transform_1, window_bounds = array<i64: 1, 8, 32>}, {transform_indices = @transform_2, window_bounds = array<i64: 1, 1, 8>}, {pipeline_mode = #tpu.pipeline_mode<synchronous>, transform_indices = @transform_3, window_bounds = array<i64: 1, 32>}, {pipeline_mode = #tpu.pipeline_mode<synchronous>, transform_indices = @transform_4, window_bounds = array<i64: 1, 32>}, {pipeline_mode = #tpu.pipeline_mode<synchronous>, transform_indices = @transform_5, window_bounds = array<i64: 32, 32>}, {pipeline_mode = #tpu.pipeline_mode<synchronous>, transform_indices = @transform_6, window_bounds = array<i64: 1, 32>}, {pipeline_mode = #tpu.pipeline_mode<synchronous>, transform_indices = @transform_7, window_bounds = array<i64: 32, 64>}, {pipeline_mode = #tpu.pipeline_mode<synchronous>, transform_indices = @transform_8, window_bounds = array<i64: 1, 64>}, {pipeline_mode = #tpu.pipeline_mode<synchronous>, transform_indices = @transform_9, window_bounds = array<i64: 32, 32>}, {pipeline_mode = #tpu.pipeline_mode<synchronous>, transform_indices = @transform_10, window_bounds = array<i64: 1, 32>}, {transform_indices = @transform_11, window_bounds = array<i64: 1, 8, 32>}]} {
    %c0 = arith.constant 0 : index
    %c0_0 = arith.constant 0 : index
    %c0_1 = arith.constant 0 : index
    %0 = vector.load %arg2[%c0, %c0_0, %c0_1] : memref<1x8x32xf32, #tpu.memory_space<vmem>>, vector<1x8x32xf32>
    %1 = vector.shape_cast %0 : vector<1x8x32xf32> to vector<8x32xf32>
    %c0_2 = arith.constant 0 : index
    %c0_3 = arith.constant 0 : index
    %2 = vector.load %arg5[%c0_2, %c0_3] : memref<1x32xf32, #tpu.memory_space<vmem>>, vector<1x32xf32>
    %c0_4 = arith.constant 0 : index
    %c0_5 = arith.constant 0 : index
    %3 = vector.load %arg6[%c0_4, %c0_5] : memref<1x32xf32, #tpu.memory_space<vmem>>, vector<1x32xf32>
    %cst = arith.constant dense<0.000000e+00> : vector<8xf32>
    %4 = vector.multi_reduction <add>, %1, %cst [1] : vector<8x32xf32> to vector<8xf32>
    %5 = vector.shape_cast %4 : vector<8xf32> to vector<8x1xf32>
    %cst_6 = arith.constant 3.200000e+01 : f32
    %6 = vector.broadcast %cst_6 : f32 to vector<8x1xf32>
    %7 = arith.divf %5, %6 : vector<8x1xf32>
    %8 = vector.broadcast %7 : vector<8x1xf32> to vector<8x32xf32>
    %9 = arith.subf %1, %8 : vector<8x32xf32>
    %10 = arith.mulf %9, %9 : vector<8x32xf32>
    %cst_7 = arith.constant dense<0.000000e+00> : vector<8xf32>
    %11 = vector.multi_reduction <add>, %10, %cst_7 [1] : vector<8x32xf32> to vector<8xf32>
    %12 = vector.shape_cast %11 : vector<8xf32> to vector<8x1xf32>
    %cst_8 = arith.constant 3.100000e+01 : f32
    %13 = vector.broadcast %cst_8 : f32 to vector<8x1xf32>
    %14 = arith.divf %12, %13 : vector<8x1xf32>
    %15 = math.sqrt %14 : vector<8x1xf32>
    %cst_9 = arith.constant 9.99999997E-7 : f32
    %16 = vector.broadcast %cst_9 : f32 to vector<8x1xf32>
    %17 = arith.addf %15, %16 : vector<8x1xf32>
    %18 = tpu.reciprocal %17 : vector<8x1xf32> -> vector<8x1xf32>
    %19 = vector.broadcast %7 : vector<8x1xf32> to vector<8x32xf32>
    %20 = arith.subf %1, %19 : vector<8x32xf32>
    %21 = vector.broadcast %2 : vector<1x32xf32> to vector<8x32xf32>
    %22 = arith.mulf %21, %20 : vector<8x32xf32>
    %23 = vector.broadcast %18 : vector<8x1xf32> to vector<8x32xf32>
    %24 = arith.mulf %22, %23 : vector<8x32xf32>
    %25 = vector.broadcast %3 : vector<1x32xf32> to vector<8x32xf32>
    %26 = arith.addf %24, %25 : vector<8x32xf32>
    %27 = arith.truncf %26 : vector<8x32xf32> to vector<8x32xbf16>
    %c0_10 = arith.constant 0 : index
    %c0_11 = arith.constant 0 : index
    %28 = vector.load %arg7[%c0_10, %c0_11] : memref<32x32xbf16, #tpu.memory_space<vmem>>, vector<32x32xbf16>
    %cst_12 = arith.constant dense<0.000000e+00> : vector<8x32xf32>
    %29 = tpu.matmul %27, %28, %cst_12 {dimension_numbers = #tpu.dot_dimension_numbers<[1], [0], [0], [1], [0, 0, 1, 1], [], []>} : vector<8x32xbf16>, vector<32x32xbf16>, vector<8x32xf32> -> vector<8x32xf32>
    %c0_13 = arith.constant 0 : index
    %c0_14 = arith.constant 0 : index
    %30 = vector.load %arg8[%c0_13, %c0_14] : memref<1x32xf32, #tpu.memory_space<vmem>>, vector<1x32xf32>
    %31 = vector.broadcast %30 : vector<1x32xf32> to vector<8x32xf32>
    %32 = arith.addf %29, %31 : vector<8x32xf32>
    %cst_15 = arith.constant 0.353553385 : f32
    %33 = vector.broadcast %cst_15 : f32 to vector<8x32xf32>
    %34 = arith.mulf %32, %33 : vector<8x32xf32>
    %c0_16 = arith.constant 0 : index
    %c0_17 = arith.constant 0 : index
    %c0_18 = arith.constant 0 : index
    %35 = vector.load %arg3[%c0_16, %c0_17, %c0_18] : memref<1x8x32xf32, #tpu.memory_space<vmem>>, vector<1x8x32xf32>
    %36 = vector.shape_cast %35 : vector<1x8x32xf32> to vector<8x32xf32>
    %37 = arith.truncf %36 : vector<8x32xf32> to vector<8x32xbf16>
    %c0_19 = arith.constant 0 : index
    %c0_20 = arith.constant 0 : index
    %38 = vector.load %arg9[%c0_19, %c0_20] : memref<32x64xbf16, #tpu.memory_space<vmem>>, vector<32x64xbf16>
    %cst_21 = arith.constant dense<0.000000e+00> : vector<8x64xf32>
    %39 = tpu.matmul %37, %38, %cst_21 {dimension_numbers = #tpu.dot_dimension_numbers<[1], [0], [0], [1], [0, 0, 1, 1], [], []>} : vector<8x32xbf16>, vector<32x64xbf16>, vector<8x64xf32> -> vector<8x64xf32>
    %c0_22 = arith.constant 0 : index
    %c0_23 = arith.constant 0 : index
    %40 = vector.load %arg10[%c0_22, %c0_23] : memref<1x64xf32, #tpu.memory_space<vmem>>, vector<1x64xf32>
    %41 = vector.shape_cast %40 : vector<1x64xf32> to vector<64xf32>
    %42 = vector.shape_cast %41 : vector<64xf32> to vector<1x64xf32>
    %43 = vector.broadcast %42 : vector<1x64xf32> to vector<8x64xf32>
    %44 = arith.addf %39, %43 : vector<8x64xf32>
    %c0_24 = arith.constant 0 : index
    %c0_25 = arith.constant 0 : index
    %c0_26 = arith.constant 0 : index
    %45 = vector.load %arg4[%c0_24, %c0_25, %c0_26] : memref<1x1x8xf32, #tpu.memory_space<vmem>>, vector<1x1x8xf32>
    %46 = vector.shape_cast %45 : vector<1x1x8xf32> to vector<1x8xf32>
    %cst_27 = arith.constant 0.000000e+00 : f32
    %47 = vector.broadcast %cst_27 : f32 to vector<1x8xf32>
    %48 = arith.cmpf oeq, %46, %47 : vector<1x8xf32>
    %cst_28 = arith.constant -1.000000e+09 : f32
    %cst_29 = arith.constant 0.000000e+00 : f32
    %49 = vector.broadcast %cst_28 : f32 to vector<1x8xf32>
    %50 = vector.broadcast %cst_29 : f32 to vector<1x8xf32>
    %51 = arith.select %48, %49, %50 : vector<1x8xi1>, vector<1x8xf32>
    %52 = vector.extract_strided_slice %44 {offsets = [0, 0], sizes = [8, 32], strides = [1, 1]} : vector<8x64xf32> to vector<8x32xf32>
    %53 = vector.extract_strided_slice %44 {offsets = [0, 32], sizes = [8, 32], strides = [1, 1]} : vector<8x64xf32> to vector<8x32xf32>
    %54 = vector.shape_cast %34 : vector<8x32xf32> to vector<8x4x8xf32>
    %55 = arith.truncf %54 : vector<8x4x8xf32> to vector<8x4x8xbf16>
    %56 = vector.shape_cast %52 : vector<8x32xf32> to vector<8x4x8xf32>
    %57 = arith.truncf %56 : vector<8x4x8xf32> to vector<8x4x8xbf16>
    %58 = vector.shape_cast %53 : vector<8x32xf32> to vector<8x4x8xf32>
    %59 = arith.truncf %58 : vector<8x4x8xf32> to vector<8x4x8xbf16>
    "tpu.trace_start"() <{level = 10 : i32, message = "qhd,khd->hqk"}> : () -> ()
    %cst_30 = arith.constant dense<0.000000e+00> : vector<4x8x8xf32>
    %60 = tpu.matmul %55, %57, %cst_30 {dimension_numbers = #tpu.dot_dimension_numbers<[2], [2], [0], [0], [0, 1, 0, 0, 1, 0], [1], [1]>} : vector<8x4x8xbf16>, vector<8x4x8xbf16>, vector<4x8x8xf32> -> vector<4x8x8xf32>
    "tpu.trace_stop"() : () -> ()
    %61 = vector.shape_cast %51 : vector<1x8xf32> to vector<1x1x8xf32>
    %62 = vector.broadcast %61 : vector<1x1x8xf32> to vector<4x8x8xf32>
    %63 = arith.addf %60, %62 : vector<4x8x8xf32>
    %cst_31 = arith.constant dense<0xFF800000> : vector<4x8xf32>
    %64 = vector.multi_reduction <maximumf>, %63, %cst_31 [2] : vector<4x8x8xf32> to vector<4x8xf32>
    %65 = vector.shape_cast %64 : vector<4x8xf32> to vector<4x8x1xf32>
    %66 = vector.broadcast %65 : vector<4x8x1xf32> to vector<4x8x8xf32>
    %67 = arith.subf %63, %66 : vector<4x8x8xf32>
    %68 = math.exp %67 : vector<4x8x8xf32>
    %cst_32 = arith.constant dense<0.000000e+00> : vector<4x8xf32>
    %69 = vector.multi_reduction <add>, %68, %cst_32 [2] : vector<4x8x8xf32> to vector<4x8xf32>
    %70 = vector.shape_cast %69 : vector<4x8xf32> to vector<4x8x1xf32>
    %71 = tpu.reciprocal %70 : vector<4x8x1xf32> -> vector<4x8x1xf32>
    %72 = vector.broadcast %71 : vector<4x8x1xf32> to vector<4x8x8xf32>
    %73 = arith.mulf %68, %72 : vector<4x8x8xf32>
    %74 = arith.truncf %73 : vector<4x8x8xf32> to vector<4x8x8xbf16>
    "tpu.trace_start"() <{level = 10 : i32, message = "hqk,khd->qhd"}> : () -> ()
    %cst_33 = arith.constant dense<0.000000e+00> : vector<4x8x8xf32>
    %75 = tpu.matmul %59, %74, %cst_33 {dimension_numbers = #tpu.dot_dimension_numbers<[0], [2], [2], [1], [0, 1, 0, 2, 1, 1], [1], [0]>} : vector<8x4x8xbf16>, vector<4x8x8xbf16>, vector<4x8x8xf32> -> vector<4x8x8xf32>
    %76 = tpu.transpose %75, [2, 0, 1] : vector<4x8x8xf32> -> vector<8x4x8xf32>
    "tpu.trace_stop"() : () -> ()
    %77 = vector.shape_cast %76 : vector<8x4x8xf32> to vector<8x32xf32>
    %78 = arith.truncf %77 : vector<8x32xf32> to vector<8x32xbf16>
    %c0_34 = arith.constant 0 : index
    %c0_35 = arith.constant 0 : index
    %79 = vector.load %arg11[%c0_34, %c0_35] : memref<32x32xbf16, #tpu.memory_space<vmem>>, vector<32x32xbf16>
    %cst_36 = arith.constant dense<0.000000e+00> : vector<8x32xf32>
    %80 = tpu.matmul %78, %79, %cst_36 {dimension_numbers = #tpu.dot_dimension_numbers<[1], [0], [0], [1], [0, 0, 1, 1], [], []>} : vector<8x32xbf16>, vector<32x32xbf16>, vector<8x32xf32> -> vector<8x32xf32>
    %c0_37 = arith.constant 0 : index
    %c0_38 = arith.constant 0 : index
    %81 = vector.load %arg12[%c0_37, %c0_38] : memref<1x32xf32, #tpu.memory_space<vmem>>, vector<1x32xf32>
    %82 = vector.broadcast %81 : vector<1x32xf32> to vector<8x32xf32>
    %83 = arith.addf %80, %82 : vector<8x32xf32>
    %84 = arith.addf %1, %83 : vector<8x32xf32>
    %c0_39 = arith.constant 0 : index
    %c0_40 = arith.constant 0 : index
    %c0_41 = arith.constant 0 : index
    %85 = vector.load %arg13[%c0_39, %c0_40, %c0_41] : memref<1x8x32xf32, #tpu.memory_space<vmem>>, vector<1x8x32xf32>
    %86 = vector.shape_cast %85 : vector<1x8x32xf32> to vector<8x32xf32>
    %87 = vector.shape_cast %84 : vector<8x32xf32> to vector<1x8x32xf32>
    tpu.vector_store %arg13[%c0_39, %c0_40, %c0_41], %87 {strides = array<i32>} : memref<1x8x32xf32, #tpu.memory_space<vmem>>, vector<1x8x32xf32>,
    return
  }
  func.func @transform_0(%arg0: i32, %arg1: i32) -> (i32, i32, i32) {
    %c0_i32 = arith.constant 0 : i32
    %c0_i32_0 = arith.constant 0 : i32
    %c0_i32_1 = arith.constant 0 : i32
    return %arg0, %c0_i32, %c0_i32_0 : i32, i32, i32
  }
  func.func @transform_1(%arg0: i32, %arg1: i32) -> (i32, i32, i32) {
    %c0_i32 = arith.constant 0 : i32
    %c0_i32_0 = arith.constant 0 : i32
    %c0_i32_1 = arith.constant 0 : i32
    return %arg0, %c0_i32, %c0_i32_0 : i32, i32, i32
  }
  func.func @transform_2(%arg0: i32, %arg1: i32) -> (i32, i32, i32) {
    %c0_i32 = arith.constant 0 : i32
    %c0_i32_0 = arith.constant 0 : i32
    %c0_i32_1 = arith.constant 0 : i32
    return %arg0, %c0_i32, %c0_i32_0 : i32, i32, i32
  }
  func.func @transform_3(%arg0: i32, %arg1: i32) -> (i32, i32) {
    %c0_i32 = arith.constant 0 : i32
    %c0_i32_0 = arith.constant 0 : i32
    %c0_i32_1 = arith.constant 0 : i32
    return %c0_i32, %c0_i32_0 : i32, i32
  }
  func.func @transform_4(%arg0: i32, %arg1: i32) -> (i32, i32) {
    %c0_i32 = arith.constant 0 : i32
    %c0_i32_0 = arith.constant 0 : i32
    %c0_i32_1 = arith.constant 0 : i32
    return %c0_i32, %c0_i32_0 : i32, i32
  }
  func.func @transform_5(%arg0: i32, %arg1: i32) -> (i32, i32) {
    %c0_i32 = arith.constant 0 : i32
    %c0_i32_0 = arith.constant 0 : i32
    %c0_i32_1 = arith.constant 0 : i32
    return %c0_i32, %c0_i32_0 : i32, i32
  }
  func.func @transform_6(%arg0: i32, %arg1: i32) -> (i32, i32) {
    %c0_i32 = arith.constant 0 : i32
    %c0_i32_0 = arith.constant 0 : i32
    %c0_i32_1 = arith.constant 0 : i32
    return %c0_i32, %c0_i32_0 : i32, i32
  }
  func.func @transform_7(%arg0: i32, %arg1: i32) -> (i32, i32) {
    %c0_i32 = arith.constant 0 : i32
    %c0_i32_0 = arith.constant 0 : i32
    %c0_i32_1 = arith.constant 0 : i32
    return %c0_i32, %c0_i32_0 : i32, i32
  }
  func.func @transform_8(%arg0: i32, %arg1: i32) -> (i32, i32) {
    %c0_i32 = arith.constant 0 : i32
    %c0_i32_0 = arith.constant 0 : i32
    %c0_i32_1 = arith.constant 0 : i32
    return %c0_i32, %c0_i32_0 : i32, i32
  }
  func.func @transform_9(%arg0: i32, %arg1: i32) -> (i32, i32) {
    %c0_i32 = arith.constant 0 : i32
    %c0_i32_0 = arith.constant 0 : i32
    %c0_i32_1 = arith.constant 0 : i32
    return %c0_i32, %c0_i32_0 : i32, i32
  }
  func.func @transform_10(%arg0: i32, %arg1: i32) -> (i32, i32) {
    %c0_i32 = arith.constant 0 : i32
    %c0_i32_0 = arith.constant 0 : i32
    %c0_i32_1 = arith.constant 0 : i32
    return %c0_i32, %c0_i32_0 : i32, i32
  }
  func.func @transform_11(%arg0: i32, %arg1: i32) -> (i32, i32, i32) {
    %c0_i32 = arith.constant 0 : i32
    %c0_i32_0 = arith.constant 0 : i32
    return %arg0, %arg1, %c0_i32 : i32, i32, i32
  }
}

module attributes {stable_mosaic.version = 11 : i64} {
  func.func @ln_ffn_block_kernel(%arg0: i32, %arg1: memref<16x32xf32, #tpu.memory_space<vmem>>, %arg2: memref<1x32xf32, #tpu.memory_space<vmem>>, %arg3: memref<1x32xf32, #tpu.memory_space<vmem>>, %arg4: memref<32x64xbf16, #tpu.memory_space<vmem>>, %arg5: memref<1x64xf32, #tpu.memory_space<vmem>>, %arg6: memref<64x32xbf16, #tpu.memory_space<vmem>>, %arg7: memref<1x32xf32, #tpu.memory_space<vmem>>, %arg8: memref<1x32xf32, #tpu.memory_space<vmem>>, %arg9: memref<1x32xf32, #tpu.memory_space<vmem>>, %arg10: memref<16x32xf32, #tpu.memory_space<vmem>>) attributes {dimension_semantics = [#tpu.dimension_semantics<parallel>], iteration_bounds = array<i64: 1>, scalar_prefetch = 0 : i64, scratch_operands = 0 : i64, tpu.core_type = #tpu.core_type<tc>, window_params = [{transform_indices = @transform_0, window_bounds = array<i64: 16, 32>}, {pipeline_mode = #tpu.pipeline_mode<synchronous>, transform_indices = @transform_1, window_bounds = array<i64: 1, 32>}, {pipeline_mode = #tpu.pipeline_mode<synchronous>, transform_indices = @transform_2, window_bounds = array<i64: 1, 32>}, {pipeline_mode = #tpu.pipeline_mode<synchronous>, transform_indices = @transform_3, window_bounds = array<i64: 32, 64>}, {pipeline_mode = #tpu.pipeline_mode<synchronous>, transform_indices = @transform_4, window_bounds = array<i64: 1, 64>}, {pipeline_mode = #tpu.pipeline_mode<synchronous>, transform_indices = @transform_5, window_bounds = array<i64: 64, 32>}, {pipeline_mode = #tpu.pipeline_mode<synchronous>, transform_indices = @transform_6, window_bounds = array<i64: 1, 32>}, {pipeline_mode = #tpu.pipeline_mode<synchronous>, transform_indices = @transform_7, window_bounds = array<i64: 1, 32>}, {pipeline_mode = #tpu.pipeline_mode<synchronous>, transform_indices = @transform_8, window_bounds = array<i64: 1, 32>}, {transform_indices = @transform_9, window_bounds = array<i64: 16, 32>}]} {
    %c0 = arith.constant 0 : index
    %c0_0 = arith.constant 0 : index
    %0 = vector.load %arg1[%c0, %c0_0] : memref<16x32xf32, #tpu.memory_space<vmem>>, vector<16x32xf32>
    %c0_1 = arith.constant 0 : index
    %c0_2 = arith.constant 0 : index
    %1 = vector.load %arg2[%c0_1, %c0_2] : memref<1x32xf32, #tpu.memory_space<vmem>>, vector<1x32xf32>
    %c0_3 = arith.constant 0 : index
    %c0_4 = arith.constant 0 : index
    %2 = vector.load %arg3[%c0_3, %c0_4] : memref<1x32xf32, #tpu.memory_space<vmem>>, vector<1x32xf32>
    %cst = arith.constant dense<0.000000e+00> : vector<16xf32>
    %3 = vector.multi_reduction <add>, %0, %cst [1] : vector<16x32xf32> to vector<16xf32>
    %4 = vector.shape_cast %3 : vector<16xf32> to vector<16x1xf32>
    %cst_5 = arith.constant 3.200000e+01 : f32
    %5 = vector.broadcast %cst_5 : f32 to vector<16x1xf32>
    %6 = arith.divf %4, %5 : vector<16x1xf32>
    %7 = vector.broadcast %6 : vector<16x1xf32> to vector<16x32xf32>
    %8 = arith.subf %0, %7 : vector<16x32xf32>
    %9 = arith.mulf %8, %8 : vector<16x32xf32>
    %cst_6 = arith.constant dense<0.000000e+00> : vector<16xf32>
    %10 = vector.multi_reduction <add>, %9, %cst_6 [1] : vector<16x32xf32> to vector<16xf32>
    %11 = vector.shape_cast %10 : vector<16xf32> to vector<16x1xf32>
    %cst_7 = arith.constant 3.100000e+01 : f32
    %12 = vector.broadcast %cst_7 : f32 to vector<16x1xf32>
    %13 = arith.divf %11, %12 : vector<16x1xf32>
    %14 = math.sqrt %13 : vector<16x1xf32>
    %cst_8 = arith.constant 9.99999997E-7 : f32
    %15 = vector.broadcast %cst_8 : f32 to vector<16x1xf32>
    %16 = arith.addf %14, %15 : vector<16x1xf32>
    %17 = tpu.reciprocal %16 : vector<16x1xf32> -> vector<16x1xf32>
    %18 = vector.broadcast %6 : vector<16x1xf32> to vector<16x32xf32>
    %19 = arith.subf %0, %18 : vector<16x32xf32>
    %20 = vector.broadcast %1 : vector<1x32xf32> to vector<16x32xf32>
    %21 = arith.mulf %20, %19 : vector<16x32xf32>
    %22 = vector.broadcast %17 : vector<16x1xf32> to vector<16x32xf32>
    %23 = arith.mulf %21, %22 : vector<16x32xf32>
    %24 = vector.broadcast %2 : vector<1x32xf32> to vector<16x32xf32>
    %25 = arith.addf %23, %24 : vector<16x32xf32>
    %26 = arith.truncf %25 : vector<16x32xf32> to vector<16x32xbf16>
    %c0_9 = arith.constant 0 : index
    %c0_10 = arith.constant 0 : index
    %27 = vector.load %arg4[%c0_9, %c0_10] : memref<32x64xbf16, #tpu.memory_space<vmem>>, vector<32x64xbf16>
    %cst_11 = arith.constant dense<0.000000e+00> : vector<16x64xf32>
    %28 = tpu.matmul %26, %27, %cst_11 {dimension_numbers = #tpu.dot_dimension_numbers<[1], [0], [0], [1], [0, 0, 1, 1], [], []>} : vector<16x32xbf16>, vector<32x64xbf16>, vector<16x64xf32> -> vector<16x64xf32>
    %c0_12 = arith.constant 0 : index
    %c0_13 = arith.constant 0 : index
    %29 = vector.load %arg5[%c0_12, %c0_13] : memref<1x64xf32, #tpu.memory_space<vmem>>, vector<1x64xf32>
    %30 = vector.broadcast %29 : vector<1x64xf32> to vector<16x64xf32>
    %31 = arith.addf %28, %30 : vector<16x64xf32>
    %cst_14 = arith.constant 0.000000e+00 : f32
    %32 = vector.broadcast %cst_14 : f32 to vector<16x64xf32>
    %33 = arith.maximumf %31, %32 : vector<16x64xf32>
    %34 = arith.truncf %33 : vector<16x64xf32> to vector<16x64xbf16>
    %c0_15 = arith.constant 0 : index
    %c0_16 = arith.constant 0 : index
    %35 = vector.load %arg6[%c0_15, %c0_16] : memref<64x32xbf16, #tpu.memory_space<vmem>>, vector<64x32xbf16>
    %cst_17 = arith.constant dense<0.000000e+00> : vector<16x32xf32>
    %36 = tpu.matmul %34, %35, %cst_17 {dimension_numbers = #tpu.dot_dimension_numbers<[1], [0], [0], [1], [0, 0, 1, 1], [], []>} : vector<16x64xbf16>, vector<64x32xbf16>, vector<16x32xf32> -> vector<16x32xf32>
    %37 = arith.addf %0, %36 : vector<16x32xf32>
    %c0_18 = arith.constant 0 : index
    %c0_19 = arith.constant 0 : index
    %38 = vector.load %arg7[%c0_18, %c0_19] : memref<1x32xf32, #tpu.memory_space<vmem>>, vector<1x32xf32>
    %39 = vector.broadcast %38 : vector<1x32xf32> to vector<16x32xf32>
    %40 = arith.addf %37, %39 : vector<16x32xf32>
    %c0_20 = arith.constant 0 : index
    %c0_21 = arith.constant 0 : index
    %41 = vector.load %arg8[%c0_20, %c0_21] : memref<1x32xf32, #tpu.memory_space<vmem>>, vector<1x32xf32>
    %c0_22 = arith.constant 0 : index
    %c0_23 = arith.constant 0 : index
    %42 = vector.load %arg9[%c0_22, %c0_23] : memref<1x32xf32, #tpu.memory_space<vmem>>, vector<1x32xf32>
    %cst_24 = arith.constant dense<0.000000e+00> : vector<16xf32>
    %43 = vector.multi_reduction <add>, %40, %cst_24 [1] : vector<16x32xf32> to vector<16xf32>
    %44 = vector.shape_cast %43 : vector<16xf32> to vector<16x1xf32>
    %cst_25 = arith.constant 3.200000e+01 : f32
    %45 = vector.broadcast %cst_25 : f32 to vector<16x1xf32>
    %46 = arith.divf %44, %45 : vector<16x1xf32>
    %47 = vector.broadcast %46 : vector<16x1xf32> to vector<16x32xf32>
    %48 = arith.subf %40, %47 : vector<16x32xf32>
    %49 = arith.mulf %48, %48 : vector<16x32xf32>
    %cst_26 = arith.constant dense<0.000000e+00> : vector<16xf32>
    %50 = vector.multi_reduction <add>, %49, %cst_26 [1] : vector<16x32xf32> to vector<16xf32>
    %51 = vector.shape_cast %50 : vector<16xf32> to vector<16x1xf32>
    %cst_27 = arith.constant 3.100000e+01 : f32
    %52 = vector.broadcast %cst_27 : f32 to vector<16x1xf32>
    %53 = arith.divf %51, %52 : vector<16x1xf32>
    %54 = math.sqrt %53 : vector<16x1xf32>
    %cst_28 = arith.constant 9.99999997E-7 : f32
    %55 = vector.broadcast %cst_28 : f32 to vector<16x1xf32>
    %56 = arith.addf %54, %55 : vector<16x1xf32>
    %57 = tpu.reciprocal %56 : vector<16x1xf32> -> vector<16x1xf32>
    %58 = vector.broadcast %46 : vector<16x1xf32> to vector<16x32xf32>
    %59 = arith.subf %40, %58 : vector<16x32xf32>
    %60 = vector.broadcast %41 : vector<1x32xf32> to vector<16x32xf32>
    %61 = arith.mulf %60, %59 : vector<16x32xf32>
    %62 = vector.broadcast %57 : vector<16x1xf32> to vector<16x32xf32>
    %63 = arith.mulf %61, %62 : vector<16x32xf32>
    %64 = vector.broadcast %42 : vector<1x32xf32> to vector<16x32xf32>
    %65 = arith.addf %63, %64 : vector<16x32xf32>
    %c0_29 = arith.constant 0 : index
    %c0_30 = arith.constant 0 : index
    %66 = vector.load %arg10[%c0_29, %c0_30] : memref<16x32xf32, #tpu.memory_space<vmem>>, vector<16x32xf32>
    tpu.vector_store %arg10[%c0_29, %c0_30], %65 {strides = array<i32>} : memref<16x32xf32, #tpu.memory_space<vmem>>, vector<16x32xf32>,
    return
  }
  func.func @transform_0(%arg0: i32) -> (i32, i32) {
    %c0_i32 = arith.constant 0 : i32
    %c0_i32_0 = arith.constant 0 : i32
    return %arg0, %c0_i32 : i32, i32
  }
  func.func @transform_1(%arg0: i32) -> (i32, i32) {
    %c0_i32 = arith.constant 0 : i32
    %c0_i32_0 = arith.constant 0 : i32
    %c0_i32_1 = arith.constant 0 : i32
    return %c0_i32, %c0_i32_0 : i32, i32
  }
  func.func @transform_2(%arg0: i32) -> (i32, i32) {
    %c0_i32 = arith.constant 0 : i32
    %c0_i32_0 = arith.constant 0 : i32
    %c0_i32_1 = arith.constant 0 : i32
    return %c0_i32, %c0_i32_0 : i32, i32
  }
  func.func @transform_3(%arg0: i32) -> (i32, i32) {
    %c0_i32 = arith.constant 0 : i32
    %c0_i32_0 = arith.constant 0 : i32
    %c0_i32_1 = arith.constant 0 : i32
    return %c0_i32, %c0_i32_0 : i32, i32
  }
  func.func @transform_4(%arg0: i32) -> (i32, i32) {
    %c0_i32 = arith.constant 0 : i32
    %c0_i32_0 = arith.constant 0 : i32
    %c0_i32_1 = arith.constant 0 : i32
    return %c0_i32, %c0_i32_0 : i32, i32
  }
  func.func @transform_5(%arg0: i32) -> (i32, i32) {
    %c0_i32 = arith.constant 0 : i32
    %c0_i32_0 = arith.constant 0 : i32
    %c0_i32_1 = arith.constant 0 : i32
    return %c0_i32, %c0_i32_0 : i32, i32
  }
  func.func @transform_6(%arg0: i32) -> (i32, i32) {
    %c0_i32 = arith.constant 0 : i32
    %c0_i32_0 = arith.constant 0 : i32
    %c0_i32_1 = arith.constant 0 : i32
    return %c0_i32, %c0_i32_0 : i32, i32
  }
  func.func @transform_7(%arg0: i32) -> (i32, i32) {
    %c0_i32 = arith.constant 0 : i32
    %c0_i32_0 = arith.constant 0 : i32
    %c0_i32_1 = arith.constant 0 : i32
    return %c0_i32, %c0_i32_0 : i32, i32
  }
  func.func @transform_8(%arg0: i32) -> (i32, i32) {
    %c0_i32 = arith.constant 0 : i32
    %c0_i32_0 = arith.constant 0 : i32
    %c0_i32_1 = arith.constant 0 : i32
    return %c0_i32, %c0_i32_0 : i32, i32
  }
  func.func @transform_9(%arg0: i32) -> (i32, i32) {
    %c0_i32 = arith.constant 0 : i32
    %c0_i32_0 = arith.constant 0 : i32
    return %arg0, %c0_i32 : i32, i32
  }
}

</mosaic_0001>

<llo_original>
// kernel: decoder_forward.8
$region0: #{decoder_forward.8}
  #allocation0 [shape = 'u32[]', space=smem, size = 0x4, offset = 0x4, fixed_abs, tag = 'smem constant byte address 0x4 - core index']
  #allocation1 [shape = 'u32[72,128]{1,0:T(1,128)}', space=vmem, size = 0x9000, scoped, tag = 'internal scratch']
  %s0 = inlined_call_operand.vmem [shape: f32[16,32], index: 0, kind: input, shape index: {}]
  %s1 = inlined_call_operand.hbm [shape: f32[1,32], index: 1, kind: input, shape index: {}]
  %s2 = inlined_call_operand.hbm [shape: f32[1,32], index: 2, kind: input, shape index: {}]
  %s3 = inlined_call_operand.vmem [shape: bf16[32,64], index: 3, kind: input, shape index: {}]
  %s4 = inlined_call_operand.hbm [shape: f32[1,64], index: 4, kind: input, shape index: {}]
  %s5 = inlined_call_operand.vmem [shape: bf16[64,32], index: 5, kind: input, shape index: {}]
  %s6 = inlined_call_operand.hbm [shape: f32[1,32], index: 6, kind: input, shape index: {}]
  %s7 = inlined_call_operand.vmem [shape: f32[16,32], index: 7, kind: output, shape index: {}]
  %s8 = sld [smem:[#allocation0]]
  $region54: #{decoder_forward.8} parent=0
    _
  %s10 = ssub.s32 1, %s8
  %s11 = scalar_select 0, %s10, %s8
  $region1: #{decoder_forward.8} parent=0
    #allocation2 [shape = 'u8[512]{0}', space=vmem, size = 0x400, scoped, tag = 'input window, operand 1, single buffered']
    #allocation3 [shape = 's32[1]{0}', space=sflag, size = 0x4, scoped, tag = 'scoped memory for decoder_forward.8']
    #allocation4 [shape = 'u8[512]{0}', space=vmem, size = 0x400, scoped, tag = 'input window, operand 2, single buffered']
    #allocation5 [shape = 's32[1]{0}', space=sflag, size = 0x4, scoped, tag = 'scoped memory for decoder_forward.8']
    #allocation6 [shape = 'u8[512]{0}', space=vmem, size = 0x400, scoped, tag = 'input window, operand 4, single buffered']
    #allocation7 [shape = 'u8[512]{0}', space=vmem, size = 0x400, scoped, tag = 'input window, operand 6, single buffered']
    #allocation8 [shape = 's32[1]{0}', space=sflag, size = 0x4, scoped, tag = 'scoped memory for decoder_forward.8']
    %12 = vsyncpa [#allocation3], 0
    %13 = vsyncpa [#allocation5], 0
    %14 = vsyncpa [#allocation8], 0
    // Predicated region
    $region2: #{decoder_forward.8} parent=1 // pred_check
      _
    $region3: #{decoder_forward.8} parent=1 // pred_check_branch
      %16 = sbr.rel (0) target = $region5
    $region4: #{decoder_forward.8} parent=1 // pred_region
      _
    $region5: #{decoder_forward.8} parent=1 // pred_fallthru
      _
    // Predicated region
    $region6: #{decoder_forward.8} parent=1 // pred_check
      _
    $region7: #{decoder_forward.8} parent=1 // pred_check_branch
      %18 = sbr.rel (0) target = $region9
    $region8: #{decoder_forward.8} parent=1 // pred_region
      %20 = vsyncadd [#allocation3], 0
      %s22 = sshll.u32 %s1, 4
      %s23 = int_to_ptr.hbm [resolvable:$true] %s22
      %s24 = sshll.u32 [#allocation2], 4
      %s25 = int_to_ptr.vmem [resolvable:$true] %s24
      %27 = dma.hbm_to_vmem [thread:$0]  %s23, 16, %s25, [#allocation3]
    $region9: #{decoder_forward.8} parent=1 // pred_fallthru
      _
    // Predicated region
    $region10: #{decoder_forward.8} parent=1 // pred_check
      _
    $region11: #{decoder_forward.8} parent=1 // pred_check_branch
      %29 = sbr.rel (0) target = $region13
    $region12: #{decoder_forward.8} parent=1 // pred_region
      %31 = vsyncadd [#allocation5], 0
      %s33 = sshll.u32 %s2, 4
      %s34 = int_to_ptr.hbm [resolvable:$true] %s33
      %s35 = sshll.u32 [#allocation4], 4
      %s36 = int_to_ptr.vmem [resolvable:$true] %s35
      %38 = dma.hbm_to_vmem [thread:$0]  %s34, 16, %s36, [#allocation5]
    $region13: #{decoder_forward.8} parent=1 // pred_fallthru
      _
    // Predicated region
    $region14: #{decoder_forward.8} parent=1 // pred_check
      _
    $region15: #{decoder_forward.8} parent=1 // pred_check_branch
      %40 = sbr.rel (0) target = $region17
    $region16: #{decoder_forward.8} parent=1 // pred_region
      _
    $region17: #{decoder_forward.8} parent=1 // pred_fallthru
      _
    // Predicated region
    $region18: #{decoder_forward.8} parent=1 // pred_check
      _
    $region19: #{decoder_forward.8} parent=1 // pred_check_branch
      %42 = sbr.rel (0) target = $region21
    $region20: #{decoder_forward.8} parent=1 // pred_region
      %44 = vsyncadd [#allocation5], 0
      %s46 = sshll.u32 %s4, 4
      %s47 = int_to_ptr.hbm [resolvable:$true] %s46
      %s48 = sshll.u32 [#allocation6], 4
      %s49 = int_to_ptr.vmem [resolvable:$true] %s48
      %51 = dma.hbm_to_vmem [thread:$0]  %s47, 16, %s49, [#allocation5]
    $region21: #{decoder_forward.8} parent=1 // pred_fallthru
      _
    // Predicated region
    $region22: #{decoder_forward.8} parent=1 // pred_check
      _
    $region23: #{decoder_forward.8} parent=1 // pred_check_branch
      %53 = sbr.rel (0) target = $region25
    $region24: #{decoder_forward.8} parent=1 // pred_region
      _
    $region25: #{decoder_forward.8} parent=1 // pred_fallthru
      _
    // Predicated region
    $region26: #{decoder_forward.8} parent=1 // pred_check
      _
    $region27: #{decoder_forward.8} parent=1 // pred_check_branch
      %55 = sbr.rel (0) target = $region29
    $region28: #{decoder_forward.8} parent=1 // pred_region
      %57 = vsyncadd [#allocation8], 0
      %s59 = sshll.u32 %s6, 4
      %s60 = int_to_ptr.hbm [resolvable:$true] %s59
      %s61 = sshll.u32 [#allocation7], 4
      %s62 = int_to_ptr.vmem [resolvable:$true] %s61
      %64 = dma.hbm_to_vmem [thread:$0]  %s60, 16, %s62, [#allocation8]
    $region29: #{decoder_forward.8} parent=1 // pred_fallthru
      _
    // Predicated region
    $region30: #{decoder_forward.8} parent=1 // pred_check
      _
    $region31: #{decoder_forward.8} parent=1 // pred_check_branch
      %66 = sbr.rel (0) target = $region33
    $region32: #{decoder_forward.8} parent=1 // pred_region
      %68 = dma.done [#allocation3], 16
    $region33: #{decoder_forward.8} parent=1 // pred_fallthru
      _
    // Predicated region
    $region34: #{decoder_forward.8} parent=1 // pred_check
      _
    $region35: #{decoder_forward.8} parent=1 // pred_check_branch
      %70 = sbr.rel (0) target = $region37
    $region36: #{decoder_forward.8} parent=1 // pred_region
      %72 = dma.done [#allocation5], 16
    $region37: #{decoder_forward.8} parent=1 // pred_fallthru
      _
    // Predicated region
    $region38: #{decoder_forward.8} parent=1 // pred_check
      _
    $region39: #{decoder_forward.8} parent=1 // pred_check_branch
      %74 = sbr.rel (0) target = $region41
    $region40: #{decoder_forward.8} parent=1 // pred_region
      %76 = dma.done [#allocation5], 16
    $region41: #{decoder_forward.8} parent=1 // pred_fallthru
      _
    // Predicated region
    $region42: #{decoder_forward.8} parent=1 // pred_check
      _
    $region43: #{decoder_forward.8} parent=1 // pred_check_branch
      %78 = sbr.rel (0) target = $region45
    $region44: #{decoder_forward.8} parent=1 // pred_region
      %80 = dma.done [#allocation8], 16
    $region45: #{decoder_forward.8} parent=1 // pred_fallthru
      _
    %v82 = vld [vmem:[%s0] sm:$0xff]
    %v83 = vld [vmem:[%s0 + $0x8] sm:$0xff]
    %v84 = vld [vmem:[#allocation2] sm:$0x1]
    %v85 = vld [vmem:[#allocation4] sm:$0x1]
    %vm86 = vcmask 261120
    %v87 = vsel %vm86, %v82, 0.0
    %88 = vadd.xlane.f32.xlu0 %v87
    %v89 = vpop.xlane.xlu0 %88
    %v90 = vsel %vm86, %v83, 0.0
    %91 = vadd.xlane.f32.xlu0 %v90
    %v92 = vpop.xlane.xlu0 %91
    %v93 = vrcp.pop 32.0
    %v94 = vmul.f32 32.0, %v93
    %v95 = vsub.f32 1.0, %v94
    %v96 = vmul.f32 %v93, %v95
    %v97 = vadd.f32 %v93, %v96
    %vm98 = vweird.f32 %v93
    %v99 = vsel %vm98, %v93, %v97
    %v100 = vmul.f32 %v89, %v99
    %v101 = vmul.f32 %v92, %v99
    %v102 = vsub.f32 %v82, %v100
    %v103 = vsub.f32 %v83, %v101
    %v104 = vmul.f32 %v102, %v102
    %v105 = vmul.f32 %v103, %v103
    %v106 = vsel %vm86, %v104, 0.0
    %107 = vadd.xlane.f32.xlu0 %v106
    %v108 = vpop.xlane.xlu0 %107
    %v109 = vsel %vm86, %v105, 0.0
    %110 = vadd.xlane.f32.xlu0 %v109
    %v111 = vpop.xlane.xlu0 %110
    %v112 = vrcp.pop 31.0
    %v113 = vmul.f32 31.0, %v112
    %v114 = vsub.f32 1.0, %v113
    %v115 = vmul.f32 %v112, %v114
    %v116 = vadd.f32 %v112, %v115
    %vm117 = vweird.f32 %v112
    %v118 = vsel %vm117, %v112, %v116
    %v119 = vmul.f32 %v108, %v118
    %v120 = vmul.f32 %v111, %v118
    %v121 = vrsqrt.pop %v119
    %v122 = vmul.f32 %v121, %v119
    %v123 = vmul.f32 %v122, %v121
    %v124 = vmul.f32 0.5, %v123
    %v125 = vsub.f32 1.5, %v124
    %v126 = vmul.f32 %v121, %v125
    %v127 = vmul.f32 %v119, %v126
    %vm128 = vcmp.eq.f32.partialorder %v119, inf
    %v129 = vsel %vm128, %v119, %v127
    %vm130 = vcmp.eq.f32.partialorder %v119, 0.0
    %v131 = vand.u32 %v119, 2147483648
    %v132 = vsel %vm130, %v131, %v129
    %v133 = vrsqrt.pop %v120
    %v134 = vmul.f32 %v133, %v120
    %v135 = vmul.f32 %v134, %v133
    %v136 = vmul.f32 0.5, %v135
    %v137 = vsub.f32 1.5, %v136
    %v138 = vmul.f32 %v133, %v137
    %v139 = vmul.f32 %v120, %v138
    %vm140 = vcmp.eq.f32.partialorder %v120, inf
    %v141 = vsel %vm140, %v120, %v139
    %vm142 = vcmp.eq.f32.partialorder %v120, 0.0
    %v143 = vand.u32 %v120, 2147483648
    %v144 = vsel %vm142, %v143, %v141
    %v145 = vadd.f32 %v132, 1e-06
    %v146 = vadd.f32 %v144, 1e-06
    %v147 = vrcp.pop %v145
    %v148 = vmul.f32 %v145, %v147
    %v149 = vsub.f32 1.0, %v148
    %v150 = vmul.f32 %v147, %v149
    %v151 = vadd.f32 %v147, %v150
    %vm152 = vweird.f32 %v145
    %vm153 = vweird.f32 %v147
    %vm154 = vmor %vm152, %vm153
    %v155 = vsel %vm154, %v147, %v151
    %v156 = vand.u32 2147483647, %v145
    %vm157 = vcmp.eq.f32.partialorder %v156, 8.507059e+37
    %v158 = vand.u32 %v145, 2147483648
    %v159 = vor.u32 1.1754944e-38, %v158
    %v160 = vsel %vm157, %v159, %v155
    %v161 = vrcp.pop %v146
    %v162 = vmul.f32 %v146, %v161
    %v163 = vsub.f32 1.0, %v162
    %v164 = vmul.f32 %v161, %v163
    %v165 = vadd.f32 %v161, %v164
    %vm166 = vweird.f32 %v146
    %vm167 = vweird.f32 %v161
    %vm168 = vmor %vm166, %vm167
    %v169 = vsel %vm168, %v161, %v165
    %v170 = vand.u32 2147483647, %v146
    %vm171 = vcmp.eq.f32.partialorder %v170, 8.507059e+37
    %v172 = vand.u32 %v146, 2147483648
    %v173 = vor.u32 1.1754944e-38, %v172
    %v174 = vsel %vm171, %v173, %v169
    %v176 = vperm.slane %v84, 0
    %v178 = vmul.f32 %v176, %v102
    %v179 = vmul.f32 %v176, %v103
    %v180 = vmul.f32 %v178, %v160
    %v181 = vmul.f32 %v179, %v174
    %v183 = vperm.slane %v85, 0
    %v185 = vadd.f32 %v180, %v183
    %v186 = vadd.f32 %v181, %v183
    %v187 = vpack.c.bf16 %v186, %v185
    %v188 = vld [vmem:[%s3] sm:$0xf]
    %v189 = vld [vmem:[%s3 + $0x4] sm:$0xf]
    %v190 = vld [vmem:[%s3 + $0x8] sm:$0xf]
    %v191 = vld [vmem:[%s3 + $0xc] sm:$0xf]
    %v192 = vld [vmem:[#allocation6] sm:$0x1]
    %v194 = vperm.slane %v192, 0
    %v200 = vunpack.c.l.b16 %v188
    %v201 = vunpack.c.l.b16 %v189
    %v202 = vunpack.c.l.b16 %v190
    %v203 = vunpack.c.l.b16 %v191
    %v204 = vpack.c.b16 %v201, %v200
    %v205 = vpack.c.b16 %v203, %v202
    %v209 = vsel %vm86, %v187, 0
    %211 = vmatpush.bf16.msra.mxu0 0
    %212 = vmatpush.bf16.msra.mxu0 0
    %213 = vmatpush.bf16.msra.mxu0 0
    %214 = vmatpush.bf16.msra.mxu0 0
    %215 = vmatpush.bf16.msra.mxu0 0
    %216 = vmatpush.bf16.msra.mxu0 0
    %217 = vmatpush.bf16.msra.mxu0 %v205
    %218 = vmatpush.bf16.msra.mxu0 %v204
    %219 = vmatmul.bf16.gmra.mxu0 %v209
    %v220 = vpop.f32.mrf.mxu0
    %v221 = vadd.f32 %v194, %v220
    %v222 = vpop.f32.mrf.mxu0
    %v223 = vadd.f32 %v194, %v222
    %224 = vdwg.mxu0
    %v225 = vmax.f32 %v221, 0.0
    %v226 = vmax.f32 %v223, 0.0
    %v227 = vpack.c.bf16 %v226, %v225
    %v228 = vld [vmem:[%s5] sm:$0xf]
    %v229 = vld [vmem:[%s5 + $0x4] sm:$0xf]
    %v230 = vld [vmem:[%s5 + $0x8] sm:$0xf]
    %v231 = vld [vmem:[%s5 + $0xc] sm:$0xf]
    %v232 = vld [vmem:[%s5 + $0x10] sm:$0xf]
    %v233 = vld [vmem:[%s5 + $0x14] sm:$0xf]
    %v234 = vld [vmem:[%s5 + $0x18] sm:$0xf]
    %v235 = vld [vmem:[%s5 + $0x1c] sm:$0xf]
    %v244 = vunpack.c.l.b16 %v228
    %v245 = vunpack.c.l.b16 %v229
    %v246 = vunpack.c.l.b16 %v230
    %v247 = vunpack.c.l.b16 %v231
    %v248 = vunpack.c.l.b16 %v232
    %v249 = vunpack.c.l.b16 %v233
    %v250 = vunpack.c.l.b16 %v234
    %v251 = vunpack.c.l.b16 %v235
    %v252 = vpack.c.b16 %v245, %v244
    %v253 = vpack.c.b16 %v247, %v246
    %v254 = vpack.c.b16 %v249, %v248
    %v255 = vpack.c.b16 %v251, %v250
    %vm260 = vcmask 523264
    %v262 = vsel %vm260, %v227, 0
    %264 = vmatpush.bf16.msra.mxu0 0
    %265 = vmatpush.bf16.msra.mxu0 0
    %266 = vmatpush.bf16.msra.mxu0 0
    %267 = vmatpush.bf16.msra.mxu0 0
    %268 = vmatpush.bf16.msra.mxu0 %v255
    %269 = vmatpush.bf16.msra.mxu0 %v254
    %270 = vmatpush.bf16.msra.mxu0 %v253
    %271 = vmatpush.bf16.msra.mxu0 %v252
    %272 = vmatmul.bf16.gmra.mxu0 %v262
    %v273 = vpop.f32.mrf.mxu0
    %v274 = vadd.f32 0.0, %v273
    %v275 = vpop.f32.mrf.mxu0
    %v276 = vadd.f32 0.0, %v275
    %277 = vdwg.mxu0
    %v278 = vadd.f32 %v82, %v274
    %v279 = vadd.f32 %v83, %v276
    %v280 = vld [vmem:[#allocation7] sm:$0x1]
    %v282 = vperm.slane %v280, 0
    %v284 = vadd.f32 %v278, %v282
    %v285 = vadd.f32 %v279, %v282
    %286 = vst.msk [vmem:[%s7] sm:$0xff] %vm86, %v284
    %287 = vst.msk [vmem:[%s7 + $0x8] sm:$0xff] %vm86, %v285
    // Predicated region
    $region46: #{decoder_forward.8} parent=1 // pred_check
      _
    $region47: #{decoder_forward.8} parent=1 // pred_check_branch
      %289 = sbr.rel (0) target = $region49
    $region48: #{decoder_forward.8} parent=1 // pred_region
      _
    $region49: #{decoder_forward.8} parent=1 // pred_fallthru
      _
    // Predicated region
    $region50: #{decoder_forward.8} parent=1 // pred_check
      _
    $region51: #{decoder_forward.8} parent=1 // pred_check_branch
      %291 = sbr.rel (0) target = $region53
    $region52: #{decoder_forward.8} parent=1 // pred_region
      _
    $region53: #{decoder_forward.8} parent=1 // pred_fallthru
      _
    %292 = vsyncpa [#allocation3], 1
    %293 = vsyncpa [#allocation5], 1
    %294 = vsyncpa [#allocation8], 1

// kernel: decoder_forward.6
$region0: #{decoder_forward.6}
  #allocation0 [shape = 'u32[]', space=smem, size = 0x4, offset = 0x4, fixed_abs, tag = 'smem constant byte address 0x4 - core index']
  #allocation1 [shape = 'u32[72,128]{1,0:T(1,128)}', space=vmem, size = 0x9000, scoped, tag = 'internal scratch']
  %s0 = inlined_call_operand.vmem [shape: f32[2,8,32], index: 0, kind: input, shape index: {}]
  %s1 = inlined_call_operand.vmem [shape: f32[1,8,8], index: 1, kind: input, shape index: {}]
  %s2 = inlined_call_operand.hbm [shape: f32[1,32], index: 2, kind: input, shape index: {}]
  %s3 = inlined_call_operand.hbm [shape: f32[1,32], index: 3, kind: input, shape index: {}]
  %s4 = inlined_call_operand.hbm [shape: bf16[32,96], index: 4, kind: input, shape index: {}]
  %s5 = inlined_call_operand.hbm [shape: f32[1,96], index: 5, kind: input, shape index: {}]
  %s6 = inlined_call_operand.hbm [shape: bf16[32,32], index: 6, kind: input, shape index: {}]
  %s7 = inlined_call_operand.hbm [shape: f32[1,32], index: 7, kind: input, shape index: {}]
  %s8 = inlined_call_operand.vmem [shape: f32[2,8,32], index: 8, kind: output, shape index: {}]
  %s9 = sld [smem:[#allocation0]]
  $region89: #{decoder_forward.6} parent=0
    _
  %s11 = ssub.s32 1, %s9
  %s12 = scalar_select 0, %s11, %s9
  $region1: #{decoder_forward.6} parent=0
    #allocation2 [shape = 'u8[512]{0}', space=vmem, size = 0x400, scoped, tag = 'input window, operand 2, single buffered']
    #allocation3 [shape = 's32[2]{0}', space=sflag, size = 0x8, scoped, tag = 'scoped memory for decoder_forward.6']
    #allocation4 [shape = 'u8[512]{0}', space=vmem, size = 0x400, scoped, tag = 'input window, operand 3, single buffered']
    #allocation5 [shape = 's32[1]{0}', space=sflag, size = 0x4, scoped, tag = 'scoped memory for decoder_forward.6']
    #allocation6 [shape = 'u8[8192]{0}', space=vmem, size = 0x2000, scoped, tag = 'input window, operand 4, single buffered']
    #allocation7 [shape = 'u8[512]{0}', space=vmem, size = 0x400, scoped, tag = 'input window, operand 5, single buffered']
    #allocation8 [shape = 's32[1]{0}', space=sflag, size = 0x4, scoped, tag = 'scoped memory for decoder_forward.6']
    #allocation9 [shape = 'u8[8192]{0}', space=vmem, size = 0x2000, scoped, tag = 'input window, operand 6, single buffered']
    #allocation10 [shape = 'u8[512]{0}', space=vmem, size = 0x400, scoped, tag = 'input window, operand 7, single buffered']
    #allocation11 [shape = 's32[1]{0}', space=sflag, size = 0x4, scoped, tag = 'scoped memory for decoder_forward.6']
    %13 = vsyncpa [#allocation3], 0
    %14 = vsyncpa [#allocation5], 0
    %15 = vsyncpa [#allocation8], 0
    %16 = vsyncpa [#allocation11], 0
    loop: start=0, step=1, limit=4
    $region2: #{decoder_forward.6} parent=1 // loop_pre_header
      _
    $region3: #{decoder_forward.6} parent=1 // loop_header
      %s18 = sphi 0, %s22
      %p19 = scmp.ge.s32.totalorder %s18, 4
      %s25 = sphi 0, %s37
      %s26 = sphi 0, %s33
      %s27 = sphi 0, %s25
      %s28 = sphi 0, %s26
      %s29 = sphi 0, %s27
      %s30 = sphi 0, %s28
      %s40 = sphi 0, %s42
      %s43 = sphi 0, %s40
      %s44 = sphi 0, %s43
      %s60 = sphi 0, %s44
      %s66 = sphi 0, %s68
      %s69 = sphi 0, %s66
      %s70 = sphi 0, %s69
      %s86 = sphi 0, %s70
      %s90 = sphi 0, %s90
      %s92 = sphi 0, %s90
      %s93 = sphi 0, %s92
      %s107 = sphi 0, %s93
      %s111 = sphi 0, %s111
      %s113 = sphi 0, %s111
      %s114 = sphi 0, %s113
      %s128 = sphi 0, %s114
      %s132 = sphi 0, %s132
      %s134 = sphi 0, %s132
      %s135 = sphi 0, %s134
      %s149 = sphi 0, %s135
      %s153 = sphi 0, %s153
      %s155 = sphi 0, %s153
      %s156 = sphi 0, %s155
      %s170 = sphi 0, %s156
      %s174 = sphi 0, %s174
      %s176 = sphi 0, %s174
      %s177 = sphi 0, %s176
      %s191 = sphi 0, %s177
      %s195 = sphi 0, %s195
      %s197 = sphi 0, %s195
      %s198 = sphi 0, %s197
      %s212 = sphi 0, %s198
      %s220 = sphi 0, %s222
      %s223 = sphi 0, %s220
      %s224 = sphi 0, %s223
      %s240 = sphi 0, %s224
    $region4: #{decoder_forward.6} parent=1 // loop_header_branch
      %21 = sbr.rel (%p19) target = $region8
    $region5: #{decoder_forward.6} parent=1 // loop_body
      %s23 = ssub.s32 %s18, 1
      %s24 = ssub.s32 %s18, 2
      %s31 = sadd.s32 1, %s26
      %p32 = scmp.ge.s32.totalorder %s31, 1
      %s33 = scalar_select %p32, 0, %s31
      %s34 = sadd.s32 1, %s25
      %s35 = scalar_select %p32, %s34, %s25
      %p36 = scmp.ge.s32.totalorder %s35, 2
      %s37 = scalar_select %p36, 0, %s35
      %s38 = ssub.s32 %s25, %s37
      %p39 = scmp.eq.s32.totalorder %s38, 0
      %s41 = sadd.s32 %s40, 1
      %s42 = scalar_select %p39, %s40, %s41
      %p45 = pneg %p39
      %p46 = scmp.eq.s32.totalorder %s18, 1
      %p47 = por %p45, %p46
      %p48 = scmp.ne.s32.totalorder %s40, %s43
      %p49 = scmp.eq.s32.totalorder %s18, 0
      %p50 = por %p48, %p49
      %p51 = scmp.ne.s32.totalorder %s40, %s43
      %p52 = scmp.eq.s32.totalorder %s23, 1
      %p53 = por %p51, %p52
      %p54 = scmp.ne.s32.totalorder %s43, %s44
      %p55 = scmp.eq.s32.totalorder %s23, 0
      %p56 = por %p54, %p55
      %p57 = scmp.ne.s32.totalorder %s43, %s44
      %p58 = scmp.eq.s32.totalorder %s24, 1
      %p59 = por %p57, %p58
      %p61 = scmp.ne.s32.totalorder %s44, %s60
      %p62 = scmp.eq.s32.totalorder %s24, 0
      %p63 = por %p61, %p62
      %s64 = ssub.s32 %s26, %s33
      %p65 = scmp.eq.s32.totalorder %s64, 0
      %s67 = sadd.s32 %s66, 1
      %s68 = scalar_select %p65, %s66, %s67
      %p71 = pneg %p65
      %p72 = scmp.eq.s32.totalorder %s18, 1
      %p73 = por %p71, %p72
      %p74 = scmp.ne.s32.totalorder %s66, %s69
      %p75 = scmp.eq.s32.totalorder %s18, 0
      %p76 = por %p74, %p75
      %p77 = scmp.ne.s32.totalorder %s66, %s69
      %p78 = scmp.eq.s32.totalorder %s23, 1
      %p79 = por %p77, %p78
      %p80 = scmp.ne.s32.totalorder %s69, %s70
      %p81 = scmp.eq.s32.totalorder %s23, 0
      %p82 = por %p80, %p81
      %p83 = scmp.ne.s32.totalorder %s69, %s70
      %p84 = scmp.eq.s32.totalorder %s24, 1
      %p85 = por %p83, %p84
      %p87 = scmp.ne.s32.totalorder %s70, %s86
      %p88 = scmp.eq.s32.totalorder %s24, 0
      %p89 = por %p87, %p88
      %s91 = sadd.s32 %s90, 1
      %p94 = scmp.eq.s32.totalorder %s18, 1
      %p95 = scmp.ne.s32.totalorder %s90, %s92
      %p96 = scmp.eq.s32.totalorder %s18, 0
      %p97 = por %p95, %p96
      %p98 = scmp.ne.s32.totalorder %s90, %s92
      %p99 = scmp.eq.s32.totalorder %s23, 1
      %p100 = por %p98, %p99
      %p101 = scmp.ne.s32.totalorder %s92, %s93
      %p102 = scmp.eq.s32.totalorder %s23, 0
      %p103 = por %p101, %p102
      %p104 = scmp.ne.s32.totalorder %s92, %s93
      %p105 = scmp.eq.s32.totalorder %s24, 1
      %p106 = por %p104, %p105
      %p108 = scmp.ne.s32.totalorder %s93, %s107
      %p109 = scmp.eq.s32.totalorder %s24, 0
      %p110 = por %p108, %p109
      %s112 = sadd.s32 %s111, 1
      %p115 = scmp.eq.s32.totalorder %s18, 1
      %p116 = scmp.ne.s32.totalorder %s111, %s113
      %p117 = scmp.eq.s32.totalorder %s18, 0
      %p118 = por %p116, %p117
      %p119 = scmp.ne.s32.totalorder %s111, %s113
      %p120 = scmp.eq.s32.totalorder %s23, 1
      %p121 = por %p119, %p120
      %p122 = scmp.ne.s32.totalorder %s113, %s114
      %p123 = scmp.eq.s32.totalorder %s23, 0
      %p124 = por %p122, %p123
      %p125 = scmp.ne.s32.totalorder %s113, %s114
      %p126 = scmp.eq.s32.totalorder %s24, 1
      %p127 = por %p125, %p126
      %p129 = scmp.ne.s32.totalorder %s114, %s128
      %p130 = scmp.eq.s32.totalorder %s24, 0
      %p131 = por %p129, %p130
      %s133 = sadd.s32 %s132, 1
      %p136 = scmp.eq.s32.totalorder %s18, 1
      %p137 = scmp.ne.s32.totalorder %s132, %s134
      %p138 = scmp.eq.s32.totalorder %s18, 0
      %p139 = por %p137, %p138
      %p140 = scmp.ne.s32.totalorder %s132, %s134
      %p141 = scmp.eq.s32.totalorder %s23, 1
      %p142 = por %p140, %p141
      %p143 = scmp.ne.s32.totalorder %s134, %s135
      %p144 = scmp.eq.s32.totalorder %s23, 0
      %p145 = por %p143, %p144
      %p146 = scmp.ne.s32.totalorder %s134, %s135
      %p147 = scmp.eq.s32.totalorder %s24, 1
      %p148 = por %p146, %p147
      %p150 = scmp.ne.s32.totalorder %s135, %s149
      %p151 = scmp.eq.s32.totalorder %s24, 0
      %p152 = por %p150, %p151
      %s154 = sadd.s32 %s153, 1
      %p157 = scmp.eq.s32.totalorder %s18, 1
      %p158 = scmp.ne.s32.totalorder %s153, %s155
      %p159 = scmp.eq.s32.totalorder %s18, 0
      %p160 = por %p158, %p159
      %p161 = scmp.ne.s32.totalorder %s153, %s155
      %p162 = scmp.eq.s32.totalorder %s23, 1
      %p163 = por %p161, %p162
      %p164 = scmp.ne.s32.totalorder %s155, %s156
      %p165 = scmp.eq.s32.totalorder %s23, 0
      %p166 = por %p164, %p165
      %p167 = scmp.ne.s32.totalorder %s155, %s156
      %p168 = scmp.eq.s32.totalorder %s24, 1
      %p169 = por %p167, %p168
      %p171 = scmp.ne.s32.totalorder %s156, %s170
      %p172 = scmp.eq.s32.totalorder %s24, 0
      %p173 = por %p171, %p172
      %s175 = sadd.s32 %s174, 1
      %p178 = scmp.eq.s32.totalorder %s18, 1
      %p179 = scmp.ne.s32.totalorder %s174, %s176
      %p180 = scmp.eq.s32.totalorder %s18, 0
      %p181 = por %p179, %p180
      %p182 = scmp.ne.s32.totalorder %s174, %s176
      %p183 = scmp.eq.s32.totalorder %s23, 1
      %p184 = por %p182, %p183
      %p185 = scmp.ne.s32.totalorder %s176, %s177
      %p186 = scmp.eq.s32.totalorder %s23, 0
      %p187 = por %p185, %p186
      %p188 = scmp.ne.s32.totalorder %s176, %s177
      %p189 = scmp.eq.s32.totalorder %s24, 1
      %p190 = por %p188, %p189
      %p192 = scmp.ne.s32.totalorder %s177, %s191
      %p193 = scmp.eq.s32.totalorder %s24, 0
      %p194 = por %p192, %p193
      %s196 = sadd.s32 %s195, 1
      %p199 = scmp.eq.s32.totalorder %s18, 1
      %p200 = scmp.ne.s32.totalorder %s195, %s197
      %p201 = scmp.eq.s32.totalorder %s18, 0
      %p202 = por %p200, %p201
      %p203 = scmp.ne.s32.totalorder %s195, %s197
      %p204 = scmp.eq.s32.totalorder %s23, 1
      %p205 = por %p203, %p204
      %p206 = scmp.ne.s32.totalorder %s197, %s198
      %p207 = scmp.eq.s32.totalorder %s23, 0
      %p208 = por %p206, %p207
      %p209 = scmp.ne.s32.totalorder %s197, %s198
      %p210 = scmp.eq.s32.totalorder %s24, 1
      %p211 = por %p209, %p210
      %p213 = scmp.ne.s32.totalorder %s198, %s212
      %p214 = scmp.eq.s32.totalorder %s24, 0
      %p215 = por %p213, %p214
      %s216 = ssub.s32 %s25, %s37
      %s217 = ssub.s32 %s26, %s33
      %s218 = sor.u32 %s216, %s217
      %p219 = scmp.eq.s32.totalorder %s218, 0
      %s221 = sadd.s32 %s220, 1
      %s222 = scalar_select %p219, %s220, %s221
      %p225 = pneg %p219
      %p226 = scmp.eq.s32.totalorder %s18, 1
      %p227 = por %p225, %p226
      %p228 = scmp.ne.s32.totalorder %s220, %s223
      %p229 = scmp.eq.s32.totalorder %s18, 0
      %p230 = por %p228, %p229
      %p231 = scmp.ne.s32.totalorder %s220, %s223
      %p232 = scmp.eq.s32.totalorder %s23, 1
      %p233 = por %p231, %p232
      %p234 = scmp.ne.s32.totalorder %s223, %s224
      %p235 = scmp.eq.s32.totalorder %s23, 0
      %p236 = por %p234, %p235
      %p237 = scmp.ne.s32.totalorder %s223, %s224
      %p238 = scmp.eq.s32.totalorder %s24, 1
      %p239 = por %p237, %p238
      %p241 = scmp.ne.s32.totalorder %s224, %s240
      %p242 = scmp.eq.s32.totalorder %s24, 0
      %p243 = por %p241, %p242
      %p244 = scmp.le.s32.totalorder 1, %s18
      %p245 = scmp.lt.s32.totalorder %s18, 3
      %p246 = pnand %p244, %p245
      %p247 = pneg %p246
      // Predicated region
      $region9: #{decoder_forward.6} parent=5 // pred_check
        _
      $region10: #{decoder_forward.6} parent=5 // pred_check_branch
        %249 = sbr.rel (%p246) target = $region12
      $region11: #{decoder_forward.6} parent=5 // pred_region
        %s250 = ssub.s32 %s18, 1
        // Predicated region
        $region13: #{decoder_forward.6} parent=11 // pred_check
          %p251 = pneg %p82
        $region14: #{decoder_forward.6} parent=11 // pred_check_branch
          %253 = sbr.rel (%p251) target = $region16
        $region15: #{decoder_forward.6} parent=11 // pred_region
          %p254 = scmp.lt.s32.totalorder %s28, 0
          %s255 = scalar_select %p254, %s28, 0
          %s256 = smul.addr %s255, 8
          %s257 = scalar_lea.vmem %s1, %s256
        $region16: #{decoder_forward.6} parent=11 // pred_fallthru
          _
        // Predicated region
        $region17: #{decoder_forward.6} parent=11 // pred_check
          %p258 = pneg %p103
        $region18: #{decoder_forward.6} parent=11 // pred_check_branch
          %260 = sbr.rel (%p258) target = $region20
        $region19: #{decoder_forward.6} parent=11 // pred_region
          %262 = vsyncadd [#allocation3], 0
          %s264 = sshll.u32 %s2, 4
          %s265 = int_to_ptr.hbm [resolvable:$true] %s264
          %s266 = sshll.u32 [#allocation2], 4
          %s267 = int_to_ptr.vmem [resolvable:$true] %s266
          %269 = dma.hbm_to_vmem [thread:$0]  %s265, 16, %s267, [#allocation3]
        $region20: #{decoder_forward.6} parent=11 // pred_fallthru
          _
        // Predicated region
        $region21: #{decoder_forward.6} parent=11 // pred_check
          %p270 = pneg %p124
        $region22: #{decoder_forward.6} parent=11 // pred_check_branch
          %272 = sbr.rel (%p270) target = $region24
        $region23: #{decoder_forward.6} parent=11 // pred_region
          %274 = vsyncadd [#allocation5], 0
          %s276 = sshll.u32 %s3, 4
          %s277 = int_to_ptr.hbm [resolvable:$true] %s276
          %s278 = sshll.u32 [#allocation4], 4
          %s279 = int_to_ptr.vmem [resolvable:$true] %s278
          %281 = dma.hbm_to_vmem [thread:$0]  %s277, 16, %s279, [#allocation5]
        $region24: #{decoder_forward.6} parent=11 // pred_fallthru
          _
        // Predicated region
        $region25: #{decoder_forward.6} parent=11 // pred_check
          %p282 = pneg %p145
        $region26: #{decoder_forward.6} parent=11 // pred_check_branch
          %284 = sbr.rel (%p282) target = $region28
        $region27: #{decoder_forward.6} parent=11 // pred_region
          %286 = vsyncadd [#allocation5], 0
          %s287 = sshll.u32 %s4, 4
          %s288 = int_to_ptr.hbm [resolvable:$true] %s287
          %s289 = sshll.u32 [#allocation6], 4
          %s290 = int_to_ptr.vmem [resolvable:$true] %s289
          %295 = dma.hbm_to_vmem [thread:$0]  %s288, 256, %s290, [#allocation5], 64, 64, 4
        $region28: #{decoder_forward.6} parent=11 // pred_fallthru
          _
        // Predicated region
        $region29: #{decoder_forward.6} parent=11 // pred_check
          %p296 = pneg %p166
        $region30: #{decoder_forward.6} parent=11 // pred_check_branch
          %298 = sbr.rel (%p296) target = $region32
        $region31: #{decoder_forward.6} parent=11 // pred_region
          %300 = vsyncadd [#allocation8], 0
          %s302 = sshll.u32 %s5, 4
          %s303 = int_to_ptr.hbm [resolvable:$true] %s302
          %s304 = sshll.u32 [#allocation7], 4
          %s305 = int_to_ptr.vmem [resolvable:$true] %s304
          %307 = dma.hbm_to_vmem [thread:$0]  %s303, 16, %s305, [#allocation8]
        $region32: #{decoder_forward.6} parent=11 // pred_fallthru
          _
        // Predicated region
        $region33: #{decoder_forward.6} parent=11 // pred_check
          %p308 = pneg %p187
        $region34: #{decoder_forward.6} parent=11 // pred_check_branch
          %310 = sbr.rel (%p308) target = $region36
        $region35: #{decoder_forward.6} parent=11 // pred_region
          %312 = vsyncadd [#allocation8], 0
          %s313 = sshll.u32 %s6, 4
          %s314 = int_to_ptr.hbm [resolvable:$true] %s313
          %s315 = sshll.u32 [#allocation9], 4
          %s316 = int_to_ptr.vmem [resolvable:$true] %s315
          %321 = dma.hbm_to_vmem [thread:$0]  %s314, 256, %s316, [#allocation8], 64, 64, 4
        $region36: #{decoder_forward.6} parent=11 // pred_fallthru
          _
        // Predicated region
        $region37: #{decoder_forward.6} parent=11 // pred_check
          %p322 = pneg %p208
        $region38: #{decoder_forward.6} parent=11 // pred_check_branch
          %324 = sbr.rel (%p322) target = $region40
        $region39: #{decoder_forward.6} parent=11 // pred_region
          %326 = vsyncadd [#allocation11], 0
          %s328 = sshll.u32 %s7, 4
          %s329 = int_to_ptr.hbm [resolvable:$true] %s328
          %s330 = sshll.u32 [#allocation10], 4
          %s331 = int_to_ptr.vmem [resolvable:$true] %s330
          %333 = dma.hbm_to_vmem [thread:$0]  %s329, 16, %s331, [#allocation11]
        $region40: #{decoder_forward.6} parent=11 // pred_fallthru
          _
      $region12: #{decoder_forward.6} parent=5 // pred_fallthru
        _
      %p334 = scmp.lt.s32.totalorder %s18, 2
      // Predicated region
      $region41: #{decoder_forward.6} parent=5 // pred_check
        %p335 = pneg %p334
      $region42: #{decoder_forward.6} parent=5 // pred_check_branch
        %337 = sbr.rel (%p335) target = $region44
      $region43: #{decoder_forward.6} parent=5 // pred_region
        // Predicated region
        $region45: #{decoder_forward.6} parent=43 // pred_check
          %p338 = pneg %p50
        $region46: #{decoder_forward.6} parent=43 // pred_check_branch
          %340 = sbr.rel (%p338) target = $region48
        $region47: #{decoder_forward.6} parent=43 // pred_region
          %p341 = scmp.lt.s32.totalorder %s25, 1
          %s342 = scalar_select %p341, %s25, 1
          %s343 = smul.addr %s342, 8
          %s344 = scalar_lea.vmem %s0, %s343
        $region48: #{decoder_forward.6} parent=43 // pred_fallthru
          _
      $region44: #{decoder_forward.6} parent=5 // pred_fallthru
        _
      %p345 = scmp.le.s32.totalorder 1, %s18
      %p346 = scmp.lt.s32.totalorder %s18, 3
      %p347 = pnand %p345, %p346
      %p348 = pneg %p347
      // Predicated region
      $region49: #{decoder_forward.6} parent=5 // pred_check
        _
      $region50: #{decoder_forward.6} parent=5 // pred_check_branch
        %350 = sbr.rel (%p347) target = $region52
      $region51: #{decoder_forward.6} parent=5 // pred_region
        %s351 = ssub.s32 %s18, 1
        // Predicated region
        $region53: #{decoder_forward.6} parent=51 // pred_check
          %p352 = pneg %p103
        $region54: #{decoder_forward.6} parent=51 // pred_check_branch
          %354 = sbr.rel (%p352) target = $region56
        $region55: #{decoder_forward.6} parent=51 // pred_region
          %356 = dma.done [#allocation3], 16
        $region56: #{decoder_forward.6} parent=51 // pred_fallthru
          _
        // Predicated region
        $region57: #{decoder_forward.6} parent=51 // pred_check
          %p357 = pneg %p124
        $region58: #{decoder_forward.6} parent=51 // pred_check_branch
          %359 = sbr.rel (%p357) target = $region60
        $region59: #{decoder_forward.6} parent=51 // pred_region
          %361 = dma.done [#allocation5], 16
        $region60: #{decoder_forward.6} parent=51 // pred_fallthru
          _
        // Predicated region
        $region61: #{decoder_forward.6} parent=51 // pred_check
          %p362 = pneg %p145
        $region62: #{decoder_forward.6} parent=51 // pred_check_branch
          %364 = sbr.rel (%p362) target = $region64
        $region63: #{decoder_forward.6} parent=51 // pred_region
          %366 = dma.done [#allocation5], 256
        $region64: #{decoder_forward.6} parent=51 // pred_fallthru
          _
        // Predicated region
        $region65: #{decoder_forward.6} parent=51 // pred_check
          %p367 = pneg %p166
        $region66: #{decoder_forward.6} parent=51 // pred_check_branch
          %369 = sbr.rel (%p367) target = $region68
        $region67: #{decoder_forward.6} parent=51 // pred_region
          %371 = dma.done [#allocation8], 16
        $region68: #{decoder_forward.6} parent=51 // pred_fallthru
          _
        // Predicated region
        $region69: #{decoder_forward.6} parent=51 // pred_check
          %p372 = pneg %p187
        $region70: #{decoder_forward.6} parent=51 // pred_check_branch
          %374 = sbr.rel (%p372) target = $region72
        $region71: #{decoder_forward.6} parent=51 // pred_region
          %376 = dma.done [#allocation8], 256
        $region72: #{decoder_forward.6} parent=51 // pred_fallthru
          _
        // Predicated region
        $region73: #{decoder_forward.6} parent=51 // pred_check
          %p377 = pneg %p208
        $region74: #{decoder_forward.6} parent=51 // pred_check_branch
          %379 = sbr.rel (%p377) target = $region76
        $region75: #{decoder_forward.6} parent=51 // pred_region
          %381 = dma.done [#allocation11], 16
        $region76: #{decoder_forward.6} parent=51 // pred_fallthru
          _
        %p382 = scmp.lt.s32.totalorder %s27, 1
        %s383 = scalar_select %p382, %s27, 1
        %s384 = smul.addr %s383, 8
        %s385 = scalar_lea.vmem %s0, %s384
        %p386 = pneg %p56
        %p387 = pneg %p53
        %p388 = scmp.lt.s32.totalorder %s28, 0
        %s389 = scalar_select %p388, %s28, 0
        %s390 = smul.addr %s389, 8
        %s391 = scalar_lea.vmem %s1, %s390
        %p392 = pneg %p82
        %p393 = pneg %p79
        %p394 = pneg %p103
        %p395 = pneg %p100
        %p396 = pneg %p124
        %p397 = pneg %p121
        %p398 = pneg %p145
        %p399 = pneg %p142
        %p400 = pneg %p166
        %p401 = pneg %p163
        %p402 = pneg %p187
        %p403 = pneg %p184
        %p404 = pneg %p208
        %p405 = pneg %p205
        %p406 = pneg %p236
        %p407 = pneg %p233
        %p408 = scmp.lt.s32.totalorder %s27, 1
        %s409 = scalar_select %p408, %s27, 1
        %p410 = scmp.lt.s32.totalorder %s28, 0
        %s411 = scalar_select %p410, %s28, 0
        %s412 = sadd.s32 %s411, %s409
        %s413 = smul.addr %s412, 8
        %s414 = scalar_lea.vmem %s8, %s413
        %p415 = scmp.lt.s32.totalorder %s27, 1
        %s416 = scalar_select %p415, %s27, 1
        %s417 = smul.addr %s416, 8
        %s418 = scalar_lea.vmem %s0, %s417
        %p419 = scmp.lt.s32.totalorder %s28, 0
        %s420 = scalar_select %p419, %s28, 0
        %s421 = smul.addr %s420, 8
        %s422 = scalar_lea.vmem %s1, %s421
        %p423 = scmp.lt.s32.totalorder %s27, 1
        %s424 = scalar_select %p423, %s27, 1
        %p425 = scmp.lt.s32.totalorder %s28, 0
        %s426 = scalar_select %p425, %s28, 0
        %s427 = sadd.s32 %s426, %s424
        %s428 = smul.addr %s427, 8
        %s429 = scalar_lea.vmem %s8, %s428
        %v431 = vld [vmem:[%s418] sm:$0xff]
        %v432 = vld [vmem:[#allocation2] sm:$0x1]
        %v433 = vld [vmem:[#allocation4] sm:$0x1]
        %vm434 = vcmask 261120
        %v435 = vsel %vm434, %v431, 0.0
        %436 = vadd.xlane.f32.xlu0 %v435
        %v437 = vpop.xlane.xlu0 %436
        %v438 = vrcp.pop 32.0
        %v439 = vmul.f32 32.0, %v438
        %v440 = vsub.f32 1.0, %v439
        %v441 = vmul.f32 %v438, %v440
        %v442 = vadd.f32 %v438, %v441
        %vm443 = vweird.f32 %v438
        %v444 = vsel %vm443, %v438, %v442
        %v445 = vmul.f32 %v437, %v444
        %v446 = vsub.f32 %v431, %v445
        %v447 = vmul.f32 %v446, %v446
        %v448 = vsel %vm434, %v447, 0.0
        %449 = vadd.xlane.f32.xlu0 %v448
        %v450 = vpop.xlane.xlu0 %449
        %v451 = vrcp.pop 31.0
        %v452 = vmul.f32 31.0, %v451
        %v453 = vsub.f32 1.0, %v452
        %v454 = vmul.f32 %v451, %v453
        %v455 = vadd.f32 %v451, %v454
        %vm456 = vweird.f32 %v451
        %v457 = vsel %vm456, %v451, %v455
        %v458 = vmul.f32 %v450, %v457
        %v459 = vrsqrt.pop %v458
        %v460 = vmul.f32 %v459, %v458
        %v461 = vmul.f32 %v460, %v459
        %v462 = vmul.f32 0.5, %v461
        %v463 = vsub.f32 1.5, %v462
        %v464 = vmul.f32 %v459, %v463
        %v465 = vmul.f32 %v458, %v464
        %vm466 = vcmp.eq.f32.partialorder %v458, inf
        %v467 = vsel %vm466, %v458, %v465
        %vm468 = vcmp.eq.f32.partialorder %v458, 0.0
        %v469 = vand.u32 %v458, 2147483648
        %v470 = vsel %vm468, %v469, %v467
        %v471 = vadd.f32 %v470, 1e-06
        %v472 = vrcp.pop %v471
        %v473 = vmul.f32 %v471, %v472
        %v474 = vsub.f32 1.0, %v473
        %v475 = vmul.f32 %v472, %v474
        %v476 = vadd.f32 %v472, %v475
        %vm477 = vweird.f32 %v471
        %vm478 = vweird.f32 %v472
        %vm479 = vmor %vm477, %vm478
        %v480 = vsel %vm479, %v472, %v476
        %v481 = vand.u32 2147483647, %v471
        %vm482 = vcmp.eq.f32.partialorder %v481, 8.507059e+37
        %v483 = vand.u32 %v471, 2147483648
        %v484 = vor.u32 1.1754944e-38, %v483
        %v485 = vsel %vm482, %v484, %v480
        %v487 = vperm.slane %v432, 0
        %v489 = vmul.f32 %v487, %v446
        %v490 = vmul.f32 %v489, %v485
        %v492 = vperm.slane %v433, 0
        %v494 = vadd.f32 %v490, %v492
        %v495 = vld [vmem:[#allocation6] sm:$0xf]
        %v496 = vld [vmem:[#allocation6 + $0x4] sm:$0xf]
        %v497 = vld [vmem:[#allocation6 + $0x8] sm:$0xf]
        %v498 = vld [vmem:[#allocation6 + $0xc] sm:$0xf]
        %v499 = vld [vmem:[#allocation7] sm:$0x1]
        %v500 = vpack.c.bf16 %v494, %v494
        %v502 = vperm.slane %v499, 0
        %v507 = vunpack.c.l.b16 %v495
        %v508 = vunpack.c.l.b16 %v496
        %v509 = vunpack.c.l.b16 %v497
        %v510 = vunpack.c.l.b16 %v498
        %v511 = vpack.c.b16 %v508, %v507
        %v512 = vpack.c.b16 %v510, %v509
        %513 = vrot.lane.b32.xlu0 %v511, 96
        %v514 = vpop.permute.xlu0 %513
        %515 = vrot.lane.b32.xlu0 %v512, 96
        %v516 = vpop.permute.xlu0 %515
        %519 = vrot.lane.b32.xlu0 %v502, 96
        %v520 = vpop.permute.xlu0 %519
        %v523 = vsel %vm434, %v500, 0
        %525 = vmatpush.bf16.msra.mxu0 0
        %526 = vmatpush.bf16.msra.mxu0 0
        %527 = vmatpush.bf16.msra.mxu0 0
        %528 = vmatpush.bf16.msra.mxu0 0
        %529 = vmatpush.bf16.msra.mxu0 0
        %530 = vmatpush.bf16.msra.mxu0 0
        %531 = vmatpush.bf16.msra.mxu0 %v516
        %532 = vmatpush.bf16.msra.mxu0 %v514
        %533 = vmatmul.bf16.gmra.mxu0 %v523
        %v534 = vpop.f32.mrf.mxu0
        %v535 = vadd.f32 %v520, %v534
        %v536 = vpop.f32.mrf.mxu0
        %537 = vdwg.mxu0
        %541 = vmatpush.bf16.msra.mxu0 0
        %542 = vmatpush.bf16.msra.mxu0 0
        %543 = vmatpush.bf16.msra.mxu0 0
        %544 = vmatpush.bf16.msra.mxu0 0
        %545 = vmatpush.bf16.msra.mxu0 0
        %546 = vmatpush.bf16.msra.mxu0 0
        %547 = vmatpush.bf16.msra.mxu0 %v512
        %548 = vmatpush.bf16.msra.mxu0 %v511
        %549 = vmatmul.bf16.gmra.mxu0 %v523
        %v550 = vpop.f32.mrf.mxu0
        %v551 = vadd.f32 %v502, %v550
        %v552 = vpop.f32.mrf.mxu0
        %553 = vdwg.mxu0
        %v554 = vmul.f32 %v551, 0.35355338
        %v555 = vld [vmem:[%s422] sm:$0xff]
        %vm556 = vcmp.eq.f32.partialorder %v555, 0.0
        %v557 = vsel %vm556, -1e+09, 0.0
        %559 = vrot.lane.b32.xlu0 %v554, 120
        %v560 = vpop.permute.xlu0 %559
        %562 = vrot.lane.b32.xlu0 %v554, 112
        %v563 = vpop.permute.xlu0 %562
        %565 = vrot.lane.b32.xlu0 %v554, 104
        %v566 = vpop.permute.xlu0 %565
        %v568 = vrot.slane %v563, 4
        %vm569 = vcmask 1047556
        %v570 = vsel %vm569, %v568, %v554
        %v571 = vrot.slane %v554, 4
        %v572 = vsel %vm569, %v563, %v571
        %v574 = vunpack.c.l.s4 1983009808
        %v575 = vunpack.c.0.s8 %v574
        %v576 = vperm.slane %v570, %v575
        %v578 = vunpack.c.l.s4 1983009808
        %v579 = vunpack.c.0.s8 %v578
        %v580 = vperm.slane %v572, %v579
        %v581 = vrot.slane %v566, 4
        %v582 = vsel %vm569, %v581, %v560
        %v583 = vrot.slane %v560, 4
        %v584 = vsel %vm569, %v566, %v583
        %v586 = vunpack.c.l.s4 1983009808
        %v587 = vunpack.c.0.s8 %v586
        %v588 = vperm.slane %v582, %v587
        %v590 = vunpack.c.l.s4 1983009808
        %v591 = vunpack.c.0.s8 %v590
        %v592 = vperm.slane %v584, %v591
        %v593 = vrot.slane %v588, 4
        %v594 = vsel %vm569, %v593, %v576
        %v595 = vrot.slane %v576, 4
        %v596 = vsel %vm569, %v588, %v595
        %v598 = vunpack.c.l.s4 1934713408
        %v599 = vunpack.c.0.s8 %v598
        %v600 = vperm.slane %v594, %v599
        %v602 = vunpack.c.l.s4 1934713408
        %v603 = vunpack.c.0.s8 %v602
        %v604 = vperm.slane %v596, %v603
        %v605 = vrot.slane %v592, 4
        %v606 = vsel %vm569, %v605, %v580
        %v607 = vrot.slane %v580, 4
        %v608 = vsel %vm569, %v592, %v607
        %v610 = vunpack.c.l.s4 1934713408
        %v611 = vunpack.c.0.s8 %v610
        %v612 = vperm.slane %v606, %v611
        %v614 = vunpack.c.l.s4 1934713408
        %v615 = vunpack.c.0.s8 %v614
        %v616 = vperm.slane %v608, %v615
        %v617 = vrot.slane %v600, 4
        %v618 = vsel %vm569, 0.0, %v617
        %v619 = vrot.slane %v604, 4
        %v620 = vsel %vm569, 0.0, %v619
        %v621 = vrot.slane %v612, 4
        %v622 = vsel %vm569, 0.0, %v621
        %v623 = vrot.slane %v616, 4
        %v624 = vsel %vm569, 0.0, %v623
        %v625 = vpack.c.bf16 %v600, %v600
        %v626 = vpack.c.bf16 %v618, %v618
        %v627 = vpack.c.bf16 %v604, %v604
        %v628 = vpack.c.bf16 %v620, %v620
        %v629 = vpack.c.bf16 %v612, %v612
        %v630 = vpack.c.bf16 %v622, %v622
        %v631 = vpack.c.bf16 %v616, %v616
        %v632 = vpack.c.bf16 %v624, %v624
        %634 = vrot.lane.b32.xlu0 %v535, 120
        %v635 = vpop.permute.xlu0 %634
        %637 = vrot.lane.b32.xlu0 %v535, 112
        %v638 = vpop.permute.xlu0 %637
        %640 = vrot.lane.b32.xlu0 %v535, 104
        %v641 = vpop.permute.xlu0 %640
        %v643 = vrot.slane %v638, 4
        %v644 = vsel %vm569, %v643, %v535
        %v645 = vrot.slane %v535, 4
        %v646 = vsel %vm569, %v638, %v645
        %v648 = vunpack.c.l.s4 1983009808
        %v649 = vunpack.c.0.s8 %v648
        %v650 = vperm.slane %v644, %v649
        %v652 = vunpack.c.l.s4 1983009808
        %v653 = vunpack.c.0.s8 %v652
        %v654 = vperm.slane %v646, %v653
        %v655 = vrot.slane %v641, 4
        %v656 = vsel %vm569, %v655, %v635
        %v657 = vrot.slane %v635, 4
        %v658 = vsel %vm569, %v641, %v657
        %v660 = vunpack.c.l.s4 1983009808
        %v661 = vunpack.c.0.s8 %v660
        %v662 = vperm.slane %v656, %v661
        %v664 = vunpack.c.l.s4 1983009808
        %v665 = vunpack.c.0.s8 %v664
        %v666 = vperm.slane %v658, %v665
        %v667 = vrot.slane %v662, 4
        %v668 = vsel %vm569, %v667, %v650
        %v669 = vrot.slane %v650, 4
        %v670 = vsel %vm569, %v662, %v669
        %v672 = vunpack.c.l.s4 1934713408
        %v673 = vunpack.c.0.s8 %v672
        %v674 = vperm.slane %v668, %v673
        %v676 = vunpack.c.l.s4 1934713408
        %v677 = vunpack.c.0.s8 %v676
        %v678 = vperm.slane %v670, %v677
        %v679 = vrot.slane %v666, 4
        %v680 = vsel %vm569, %v679, %v654
        %v681 = vrot.slane %v654, 4
        %v682 = vsel %vm569, %v666, %v681
        %v684 = vunpack.c.l.s4 1934713408
        %v685 = vunpack.c.0.s8 %v684
        %v686 = vperm.slane %v680, %v685
        %v688 = vunpack.c.l.s4 1934713408
        %v689 = vunpack.c.0.s8 %v688
        %v690 = vperm.slane %v682, %v689
        %v691 = vrot.slane %v674, 4
        %v692 = vsel %vm569, 0.0, %v691
        %v693 = vrot.slane %v678, 4
        %v694 = vsel %vm569, 0.0, %v693
        %v695 = vrot.slane %v686, 4
        %v696 = vsel %vm569, 0.0, %v695
        %v697 = vrot.slane %v690, 4
        %v698 = vsel %vm569, 0.0, %v697
        %v699 = vpack.c.bf16 %v674, %v674
        %v700 = vpack.c.bf16 %v692, %v692
        %v701 = vpack.c.bf16 %v678, %v678
        %v702 = vpack.c.bf16 %v694, %v694
        %v703 = vpack.c.bf16 %v686, %v686
        %v704 = vpack.c.bf16 %v696, %v696
        %v705 = vpack.c.bf16 %v690, %v690
        %v706 = vpack.c.bf16 %v698, %v698
        %707 = vrot.lane.b32.xlu0 %v535, 96
        %v708 = vpop.permute.xlu0 %707
        %709 = vrot.lane.b32.xlu0 %v635, 96
        %v710 = vpop.permute.xlu0 %709
        %711 = vrot.lane.b32.xlu0 %v638, 96
        %v712 = vpop.permute.xlu0 %711
        %713 = vrot.lane.b32.xlu0 %v641, 96
        %v714 = vpop.permute.xlu0 %713
        %v719 = vrot.slane %v712, 4
        %v720 = vsel %vm569, %v719, %v708
        %v721 = vrot.slane %v708, 4
        %v722 = vsel %vm569, %v712, %v721
        %v724 = vunpack.c.l.s4 1983009808
        %v725 = vunpack.c.0.s8 %v724
        %v726 = vperm.slane %v720, %v725
        %v728 = vunpack.c.l.s4 1983009808
        %v729 = vunpack.c.0.s8 %v728
        %v730 = vperm.slane %v722, %v729
        %v731 = vrot.slane %v714, 4
        %v732 = vsel %vm569, %v731, %v710
        %v733 = vrot.slane %v710, 4
        %v734 = vsel %vm569, %v714, %v733
        %v736 = vunpack.c.l.s4 1983009808
        %v737 = vunpack.c.0.s8 %v736
        %v738 = vperm.slane %v732, %v737
        %v740 = vunpack.c.l.s4 1983009808
        %v741 = vunpack.c.0.s8 %v740
        %v742 = vperm.slane %v734, %v741
        %v743 = vrot.slane %v738, 4
        %v744 = vsel %vm569, %v743, %v726
        %v745 = vrot.slane %v726, 4
        %v746 = vsel %vm569, %v738, %v745
        %v748 = vunpack.c.l.s4 1934713408
        %v749 = vunpack.c.0.s8 %v748
        %v750 = vperm.slane %v744, %v749
        %v752 = vunpack.c.l.s4 1934713408
        %v753 = vunpack.c.0.s8 %v752
        %v754 = vperm.slane %v746, %v753
        %v755 = vrot.slane %v742, 4
        %v756 = vsel %vm569, %v755, %v730
        %v757 = vrot.slane %v730, 4
        %v758 = vsel %vm569, %v742, %v757
        %v760 = vunpack.c.l.s4 1934713408
        %v761 = vunpack.c.0.s8 %v760
        %v762 = vperm.slane %v756, %v761
        %v764 = vunpack.c.l.s4 1934713408
        %v765 = vunpack.c.0.s8 %v764
        %v766 = vperm.slane %v758, %v765
        %v767 = vrot.slane %v750, 4
        %v768 = vsel %vm569, 0.0, %v767
        %v769 = vrot.slane %v754, 4
        %v770 = vsel %vm569, 0.0, %v769
        %v771 = vrot.slane %v762, 4
        %v772 = vsel %vm569, 0.0, %v771
        %v773 = vrot.slane %v766, 4
        %v774 = vsel %vm569, 0.0, %v773
        %v775 = vpack.c.bf16 %v750, %v750
        %v776 = vpack.c.bf16 %v768, %v768
        %v777 = vpack.c.bf16 %v754, %v754
        %v778 = vpack.c.bf16 %v770, %v770
        %v779 = vpack.c.bf16 %v762, %v762
        %v780 = vpack.c.bf16 %v772, %v772
        %v781 = vpack.c.bf16 %v766, %v766
        %v782 = vpack.c.bf16 %v774, %v774
        %v783 = vrot.slane %v629, 4
        %vm784 = vcmask 1047556
        %v785 = vsel %vm784, %v783, %v625
        %v787 = vunpack.c.l.s4 1983009808
        %v788 = vunpack.c.0.s8 %v787
        %v789 = vperm.slane %v785, %v788
        %v790 = vrot.slane %v631, 4
        %v791 = vsel %vm784, %v790, %v627
        %v793 = vunpack.c.l.s4 1983009808
        %v794 = vunpack.c.0.s8 %v793
        %v795 = vperm.slane %v791, %v794
        %v796 = vrot.slane %v795, 4
        %v797 = vsel %vm784, %v796, %v789
        %v799 = vunpack.c.l.s4 1934713408
        %v800 = vunpack.c.0.s8 %v799
        %v801 = vperm.slane %v797, %v800
        %v802 = vrot.slane %v801, 4
        %v803 = vsel %vm784, 0, %v802
        %v804 = vrot.slane %v630, 4
        %v805 = vsel %vm784, %v804, %v626
        %v807 = vunpack.c.l.s4 1983009808
        %v808 = vunpack.c.0.s8 %v807
        %v809 = vperm.slane %v805, %v808
        %v810 = vrot.slane %v632, 4
        %v811 = vsel %vm784, %v810, %v628
        %v813 = vunpack.c.l.s4 1983009808
        %v814 = vunpack.c.0.s8 %v813
        %v815 = vperm.slane %v811, %v814
        %v816 = vrot.slane %v815, 4
        %v817 = vsel %vm784, %v816, %v809
        %v819 = vunpack.c.l.s4 1934713408
        %v820 = vunpack.c.0.s8 %v819
        %v821 = vperm.slane %v817, %v820
        %v822 = vrot.slane %v821, 4
        %v823 = vsel %vm784, 0, %v822
        %v826 = vpack.i.b16 %v821, %v801
        %v827 = vshrl.u32 %v801, 16
        %v828 = vshrl.u32 %v821, 16
        %v829 = vpack.i.b16 %v828, %v827
        %v832 = vpack.i.b16 %v823, %v803
        %v833 = vshrl.u32 %v803, 16
        %v834 = vshrl.u32 %v823, 16
        %v835 = vpack.i.b16 %v834, %v833
        %836 = vxpose.xlu0.c.b16.start [1/8] %v699, 128
        %837 = vxpose.xlu0.c.b16.cont [2/8] 0, 128
        %838 = vxpose.xlu0.c.b16.cont [3/8] 0, 128
        %839 = vxpose.xlu0.c.b16.cont [4/8] 0, 128
        %840 = vxpose.xlu0.c.b16.cont [5/8] 0, 128
        %841 = vxpose.xlu0.c.b16.cont [6/8] 0, 128
        %842 = vxpose.xlu0.c.b16.cont [7/8] 0, 128
        %843 = vxpose.xlu0.c.b16.end [8/8] 0, 128
        %v844 = vpop.trf.xlu0
        %v845 = vpop.trf.xlu0
        %v846 = vpop.trf.xlu0
        %v847 = vpop.trf.xlu0
        %v848 = vpop.trf.xlu0
        %v849 = vpop.trf.xlu0
        %v850 = vpop.trf.xlu0
        %v851 = vpop.trf.xlu0
        %852 = vxpose.xlu0.c.b16.start [1/8] %v700, 128
        %853 = vxpose.xlu0.c.b16.cont [2/8] 0, 128
        %854 = vxpose.xlu0.c.b16.cont [3/8] 0, 128
        %855 = vxpose.xlu0.c.b16.cont [4/8] 0, 128
        %856 = vxpose.xlu0.c.b16.cont [5/8] 0, 128
        %857 = vxpose.xlu0.c.b16.cont [6/8] 0, 128
        %858 = vxpose.xlu0.c.b16.cont [7/8] 0, 128
        %859 = vxpose.xlu0.c.b16.end [8/8] 0, 128
        %v860 = vpop.trf.xlu0
        %v861 = vpop.trf.xlu0
        %v862 = vpop.trf.xlu0
        %v863 = vpop.trf.xlu0
        %v864 = vpop.trf.xlu0
        %v865 = vpop.trf.xlu0
        %v866 = vpop.trf.xlu0
        %v867 = vpop.trf.xlu0
        %868 = vxpose.xlu0.c.b16.start [1/8] %v701, 128
        %869 = vxpose.xlu0.c.b16.cont [2/8] 0, 128
        %870 = vxpose.xlu0.c.b16.cont [3/8] 0, 128
        %871 = vxpose.xlu0.c.b16.cont [4/8] 0, 128
        %872 = vxpose.xlu0.c.b16.cont [5/8] 0, 128
        %873 = vxpose.xlu0.c.b16.cont [6/8] 0, 128
        %874 = vxpose.xlu0.c.b16.cont [7/8] 0, 128
        %875 = vxpose.xlu0.c.b16.end [8/8] 0, 128
        %v876 = vpop.trf.xlu0
        %v877 = vpop.trf.xlu0
        %v878 = vpop.trf.xlu0
        %v879 = vpop.trf.xlu0
        %v880 = vpop.trf.xlu0
        %v881 = vpop.trf.xlu0
        %v882 = vpop.trf.xlu0
        %v883 = vpop.trf.xlu0
        %884 = vxpose.xlu0.c.b16.start [1/8] %v702, 128
        %885 = vxpose.xlu0.c.b16.cont [2/8] 0, 128
        %886 = vxpose.xlu0.c.b16.cont [3/8] 0, 128
        %887 = vxpose.xlu0.c.b16.cont [4/8] 0, 128
        %888 = vxpose.xlu0.c.b16.cont [5/8] 0, 128
        %889 = vxpose.xlu0.c.b16.cont [6/8] 0, 128
        %890 = vxpose.xlu0.c.b16.cont [7/8] 0, 128
        %891 = vxpose.xlu0.c.b16.end [8/8] 0, 128
        %v892 = vpop.trf.xlu0
        %v893 = vpop.trf.xlu0
        %v894 = vpop.trf.xlu0
        %v895 = vpop.trf.xlu0
        %v896 = vpop.trf.xlu0
        %v897 = vpop.trf.xlu0
        %v898 = vpop.trf.xlu0
        %v899 = vpop.trf.xlu0
        %900 = vxpose.xlu0.c.b16.start [1/8] %v703, 128
        %901 = vxpose.xlu0.c.b16.cont [2/8] 0, 128
        %902 = vxpose.xlu0.c.b16.cont [3/8] 0, 128
        %903 = vxpose.xlu0.c.b16.cont [4/8] 0, 128
        %904 = vxpose.xlu0.c.b16.cont [5/8] 0, 128
        %905 = vxpose.xlu0.c.b16.cont [6/8] 0, 128
        %906 = vxpose.xlu0.c.b16.cont [7/8] 0, 128
        %907 = vxpose.xlu0.c.b16.end [8/8] 0, 128
        %v908 = vpop.trf.xlu0
        %v909 = vpop.trf.xlu0
        %v910 = vpop.trf.xlu0
        %v911 = vpop.trf.xlu0
        %v912 = vpop.trf.xlu0
        %v913 = vpop.trf.xlu0
        %v914 = vpop.trf.xlu0
        %v915 = vpop.trf.xlu0
        %916 = vxpose.xlu0.c.b16.start [1/8] %v704, 128
        %917 = vxpose.xlu0.c.b16.cont [2/8] 0, 128
        %918 = vxpose.xlu0.c.b16.cont [3/8] 0, 128
        %919 = vxpose.xlu0.c.b16.cont [4/8] 0, 128
        %920 = vxpose.xlu0.c.b16.cont [5/8] 0, 128
        %921 = vxpose.xlu0.c.b16.cont [6/8] 0, 128
        %922 = vxpose.xlu0.c.b16.cont [7/8] 0, 128
        %923 = vxpose.xlu0.c.b16.end [8/8] 0, 128
        %v924 = vpop.trf.xlu0
        %v925 = vpop.trf.xlu0
        %v926 = vpop.trf.xlu0
        %v927 = vpop.trf.xlu0
        %v928 = vpop.trf.xlu0
        %v929 = vpop.trf.xlu0
        %v930 = vpop.trf.xlu0
        %v931 = vpop.trf.xlu0
        %932 = vxpose.xlu0.c.b16.start [1/8] %v705, 128
        %933 = vxpose.xlu0.c.b16.cont [2/8] 0, 128
        %934 = vxpose.xlu0.c.b16.cont [3/8] 0, 128
        %935 = vxpose.xlu0.c.b16.cont [4/8] 0, 128
        %936 = vxpose.xlu0.c.b16.cont [5/8] 0, 128
        %937 = vxpose.xlu0.c.b16.cont [6/8] 0, 128
        %938 = vxpose.xlu0.c.b16.cont [7/8] 0, 128
        %939 = vxpose.xlu0.c.b16.end [8/8] 0, 128
        %v940 = vpop.trf.xlu0
        %v941 = vpop.trf.xlu0
        %v942 = vpop.trf.xlu0
        %v943 = vpop.trf.xlu0
        %v944 = vpop.trf.xlu0
        %v945 = vpop.trf.xlu0
        %v946 = vpop.trf.xlu0
        %v947 = vpop.trf.xlu0
        %948 = vxpose.xlu0.c.b16.start [1/8] %v706, 128
        %949 = vxpose.xlu0.c.b16.cont [2/8] 0, 128
        %950 = vxpose.xlu0.c.b16.cont [3/8] 0, 128
        %951 = vxpose.xlu0.c.b16.cont [4/8] 0, 128
        %952 = vxpose.xlu0.c.b16.cont [5/8] 0, 128
        %953 = vxpose.xlu0.c.b16.cont [6/8] 0, 128
        %954 = vxpose.xlu0.c.b16.cont [7/8] 0, 128
        %955 = vxpose.xlu0.c.b16.end [8/8] 0, 128
        %v956 = vpop.trf.xlu0
        %v957 = vpop.trf.xlu0
        %v958 = vpop.trf.xlu0
        %v959 = vpop.trf.xlu0
        %v960 = vpop.trf.xlu0
        %v961 = vpop.trf.xlu0
        %v962 = vpop.trf.xlu0
        %v963 = vpop.trf.xlu0
        %v964 = vrot.slane %v908, 4
        %v965 = vsel %vm784, %v964, %v844
        %v967 = vunpack.c.l.s4 1983009808
        %v968 = vunpack.c.0.s8 %v967
        %v969 = vperm.slane %v965, %v968
        %v970 = vrot.slane %v940, 4
        %v971 = vsel %vm784, %v970, %v876
        %v973 = vunpack.c.l.s4 1983009808
        %v974 = vunpack.c.0.s8 %v973
        %v975 = vperm.slane %v971, %v974
        %v976 = vrot.slane %v975, 4
        %v977 = vsel %vm784, %v976, %v969
        %v978 = vrot.slane %v969, 4
        %v979 = vsel %vm784, %v975, %v978
        %v981 = vunpack.c.l.s4 1934713408
        %v982 = vunpack.c.0.s8 %v981
        %v983 = vperm.slane %v977, %v982
        %v985 = vunpack.c.l.s4 1934713408
        %v986 = vunpack.c.0.s8 %v985
        %v987 = vperm.slane %v979, %v986
        %v988 = vrot.slane %v983, 4
        %v989 = vsel %vm784, 0, %v988
        %v990 = vrot.slane %v987, 4
        %v991 = vsel %vm784, 0, %v990
        %v992 = vrot.slane %v924, 4
        %v993 = vsel %vm784, %v992, %v860
        %v995 = vunpack.c.l.s4 1983009808
        %v996 = vunpack.c.0.s8 %v995
        %v997 = vperm.slane %v993, %v996
        %v998 = vrot.slane %v956, 4
        %v999 = vsel %vm784, %v998, %v892
        %v1001 = vunpack.c.l.s4 1983009808
        %v1002 = vunpack.c.0.s8 %v1001
        %v1003 = vperm.slane %v999, %v1002
        %v1004 = vrot.slane %v1003, 4
        %v1005 = vsel %vm784, %v1004, %v997
        %v1006 = vrot.slane %v997, 4
        %v1007 = vsel %vm784, %v1003, %v1006
        %v1009 = vunpack.c.l.s4 1934713408
        %v1010 = vunpack.c.0.s8 %v1009
        %v1011 = vperm.slane %v1005, %v1010
        %v1013 = vunpack.c.l.s4 1934713408
        %v1014 = vunpack.c.0.s8 %v1013
        %v1015 = vperm.slane %v1007, %v1014
        %v1016 = vrot.slane %v1011, 4
        %v1017 = vsel %vm784, 0, %v1016
        %v1018 = vrot.slane %v1015, 4
        %v1019 = vsel %vm784, 0, %v1018
        %v1022 = vpack.i.b16 %v1011, %v983
        %v1024 = vshrl.u32 %v983, 16
        %v1025 = vshrl.u32 %v1011, 16
        %v1026 = vpack.i.b16 %v1025, %v1024
        %v1030 = vpack.i.b16 %v1017, %v989
        %v1032 = vshrl.u32 %v989, 16
        %v1033 = vshrl.u32 %v1017, 16
        %v1034 = vpack.i.b16 %v1033, %v1032
        %v1038 = vpack.i.b16 %v1015, %v987
        %v1040 = vshrl.u32 %v987, 16
        %v1041 = vshrl.u32 %v1015, 16
        %v1042 = vpack.i.b16 %v1041, %v1040
        %v1046 = vpack.i.b16 %v1019, %v991
        %v1048 = vshrl.u32 %v991, 16
        %v1049 = vshrl.u32 %v1019, 16
        %v1050 = vpack.i.b16 %v1049, %v1048
        %1052 = vxpose.xlu0.c.b16.start [1/8] %v1022, 128
        %1053 = vxpose.xlu0.c.b16.cont [2/8] 0, 128
        %1054 = vxpose.xlu0.c.b16.cont [3/8] 0, 128
        %1055 = vxpose.xlu0.c.b16.cont [4/8] 0, 128
        %1056 = vxpose.xlu0.c.b16.cont [5/8] 0, 128
        %1057 = vxpose.xlu0.c.b16.cont [6/8] 0, 128
        %1058 = vxpose.xlu0.c.b16.cont [7/8] 0, 128
        %1059 = vxpose.xlu0.c.b16.end [8/8] 0, 128
        %v1060 = vpop.trf.xlu0
        %v1061 = vpop.trf.xlu0
        %v1062 = vpop.trf.xlu0
        %v1063 = vpop.trf.xlu0
        %v1064 = vpop.trf.xlu0
        %v1065 = vpop.trf.xlu0
        %v1066 = vpop.trf.xlu0
        %v1067 = vpop.trf.xlu0
        %1068 = vxpose.xlu0.c.b16.start [1/8] %v1026, 128
        %1069 = vxpose.xlu0.c.b16.cont [2/8] 0, 128
        %1070 = vxpose.xlu0.c.b16.cont [3/8] 0, 128
        %1071 = vxpose.xlu0.c.b16.cont [4/8] 0, 128
        %1072 = vxpose.xlu0.c.b16.cont [5/8] 0, 128
        %1073 = vxpose.xlu0.c.b16.cont [6/8] 0, 128
        %1074 = vxpose.xlu0.c.b16.cont [7/8] 0, 128
        %1075 = vxpose.xlu0.c.b16.end [8/8] 0, 128
        %v1076 = vpop.trf.xlu0
        %v1077 = vpop.trf.xlu0
        %v1078 = vpop.trf.xlu0
        %v1079 = vpop.trf.xlu0
        %v1080 = vpop.trf.xlu0
        %v1081 = vpop.trf.xlu0
        %v1082 = vpop.trf.xlu0
        %v1083 = vpop.trf.xlu0
        %1084 = vxpose.xlu0.c.b16.start [1/8] %v1030, 128
        %1085 = vxpose.xlu0.c.b16.cont [2/8] 0, 128
        %1086 = vxpose.xlu0.c.b16.cont [3/8] 0, 128
        %1087 = vxpose.xlu0.c.b16.cont [4/8] 0, 128
        %1088 = vxpose.xlu0.c.b16.cont [5/8] 0, 128
        %1089 = vxpose.xlu0.c.b16.cont [6/8] 0, 128
        %1090 = vxpose.xlu0.c.b16.cont [7/8] 0, 128
        %1091 = vxpose.xlu0.c.b16.end [8/8] 0, 128
        %v1092 = vpop.trf.xlu0
        %v1093 = vpop.trf.xlu0
        %v1094 = vpop.trf.xlu0
        %v1095 = vpop.trf.xlu0
        %v1096 = vpop.trf.xlu0
        %v1097 = vpop.trf.xlu0
        %v1098 = vpop.trf.xlu0
        %v1099 = vpop.trf.xlu0
        %1100 = vxpose.xlu0.c.b16.start [1/8] %v1034, 128
        %1101 = vxpose.xlu0.c.b16.cont [2/8] 0, 128
        %1102 = vxpose.xlu0.c.b16.cont [3/8] 0, 128
        %1103 = vxpose.xlu0.c.b16.cont [4/8] 0, 128
        %1104 = vxpose.xlu0.c.b16.cont [5/8] 0, 128
        %1105 = vxpose.xlu0.c.b16.cont [6/8] 0, 128
        %1106 = vxpose.xlu0.c.b16.cont [7/8] 0, 128
        %1107 = vxpose.xlu0.c.b16.end [8/8] 0, 128
        %v1108 = vpop.trf.xlu0
        %v1109 = vpop.trf.xlu0
        %v1110 = vpop.trf.xlu0
        %v1111 = vpop.trf.xlu0
        %v1112 = vpop.trf.xlu0
        %v1113 = vpop.trf.xlu0
        %v1114 = vpop.trf.xlu0
        %v1115 = vpop.trf.xlu0
        %1116 = vxpose.xlu0.c.b16.start [1/8] %v1038, 128
        %1117 = vxpose.xlu0.c.b16.cont [2/8] 0, 128
        %1118 = vxpose.xlu0.c.b16.cont [3/8] 0, 128
        %1119 = vxpose.xlu0.c.b16.cont [4/8] 0, 128
        %1120 = vxpose.xlu0.c.b16.cont [5/8] 0, 128
        %1121 = vxpose.xlu0.c.b16.cont [6/8] 0, 128
        %1122 = vxpose.xlu0.c.b16.cont [7/8] 0, 128
        %1123 = vxpose.xlu0.c.b16.end [8/8] 0, 128
        %v1124 = vpop.trf.xlu0
        %v1125 = vpop.trf.xlu0
        %v1126 = vpop.trf.xlu0
        %v1127 = vpop.trf.xlu0
        %v1128 = vpop.trf.xlu0
        %v1129 = vpop.trf.xlu0
        %v1130 = vpop.trf.xlu0
        %v1131 = vpop.trf.xlu0
        %1132 = vxpose.xlu0.c.b16.start [1/8] %v1042, 128
        %1133 = vxpose.xlu0.c.b16.cont [2/8] 0, 128
        %1134 = vxpose.xlu0.c.b16.cont [3/8] 0, 128
        %1135 = vxpose.xlu0.c.b16.cont [4/8] 0, 128
        %1136 = vxpose.xlu0.c.b16.cont [5/8] 0, 128
        %1137 = vxpose.xlu0.c.b16.cont [6/8] 0, 128
        %1138 = vxpose.xlu0.c.b16.cont [7/8] 0, 128
        %1139 = vxpose.xlu0.c.b16.end [8/8] 0, 128
        %v1140 = vpop.trf.xlu0
        %v1141 = vpop.trf.xlu0
        %v1142 = vpop.trf.xlu0
        %v1143 = vpop.trf.xlu0
        %v1144 = vpop.trf.xlu0
        %v1145 = vpop.trf.xlu0
        %v1146 = vpop.trf.xlu0
        %v1147 = vpop.trf.xlu0
        %1148 = vxpose.xlu0.c.b16.start [1/8] %v1046, 128
        %1149 = vxpose.xlu0.c.b16.cont [2/8] 0, 128
        %1150 = vxpose.xlu0.c.b16.cont [3/8] 0, 128
        %1151 = vxpose.xlu0.c.b16.cont [4/8] 0, 128
        %1152 = vxpose.xlu0.c.b16.cont [5/8] 0, 128
        %1153 = vxpose.xlu0.c.b16.cont [6/8] 0, 128
        %1154 = vxpose.xlu0.c.b16.cont [7/8] 0, 128
        %1155 = vxpose.xlu0.c.b16.end [8/8] 0, 128
        %v1156 = vpop.trf.xlu0
        %v1157 = vpop.trf.xlu0
        %v1158 = vpop.trf.xlu0
        %v1159 = vpop.trf.xlu0
        %v1160 = vpop.trf.xlu0
        %v1161 = vpop.trf.xlu0
        %v1162 = vpop.trf.xlu0
        %v1163 = vpop.trf.xlu0
        %1164 = vxpose.xlu0.c.b16.start [1/8] %v1050, 128
        %1165 = vxpose.xlu0.c.b16.cont [2/8] 0, 128
        %1166 = vxpose.xlu0.c.b16.cont [3/8] 0, 128
        %1167 = vxpose.xlu0.c.b16.cont [4/8] 0, 128
        %1168 = vxpose.xlu0.c.b16.cont [5/8] 0, 128
        %1169 = vxpose.xlu0.c.b16.cont [6/8] 0, 128
        %1170 = vxpose.xlu0.c.b16.cont [7/8] 0, 128
        %1171 = vxpose.xlu0.c.b16.end [8/8] 0, 128
        %v1172 = vpop.trf.xlu0
        %v1173 = vpop.trf.xlu0
        %v1174 = vpop.trf.xlu0
        %v1175 = vpop.trf.xlu0
        %v1176 = vpop.trf.xlu0
        %v1177 = vpop.trf.xlu0
        %v1178 = vpop.trf.xlu0
        %v1179 = vpop.trf.xlu0
        %v1180 = vrot.slane %v1124, 4
        %v1181 = vsel %vm784, %v1180, %v1060
        %v1183 = vunpack.c.l.s4 1983009808
        %v1184 = vunpack.c.0.s8 %v1183
        %v1185 = vperm.slane %v1181, %v1184
        %v1186 = vrot.slane %v1156, 4
        %v1187 = vsel %vm784, %v1186, %v1092
        %v1189 = vunpack.c.l.s4 1983009808
        %v1190 = vunpack.c.0.s8 %v1189
        %v1191 = vperm.slane %v1187, %v1190
        %v1192 = vrot.slane %v1191, 4
        %v1193 = vsel %vm784, %v1192, %v1185
        %v1195 = vunpack.c.l.s4 1934713408
        %v1196 = vunpack.c.0.s8 %v1195
        %v1197 = vperm.slane %v1193, %v1196
        %v1198 = vrot.slane %v1197, 4
        %v1199 = vsel %vm784, 0, %v1198
        %v1200 = vrot.slane %v1140, 4
        %v1201 = vsel %vm784, %v1200, %v1076
        %v1203 = vunpack.c.l.s4 1983009808
        %v1204 = vunpack.c.0.s8 %v1203
        %v1205 = vperm.slane %v1201, %v1204
        %v1206 = vrot.slane %v1172, 4
        %v1207 = vsel %vm784, %v1206, %v1108
        %v1209 = vunpack.c.l.s4 1983009808
        %v1210 = vunpack.c.0.s8 %v1209
        %v1211 = vperm.slane %v1207, %v1210
        %v1212 = vrot.slane %v1211, 4
        %v1213 = vsel %vm784, %v1212, %v1205
        %v1215 = vunpack.c.l.s4 1934713408
        %v1216 = vunpack.c.0.s8 %v1215
        %v1217 = vperm.slane %v1213, %v1216
        %v1218 = vrot.slane %v1217, 4
        %v1219 = vsel %vm784, 0, %v1218
        %v1222 = vpack.i.b16 %v1217, %v1197
        %v1223 = vshrl.u32 %v1197, 16
        %v1224 = vshrl.u32 %v1217, 16
        %v1225 = vpack.i.b16 %v1224, %v1223
        %v1228 = vpack.i.b16 %v1219, %v1199
        %v1229 = vshrl.u32 %v1199, 16
        %v1230 = vshrl.u32 %v1219, 16
        %v1231 = vpack.i.b16 %v1230, %v1229
        %vm1232 = vcmask 64512
        %v1234 = vsel %vm1232, %v826, 0
        %vm1236 = vcmask 1043456
        %v1238 = vsel %vm1236, %v1222, 0
        %1240 = vmatpush.bf16.msra.mxu0 0
        %1241 = vmatpush.bf16.msra.mxu0 0
        %1242 = vmatpush.bf16.msra.mxu0 0
        %1243 = vmatpush.bf16.msra.mxu0 0
        %1244 = vmatpush.bf16.msra.mxu0 0
        %1245 = vmatpush.bf16.msra.mxu0 0
        %1246 = vmatpush.bf16.msra.mxu0 0
        %1247 = vmatpush.bf16.msra.mxu0 %v1238
        %1248 = vmatmul.bf16.gmra.mxu0 %v1234
        %v1249 = vpop.f32.mrf.mxu0
        %v1250 = vadd.f32 %v557, %v1249
        %v1251 = vpop.f32.mrf.mxu0
        %1252 = vdwg.mxu0
        %v1254 = vsel %vm1232, %v829, 0
        %v1257 = vsel %vm1236, %v1225, 0
        %1259 = vmatpush.bf16.msra.mxu0 0
        %1260 = vmatpush.bf16.msra.mxu0 0
        %1261 = vmatpush.bf16.msra.mxu0 0
        %1262 = vmatpush.bf16.msra.mxu0 0
        %1263 = vmatpush.bf16.msra.mxu0 0
        %1264 = vmatpush.bf16.msra.mxu0 0
        %1265 = vmatpush.bf16.msra.mxu0 0
        %1266 = vmatpush.bf16.msra.mxu0 %v1257
        %1267 = vmatmul.bf16.gmra.mxu0 %v1254
        %v1268 = vpop.f32.mrf.mxu0
        %v1269 = vadd.f32 %v557, %v1268
        %v1270 = vpop.f32.mrf.mxu0
        %1271 = vdwg.mxu0
        %v1273 = vsel %vm1232, %v832, 0
        %v1276 = vsel %vm1236, %v1228, 0
        %1278 = vmatpush.bf16.msra.mxu0 0
        %1279 = vmatpush.bf16.msra.mxu0 0
        %1280 = vmatpush.bf16.msra.mxu0 0
        %1281 = vmatpush.bf16.msra.mxu0 0
        %1282 = vmatpush.bf16.msra.mxu0 0
        %1283 = vmatpush.bf16.msra.mxu0 0
        %1284 = vmatpush.bf16.msra.mxu0 0
        %1285 = vmatpush.bf16.msra.mxu0 %v1276
        %1286 = vmatmul.bf16.gmra.mxu0 %v1273
        %v1287 = vpop.f32.mrf.mxu0
        %v1288 = vadd.f32 %v557, %v1287
        %v1289 = vpop.f32.mrf.mxu0
        %1290 = vdwg.mxu0
        %v1292 = vsel %vm1232, %v835, 0
        %v1295 = vsel %vm1236, %v1231, 0
        %1297 = vmatpush.bf16.msra.mxu0 0
        %1298 = vmatpush.bf16.msra.mxu0 0
        %1299 = vmatpush.bf16.msra.mxu0 0
        %1300 = vmatpush.bf16.msra.mxu0 0
        %1301 = vmatpush.bf16.msra.mxu0 0
        %1302 = vmatpush.bf16.msra.mxu0 0
        %1303 = vmatpush.bf16.msra.mxu0 0
        %1304 = vmatpush.bf16.msra.mxu0 %v1295
        %1305 = vmatmul.bf16.gmra.mxu0 %v1292
        %v1306 = vpop.f32.mrf.mxu0
        %v1307 = vadd.f32 %v557, %v1306
        %v1308 = vpop.f32.mrf.mxu0
        %1309 = vdwg.mxu0
        %v1310 = vsel %vm1232, %v1250, -inf
        %1311 = vmax.xlane.f32.xlu0 %v1310
        %v1312 = vpop.xlane.xlu0 %1311
        %v1313 = vsel %vm1232, %v1269, -inf
        %1314 = vmax.xlane.f32.xlu0 %v1313
        %v1315 = vpop.xlane.xlu0 %1314
        %v1316 = vsel %vm1232, %v1288, -inf
        %1317 = vmax.xlane.f32.xlu0 %v1316
        %v1318 = vpop.xlane.xlu0 %1317
        %v1319 = vsel %vm1232, %v1307, -inf
        %1320 = vmax.xlane.f32.xlu0 %v1319
        %v1321 = vpop.xlane.xlu0 %1320
        %v1322 = vsub.f32 %v1250, %v1312
        %v1323 = vsub.f32 %v1269, %v1315
        %v1324 = vsub.f32 %v1288, %v1318
        %v1325 = vsub.f32 %v1307, %v1321
        %v1326 = vmul.f32 %v1322, 1.442695
        %v1327 = vpow.pop %v1326
        %v1328 = vmul.f32 %v1323, 1.442695
        %v1329 = vpow.pop %v1328
        %v1330 = vmul.f32 %v1324, 1.442695
        %v1331 = vpow.pop %v1330
        %v1332 = vmul.f32 %v1325, 1.442695
        %v1333 = vpow.pop %v1332
        %v1334 = vsel %vm1232, %v1327, 0.0
        %1335 = vadd.xlane.f32.xlu0 %v1334
        %v1336 = vpop.xlane.xlu0 %1335
        %v1337 = vsel %vm1232, %v1329, 0.0
        %1338 = vadd.xlane.f32.xlu0 %v1337
        %v1339 = vpop.xlane.xlu0 %1338
        %v1340 = vsel %vm1232, %v1331, 0.0
        %1341 = vadd.xlane.f32.xlu0 %v1340
        %v1342 = vpop.xlane.xlu0 %1341
        %v1343 = vsel %vm1232, %v1333, 0.0
        %1344 = vadd.xlane.f32.xlu0 %v1343
        %v1345 = vpop.xlane.xlu0 %1344
        %v1346 = vrcp.pop %v1336
        %v1347 = vmul.f32 %v1336, %v1346
        %v1348 = vsub.f32 1.0, %v1347
        %v1349 = vmul.f32 %v1346, %v1348
        %v1350 = vadd.f32 %v1346, %v1349
        %vm1351 = vweird.f32 %v1336
        %vm1352 = vweird.f32 %v1346
        %vm1353 = vmor %vm1351, %vm1352
        %v1354 = vsel %vm1353, %v1346, %v1350
        %v1355 = vand.u32 2147483647, %v1336
        %vm1356 = vcmp.eq.f32.partialorder %v1355, 8.507059e+37
        %v1357 = vand.u32 %v1336, 2147483648
        %v1358 = vor.u32 1.1754944e-38, %v1357
        %v1359 = vsel %vm1356, %v1358, %v1354
        %v1360 = vrcp.pop %v1339
        %v1361 = vmul.f32 %v1339, %v1360
        %v1362 = vsub.f32 1.0, %v1361
        %v1363 = vmul.f32 %v1360, %v1362
        %v1364 = vadd.f32 %v1360, %v1363
        %vm1365 = vweird.f32 %v1339
        %vm1366 = vweird.f32 %v1360
        %vm1367 = vmor %vm1365, %vm1366
        %v1368 = vsel %vm1367, %v1360, %v1364
        %v1369 = vand.u32 2147483647, %v1339
        %vm1370 = vcmp.eq.f32.partialorder %v1369, 8.507059e+37
        %v1371 = vand.u32 %v1339, 2147483648
        %v1372 = vor.u32 1.1754944e-38, %v1371
        %v1373 = vsel %vm1370, %v1372, %v1368
        %v1374 = vrcp.pop %v1342
        %v1375 = vmul.f32 %v1342, %v1374
        %v1376 = vsub.f32 1.0, %v1375
        %v1377 = vmul.f32 %v1374, %v1376
        %v1378 = vadd.f32 %v1374, %v1377
        %vm1379 = vweird.f32 %v1342
        %vm1380 = vweird.f32 %v1374
        %vm1381 = vmor %vm1379, %vm1380
        %v1382 = vsel %vm1381, %v1374, %v1378
        %v1383 = vand.u32 2147483647, %v1342
        %vm1384 = vcmp.eq.f32.partialorder %v1383, 8.507059e+37
        %v1385 = vand.u32 %v1342, 2147483648
        %v1386 = vor.u32 1.1754944e-38, %v1385
        %v1387 = vsel %vm1384, %v1386, %v1382
        %v1388 = vrcp.pop %v1345
        %v1389 = vmul.f32 %v1345, %v1388
        %v1390 = vsub.f32 1.0, %v1389
        %v1391 = vmul.f32 %v1388, %v1390
        %v1392 = vadd.f32 %v1388, %v1391
        %vm1393 = vweird.f32 %v1345
        %vm1394 = vweird.f32 %v1388
        %vm1395 = vmor %vm1393, %vm1394
        %v1396 = vsel %vm1395, %v1388, %v1392
        %v1397 = vand.u32 2147483647, %v1345
        %vm1398 = vcmp.eq.f32.partialorder %v1397, 8.507059e+37
        %v1399 = vand.u32 %v1345, 2147483648
        %v1400 = vor.u32 1.1754944e-38, %v1399
        %v1401 = vsel %vm1398, %v1400, %v1396
        %v1402 = vmul.f32 %v1327, %v1359
        %v1403 = vmul.f32 %v1329, %v1373
        %v1404 = vmul.f32 %v1331, %v1387
        %v1405 = vmul.f32 %v1333, %v1401
        %v1406 = vpack.c.bf16 %v1402, %v1402
        %v1407 = vpack.c.bf16 %v1403, %v1403
        %v1408 = vpack.c.bf16 %v1404, %v1404
        %v1409 = vpack.c.bf16 %v1405, %v1405
        %1410 = vxpose.xlu0.c.b16.start [1/8] %v775, 128
        %1411 = vxpose.xlu0.c.b16.cont [2/8] 0, 128
        %1412 = vxpose.xlu0.c.b16.cont [3/8] 0, 128
        %1413 = vxpose.xlu0.c.b16.cont [4/8] 0, 128
        %1414 = vxpose.xlu0.c.b16.cont [5/8] 0, 128
        %1415 = vxpose.xlu0.c.b16.cont [6/8] 0, 128
        %1416 = vxpose.xlu0.c.b16.cont [7/8] 0, 128
        %1417 = vxpose.xlu0.c.b16.end [8/8] 0, 128
        %v1418 = vpop.trf.xlu0
        %v1419 = vpop.trf.xlu0
        %v1420 = vpop.trf.xlu0
        %v1421 = vpop.trf.xlu0
        %v1422 = vpop.trf.xlu0
        %v1423 = vpop.trf.xlu0
        %v1424 = vpop.trf.xlu0
        %v1425 = vpop.trf.xlu0
        %1426 = vxpose.xlu0.c.b16.start [1/8] %v776, 128
        %1427 = vxpose.xlu0.c.b16.cont [2/8] 0, 128
        %1428 = vxpose.xlu0.c.b16.cont [3/8] 0, 128
        %1429 = vxpose.xlu0.c.b16.cont [4/8] 0, 128
        %1430 = vxpose.xlu0.c.b16.cont [5/8] 0, 128
        %1431 = vxpose.xlu0.c.b16.cont [6/8] 0, 128
        %1432 = vxpose.xlu0.c.b16.cont [7/8] 0, 128
        %1433 = vxpose.xlu0.c.b16.end [8/8] 0, 128
        %v1434 = vpop.trf.xlu0
        %v1435 = vpop.trf.xlu0
        %v1436 = vpop.trf.xlu0
        %v1437 = vpop.trf.xlu0
        %v1438 = vpop.trf.xlu0
        %v1439 = vpop.trf.xlu0
        %v1440 = vpop.trf.xlu0
        %v1441 = vpop.trf.xlu0
        %1442 = vxpose.xlu0.c.b16.start [1/8] %v777, 128
        %1443 = vxpose.xlu0.c.b16.cont [2/8] 0, 128
        %1444 = vxpose.xlu0.c.b16.cont [3/8] 0, 128
        %1445 = vxpose.xlu0.c.b16.cont [4/8] 0, 128
        %1446 = vxpose.xlu0.c.b16.cont [5/8] 0, 128
        %1447 = vxpose.xlu0.c.b16.cont [6/8] 0, 128
        %1448 = vxpose.xlu0.c.b16.cont [7/8] 0, 128
        %1449 = vxpose.xlu0.c.b16.end [8/8] 0, 128
        %v1450 = vpop.trf.xlu0
        %v1451 = vpop.trf.xlu0
        %v1452 = vpop.trf.xlu0
        %v1453 = vpop.trf.xlu0
        %v1454 = vpop.trf.xlu0
        %v1455 = vpop.trf.xlu0
        %v1456 = vpop.trf.xlu0
        %v1457 = vpop.trf.xlu0
        %1458 = vxpose.xlu0.c.b16.start [1/8] %v778, 128
        %1459 = vxpose.xlu0.c.b16.cont [2/8] 0, 128
        %1460 = vxpose.xlu0.c.b16.cont [3/8] 0, 128
        %1461 = vxpose.xlu0.c.b16.cont [4/8] 0, 128
        %1462 = vxpose.xlu0.c.b16.cont [5/8] 0, 128
        %1463 = vxpose.xlu0.c.b16.cont [6/8] 0, 128
        %1464 = vxpose.xlu0.c.b16.cont [7/8] 0, 128
        %1465 = vxpose.xlu0.c.b16.end [8/8] 0, 128
        %v1466 = vpop.trf.xlu0
        %v1467 = vpop.trf.xlu0
        %v1468 = vpop.trf.xlu0
        %v1469 = vpop.trf.xlu0
        %v1470 = vpop.trf.xlu0
        %v1471 = vpop.trf.xlu0
        %v1472 = vpop.trf.xlu0
        %v1473 = vpop.trf.xlu0
        %1474 = vxpose.xlu0.c.b16.start [1/8] %v779, 128
        %1475 = vxpose.xlu0.c.b16.cont [2/8] 0, 128
        %1476 = vxpose.xlu0.c.b16.cont [3/8] 0, 128
        %1477 = vxpose.xlu0.c.b16.cont [4/8] 0, 128
        %1478 = vxpose.xlu0.c.b16.cont [5/8] 0, 128
        %1479 = vxpose.xlu0.c.b16.cont [6/8] 0, 128
        %1480 = vxpose.xlu0.c.b16.cont [7/8] 0, 128
        %1481 = vxpose.xlu0.c.b16.end [8/8] 0, 128
        %v1482 = vpop.trf.xlu0
        %v1483 = vpop.trf.xlu0
        %v1484 = vpop.trf.xlu0
        %v1485 = vpop.trf.xlu0
        %v1486 = vpop.trf.xlu0
        %v1487 = vpop.trf.xlu0
        %v1488 = vpop.trf.xlu0
        %v1489 = vpop.trf.xlu0
        %1490 = vxpose.xlu0.c.b16.start [1/8] %v780, 128
        %1491 = vxpose.xlu0.c.b16.cont [2/8] 0, 128
        %1492 = vxpose.xlu0.c.b16.cont [3/8] 0, 128
        %1493 = vxpose.xlu0.c.b16.cont [4/8] 0, 128
        %1494 = vxpose.xlu0.c.b16.cont [5/8] 0, 128
        %1495 = vxpose.xlu0.c.b16.cont [6/8] 0, 128
        %1496 = vxpose.xlu0.c.b16.cont [7/8] 0, 128
        %1497 = vxpose.xlu0.c.b16.end [8/8] 0, 128
        %v1498 = vpop.trf.xlu0
        %v1499 = vpop.trf.xlu0
        %v1500 = vpop.trf.xlu0
        %v1501 = vpop.trf.xlu0
        %v1502 = vpop.trf.xlu0
        %v1503 = vpop.trf.xlu0
        %v1504 = vpop.trf.xlu0
        %v1505 = vpop.trf.xlu0
        %1506 = vxpose.xlu0.c.b16.start [1/8] %v781, 128
        %1507 = vxpose.xlu0.c.b16.cont [2/8] 0, 128
        %1508 = vxpose.xlu0.c.b16.cont [3/8] 0, 128
        %1509 = vxpose.xlu0.c.b16.cont [4/8] 0, 128
        %1510 = vxpose.xlu0.c.b16.cont [5/8] 0, 128
        %1511 = vxpose.xlu0.c.b16.cont [6/8] 0, 128
        %1512 = vxpose.xlu0.c.b16.cont [7/8] 0, 128
        %1513 = vxpose.xlu0.c.b16.end [8/8] 0, 128
        %v1514 = vpop.trf.xlu0
        %v1515 = vpop.trf.xlu0
        %v1516 = vpop.trf.xlu0
        %v1517 = vpop.trf.xlu0
        %v1518 = vpop.trf.xlu0
        %v1519 = vpop.trf.xlu0
        %v1520 = vpop.trf.xlu0
        %v1521 = vpop.trf.xlu0
        %1522 = vxpose.xlu0.c.b16.start [1/8] %v782, 128
        %1523 = vxpose.xlu0.c.b16.cont [2/8] 0, 128
        %1524 = vxpose.xlu0.c.b16.cont [3/8] 0, 128
        %1525 = vxpose.xlu0.c.b16.cont [4/8] 0, 128
        %1526 = vxpose.xlu0.c.b16.cont [5/8] 0, 128
        %1527 = vxpose.xlu0.c.b16.cont [6/8] 0, 128
        %1528 = vxpose.xlu0.c.b16.cont [7/8] 0, 128
        %1529 = vxpose.xlu0.c.b16.end [8/8] 0, 128
        %v1530 = vpop.trf.xlu0
        %v1531 = vpop.trf.xlu0
        %v1532 = vpop.trf.xlu0
        %v1533 = vpop.trf.xlu0
        %v1534 = vpop.trf.xlu0
        %v1535 = vpop.trf.xlu0
        %v1536 = vpop.trf.xlu0
        %v1537 = vpop.trf.xlu0
        %v1538 = vrot.slane %v1482, 4
        %v1539 = vsel %vm784, %v1538, %v1418
        %v1541 = vunpack.c.l.s4 1983009808
        %v1542 = vunpack.c.0.s8 %v1541
        %v1543 = vperm.slane %v1539, %v1542
        %v1544 = vrot.slane %v1514, 4
        %v1545 = vsel %vm784, %v1544, %v1450
        %v1547 = vunpack.c.l.s4 1983009808
        %v1548 = vunpack.c.0.s8 %v1547
        %v1549 = vperm.slane %v1545, %v1548
        %v1550 = vrot.slane %v1549, 4
        %v1551 = vsel %vm784, %v1550, %v1543
        %v1552 = vrot.slane %v1543, 4
        %v1553 = vsel %vm784, %v1549, %v1552
        %v1555 = vunpack.c.l.s4 1934713408
        %v1556 = vunpack.c.0.s8 %v1555
        %v1557 = vperm.slane %v1551, %v1556
        %v1559 = vunpack.c.l.s4 1934713408
        %v1560 = vunpack.c.0.s8 %v1559
        %v1561 = vperm.slane %v1553, %v1560
        %v1562 = vrot.slane %v1557, 4
        %v1563 = vsel %vm784, 0, %v1562
        %v1564 = vrot.slane %v1561, 4
        %v1565 = vsel %vm784, 0, %v1564
        %v1566 = vrot.slane %v1498, 4
        %v1567 = vsel %vm784, %v1566, %v1434
        %v1569 = vunpack.c.l.s4 1983009808
        %v1570 = vunpack.c.0.s8 %v1569
        %v1571 = vperm.slane %v1567, %v1570
        %v1572 = vrot.slane %v1530, 4
        %v1573 = vsel %vm784, %v1572, %v1466
        %v1575 = vunpack.c.l.s4 1983009808
        %v1576 = vunpack.c.0.s8 %v1575
        %v1577 = vperm.slane %v1573, %v1576
        %v1578 = vrot.slane %v1577, 4
        %v1579 = vsel %vm784, %v1578, %v1571
        %v1580 = vrot.slane %v1571, 4
        %v1581 = vsel %vm784, %v1577, %v1580
        %v1583 = vunpack.c.l.s4 1934713408
        %v1584 = vunpack.c.0.s8 %v1583
        %v1585 = vperm.slane %v1579, %v1584
        %v1587 = vunpack.c.l.s4 1934713408
        %v1588 = vunpack.c.0.s8 %v1587
        %v1589 = vperm.slane %v1581, %v1588
        %v1590 = vrot.slane %v1585, 4
        %v1591 = vsel %vm784, 0, %v1590
        %v1592 = vrot.slane %v1589, 4
        %v1593 = vsel %vm784, 0, %v1592
        %v1596 = vpack.i.b16 %v1585, %v1557
        %v1598 = vshrl.u32 %v1557, 16
        %v1599 = vshrl.u32 %v1585, 16
        %v1600 = vpack.i.b16 %v1599, %v1598
        %v1604 = vpack.i.b16 %v1591, %v1563
        %v1606 = vshrl.u32 %v1563, 16
        %v1607 = vshrl.u32 %v1591, 16
        %v1608 = vpack.i.b16 %v1607, %v1606
        %v1612 = vpack.i.b16 %v1589, %v1561
        %v1614 = vshrl.u32 %v1561, 16
        %v1615 = vshrl.u32 %v1589, 16
        %v1616 = vpack.i.b16 %v1615, %v1614
        %v1620 = vpack.i.b16 %v1593, %v1565
        %v1622 = vshrl.u32 %v1565, 16
        %v1623 = vshrl.u32 %v1593, 16
        %v1624 = vpack.i.b16 %v1623, %v1622
        %1626 = vxpose.xlu0.c.b16.start [1/8] %v1596, 128
        %1627 = vxpose.xlu0.c.b16.cont [2/8] 0, 128
        %1628 = vxpose.xlu0.c.b16.cont [3/8] 0, 128
        %1629 = vxpose.xlu0.c.b16.cont [4/8] 0, 128
        %1630 = vxpose.xlu0.c.b16.cont [5/8] 0, 128
        %1631 = vxpose.xlu0.c.b16.cont [6/8] 0, 128
        %1632 = vxpose.xlu0.c.b16.cont [7/8] 0, 128
        %1633 = vxpose.xlu0.c.b16.end [8/8] 0, 128
        %v1634 = vpop.trf.xlu0
        %v1635 = vpop.trf.xlu0
        %v1636 = vpop.trf.xlu0
        %v1637 = vpop.trf.xlu0
        %v1638 = vpop.trf.xlu0
        %v1639 = vpop.trf.xlu0
        %v1640 = vpop.trf.xlu0
        %v1641 = vpop.trf.xlu0
        %1642 = vxpose.xlu0.c.b16.start [1/8] %v1600, 128
        %1643 = vxpose.xlu0.c.b16.cont [2/8] 0, 128
        %1644 = vxpose.xlu0.c.b16.cont [3/8] 0, 128
        %1645 = vxpose.xlu0.c.b16.cont [4/8] 0, 128
        %1646 = vxpose.xlu0.c.b16.cont [5/8] 0, 128
        %1647 = vxpose.xlu0.c.b16.cont [6/8] 0, 128
        %1648 = vxpose.xlu0.c.b16.cont [7/8] 0, 128
        %1649 = vxpose.xlu0.c.b16.end [8/8] 0, 128
        %v1650 = vpop.trf.xlu0
        %v1651 = vpop.trf.xlu0
        %v1652 = vpop.trf.xlu0
        %v1653 = vpop.trf.xlu0
        %v1654 = vpop.trf.xlu0
        %v1655 = vpop.trf.xlu0
        %v1656 = vpop.trf.xlu0
        %v1657 = vpop.trf.xlu0
        %1658 = vxpose.xlu0.c.b16.start [1/8] %v1604, 128
        %1659 = vxpose.xlu0.c.b16.cont [2/8] 0, 128
        %1660 = vxpose.xlu0.c.b16.cont [3/8] 0, 128
        %1661 = vxpose.xlu0.c.b16.cont [4/8] 0, 128
        %1662 = vxpose.xlu0.c.b16.cont [5/8] 0, 128
        %1663 = vxpose.xlu0.c.b16.cont [6/8] 0, 128
        %1664 = vxpose.xlu0.c.b16.cont [7/8] 0, 128
        %1665 = vxpose.xlu0.c.b16.end [8/8] 0, 128
        %v1666 = vpop.trf.xlu0
        %v1667 = vpop.trf.xlu0
        %v1668 = vpop.trf.xlu0
        %v1669 = vpop.trf.xlu0
        %v1670 = vpop.trf.xlu0
        %v1671 = vpop.trf.xlu0
        %v1672 = vpop.trf.xlu0
        %v1673 = vpop.trf.xlu0
        %1674 = vxpose.xlu0.c.b16.start [1/8] %v1608, 128
        %1675 = vxpose.xlu0.c.b16.cont [2/8] 0, 128
        %1676 = vxpose.xlu0.c.b16.cont [3/8] 0, 128
        %1677 = vxpose.xlu0.c.b16.cont [4/8] 0, 128
        %1678 = vxpose.xlu0.c.b16.cont [5/8] 0, 128
        %1679 = vxpose.xlu0.c.b16.cont [6/8] 0, 128
        %1680 = vxpose.xlu0.c.b16.cont [7/8] 0, 128
        %1681 = vxpose.xlu0.c.b16.end [8/8] 0, 128
        %v1682 = vpop.trf.xlu0
        %v1683 = vpop.trf.xlu0
        %v1684 = vpop.trf.xlu0
        %v1685 = vpop.trf.xlu0
        %v1686 = vpop.trf.xlu0
        %v1687 = vpop.trf.xlu0
        %v1688 = vpop.trf.xlu0
        %v1689 = vpop.trf.xlu0
        %1690 = vxpose.xlu0.c.b16.start [1/8] %v1612, 128
        %1691 = vxpose.xlu0.c.b16.cont [2/8] 0, 128
        %1692 = vxpose.xlu0.c.b16.cont [3/8] 0, 128
        %1693 = vxpose.xlu0.c.b16.cont [4/8] 0, 128
        %1694 = vxpose.xlu0.c.b16.cont [5/8] 0, 128
        %1695 = vxpose.xlu0.c.b16.cont [6/8] 0, 128
        %1696 = vxpose.xlu0.c.b16.cont [7/8] 0, 128
        %1697 = vxpose.xlu0.c.b16.end [8/8] 0, 128
        %v1698 = vpop.trf.xlu0
        %v1699 = vpop.trf.xlu0
        %v1700 = vpop.trf.xlu0
        %v1701 = vpop.trf.xlu0
        %v1702 = vpop.trf.xlu0
        %v1703 = vpop.trf.xlu0
        %v1704 = vpop.trf.xlu0
        %v1705 = vpop.trf.xlu0
        %1706 = vxpose.xlu0.c.b16.start [1/8] %v1616, 128
        %1707 = vxpose.xlu0.c.b16.cont [2/8] 0, 128
        %1708 = vxpose.xlu0.c.b16.cont [3/8] 0, 128
        %1709 = vxpose.xlu0.c.b16.cont [4/8] 0, 128
        %1710 = vxpose.xlu0.c.b16.cont [5/8] 0, 128
        %1711 = vxpose.xlu0.c.b16.cont [6/8] 0, 128
        %1712 = vxpose.xlu0.c.b16.cont [7/8] 0, 128
        %1713 = vxpose.xlu0.c.b16.end [8/8] 0, 128
        %v1714 = vpop.trf.xlu0
        %v1715 = vpop.trf.xlu0
        %v1716 = vpop.trf.xlu0
        %v1717 = vpop.trf.xlu0
        %v1718 = vpop.trf.xlu0
        %v1719 = vpop.trf.xlu0
        %v1720 = vpop.trf.xlu0
        %v1721 = vpop.trf.xlu0
        %1722 = vxpose.xlu0.c.b16.start [1/8] %v1620, 128
        %1723 = vxpose.xlu0.c.b16.cont [2/8] 0, 128
        %1724 = vxpose.xlu0.c.b16.cont [3/8] 0, 128
        %1725 = vxpose.xlu0.c.b16.cont [4/8] 0, 128
        %1726 = vxpose.xlu0.c.b16.cont [5/8] 0, 128
        %1727 = vxpose.xlu0.c.b16.cont [6/8] 0, 128
        %1728 = vxpose.xlu0.c.b16.cont [7/8] 0, 128
        %1729 = vxpose.xlu0.c.b16.end [8/8] 0, 128
        %v1730 = vpop.trf.xlu0
        %v1731 = vpop.trf.xlu0
        %v1732 = vpop.trf.xlu0
        %v1733 = vpop.trf.xlu0
        %v1734 = vpop.trf.xlu0
        %v1735 = vpop.trf.xlu0
        %v1736 = vpop.trf.xlu0
        %v1737 = vpop.trf.xlu0
        %1738 = vxpose.xlu0.c.b16.start [1/8] %v1624, 128
        %1739 = vxpose.xlu0.c.b16.cont [2/8] 0, 128
        %1740 = vxpose.xlu0.c.b16.cont [3/8] 0, 128
        %1741 = vxpose.xlu0.c.b16.cont [4/8] 0, 128
        %1742 = vxpose.xlu0.c.b16.cont [5/8] 0, 128
        %1743 = vxpose.xlu0.c.b16.cont [6/8] 0, 128
        %1744 = vxpose.xlu0.c.b16.cont [7/8] 0, 128
        %1745 = vxpose.xlu0.c.b16.end [8/8] 0, 128
        %v1746 = vpop.trf.xlu0
        %v1747 = vpop.trf.xlu0
        %v1748 = vpop.trf.xlu0
        %v1749 = vpop.trf.xlu0
        %v1750 = vpop.trf.xlu0
        %v1751 = vpop.trf.xlu0
        %v1752 = vpop.trf.xlu0
        %v1753 = vpop.trf.xlu0
        %v1754 = vrot.slane %v1698, 4
        %v1755 = vsel %vm784, %v1754, %v1634
        %v1757 = vunpack.c.l.s4 1983009808
        %v1758 = vunpack.c.0.s8 %v1757
        %v1759 = vperm.slane %v1755, %v1758
        %v1760 = vrot.slane %v1730, 4
        %v1761 = vsel %vm784, %v1760, %v1666
        %v1763 = vunpack.c.l.s4 1983009808
        %v1764 = vunpack.c.0.s8 %v1763
        %v1765 = vperm.slane %v1761, %v1764
        %v1766 = vrot.slane %v1765, 4
        %v1767 = vsel %vm784, %v1766, %v1759
        %v1769 = vunpack.c.l.s4 1934713408
        %v1770 = vunpack.c.0.s8 %v1769
        %v1771 = vperm.slane %v1767, %v1770
        %v1772 = vrot.slane %v1771, 4
        %v1773 = vsel %vm784, 0, %v1772
        %v1774 = vrot.slane %v1714, 4
        %v1775 = vsel %vm784, %v1774, %v1650
        %v1777 = vunpack.c.l.s4 1983009808
        %v1778 = vunpack.c.0.s8 %v1777
        %v1779 = vperm.slane %v1775, %v1778
        %v1780 = vrot.slane %v1746, 4
        %v1781 = vsel %vm784, %v1780, %v1682
        %v1783 = vunpack.c.l.s4 1983009808
        %v1784 = vunpack.c.0.s8 %v1783
        %v1785 = vperm.slane %v1781, %v1784
        %v1786 = vrot.slane %v1785, 4
        %v1787 = vsel %vm784, %v1786, %v1779
        %v1789 = vunpack.c.l.s4 1934713408
        %v1790 = vunpack.c.0.s8 %v1789
        %v1791 = vperm.slane %v1787, %v1790
        %v1792 = vrot.slane %v1791, 4
        %v1793 = vsel %vm784, 0, %v1792
        %v1796 = vpack.i.b16 %v1791, %v1771
        %v1797 = vshrl.u32 %v1771, 16
        %v1798 = vshrl.u32 %v1791, 16
        %v1799 = vpack.i.b16 %v1798, %v1797
        %v1802 = vpack.i.b16 %v1793, %v1773
        %v1803 = vshrl.u32 %v1773, 16
        %v1804 = vshrl.u32 %v1793, 16
        %v1805 = vpack.i.b16 %v1804, %v1803
        %v1807 = vsel %vm1232, %v1796, 0
        %v1810 = vsel %vm1232, %v1406, 0
        %1812 = vmatpush.bf16.xpose.msra.mxu0 0
        %1813 = vmatpush.bf16.xpose.msra.mxu0 0
        %1814 = vmatpush.bf16.xpose.msra.mxu0 0
        %1815 = vmatpush.bf16.xpose.msra.mxu0 0
        %1816 = vmatpush.bf16.xpose.msra.mxu0 0
        %1817 = vmatpush.bf16.xpose.msra.mxu0 0
        %1818 = vmatpush.bf16.xpose.msra.mxu0 0
        %1819 = vmatpush.bf16.xpose.msra.mxu0 %v1810
        %1820 = vmatmul.bf16.gmra.mxu0 %v1807
        %v1821 = vpop.f32.mrf.mxu0
        %v1822 = vadd.f32 0.0, %v1821
        %v1823 = vpop.f32.mrf.mxu0
        %1824 = vdwg.mxu0
        %v1826 = vsel %vm1232, %v1799, 0
        %v1829 = vsel %vm1232, %v1407, 0
        %1831 = vmatpush.bf16.xpose.msra.mxu0 0
        %1832 = vmatpush.bf16.xpose.msra.mxu0 0
        %1833 = vmatpush.bf16.xpose.msra.mxu0 0
        %1834 = vmatpush.bf16.xpose.msra.mxu0 0
        %1835 = vmatpush.bf16.xpose.msra.mxu0 0
        %1836 = vmatpush.bf16.xpose.msra.mxu0 0
        %1837 = vmatpush.bf16.xpose.msra.mxu0 0
        %1838 = vmatpush.bf16.xpose.msra.mxu0 %v1829
        %1839 = vmatmul.bf16.gmra.mxu0 %v1826
        %v1840 = vpop.f32.mrf.mxu0
        %v1841 = vadd.f32 0.0, %v1840
        %v1842 = vpop.f32.mrf.mxu0
        %1843 = vdwg.mxu0
        %v1845 = vsel %vm1232, %v1802, 0
        %v1848 = vsel %vm1232, %v1408, 0
        %1850 = vmatpush.bf16.xpose.msra.mxu0 0
        %1851 = vmatpush.bf16.xpose.msra.mxu0 0
        %1852 = vmatpush.bf16.xpose.msra.mxu0 0
        %1853 = vmatpush.bf16.xpose.msra.mxu0 0
        %1854 = vmatpush.bf16.xpose.msra.mxu0 0
        %1855 = vmatpush.bf16.xpose.msra.mxu0 0
        %1856 = vmatpush.bf16.xpose.msra.mxu0 0
        %1857 = vmatpush.bf16.xpose.msra.mxu0 %v1848
        %1858 = vmatmul.bf16.gmra.mxu0 %v1845
        %v1859 = vpop.f32.mrf.mxu0
        %v1860 = vadd.f32 0.0, %v1859
        %v1861 = vpop.f32.mrf.mxu0
        %1862 = vdwg.mxu0
        %v1864 = vsel %vm1232, %v1805, 0
        %v1867 = vsel %vm1232, %v1409, 0
        %1869 = vmatpush.bf16.xpose.msra.mxu0 0
        %1870 = vmatpush.bf16.xpose.msra.mxu0 0
        %1871 = vmatpush.bf16.xpose.msra.mxu0 0
        %1872 = vmatpush.bf16.xpose.msra.mxu0 0
        %1873 = vmatpush.bf16.xpose.msra.mxu0 0
        %1874 = vmatpush.bf16.xpose.msra.mxu0 0
        %1875 = vmatpush.bf16.xpose.msra.mxu0 0
        %1876 = vmatpush.bf16.xpose.msra.mxu0 %v1867
        %1877 = vmatmul.bf16.gmra.mxu0 %v1864
        %v1878 = vpop.f32.mrf.mxu0
        %v1879 = vadd.f32 0.0, %v1878
        %v1880 = vpop.f32.mrf.mxu0
        %1881 = vdwg.mxu0
        %1882 = vxpose.xlu0.b32.start [1/16] %v1822, 128
        %1883 = vxpose.xlu0.b32.cont [2/16] 0.0, 128
        %1884 = vxpose.xlu0.b32.cont [3/16] 0.0, 128
        %1885 = vxpose.xlu0.b32.cont [4/16] 0.0, 128
        %1886 = vxpose.xlu0.b32.cont [5/16] 0.0, 128
        %1887 = vxpose.xlu0.b32.cont [6/16] 0.0, 128
        %1888 = vxpose.xlu0.b32.cont [7/16] 0.0, 128
        %1889 = vxpose.xlu0.b32.cont [8/16] 0.0, 128
        %1890 = vxpose.xlu0.b32.cont [9/16] 0.0, 128
        %1891 = vxpose.xlu0.b32.cont [10/16] 0.0, 128
        %1892 = vxpose.xlu0.b32.cont [11/16] 0.0, 128
        %1893 = vxpose.xlu0.b32.cont [12/16] 0.0, 128
        %1894 = vxpose.xlu0.b32.cont [13/16] 0.0, 128
        %1895 = vxpose.xlu0.b32.cont [14/16] 0.0, 128
        %1896 = vxpose.xlu0.b32.cont [15/16] 0.0, 128
        %1897 = vxpose.xlu0.b32.end [16/16] 0.0, 128
        %v1898 = vpop.trf.xlu0
        %v1899 = vpop.trf.xlu0
        %v1900 = vpop.trf.xlu0
        %v1901 = vpop.trf.xlu0
        %v1902 = vpop.trf.xlu0
        %v1903 = vpop.trf.xlu0
        %v1904 = vpop.trf.xlu0
        %v1905 = vpop.trf.xlu0
        %v1906 = vpop.trf.xlu0
        %v1907 = vpop.trf.xlu0
        %v1908 = vpop.trf.xlu0
        %v1909 = vpop.trf.xlu0
        %v1910 = vpop.trf.xlu0
        %v1911 = vpop.trf.xlu0
        %v1912 = vpop.trf.xlu0
        %v1913 = vpop.trf.xlu0
        %1914 = vxpose.xlu0.b32.start [1/16] %v1841, 128
        %1915 = vxpose.xlu0.b32.cont [2/16] 0.0, 128
        %1916 = vxpose.xlu0.b32.cont [3/16] 0.0, 128
        %1917 = vxpose.xlu0.b32.cont [4/16] 0.0, 128
        %1918 = vxpose.xlu0.b32.cont [5/16] 0.0, 128
        %1919 = vxpose.xlu0.b32.cont [6/16] 0.0, 128
        %1920 = vxpose.xlu0.b32.cont [7/16] 0.0, 128
        %1921 = vxpose.xlu0.b32.cont [8/16] 0.0, 128
        %1922 = vxpose.xlu0.b32.cont [9/16] 0.0, 128
        %1923 = vxpose.xlu0.b32.cont [10/16] 0.0, 128
        %1924 = vxpose.xlu0.b32.cont [11/16] 0.0, 128
        %1925 = vxpose.xlu0.b32.cont [12/16] 0.0, 128
        %1926 = vxpose.xlu0.b32.cont [13/16] 0.0, 128
        %1927 = vxpose.xlu0.b32.cont [14/16] 0.0, 128
        %1928 = vxpose.xlu0.b32.cont [15/16] 0.0, 128
        %1929 = vxpose.xlu0.b32.end [16/16] 0.0, 128
        %v1930 = vpop.trf.xlu0
        %v1931 = vpop.trf.xlu0
        %v1932 = vpop.trf.xlu0
        %v1933 = vpop.trf.xlu0
        %v1934 = vpop.trf.xlu0
        %v1935 = vpop.trf.xlu0
        %v1936 = vpop.trf.xlu0
        %v1937 = vpop.trf.xlu0
        %v1938 = vpop.trf.xlu0
        %v1939 = vpop.trf.xlu0
        %v1940 = vpop.trf.xlu0
        %v1941 = vpop.trf.xlu0
        %v1942 = vpop.trf.xlu0
        %v1943 = vpop.trf.xlu0
        %v1944 = vpop.trf.xlu0
        %v1945 = vpop.trf.xlu0
        %1946 = vxpose.xlu0.b32.start [1/16] %v1860, 128
        %1947 = vxpose.xlu0.b32.cont [2/16] 0.0, 128
        %1948 = vxpose.xlu0.b32.cont [3/16] 0.0, 128
        %1949 = vxpose.xlu0.b32.cont [4/16] 0.0, 128
        %1950 = vxpose.xlu0.b32.cont [5/16] 0.0, 128
        %1951 = vxpose.xlu0.b32.cont [6/16] 0.0, 128
        %1952 = vxpose.xlu0.b32.cont [7/16] 0.0, 128
        %1953 = vxpose.xlu0.b32.cont [8/16] 0.0, 128
        %1954 = vxpose.xlu0.b32.cont [9/16] 0.0, 128
        %1955 = vxpose.xlu0.b32.cont [10/16] 0.0, 128
        %1956 = vxpose.xlu0.b32.cont [11/16] 0.0, 128
        %1957 = vxpose.xlu0.b32.cont [12/16] 0.0, 128
        %1958 = vxpose.xlu0.b32.cont [13/16] 0.0, 128
        %1959 = vxpose.xlu0.b32.cont [14/16] 0.0, 128
        %1960 = vxpose.xlu0.b32.cont [15/16] 0.0, 128
        %1961 = vxpose.xlu0.b32.end [16/16] 0.0, 128
        %v1962 = vpop.trf.xlu0
        %v1963 = vpop.trf.xlu0
        %v1964 = vpop.trf.xlu0
        %v1965 = vpop.trf.xlu0
        %v1966 = vpop.trf.xlu0
        %v1967 = vpop.trf.xlu0
        %v1968 = vpop.trf.xlu0
        %v1969 = vpop.trf.xlu0
        %v1970 = vpop.trf.xlu0
        %v1971 = vpop.trf.xlu0
        %v1972 = vpop.trf.xlu0
        %v1973 = vpop.trf.xlu0
        %v1974 = vpop.trf.xlu0
        %v1975 = vpop.trf.xlu0
        %v1976 = vpop.trf.xlu0
        %v1977 = vpop.trf.xlu0
        %1978 = vxpose.xlu0.b32.start [1/16] %v1879, 128
        %1979 = vxpose.xlu0.b32.cont [2/16] 0.0, 128
        %1980 = vxpose.xlu0.b32.cont [3/16] 0.0, 128
        %1981 = vxpose.xlu0.b32.cont [4/16] 0.0, 128
        %1982 = vxpose.xlu0.b32.cont [5/16] 0.0, 128
        %1983 = vxpose.xlu0.b32.cont [6/16] 0.0, 128
        %1984 = vxpose.xlu0.b32.cont [7/16] 0.0, 128
        %1985 = vxpose.xlu0.b32.cont [8/16] 0.0, 128
        %1986 = vxpose.xlu0.b32.cont [9/16] 0.0, 128
        %1987 = vxpose.xlu0.b32.cont [10/16] 0.0, 128
        %1988 = vxpose.xlu0.b32.cont [11/16] 0.0, 128
        %1989 = vxpose.xlu0.b32.cont [12/16] 0.0, 128
        %1990 = vxpose.xlu0.b32.cont [13/16] 0.0, 128
        %1991 = vxpose.xlu0.b32.cont [14/16] 0.0, 128
        %1992 = vxpose.xlu0.b32.cont [15/16] 0.0, 128
        %1993 = vxpose.xlu0.b32.end [16/16] 0.0, 128
        %v1994 = vpop.trf.xlu0
        %v1995 = vpop.trf.xlu0
        %v1996 = vpop.trf.xlu0
        %v1997 = vpop.trf.xlu0
        %v1998 = vpop.trf.xlu0
        %v1999 = vpop.trf.xlu0
        %v2000 = vpop.trf.xlu0
        %v2001 = vpop.trf.xlu0
        %v2002 = vpop.trf.xlu0
        %v2003 = vpop.trf.xlu0
        %v2004 = vpop.trf.xlu0
        %v2005 = vpop.trf.xlu0
        %v2006 = vpop.trf.xlu0
        %v2007 = vpop.trf.xlu0
        %v2008 = vpop.trf.xlu0
        %v2009 = vpop.trf.xlu0
        %v2010 = vrot.slane %v1962, 4
        %v2011 = vsel %vm569, %v2010, %v1898
        %v2012 = vrot.slane %v1898, 4
        %v2013 = vsel %vm569, %v1962, %v2012
        %v2015 = vunpack.c.l.s4 1983009808
        %v2016 = vunpack.c.0.s8 %v2015
        %v2017 = vperm.slane %v2011, %v2016
        %v2019 = vunpack.c.l.s4 1983009808
        %v2020 = vunpack.c.0.s8 %v2019
        %v2021 = vperm.slane %v2013, %v2020
        %v2022 = vrot.slane %v1994, 4
        %v2023 = vsel %vm569, %v2022, %v1930
        %v2024 = vrot.slane %v1930, 4
        %v2025 = vsel %vm569, %v1994, %v2024
        %v2027 = vunpack.c.l.s4 1983009808
        %v2028 = vunpack.c.0.s8 %v2027
        %v2029 = vperm.slane %v2023, %v2028
        %v2031 = vunpack.c.l.s4 1983009808
        %v2032 = vunpack.c.0.s8 %v2031
        %v2033 = vperm.slane %v2025, %v2032
        %v2034 = vrot.slane %v2029, 4
        %v2035 = vsel %vm569, %v2034, %v2017
        %v2036 = vrot.slane %v2017, 4
        %v2037 = vsel %vm569, %v2029, %v2036
        %v2039 = vunpack.c.l.s4 1934713408
        %v2040 = vunpack.c.0.s8 %v2039
        %v2041 = vperm.slane %v2035, %v2040
        %v2043 = vunpack.c.l.s4 1934713408
        %v2044 = vunpack.c.0.s8 %v2043
        %v2045 = vperm.slane %v2037, %v2044
        %v2046 = vrot.slane %v2033, 4
        %v2047 = vsel %vm569, %v2046, %v2021
        %v2048 = vrot.slane %v2021, 4
        %v2049 = vsel %vm569, %v2033, %v2048
        %v2051 = vunpack.c.l.s4 1934713408
        %v2052 = vunpack.c.0.s8 %v2051
        %v2053 = vperm.slane %v2047, %v2052
        %v2055 = vunpack.c.l.s4 1934713408
        %v2056 = vunpack.c.0.s8 %v2055
        %v2057 = vperm.slane %v2049, %v2056
        %v2058 = vrot.slane %v2041, 4
        %v2059 = vsel %vm569, 0.0, %v2058
        %v2060 = vrot.slane %v2045, 4
        %v2061 = vsel %vm569, 0.0, %v2060
        %v2062 = vrot.slane %v2053, 4
        %v2063 = vsel %vm569, 0.0, %v2062
        %v2064 = vrot.slane %v2057, 4
        %v2065 = vsel %vm569, 0.0, %v2064
        %v2066 = vsel %vm569, %v2060, %v2041
        %v2068 = vunpack.c.l.s4 1983009808
        %v2069 = vunpack.c.0.s8 %v2068
        %v2070 = vperm.slane %v2066, %v2069
        %v2071 = vrot.slane %v2061, 4
        %v2072 = vsel %vm569, %v2071, %v2059
        %v2074 = vunpack.c.l.s4 1983009808
        %v2075 = vunpack.c.0.s8 %v2074
        %v2076 = vperm.slane %v2072, %v2075
        %v2077 = vsel %vm569, %v2064, %v2053
        %v2079 = vunpack.c.l.s4 1983009808
        %v2080 = vunpack.c.0.s8 %v2079
        %v2081 = vperm.slane %v2077, %v2080
        %v2082 = vrot.slane %v2065, 4
        %v2083 = vsel %vm569, %v2082, %v2063
        %v2085 = vunpack.c.l.s4 1983009808
        %v2086 = vunpack.c.0.s8 %v2085
        %v2087 = vperm.slane %v2083, %v2086
        %v2088 = vrot.slane %v2076, 4
        %v2089 = vsel %vm569, %v2088, %v2070
        %v2090 = vrot.slane %v2070, 4
        %v2091 = vsel %vm569, %v2076, %v2090
        %v2093 = vunpack.c.l.s4 1934713408
        %v2094 = vunpack.c.0.s8 %v2093
        %v2095 = vperm.slane %v2089, %v2094
        %v2097 = vunpack.c.l.s4 1934713408
        %v2098 = vunpack.c.0.s8 %v2097
        %v2099 = vperm.slane %v2091, %v2098
        %v2100 = vrot.slane %v2087, 4
        %v2101 = vsel %vm569, %v2100, %v2081
        %v2102 = vrot.slane %v2081, 4
        %v2103 = vsel %vm569, %v2087, %v2102
        %v2105 = vunpack.c.l.s4 1934713408
        %v2106 = vunpack.c.0.s8 %v2105
        %v2107 = vperm.slane %v2101, %v2106
        %v2109 = vunpack.c.l.s4 1934713408
        %v2110 = vunpack.c.0.s8 %v2109
        %v2111 = vperm.slane %v2103, %v2110
        %v2112 = vrot.slane %v2107, 4
        %v2113 = vsel %vm569, %v2112, %v2095
        %v2114 = vrot.slane %v2095, 4
        %v2115 = vsel %vm569, %v2107, %v2114
        %v2116 = vrot.slane %v2111, 4
        %v2117 = vsel %vm569, %v2116, %v2099
        %v2118 = vrot.slane %v2099, 4
        %v2119 = vsel %vm569, %v2111, %v2118
        %2121 = vrot.lane.b32.xlu0 %v2115, 8
        %v2122 = vpop.permute.xlu0 %2121
        %2125 = vrot.lane.b32.xlu0 %v2117, 16
        %v2126 = vpop.permute.xlu0 %2125
        %2129 = vrot.lane.b32.xlu0 %v2119, 24
        %v2130 = vpop.permute.xlu0 %2129
        %v2132 = vsel %vm1232, %v2113, %v2122
        %vm2133 = vcmask 130048
        %v2134 = vsel %vm2133, %v2132, %v2126
        %vm2135 = vcmask 195584
        %v2136 = vsel %vm2135, %v2134, %v2130
        %v2137 = vpack.c.bf16 %v2136, %v2136
        %v2138 = vld [vmem:[#allocation9] sm:$0xf]
        %v2139 = vld [vmem:[#allocation9 + $0x4] sm:$0xf]
        %v2140 = vld [vmem:[#allocation9 + $0x8] sm:$0xf]
        %v2141 = vld [vmem:[#allocation9 + $0xc] sm:$0xf]
        %v2142 = vld [vmem:[#allocation10] sm:$0x1]
        %v2144 = vperm.slane %v2142, 0
        %v2150 = vunpack.c.l.b16 %v2138
        %v2151 = vunpack.c.l.b16 %v2139
        %v2152 = vunpack.c.l.b16 %v2140
        %v2153 = vunpack.c.l.b16 %v2141
        %v2154 = vpack.c.b16 %v2151, %v2150
        %v2155 = vpack.c.b16 %v2153, %v2152
        %v2159 = vsel %vm434, %v2137, 0
        %2161 = vmatpush.bf16.msra.mxu0 0
        %2162 = vmatpush.bf16.msra.mxu0 0
        %2163 = vmatpush.bf16.msra.mxu0 0
        %2164 = vmatpush.bf16.msra.mxu0 0
        %2165 = vmatpush.bf16.msra.mxu0 0
        %2166 = vmatpush.bf16.msra.mxu0 0
        %2167 = vmatpush.bf16.msra.mxu0 %v2155
        %2168 = vmatpush.bf16.msra.mxu0 %v2154
        %2169 = vmatmul.bf16.gmra.mxu0 %v2159
        %v2170 = vpop.f32.mrf.mxu0
        %v2171 = vadd.f32 %v2144, %v2170
        %v2172 = vpop.f32.mrf.mxu0
        %2173 = vdwg.mxu0
        %v2174 = vadd.f32 %v431, %v2171
        %2175 = vst.msk [vmem:[%s429] sm:$0xff] %vm434, %v2174
        %p2176 = scmp.lt.s32.totalorder %s27, 1
        %s2177 = scalar_select %p2176, %s27, 1
        %p2178 = scmp.lt.s32.totalorder %s28, 0
        %s2179 = scalar_select %p2178, %s28, 0
        %s2180 = sadd.s32 %s2179, %s2177
        %s2181 = smul.addr %s2180, 8
        %s2182 = scalar_lea.vmem %s8, %s2181
        // Predicated region
        $region77: #{decoder_forward.6} parent=51 // pred_check
          %p2183 = pneg %p233
        $region78: #{decoder_forward.6} parent=51 // pred_check_branch
          %2185 = sbr.rel (%p2183) target = $region80
        $region79: #{decoder_forward.6} parent=51 // pred_region
          _
        $region80: #{decoder_forward.6} parent=51 // pred_fallthru
          _
      $region52: #{decoder_forward.6} parent=5 // pred_fallthru
        _
      %p2186 = scmp.le.s32.totalorder 2, %s18
      // Predicated region
      $region81: #{decoder_forward.6} parent=5 // pred_check
        %p2187 = pneg %p2186
      $region82: #{decoder_forward.6} parent=5 // pred_check_branch
        %2189 = sbr.rel (%p2187) target = $region84
      $region83: #{decoder_forward.6} parent=5 // pred_region
        %s2190 = ssub.s32 %s18, 2
        // Predicated region
        $region85: #{decoder_forward.6} parent=83 // pred_check
          %p2191 = pneg %p239
        $region86: #{decoder_forward.6} parent=83 // pred_check_branch
          %2193 = sbr.rel (%p2191) target = $region88
        $region87: #{decoder_forward.6} parent=83 // pred_region
          %p2194 = scmp.lt.s32.totalorder %s29, 1
          %s2195 = scalar_select %p2194, %s29, 1
          %p2196 = scmp.lt.s32.totalorder %s30, 0
          %s2197 = scalar_select %p2196, %s30, 0
          %s2198 = sadd.s32 %s2197, %s2195
          %s2199 = smul.addr %s2198, 8
          %s2200 = scalar_lea.vmem %s8, %s2199
        $region88: #{decoder_forward.6} parent=83 // pred_fallthru
          _
      $region84: #{decoder_forward.6} parent=5 // pred_fallthru
        _
    $region6: #{decoder_forward.6} parent=1 // loop_footer
      %s22 = sadd.s32 1, %s18
    $region7: #{decoder_forward.6} parent=1 // loop_footer_branch
      %17 = sbr.rel target = $region3
    $region8: #{decoder_forward.6} parent=1 // loop_exit
      _
    %2201 = vsyncpa [#allocation3], 1
    %s2202 = scalar_lea.sflag [#allocation3], 1
    %2203 = vsyncpa %s2202, 1
    %2204 = vsyncpa [#allocation5], 1
    %2205 = vsyncpa [#allocation8], 1
    %2206 = vsyncpa [#allocation11], 1

// kernel: decoder_forward.7
$region0: #{decoder_forward.7}
  #allocation0 [shape = 'u32[]', space=smem, size = 0x4, offset = 0x4, fixed_abs, tag = 'smem constant byte address 0x4 - core index']
  #allocation1 [shape = 'u32[72,128]{1,0:T(1,128)}', space=vmem, size = 0x9000, scoped, tag = 'internal scratch']
  %s0 = inlined_call_operand.vmem [shape: f32[2,8,32], index: 0, kind: input, shape index: {}]
  %s1 = inlined_call_operand.vmem [shape: f32[2,8,32], index: 1, kind: input, shape index: {}]
  %s2 = inlined_call_operand.hbm [shape: f32[2,1,8], index: 2, kind: input, shape index: {}]
  %s3 = inlined_call_operand.hbm [shape: f32[1,32], index: 3, kind: input, shape index: {}]
  %s4 = inlined_call_operand.hbm [shape: f32[1,32], index: 4, kind: input, shape index: {}]
  %s5 = inlined_call_operand.vmem [shape: bf16[32,32], index: 5, kind: input, shape index: {}]
  %s6 = inlined_call_operand.hbm [shape: f32[1,32], index: 6, kind: input, shape index: {}]
  %s7 = inlined_call_operand.hbm [shape: bf16[32,64], index: 7, kind: input, shape index: {}]
  %s8 = inlined_call_operand.hbm [shape: f32[1,64], index: 8, kind: input, shape index: {}]
  %s9 = inlined_call_operand.hbm [shape: bf16[32,32], index: 9, kind: input, shape index: {}]
  %s10 = inlined_call_operand.hbm [shape: f32[1,32], index: 10, kind: input, shape index: {}]
  %s11 = inlined_call_operand.vmem [shape: f32[2,8,32], index: 11, kind: output, shape index: {}]
  %s12 = sld [smem:[#allocation0]]
  $region109: #{decoder_forward.7} parent=0
    _
  %s14 = ssub.s32 1, %s12
  %s15 = scalar_select 0, %s14, %s12
  $region1: #{decoder_forward.7} parent=0
    #allocation2 [shape = 'u8[1024]{0}', space=vmem, size = 0x400, scoped, tag = 'input window, operand 2']
    #allocation3 [shape = 's32[2]{0}', space=sflag, size = 0x8, scoped, tag = 'scoped memory for decoder_forward.7']
    #allocation4 [shape = 'u8[512]{0}', space=vmem, size = 0x400, scoped, tag = 'input window, operand 3, single buffered']
    #allocation5 [shape = 's32[1]{0}', space=sflag, size = 0x4, scoped, tag = 'scoped memory for decoder_forward.7']
    #allocation6 [shape = 'u8[512]{0}', space=vmem, size = 0x400, scoped, tag = 'input window, operand 4, single buffered']
    #allocation7 [shape = 'u8[512]{0}', space=vmem, size = 0x400, scoped, tag = 'input window, operand 6, single buffered']
    #allocation8 [shape = 's32[1]{0}', space=sflag, size = 0x4, scoped, tag = 'scoped memory for decoder_forward.7']
    #allocation9 [shape = 'u8[8192]{0}', space=vmem, size = 0x2000, scoped, tag = 'input window, operand 7, single buffered']
    #allocation10 [shape = 'u8[512]{0}', space=vmem, size = 0x400, scoped, tag = 'input window, operand 8, single buffered']
    #allocation11 [shape = 's32[1]{0}', space=sflag, size = 0x4, scoped, tag = 'scoped memory for decoder_forward.7']
    #allocation12 [shape = 'u8[8192]{0}', space=vmem, size = 0x2000, scoped, tag = 'input window, operand 9, single buffered']
    #allocation13 [shape = 'u8[512]{0}', space=vmem, size = 0x400, scoped, tag = 'input window, operand 10, single buffered']
    #allocation14 [shape = 's32[1]{0}', space=sflag, size = 0x4, scoped, tag = 'scoped memory for decoder_forward.7']
    %16 = vsyncpa [#allocation3], 0
    %s17 = scalar_lea.sflag [#allocation3], 1
    %18 = vsyncpa %s17, 0
    %19 = vsyncpa [#allocation5], 0
    %20 = vsyncpa [#allocation8], 0
    %21 = vsyncpa [#allocation11], 0
    %22 = vsyncpa [#allocation14], 0
    loop: start=0, step=1, limit=4
    $region2: #{decoder_forward.7} parent=1 // loop_pre_header
      _
    $region3: #{decoder_forward.7} parent=1 // loop_header
      %s24 = sphi 0, %s28
      %p25 = scmp.ge.s32.totalorder %s24, 4
      %s31 = sphi 0, %s43
      %s32 = sphi 0, %s39
      %s33 = sphi 0, %s31
      %s34 = sphi 0, %s32
      %s35 = sphi 0, %s33
      %s36 = sphi 0, %s34
      %s46 = sphi 0, %s48
      %s49 = sphi 0, %s46
      %s50 = sphi 0, %s49
      %s66 = sphi 0, %s50
      %s72 = sphi 0, %s74
      %s75 = sphi 0, %s72
      %s76 = sphi 0, %s75
      %s92 = sphi 0, %s76
      %s98 = sphi 0, %s100
      %s101 = sphi 0, %s98
      %s102 = sphi 0, %s101
      %s118 = sphi 0, %s102
      %s122 = sphi 0, %s122
      %s124 = sphi 0, %s122
      %s125 = sphi 0, %s124
      %s139 = sphi 0, %s125
      %s143 = sphi 0, %s143
      %s145 = sphi 0, %s143
      %s146 = sphi 0, %s145
      %s160 = sphi 0, %s146
      %s164 = sphi 0, %s164
      %s166 = sphi 0, %s164
      %s167 = sphi 0, %s166
      %s181 = sphi 0, %s167
      %s185 = sphi 0, %s185
      %s187 = sphi 0, %s185
      %s188 = sphi 0, %s187
      %s202 = sphi 0, %s188
      %s206 = sphi 0, %s206
      %s208 = sphi 0, %s206
      %s209 = sphi 0, %s208
      %s223 = sphi 0, %s209
      %s227 = sphi 0, %s227
      %s229 = sphi 0, %s227
      %s230 = sphi 0, %s229
      %s244 = sphi 0, %s230
      %s248 = sphi 0, %s248
      %s250 = sphi 0, %s248
      %s251 = sphi 0, %s250
      %s265 = sphi 0, %s251
      %s269 = sphi 0, %s269
      %s271 = sphi 0, %s269
      %s272 = sphi 0, %s271
      %s286 = sphi 0, %s272
      %s294 = sphi 0, %s296
      %s297 = sphi 0, %s294
      %s298 = sphi 0, %s297
      %s314 = sphi 0, %s298
    $region4: #{decoder_forward.7} parent=1 // loop_header_branch
      %27 = sbr.rel (%p25) target = $region8
    $region5: #{decoder_forward.7} parent=1 // loop_body
      %s29 = ssub.s32 %s24, 1
      %s30 = ssub.s32 %s24, 2
      %s37 = sadd.s32 1, %s32
      %p38 = scmp.ge.s32.totalorder %s37, 1
      %s39 = scalar_select %p38, 0, %s37
      %s40 = sadd.s32 1, %s31
      %s41 = scalar_select %p38, %s40, %s31
      %p42 = scmp.ge.s32.totalorder %s41, 2
      %s43 = scalar_select %p42, 0, %s41
      %s44 = ssub.s32 %s31, %s43
      %p45 = scmp.eq.s32.totalorder %s44, 0
      %s47 = sadd.s32 %s46, 1
      %s48 = scalar_select %p45, %s46, %s47
      %p51 = pneg %p45
      %p52 = scmp.eq.s32.totalorder %s24, 1
      %p53 = por %p51, %p52
      %p54 = scmp.ne.s32.totalorder %s46, %s49
      %p55 = scmp.eq.s32.totalorder %s24, 0
      %p56 = por %p54, %p55
      %p57 = scmp.ne.s32.totalorder %s46, %s49
      %p58 = scmp.eq.s32.totalorder %s29, 1
      %p59 = por %p57, %p58
      %p60 = scmp.ne.s32.totalorder %s49, %s50
      %p61 = scmp.eq.s32.totalorder %s29, 0
      %p62 = por %p60, %p61
      %p63 = scmp.ne.s32.totalorder %s49, %s50
      %p64 = scmp.eq.s32.totalorder %s30, 1
      %p65 = por %p63, %p64
      %p67 = scmp.ne.s32.totalorder %s50, %s66
      %p68 = scmp.eq.s32.totalorder %s30, 0
      %p69 = por %p67, %p68
      %s70 = ssub.s32 %s31, %s43
      %p71 = scmp.eq.s32.totalorder %s70, 0
      %s73 = sadd.s32 %s72, 1
      %s74 = scalar_select %p71, %s72, %s73
      %p77 = pneg %p71
      %p78 = scmp.eq.s32.totalorder %s24, 1
      %p79 = por %p77, %p78
      %p80 = scmp.ne.s32.totalorder %s72, %s75
      %p81 = scmp.eq.s32.totalorder %s24, 0
      %p82 = por %p80, %p81
      %p83 = scmp.ne.s32.totalorder %s72, %s75
      %p84 = scmp.eq.s32.totalorder %s29, 1
      %p85 = por %p83, %p84
      %p86 = scmp.ne.s32.totalorder %s75, %s76
      %p87 = scmp.eq.s32.totalorder %s29, 0
      %p88 = por %p86, %p87
      %p89 = scmp.ne.s32.totalorder %s75, %s76
      %p90 = scmp.eq.s32.totalorder %s30, 1
      %p91 = por %p89, %p90
      %p93 = scmp.ne.s32.totalorder %s76, %s92
      %p94 = scmp.eq.s32.totalorder %s30, 0
      %p95 = por %p93, %p94
      %s96 = ssub.s32 %s31, %s43
      %p97 = scmp.eq.s32.totalorder %s96, 0
      %s99 = sadd.s32 %s98, 1
      %s100 = scalar_select %p97, %s98, %s99
      %p103 = pneg %p97
      %p104 = scmp.eq.s32.totalorder %s24, 1
      %p105 = por %p103, %p104
      %p106 = scmp.ne.s32.totalorder %s98, %s101
      %p107 = scmp.eq.s32.totalorder %s24, 0
      %p108 = por %p106, %p107
      %p109 = scmp.ne.s32.totalorder %s98, %s101
      %p110 = scmp.eq.s32.totalorder %s29, 1
      %p111 = por %p109, %p110
      %p112 = scmp.ne.s32.totalorder %s101, %s102
      %p113 = scmp.eq.s32.totalorder %s29, 0
      %p114 = por %p112, %p113
      %p115 = scmp.ne.s32.totalorder %s101, %s102
      %p116 = scmp.eq.s32.totalorder %s30, 1
      %p117 = por %p115, %p116
      %p119 = scmp.ne.s32.totalorder %s102, %s118
      %p120 = scmp.eq.s32.totalorder %s30, 0
      %p121 = por %p119, %p120
      %s123 = sadd.s32 %s122, 1
      %p126 = scmp.eq.s32.totalorder %s24, 1
      %p127 = scmp.ne.s32.totalorder %s122, %s124
      %p128 = scmp.eq.s32.totalorder %s24, 0
      %p129 = por %p127, %p128
      %p130 = scmp.ne.s32.totalorder %s122, %s124
      %p131 = scmp.eq.s32.totalorder %s29, 1
      %p132 = por %p130, %p131
      %p133 = scmp.ne.s32.totalorder %s124, %s125
      %p134 = scmp.eq.s32.totalorder %s29, 0
      %p135 = por %p133, %p134
      %p136 = scmp.ne.s32.totalorder %s124, %s125
      %p137 = scmp.eq.s32.totalorder %s30, 1
      %p138 = por %p136, %p137
      %p140 = scmp.ne.s32.totalorder %s125, %s139
      %p141 = scmp.eq.s32.totalorder %s30, 0
      %p142 = por %p140, %p141
      %s144 = sadd.s32 %s143, 1
      %p147 = scmp.eq.s32.totalorder %s24, 1
      %p148 = scmp.ne.s32.totalorder %s143, %s145
      %p149 = scmp.eq.s32.totalorder %s24, 0
      %p150 = por %p148, %p149
      %p151 = scmp.ne.s32.totalorder %s143, %s145
      %p152 = scmp.eq.s32.totalorder %s29, 1
      %p153 = por %p151, %p152
      %p154 = scmp.ne.s32.totalorder %s145, %s146
      %p155 = scmp.eq.s32.totalorder %s29, 0
      %p156 = por %p154, %p155
      %p157 = scmp.ne.s32.totalorder %s145, %s146
      %p158 = scmp.eq.s32.totalorder %s30, 1
      %p159 = por %p157, %p158
      %p161 = scmp.ne.s32.totalorder %s146, %s160
      %p162 = scmp.eq.s32.totalorder %s30, 0
      %p163 = por %p161, %p162
      %s165 = sadd.s32 %s164, 1
      %p168 = scmp.eq.s32.totalorder %s24, 1
      %p169 = scmp.ne.s32.totalorder %s164, %s166
      %p170 = scmp.eq.s32.totalorder %s24, 0
      %p171 = por %p169, %p170
      %p172 = scmp.ne.s32.totalorder %s164, %s166
      %p173 = scmp.eq.s32.totalorder %s29, 1
      %p174 = por %p172, %p173
      %p175 = scmp.ne.s32.totalorder %s166, %s167
      %p176 = scmp.eq.s32.totalorder %s29, 0
      %p177 = por %p175, %p176
      %p178 = scmp.ne.s32.totalorder %s166, %s167
      %p179 = scmp.eq.s32.totalorder %s30, 1
      %p180 = por %p178, %p179
      %p182 = scmp.ne.s32.totalorder %s167, %s181
      %p183 = scmp.eq.s32.totalorder %s30, 0
      %p184 = por %p182, %p183
      %s186 = sadd.s32 %s185, 1
      %p189 = scmp.eq.s32.totalorder %s24, 1
      %p190 = scmp.ne.s32.totalorder %s185, %s187
      %p191 = scmp.eq.s32.totalorder %s24, 0
      %p192 = por %p190, %p191
      %p193 = scmp.ne.s32.totalorder %s185, %s187
      %p194 = scmp.eq.s32.totalorder %s29, 1
      %p195 = por %p193, %p194
      %p196 = scmp.ne.s32.totalorder %s187, %s188
      %p197 = scmp.eq.s32.totalorder %s29, 0
      %p198 = por %p196, %p197
      %p199 = scmp.ne.s32.totalorder %s187, %s188
      %p200 = scmp.eq.s32.totalorder %s30, 1
      %p201 = por %p199, %p200
      %p203 = scmp.ne.s32.totalorder %s188, %s202
      %p204 = scmp.eq.s32.totalorder %s30, 0
      %p205 = por %p203, %p204
      %s207 = sadd.s32 %s206, 1
      %p210 = scmp.eq.s32.totalorder %s24, 1
      %p211 = scmp.ne.s32.totalorder %s206, %s208
      %p212 = scmp.eq.s32.totalorder %s24, 0
      %p213 = por %p211, %p212
      %p214 = scmp.ne.s32.totalorder %s206, %s208
      %p215 = scmp.eq.s32.totalorder %s29, 1
      %p216 = por %p214, %p215
      %p217 = scmp.ne.s32.totalorder %s208, %s209
      %p218 = scmp.eq.s32.totalorder %s29, 0
      %p219 = por %p217, %p218
      %p220 = scmp.ne.s32.totalorder %s208, %s209
      %p221 = scmp.eq.s32.totalorder %s30, 1
      %p222 = por %p220, %p221
      %p224 = scmp.ne.s32.totalorder %s209, %s223
      %p225 = scmp.eq.s32.totalorder %s30, 0
      %p226 = por %p224, %p225
      %s228 = sadd.s32 %s227, 1
      %p231 = scmp.eq.s32.totalorder %s24, 1
      %p232 = scmp.ne.s32.totalorder %s227, %s229
      %p233 = scmp.eq.s32.totalorder %s24, 0
      %p234 = por %p232, %p233
      %p235 = scmp.ne.s32.totalorder %s227, %s229
      %p236 = scmp.eq.s32.totalorder %s29, 1
      %p237 = por %p235, %p236
      %p238 = scmp.ne.s32.totalorder %s229, %s230
      %p239 = scmp.eq.s32.totalorder %s29, 0
      %p240 = por %p238, %p239
      %p241 = scmp.ne.s32.totalorder %s229, %s230
      %p242 = scmp.eq.s32.totalorder %s30, 1
      %p243 = por %p241, %p242
      %p245 = scmp.ne.s32.totalorder %s230, %s244
      %p246 = scmp.eq.s32.totalorder %s30, 0
      %p247 = por %p245, %p246
      %s249 = sadd.s32 %s248, 1
      %p252 = scmp.eq.s32.totalorder %s24, 1
      %p253 = scmp.ne.s32.totalorder %s248, %s250
      %p254 = scmp.eq.s32.totalorder %s24, 0
      %p255 = por %p253, %p254
      %p256 = scmp.ne.s32.totalorder %s248, %s250
      %p257 = scmp.eq.s32.totalorder %s29, 1
      %p258 = por %p256, %p257
      %p259 = scmp.ne.s32.totalorder %s250, %s251
      %p260 = scmp.eq.s32.totalorder %s29, 0
      %p261 = por %p259, %p260
      %p262 = scmp.ne.s32.totalorder %s250, %s251
      %p263 = scmp.eq.s32.totalorder %s30, 1
      %p264 = por %p262, %p263
      %p266 = scmp.ne.s32.totalorder %s251, %s265
      %p267 = scmp.eq.s32.totalorder %s30, 0
      %p268 = por %p266, %p267
      %s270 = sadd.s32 %s269, 1
      %p273 = scmp.eq.s32.totalorder %s24, 1
      %p274 = scmp.ne.s32.totalorder %s269, %s271
      %p275 = scmp.eq.s32.totalorder %s24, 0
      %p276 = por %p274, %p275
      %p277 = scmp.ne.s32.totalorder %s269, %s271
      %p278 = scmp.eq.s32.totalorder %s29, 1
      %p279 = por %p277, %p278
      %p280 = scmp.ne.s32.totalorder %s271, %s272
      %p281 = scmp.eq.s32.totalorder %s29, 0
      %p282 = por %p280, %p281
      %p283 = scmp.ne.s32.totalorder %s271, %s272
      %p284 = scmp.eq.s32.totalorder %s30, 1
      %p285 = por %p283, %p284
      %p287 = scmp.ne.s32.totalorder %s272, %s286
      %p288 = scmp.eq.s32.totalorder %s30, 0
      %p289 = por %p287, %p288
      %s290 = ssub.s32 %s31, %s43
      %s291 = ssub.s32 %s32, %s39
      %s292 = sor.u32 %s290, %s291
      %p293 = scmp.eq.s32.totalorder %s292, 0
      %s295 = sadd.s32 %s294, 1
      %s296 = scalar_select %p293, %s294, %s295
      %p299 = pneg %p293
      %p300 = scmp.eq.s32.totalorder %s24, 1
      %p301 = por %p299, %p300
      %p302 = scmp.ne.s32.totalorder %s294, %s297
      %p303 = scmp.eq.s32.totalorder %s24, 0
      %p304 = por %p302, %p303
      %p305 = scmp.ne.s32.totalorder %s294, %s297
      %p306 = scmp.eq.s32.totalorder %s29, 1
      %p307 = por %p305, %p306
      %p308 = scmp.ne.s32.totalorder %s297, %s298
      %p309 = scmp.eq.s32.totalorder %s29, 0
      %p310 = por %p308, %p309
      %p311 = scmp.ne.s32.totalorder %s297, %s298
      %p312 = scmp.eq.s32.totalorder %s30, 1
      %p313 = por %p311, %p312
      %p315 = scmp.ne.s32.totalorder %s298, %s314
      %p316 = scmp.eq.s32.totalorder %s30, 0
      %p317 = por %p315, %p316
      %p318 = scmp.le.s32.totalorder 1, %s24
      %p319 = scmp.lt.s32.totalorder %s24, 3
      %p320 = pnand %p318, %p319
      %p321 = pneg %p320
      // Predicated region
      $region9: #{decoder_forward.7} parent=5 // pred_check
        _
      $region10: #{decoder_forward.7} parent=5 // pred_check_branch
        %323 = sbr.rel (%p320) target = $region12
      $region11: #{decoder_forward.7} parent=5 // pred_region
        %s324 = ssub.s32 %s24, 1
        // Predicated region
        $region13: #{decoder_forward.7} parent=11 // pred_check
          %p325 = pneg %p135
        $region14: #{decoder_forward.7} parent=11 // pred_check_branch
          %327 = sbr.rel (%p325) target = $region16
        $region15: #{decoder_forward.7} parent=11 // pred_region
          %329 = vsyncadd [#allocation5], 0
          %s331 = sshll.u32 %s3, 4
          %s332 = int_to_ptr.hbm [resolvable:$true] %s331
          %s333 = sshll.u32 [#allocation4], 4
          %s334 = int_to_ptr.vmem [resolvable:$true] %s333
          %336 = dma.hbm_to_vmem [thread:$0]  %s332, 16, %s334, [#allocation5]
        $region16: #{decoder_forward.7} parent=11 // pred_fallthru
          _
        // Predicated region
        $region17: #{decoder_forward.7} parent=11 // pred_check
          %p337 = pneg %p156
        $region18: #{decoder_forward.7} parent=11 // pred_check_branch
          %339 = sbr.rel (%p337) target = $region20
        $region19: #{decoder_forward.7} parent=11 // pred_region
          %341 = vsyncadd [#allocation5], 0
          %s343 = sshll.u32 %s4, 4
          %s344 = int_to_ptr.hbm [resolvable:$true] %s343
          %s345 = sshll.u32 [#allocation6], 4
          %s346 = int_to_ptr.vmem [resolvable:$true] %s345
          %348 = dma.hbm_to_vmem [thread:$0]  %s344, 16, %s346, [#allocation5]
        $region20: #{decoder_forward.7} parent=11 // pred_fallthru
          _
        // Predicated region
        $region21: #{decoder_forward.7} parent=11 // pred_check
          %p349 = pneg %p177
        $region22: #{decoder_forward.7} parent=11 // pred_check_branch
          %351 = sbr.rel (%p349) target = $region24
        $region23: #{decoder_forward.7} parent=11 // pred_region
          _
        $region24: #{decoder_forward.7} parent=11 // pred_fallthru
          _
        // Predicated region
        $region25: #{decoder_forward.7} parent=11 // pred_check
          %p352 = pneg %p198
        $region26: #{decoder_forward.7} parent=11 // pred_check_branch
          %354 = sbr.rel (%p352) target = $region28
        $region27: #{decoder_forward.7} parent=11 // pred_region
          %356 = vsyncadd [#allocation8], 0
          %s358 = sshll.u32 %s6, 4
          %s359 = int_to_ptr.hbm [resolvable:$true] %s358
          %s360 = sshll.u32 [#allocation7], 4
          %s361 = int_to_ptr.vmem [resolvable:$true] %s360
          %363 = dma.hbm_to_vmem [thread:$0]  %s359, 16, %s361, [#allocation8]
        $region28: #{decoder_forward.7} parent=11 // pred_fallthru
          _
        // Predicated region
        $region29: #{decoder_forward.7} parent=11 // pred_check
          %p364 = pneg %p219
        $region30: #{decoder_forward.7} parent=11 // pred_check_branch
          %366 = sbr.rel (%p364) target = $region32
        $region31: #{decoder_forward.7} parent=11 // pred_region
          %368 = vsyncadd [#allocation8], 0
          %s369 = sshll.u32 %s7, 4
          %s370 = int_to_ptr.hbm [resolvable:$true] %s369
          %s371 = sshll.u32 [#allocation9], 4
          %s372 = int_to_ptr.vmem [resolvable:$true] %s371
          %377 = dma.hbm_to_vmem [thread:$0]  %s370, 256, %s372, [#allocation8], 64, 64, 4
        $region32: #{decoder_forward.7} parent=11 // pred_fallthru
          _
        // Predicated region
        $region33: #{decoder_forward.7} parent=11 // pred_check
          %p378 = pneg %p240
        $region34: #{decoder_forward.7} parent=11 // pred_check_branch
          %380 = sbr.rel (%p378) target = $region36
        $region35: #{decoder_forward.7} parent=11 // pred_region
          %382 = vsyncadd [#allocation11], 0
          %s384 = sshll.u32 %s8, 4
          %s385 = int_to_ptr.hbm [resolvable:$true] %s384
          %s386 = sshll.u32 [#allocation10], 4
          %s387 = int_to_ptr.vmem [resolvable:$true] %s386
          %389 = dma.hbm_to_vmem [thread:$0]  %s385, 16, %s387, [#allocation11]
        $region36: #{decoder_forward.7} parent=11 // pred_fallthru
          _
        // Predicated region
        $region37: #{decoder_forward.7} parent=11 // pred_check
          %p390 = pneg %p261
        $region38: #{decoder_forward.7} parent=11 // pred_check_branch
          %392 = sbr.rel (%p390) target = $region40
        $region39: #{decoder_forward.7} parent=11 // pred_region
          %394 = vsyncadd [#allocation11], 0
          %s395 = sshll.u32 %s9, 4
          %s396 = int_to_ptr.hbm [resolvable:$true] %s395
          %s397 = sshll.u32 [#allocation12], 4
          %s398 = int_to_ptr.vmem [resolvable:$true] %s397
          %403 = dma.hbm_to_vmem [thread:$0]  %s396, 256, %s398, [#allocation11], 64, 64, 4
        $region40: #{decoder_forward.7} parent=11 // pred_fallthru
          _
        // Predicated region
        $region41: #{decoder_forward.7} parent=11 // pred_check
          %p404 = pneg %p282
        $region42: #{decoder_forward.7} parent=11 // pred_check_branch
          %406 = sbr.rel (%p404) target = $region44
        $region43: #{decoder_forward.7} parent=11 // pred_region
          %408 = vsyncadd [#allocation14], 0
          %s410 = sshll.u32 %s10, 4
          %s411 = int_to_ptr.hbm [resolvable:$true] %s410
          %s412 = sshll.u32 [#allocation13], 4
          %s413 = int_to_ptr.vmem [resolvable:$true] %s412
          %415 = dma.hbm_to_vmem [thread:$0]  %s411, 16, %s413, [#allocation14]
        $region44: #{decoder_forward.7} parent=11 // pred_fallthru
          _
      $region12: #{decoder_forward.7} parent=5 // pred_fallthru
        _
      %p416 = scmp.lt.s32.totalorder %s24, 2
      // Predicated region
      $region45: #{decoder_forward.7} parent=5 // pred_check
        %p417 = pneg %p416
      $region46: #{decoder_forward.7} parent=5 // pred_check_branch
        %419 = sbr.rel (%p417) target = $region48
      $region47: #{decoder_forward.7} parent=5 // pred_region
        // Predicated region
        $region49: #{decoder_forward.7} parent=47 // pred_check
          %p420 = pneg %p56
        $region50: #{decoder_forward.7} parent=47 // pred_check_branch
          %422 = sbr.rel (%p420) target = $region52
        $region51: #{decoder_forward.7} parent=47 // pred_region
          %p423 = scmp.lt.s32.totalorder %s31, 1
          %s424 = scalar_select %p423, %s31, 1
          %s425 = smul.addr %s424, 8
          %s426 = scalar_lea.vmem %s0, %s425
        $region52: #{decoder_forward.7} parent=47 // pred_fallthru
          _
        // Predicated region
        $region53: #{decoder_forward.7} parent=47 // pred_check
          %p427 = pneg %p82
        $region54: #{decoder_forward.7} parent=47 // pred_check_branch
          %429 = sbr.rel (%p427) target = $region56
        $region55: #{decoder_forward.7} parent=47 // pred_region
          %p430 = scmp.lt.s32.totalorder %s31, 1
          %s431 = scalar_select %p430, %s31, 1
          %s432 = smul.addr %s431, 8
          %s433 = scalar_lea.vmem %s1, %s432
        $region56: #{decoder_forward.7} parent=47 // pred_fallthru
          _
        // Predicated region
        $region57: #{decoder_forward.7} parent=47 // pred_check
          %p434 = pneg %p108
        $region58: #{decoder_forward.7} parent=47 // pred_check_branch
          %436 = sbr.rel (%p434) target = $region60
        $region59: #{decoder_forward.7} parent=47 // pred_region
          %s437 = sand.u32 %s98, 1
          %s438 = scalar_lea.sflag [#allocation3], %s437
          %s439 = sand.u32 %s98, 1
          %s440 = scalar_lea.vmem [#allocation2], %s439
          %442 = vsyncadd %s438, 0
          %s443 = scalar_lea.hbm %s2, %s31
          %s445 = sshll.u32 %s443, 4
          %s446 = int_to_ptr.hbm [resolvable:$true] %s445
          %s447 = sshll.u32 %s440, 4
          %s448 = int_to_ptr.vmem [resolvable:$true] %s447
          %450 = dma.hbm_to_vmem [thread:$0]  %s446, 16, %s448, %s438
        $region60: #{decoder_forward.7} parent=47 // pred_fallthru
          _
      $region48: #{decoder_forward.7} parent=5 // pred_fallthru
        _
      %p451 = scmp.le.s32.totalorder 1, %s24
      %p452 = scmp.lt.s32.totalorder %s24, 3
      %p453 = pnand %p451, %p452
      %p454 = pneg %p453
      // Predicated region
      $region61: #{decoder_forward.7} parent=5 // pred_check
        _
      $region62: #{decoder_forward.7} parent=5 // pred_check_branch
        %456 = sbr.rel (%p453) target = $region64
      $region63: #{decoder_forward.7} parent=5 // pred_region
        %s457 = ssub.s32 %s24, 1
        %s458 = sand.u32 %s101, 1
        %s459 = scalar_lea.sflag [#allocation3], %s458
        %s460 = sand.u32 %s101, 1
        %s461 = scalar_lea.vmem [#allocation2], %s460
        // Predicated region
        $region65: #{decoder_forward.7} parent=63 // pred_check
          %p462 = pneg %p114
        $region66: #{decoder_forward.7} parent=63 // pred_check_branch
          %464 = sbr.rel (%p462) target = $region68
        $region67: #{decoder_forward.7} parent=63 // pred_region
          %466 = dma.done %s459, 16
        $region68: #{decoder_forward.7} parent=63 // pred_fallthru
          _
        // Predicated region
        $region69: #{decoder_forward.7} parent=63 // pred_check
          %p467 = pneg %p135
        $region70: #{decoder_forward.7} parent=63 // pred_check_branch
          %469 = sbr.rel (%p467) target = $region72
        $region71: #{decoder_forward.7} parent=63 // pred_region
          %471 = dma.done [#allocation5], 16
        $region72: #{decoder_forward.7} parent=63 // pred_fallthru
          _
        // Predicated region
        $region73: #{decoder_forward.7} parent=63 // pred_check
          %p472 = pneg %p156
        $region74: #{decoder_forward.7} parent=63 // pred_check_branch
          %474 = sbr.rel (%p472) target = $region76
        $region75: #{decoder_forward.7} parent=63 // pred_region
          %476 = dma.done [#allocation5], 16
        $region76: #{decoder_forward.7} parent=63 // pred_fallthru
          _
        // Predicated region
        $region77: #{decoder_forward.7} parent=63 // pred_check
          %p477 = pneg %p198
        $region78: #{decoder_forward.7} parent=63 // pred_check_branch
          %479 = sbr.rel (%p477) target = $region80
        $region79: #{decoder_forward.7} parent=63 // pred_region
          %481 = dma.done [#allocation8], 16
        $region80: #{decoder_forward.7} parent=63 // pred_fallthru
          _
        // Predicated region
        $region81: #{decoder_forward.7} parent=63 // pred_check
          %p482 = pneg %p219
        $region82: #{decoder_forward.7} parent=63 // pred_check_branch
          %484 = sbr.rel (%p482) target = $region84
        $region83: #{decoder_forward.7} parent=63 // pred_region
          %486 = dma.done [#allocation8], 256
        $region84: #{decoder_forward.7} parent=63 // pred_fallthru
          _
        // Predicated region
        $region85: #{decoder_forward.7} parent=63 // pred_check
          %p487 = pneg %p240
        $region86: #{decoder_forward.7} parent=63 // pred_check_branch
          %489 = sbr.rel (%p487) target = $region88
        $region87: #{decoder_forward.7} parent=63 // pred_region
          %491 = dma.done [#allocation11], 16
        $region88: #{decoder_forward.7} parent=63 // pred_fallthru
          _
        // Predicated region
        $region89: #{decoder_forward.7} parent=63 // pred_check
          %p492 = pneg %p261
        $region90: #{decoder_forward.7} parent=63 // pred_check_branch
          %494 = sbr.rel (%p492) target = $region92
        $region91: #{decoder_forward.7} parent=63 // pred_region
          %496 = dma.done [#allocation11], 256
        $region92: #{decoder_forward.7} parent=63 // pred_fallthru
          _
        // Predicated region
        $region93: #{decoder_forward.7} parent=63 // pred_check
          %p497 = pneg %p282
        $region94: #{decoder_forward.7} parent=63 // pred_check_branch
          %499 = sbr.rel (%p497) target = $region96
        $region95: #{decoder_forward.7} parent=63 // pred_region
          %501 = dma.done [#allocation14], 16
        $region96: #{decoder_forward.7} parent=63 // pred_fallthru
          _
        %p502 = scmp.lt.s32.totalorder %s33, 1
        %s503 = scalar_select %p502, %s33, 1
        %s504 = smul.addr %s503, 8
        %s505 = scalar_lea.vmem %s0, %s504
        %p506 = pneg %p62
        %p507 = pneg %p59
        %p508 = scmp.lt.s32.totalorder %s33, 1
        %s509 = scalar_select %p508, %s33, 1
        %s510 = smul.addr %s509, 8
        %s511 = scalar_lea.vmem %s1, %s510
        %p512 = pneg %p88
        %p513 = pneg %p85
        %s514 = sand.u32 %s101, 1
        %s515 = scalar_lea.sflag [#allocation3], %s514
        %s516 = sand.u32 %s101, 1
        %s517 = scalar_lea.vmem [#allocation2], %s516
        %p518 = pneg %p114
        %p519 = pneg %p111
        %p520 = pneg %p135
        %p521 = pneg %p132
        %p522 = pneg %p156
        %p523 = pneg %p153
        %p524 = pneg %p177
        %p525 = pneg %p174
        %p526 = pneg %p198
        %p527 = pneg %p195
        %p528 = pneg %p219
        %p529 = pneg %p216
        %p530 = pneg %p240
        %p531 = pneg %p237
        %p532 = pneg %p261
        %p533 = pneg %p258
        %p534 = pneg %p282
        %p535 = pneg %p279
        %p536 = pneg %p310
        %p537 = pneg %p307
        %p538 = scmp.lt.s32.totalorder %s33, 1
        %s539 = scalar_select %p538, %s33, 1
        %p540 = scmp.lt.s32.totalorder %s34, 0
        %s541 = scalar_select %p540, %s34, 0
        %s542 = sadd.s32 %s541, %s539
        %s543 = smul.addr %s542, 8
        %s544 = scalar_lea.vmem %s11, %s543
        %p545 = scmp.lt.s32.totalorder %s33, 1
        %s546 = scalar_select %p545, %s33, 1
        %s547 = smul.addr %s546, 8
        %s548 = scalar_lea.vmem %s0, %s547
        %p549 = scmp.lt.s32.totalorder %s33, 1
        %s550 = scalar_select %p549, %s33, 1
        %s551 = smul.addr %s550, 8
        %s552 = scalar_lea.vmem %s1, %s551
        %p553 = scmp.lt.s32.totalorder %s33, 1
        %s554 = scalar_select %p553, %s33, 1
        %p555 = scmp.lt.s32.totalorder %s34, 0
        %s556 = scalar_select %p555, %s34, 0
        %s557 = sadd.s32 %s556, %s554
        %s558 = smul.addr %s557, 8
        %s559 = scalar_lea.vmem %s11, %s558
        %v561 = vld [vmem:[%s548] sm:$0xff]
        %v562 = vld [vmem:[#allocation4] sm:$0x1]
        %v563 = vld [vmem:[#allocation6] sm:$0x1]
        %vm564 = vcmask 261120
        %v565 = vsel %vm564, %v561, 0.0
        %566 = vadd.xlane.f32.xlu0 %v565
        %v567 = vpop.xlane.xlu0 %566
        %v568 = vrcp.pop 32.0
        %v569 = vmul.f32 32.0, %v568
        %v570 = vsub.f32 1.0, %v569
        %v571 = vmul.f32 %v568, %v570
        %v572 = vadd.f32 %v568, %v571
        %vm573 = vweird.f32 %v568
        %v574 = vsel %vm573, %v568, %v572
        %v575 = vmul.f32 %v567, %v574
        %v576 = vsub.f32 %v561, %v575
        %v577 = vmul.f32 %v576, %v576
        %v578 = vsel %vm564, %v577, 0.0
        %579 = vadd.xlane.f32.xlu0 %v578
        %v580 = vpop.xlane.xlu0 %579
        %v581 = vrcp.pop 31.0
        %v582 = vmul.f32 31.0, %v581
        %v583 = vsub.f32 1.0, %v582
        %v584 = vmul.f32 %v581, %v583
        %v585 = vadd.f32 %v581, %v584
        %vm586 = vweird.f32 %v581
        %v587 = vsel %vm586, %v581, %v585
        %v588 = vmul.f32 %v580, %v587
        %v589 = vrsqrt.pop %v588
        %v590 = vmul.f32 %v589, %v588
        %v591 = vmul.f32 %v590, %v589
        %v592 = vmul.f32 0.5, %v591
        %v593 = vsub.f32 1.5, %v592
        %v594 = vmul.f32 %v589, %v593
        %v595 = vmul.f32 %v588, %v594
        %vm596 = vcmp.eq.f32.partialorder %v588, inf
        %v597 = vsel %vm596, %v588, %v595
        %vm598 = vcmp.eq.f32.partialorder %v588, 0.0
        %v599 = vand.u32 %v588, 2147483648
        %v600 = vsel %vm598, %v599, %v597
        %v601 = vadd.f32 %v600, 1e-06
        %v602 = vrcp.pop %v601
        %v603 = vmul.f32 %v601, %v602
        %v604 = vsub.f32 1.0, %v603
        %v605 = vmul.f32 %v602, %v604
        %v606 = vadd.f32 %v602, %v605
        %vm607 = vweird.f32 %v601
        %vm608 = vweird.f32 %v602
        %vm609 = vmor %vm607, %vm608
        %v610 = vsel %vm609, %v602, %v606
        %v611 = vand.u32 2147483647, %v601
        %vm612 = vcmp.eq.f32.partialorder %v611, 8.507059e+37
        %v613 = vand.u32 %v601, 2147483648
        %v614 = vor.u32 1.1754944e-38, %v613
        %v615 = vsel %vm612, %v614, %v610
        %v617 = vperm.slane %v562, 0
        %v619 = vmul.f32 %v617, %v576
        %v620 = vmul.f32 %v619, %v615
        %v622 = vperm.slane %v563, 0
        %v624 = vadd.f32 %v620, %v622
        %v625 = vpack.c.bf16 %v624, %v624
        %v626 = vld [vmem:[%s5] sm:$0xf]
        %v627 = vld [vmem:[%s5 + $0x4] sm:$0xf]
        %v628 = vld [vmem:[%s5 + $0x8] sm:$0xf]
        %v629 = vld [vmem:[%s5 + $0xc] sm:$0xf]
        %v630 = vld [vmem:[#allocation7] sm:$0x1]
        %v632 = vperm.slane %v630, 0
        %v638 = vunpack.c.l.b16 %v626
        %v639 = vunpack.c.l.b16 %v627
        %v640 = vunpack.c.l.b16 %v628
        %v641 = vunpack.c.l.b16 %v629
        %v642 = vpack.c.b16 %v639, %v638
        %v643 = vpack.c.b16 %v641, %v640
        %v647 = vsel %vm564, %v625, 0
        %649 = vmatpush.bf16.msra.mxu0 0
        %650 = vmatpush.bf16.msra.mxu0 0
        %651 = vmatpush.bf16.msra.mxu0 0
        %652 = vmatpush.bf16.msra.mxu0 0
        %653 = vmatpush.bf16.msra.mxu0 0
        %654 = vmatpush.bf16.msra.mxu0 0
        %655 = vmatpush.bf16.msra.mxu0 %v643
        %656 = vmatpush.bf16.msra.mxu0 %v642
        %657 = vmatmul.bf16.gmra.mxu0 %v647
        %v658 = vpop.f32.mrf.mxu0
        %v659 = vadd.f32 %v632, %v658
        %v660 = vpop.f32.mrf.mxu0
        %661 = vdwg.mxu0
        %v662 = vmul.f32 %v659, 0.35355338
        %v663 = vld [vmem:[%s552] sm:$0xff]
        %v664 = vpack.c.bf16 %v663, %v663
        %v665 = vld [vmem:[#allocation9] sm:$0xf]
        %v666 = vld [vmem:[#allocation9 + $0x4] sm:$0xf]
        %v667 = vld [vmem:[#allocation9 + $0x8] sm:$0xf]
        %v668 = vld [vmem:[#allocation9 + $0xc] sm:$0xf]
        %v669 = vld [vmem:[#allocation10] sm:$0x1]
        %v671 = vperm.slane %v669, 0
        %v677 = vunpack.c.l.b16 %v665
        %v678 = vunpack.c.l.b16 %v666
        %v679 = vunpack.c.l.b16 %v667
        %v680 = vunpack.c.l.b16 %v668
        %v681 = vpack.c.b16 %v678, %v677
        %v682 = vpack.c.b16 %v680, %v679
        %v686 = vsel %vm564, %v664, 0
        %688 = vmatpush.bf16.msra.mxu0 0
        %689 = vmatpush.bf16.msra.mxu0 0
        %690 = vmatpush.bf16.msra.mxu0 0
        %691 = vmatpush.bf16.msra.mxu0 0
        %692 = vmatpush.bf16.msra.mxu0 0
        %693 = vmatpush.bf16.msra.mxu0 0
        %694 = vmatpush.bf16.msra.mxu0 %v682
        %695 = vmatpush.bf16.msra.mxu0 %v681
        %696 = vmatmul.bf16.gmra.mxu0 %v686
        %v697 = vpop.f32.mrf.mxu0
        %v698 = vadd.f32 %v671, %v697
        %v699 = vpop.f32.mrf.mxu0
        %700 = vdwg.mxu0
        %v701 = vld [vmem:[%s461] sm:$0x1]
        %vm702 = vcmp.eq.f32.partialorder %v701, 0.0
        %v703 = vsel %vm702, -1e+09, 0.0
        %705 = vrot.lane.b32.xlu0 %v662, 120
        %v706 = vpop.permute.xlu0 %705
        %708 = vrot.lane.b32.xlu0 %v662, 112
        %v709 = vpop.permute.xlu0 %708
        %711 = vrot.lane.b32.xlu0 %v662, 104
        %v712 = vpop.permute.xlu0 %711
        %v714 = vrot.slane %v709, 4
        %vm715 = vcmask 1047556
        %v716 = vsel %vm715, %v714, %v662
        %v717 = vrot.slane %v662, 4
        %v718 = vsel %vm715, %v709, %v717
        %v720 = vunpack.c.l.s4 1983009808
        %v721 = vunpack.c.0.s8 %v720
        %v722 = vperm.slane %v716, %v721
        %v724 = vunpack.c.l.s4 1983009808
        %v725 = vunpack.c.0.s8 %v724
        %v726 = vperm.slane %v718, %v725
        %v727 = vrot.slane %v712, 4
        %v728 = vsel %vm715, %v727, %v706
        %v729 = vrot.slane %v706, 4
        %v730 = vsel %vm715, %v712, %v729
        %v732 = vunpack.c.l.s4 1983009808
        %v733 = vunpack.c.0.s8 %v732
        %v734 = vperm.slane %v728, %v733
        %v736 = vunpack.c.l.s4 1983009808
        %v737 = vunpack.c.0.s8 %v736
        %v738 = vperm.slane %v730, %v737
        %v739 = vrot.slane %v734, 4
        %v740 = vsel %vm715, %v739, %v722
        %v741 = vrot.slane %v722, 4
        %v742 = vsel %vm715, %v734, %v741
        %v744 = vunpack.c.l.s4 1934713408
        %v745 = vunpack.c.0.s8 %v744
        %v746 = vperm.slane %v740, %v745
        %v748 = vunpack.c.l.s4 1934713408
        %v749 = vunpack.c.0.s8 %v748
        %v750 = vperm.slane %v742, %v749
        %v751 = vrot.slane %v738, 4
        %v752 = vsel %vm715, %v751, %v726
        %v753 = vrot.slane %v726, 4
        %v754 = vsel %vm715, %v738, %v753
        %v756 = vunpack.c.l.s4 1934713408
        %v757 = vunpack.c.0.s8 %v756
        %v758 = vperm.slane %v752, %v757
        %v760 = vunpack.c.l.s4 1934713408
        %v761 = vunpack.c.0.s8 %v760
        %v762 = vperm.slane %v754, %v761
        %v763 = vrot.slane %v746, 4
        %v764 = vsel %vm715, 0.0, %v763
        %v765 = vrot.slane %v750, 4
        %v766 = vsel %vm715, 0.0, %v765
        %v767 = vrot.slane %v758, 4
        %v768 = vsel %vm715, 0.0, %v767
        %v769 = vrot.slane %v762, 4
        %v770 = vsel %vm715, 0.0, %v769
        %v771 = vpack.c.bf16 %v746, %v746
        %v772 = vpack.c.bf16 %v764, %v764
        %v773 = vpack.c.bf16 %v750, %v750
        %v774 = vpack.c.bf16 %v766, %v766
        %v775 = vpack.c.bf16 %v758, %v758
        %v776 = vpack.c.bf16 %v768, %v768
        %v777 = vpack.c.bf16 %v762, %v762
        %v778 = vpack.c.bf16 %v770, %v770
        %780 = vrot.lane.b32.xlu0 %v698, 120
        %v781 = vpop.permute.xlu0 %780
        %783 = vrot.lane.b32.xlu0 %v698, 112
        %v784 = vpop.permute.xlu0 %783
        %786 = vrot.lane.b32.xlu0 %v698, 104
        %v787 = vpop.permute.xlu0 %786
        %v789 = vrot.slane %v784, 4
        %v790 = vsel %vm715, %v789, %v698
        %v791 = vrot.slane %v698, 4
        %v792 = vsel %vm715, %v784, %v791
        %v794 = vunpack.c.l.s4 1983009808
        %v795 = vunpack.c.0.s8 %v794
        %v796 = vperm.slane %v790, %v795
        %v798 = vunpack.c.l.s4 1983009808
        %v799 = vunpack.c.0.s8 %v798
        %v800 = vperm.slane %v792, %v799
        %v801 = vrot.slane %v787, 4
        %v802 = vsel %vm715, %v801, %v781
        %v803 = vrot.slane %v781, 4
        %v804 = vsel %vm715, %v787, %v803
        %v806 = vunpack.c.l.s4 1983009808
        %v807 = vunpack.c.0.s8 %v806
        %v808 = vperm.slane %v802, %v807
        %v810 = vunpack.c.l.s4 1983009808
        %v811 = vunpack.c.0.s8 %v810
        %v812 = vperm.slane %v804, %v811
        %v813 = vrot.slane %v808, 4
        %v814 = vsel %vm715, %v813, %v796
        %v815 = vrot.slane %v796, 4
        %v816 = vsel %vm715, %v808, %v815
        %v818 = vunpack.c.l.s4 1934713408
        %v819 = vunpack.c.0.s8 %v818
        %v820 = vperm.slane %v814, %v819
        %v822 = vunpack.c.l.s4 1934713408
        %v823 = vunpack.c.0.s8 %v822
        %v824 = vperm.slane %v816, %v823
        %v825 = vrot.slane %v812, 4
        %v826 = vsel %vm715, %v825, %v800
        %v827 = vrot.slane %v800, 4
        %v828 = vsel %vm715, %v812, %v827
        %v830 = vunpack.c.l.s4 1934713408
        %v831 = vunpack.c.0.s8 %v830
        %v832 = vperm.slane %v826, %v831
        %v834 = vunpack.c.l.s4 1934713408
        %v835 = vunpack.c.0.s8 %v834
        %v836 = vperm.slane %v828, %v835
        %v837 = vrot.slane %v820, 4
        %v838 = vsel %vm715, 0.0, %v837
        %v839 = vrot.slane %v824, 4
        %v840 = vsel %vm715, 0.0, %v839
        %v841 = vrot.slane %v832, 4
        %v842 = vsel %vm715, 0.0, %v841
        %v843 = vrot.slane %v836, 4
        %v844 = vsel %vm715, 0.0, %v843
        %v845 = vpack.c.bf16 %v820, %v820
        %v846 = vpack.c.bf16 %v838, %v838
        %v847 = vpack.c.bf16 %v824, %v824
        %v848 = vpack.c.bf16 %v840, %v840
        %v849 = vpack.c.bf16 %v832, %v832
        %v850 = vpack.c.bf16 %v842, %v842
        %v851 = vpack.c.bf16 %v836, %v836
        %v852 = vpack.c.bf16 %v844, %v844
        %853 = vrot.lane.b32.xlu0 %v698, 96
        %v854 = vpop.permute.xlu0 %853
        %855 = vrot.lane.b32.xlu0 %v781, 96
        %v856 = vpop.permute.xlu0 %855
        %857 = vrot.lane.b32.xlu0 %v784, 96
        %v858 = vpop.permute.xlu0 %857
        %859 = vrot.lane.b32.xlu0 %v787, 96
        %v860 = vpop.permute.xlu0 %859
        %v865 = vrot.slane %v858, 4
        %v866 = vsel %vm715, %v865, %v854
        %v867 = vrot.slane %v854, 4
        %v868 = vsel %vm715, %v858, %v867
        %v870 = vunpack.c.l.s4 1983009808
        %v871 = vunpack.c.0.s8 %v870
        %v872 = vperm.slane %v866, %v871
        %v874 = vunpack.c.l.s4 1983009808
        %v875 = vunpack.c.0.s8 %v874
        %v876 = vperm.slane %v868, %v875
        %v877 = vrot.slane %v860, 4
        %v878 = vsel %vm715, %v877, %v856
        %v879 = vrot.slane %v856, 4
        %v880 = vsel %vm715, %v860, %v879
        %v882 = vunpack.c.l.s4 1983009808
        %v883 = vunpack.c.0.s8 %v882
        %v884 = vperm.slane %v878, %v883
        %v886 = vunpack.c.l.s4 1983009808
        %v887 = vunpack.c.0.s8 %v886
        %v888 = vperm.slane %v880, %v887
        %v889 = vrot.slane %v884, 4
        %v890 = vsel %vm715, %v889, %v872
        %v891 = vrot.slane %v872, 4
        %v892 = vsel %vm715, %v884, %v891
        %v894 = vunpack.c.l.s4 1934713408
        %v895 = vunpack.c.0.s8 %v894
        %v896 = vperm.slane %v890, %v895
        %v898 = vunpack.c.l.s4 1934713408
        %v899 = vunpack.c.0.s8 %v898
        %v900 = vperm.slane %v892, %v899
        %v901 = vrot.slane %v888, 4
        %v902 = vsel %vm715, %v901, %v876
        %v903 = vrot.slane %v876, 4
        %v904 = vsel %vm715, %v888, %v903
        %v906 = vunpack.c.l.s4 1934713408
        %v907 = vunpack.c.0.s8 %v906
        %v908 = vperm.slane %v902, %v907
        %v910 = vunpack.c.l.s4 1934713408
        %v911 = vunpack.c.0.s8 %v910
        %v912 = vperm.slane %v904, %v911
        %v913 = vrot.slane %v896, 4
        %v914 = vsel %vm715, 0.0, %v913
        %v915 = vrot.slane %v900, 4
        %v916 = vsel %vm715, 0.0, %v915
        %v917 = vrot.slane %v908, 4
        %v918 = vsel %vm715, 0.0, %v917
        %v919 = vrot.slane %v912, 4
        %v920 = vsel %vm715, 0.0, %v919
        %v921 = vpack.c.bf16 %v896, %v896
        %v922 = vpack.c.bf16 %v914, %v914
        %v923 = vpack.c.bf16 %v900, %v900
        %v924 = vpack.c.bf16 %v916, %v916
        %v925 = vpack.c.bf16 %v908, %v908
        %v926 = vpack.c.bf16 %v918, %v918
        %v927 = vpack.c.bf16 %v912, %v912
        %v928 = vpack.c.bf16 %v920, %v920
        %v930 = vperm.slane %v703, 0
        %v932 = vrot.slane %v775, 4
        %vm933 = vcmask 1047556
        %v934 = vsel %vm933, %v932, %v771
        %v936 = vunpack.c.l.s4 1983009808
        %v937 = vunpack.c.0.s8 %v936
        %v938 = vperm.slane %v934, %v937
        %v939 = vrot.slane %v777, 4
        %v940 = vsel %vm933, %v939, %v773
        %v942 = vunpack.c.l.s4 1983009808
        %v943 = vunpack.c.0.s8 %v942
        %v944 = vperm.slane %v940, %v943
        %v945 = vrot.slane %v944, 4
        %v946 = vsel %vm933, %v945, %v938
        %v948 = vunpack.c.l.s4 1934713408
        %v949 = vunpack.c.0.s8 %v948
        %v950 = vperm.slane %v946, %v949
        %v951 = vrot.slane %v950, 4
        %v952 = vsel %vm933, 0, %v951
        %v953 = vrot.slane %v776, 4
        %v954 = vsel %vm933, %v953, %v772
        %v956 = vunpack.c.l.s4 1983009808
        %v957 = vunpack.c.0.s8 %v956
        %v958 = vperm.slane %v954, %v957
        %v959 = vrot.slane %v778, 4
        %v960 = vsel %vm933, %v959, %v774
        %v962 = vunpack.c.l.s4 1983009808
        %v963 = vunpack.c.0.s8 %v962
        %v964 = vperm.slane %v960, %v963
        %v965 = vrot.slane %v964, 4
        %v966 = vsel %vm933, %v965, %v958
        %v968 = vunpack.c.l.s4 1934713408
        %v969 = vunpack.c.0.s8 %v968
        %v970 = vperm.slane %v966, %v969
        %v971 = vrot.slane %v970, 4
        %v972 = vsel %vm933, 0, %v971
        %v975 = vpack.i.b16 %v970, %v950
        %v976 = vshrl.u32 %v950, 16
        %v977 = vshrl.u32 %v970, 16
        %v978 = vpack.i.b16 %v977, %v976
        %v981 = vpack.i.b16 %v972, %v952
        %v982 = vshrl.u32 %v952, 16
        %v983 = vshrl.u32 %v972, 16
        %v984 = vpack.i.b16 %v983, %v982
        %985 = vxpose.xlu0.c.b16.start [1/8] %v845, 128
        %986 = vxpose.xlu0.c.b16.cont [2/8] 0, 128
        %987 = vxpose.xlu0.c.b16.cont [3/8] 0, 128
        %988 = vxpose.xlu0.c.b16.cont [4/8] 0, 128
        %989 = vxpose.xlu0.c.b16.cont [5/8] 0, 128
        %990 = vxpose.xlu0.c.b16.cont [6/8] 0, 128
        %991 = vxpose.xlu0.c.b16.cont [7/8] 0, 128
        %992 = vxpose.xlu0.c.b16.end [8/8] 0, 128
        %v993 = vpop.trf.xlu0
        %v994 = vpop.trf.xlu0
        %v995 = vpop.trf.xlu0
        %v996 = vpop.trf.xlu0
        %v997 = vpop.trf.xlu0
        %v998 = vpop.trf.xlu0
        %v999 = vpop.trf.xlu0
        %v1000 = vpop.trf.xlu0
        %1001 = vxpose.xlu0.c.b16.start [1/8] %v846, 128
        %1002 = vxpose.xlu0.c.b16.cont [2/8] 0, 128
        %1003 = vxpose.xlu0.c.b16.cont [3/8] 0, 128
        %1004 = vxpose.xlu0.c.b16.cont [4/8] 0, 128
        %1005 = vxpose.xlu0.c.b16.cont [5/8] 0, 128
        %1006 = vxpose.xlu0.c.b16.cont [6/8] 0, 128
        %1007 = vxpose.xlu0.c.b16.cont [7/8] 0, 128
        %1008 = vxpose.xlu0.c.b16.end [8/8] 0, 128
        %v1009 = vpop.trf.xlu0
        %v1010 = vpop.trf.xlu0
        %v1011 = vpop.trf.xlu0
        %v1012 = vpop.trf.xlu0
        %v1013 = vpop.trf.xlu0
        %v1014 = vpop.trf.xlu0
        %v1015 = vpop.trf.xlu0
        %v1016 = vpop.trf.xlu0
        %1017 = vxpose.xlu0.c.b16.start [1/8] %v847, 128
        %1018 = vxpose.xlu0.c.b16.cont [2/8] 0, 128
        %1019 = vxpose.xlu0.c.b16.cont [3/8] 0, 128
        %1020 = vxpose.xlu0.c.b16.cont [4/8] 0, 128
        %1021 = vxpose.xlu0.c.b16.cont [5/8] 0, 128
        %1022 = vxpose.xlu0.c.b16.cont [6/8] 0, 128
        %1023 = vxpose.xlu0.c.b16.cont [7/8] 0, 128
        %1024 = vxpose.xlu0.c.b16.end [8/8] 0, 128
        %v1025 = vpop.trf.xlu0
        %v1026 = vpop.trf.xlu0
        %v1027 = vpop.trf.xlu0
        %v1028 = vpop.trf.xlu0
        %v1029 = vpop.trf.xlu0
        %v1030 = vpop.trf.xlu0
        %v1031 = vpop.trf.xlu0
        %v1032 = vpop.trf.xlu0
        %1033 = vxpose.xlu0.c.b16.start [1/8] %v848, 128
        %1034 = vxpose.xlu0.c.b16.cont [2/8] 0, 128
        %1035 = vxpose.xlu0.c.b16.cont [3/8] 0, 128
        %1036 = vxpose.xlu0.c.b16.cont [4/8] 0, 128
        %1037 = vxpose.xlu0.c.b16.cont [5/8] 0, 128
        %1038 = vxpose.xlu0.c.b16.cont [6/8] 0, 128
        %1039 = vxpose.xlu0.c.b16.cont [7/8] 0, 128
        %1040 = vxpose.xlu0.c.b16.end [8/8] 0, 128
        %v1041 = vpop.trf.xlu0
        %v1042 = vpop.trf.xlu0
        %v1043 = vpop.trf.xlu0
        %v1044 = vpop.trf.xlu0
        %v1045 = vpop.trf.xlu0
        %v1046 = vpop.trf.xlu0
        %v1047 = vpop.trf.xlu0
        %v1048 = vpop.trf.xlu0
        %1049 = vxpose.xlu0.c.b16.start [1/8] %v849, 128
        %1050 = vxpose.xlu0.c.b16.cont [2/8] 0, 128
        %1051 = vxpose.xlu0.c.b16.cont [3/8] 0, 128
        %1052 = vxpose.xlu0.c.b16.cont [4/8] 0, 128
        %1053 = vxpose.xlu0.c.b16.cont [5/8] 0, 128
        %1054 = vxpose.xlu0.c.b16.cont [6/8] 0, 128
        %1055 = vxpose.xlu0.c.b16.cont [7/8] 0, 128
        %1056 = vxpose.xlu0.c.b16.end [8/8] 0, 128
        %v1057 = vpop.trf.xlu0
        %v1058 = vpop.trf.xlu0
        %v1059 = vpop.trf.xlu0
        %v1060 = vpop.trf.xlu0
        %v1061 = vpop.trf.xlu0
        %v1062 = vpop.trf.xlu0
        %v1063 = vpop.trf.xlu0
        %v1064 = vpop.trf.xlu0
        %1065 = vxpose.xlu0.c.b16.start [1/8] %v850, 128
        %1066 = vxpose.xlu0.c.b16.cont [2/8] 0, 128
        %1067 = vxpose.xlu0.c.b16.cont [3/8] 0, 128
        %1068 = vxpose.xlu0.c.b16.cont [4/8] 0, 128
        %1069 = vxpose.xlu0.c.b16.cont [5/8] 0, 128
        %1070 = vxpose.xlu0.c.b16.cont [6/8] 0, 128
        %1071 = vxpose.xlu0.c.b16.cont [7/8] 0, 128
        %1072 = vxpose.xlu0.c.b16.end [8/8] 0, 128
        %v1073 = vpop.trf.xlu0
        %v1074 = vpop.trf.xlu0
        %v1075 = vpop.trf.xlu0
        %v1076 = vpop.trf.xlu0
        %v1077 = vpop.trf.xlu0
        %v1078 = vpop.trf.xlu0
        %v1079 = vpop.trf.xlu0
        %v1080 = vpop.trf.xlu0
        %1081 = vxpose.xlu0.c.b16.start [1/8] %v851, 128
        %1082 = vxpose.xlu0.c.b16.cont [2/8] 0, 128
        %1083 = vxpose.xlu0.c.b16.cont [3/8] 0, 128
        %1084 = vxpose.xlu0.c.b16.cont [4/8] 0, 128
        %1085 = vxpose.xlu0.c.b16.cont [5/8] 0, 128
        %1086 = vxpose.xlu0.c.b16.cont [6/8] 0, 128
        %1087 = vxpose.xlu0.c.b16.cont [7/8] 0, 128
        %1088 = vxpose.xlu0.c.b16.end [8/8] 0, 128
        %v1089 = vpop.trf.xlu0
        %v1090 = vpop.trf.xlu0
        %v1091 = vpop.trf.xlu0
        %v1092 = vpop.trf.xlu0
        %v1093 = vpop.trf.xlu0
        %v1094 = vpop.trf.xlu0
        %v1095 = vpop.trf.xlu0
        %v1096 = vpop.trf.xlu0
        %1097 = vxpose.xlu0.c.b16.start [1/8] %v852, 128
        %1098 = vxpose.xlu0.c.b16.cont [2/8] 0, 128
        %1099 = vxpose.xlu0.c.b16.cont [3/8] 0, 128
        %1100 = vxpose.xlu0.c.b16.cont [4/8] 0, 128
        %1101 = vxpose.xlu0.c.b16.cont [5/8] 0, 128
        %1102 = vxpose.xlu0.c.b16.cont [6/8] 0, 128
        %1103 = vxpose.xlu0.c.b16.cont [7/8] 0, 128
        %1104 = vxpose.xlu0.c.b16.end [8/8] 0, 128
        %v1105 = vpop.trf.xlu0
        %v1106 = vpop.trf.xlu0
        %v1107 = vpop.trf.xlu0
        %v1108 = vpop.trf.xlu0
        %v1109 = vpop.trf.xlu0
        %v1110 = vpop.trf.xlu0
        %v1111 = vpop.trf.xlu0
        %v1112 = vpop.trf.xlu0
        %v1113 = vrot.slane %v1057, 4
        %v1114 = vsel %vm933, %v1113, %v993
        %v1116 = vunpack.c.l.s4 1983009808
        %v1117 = vunpack.c.0.s8 %v1116
        %v1118 = vperm.slane %v1114, %v1117
        %v1119 = vrot.slane %v1089, 4
        %v1120 = vsel %vm933, %v1119, %v1025
        %v1122 = vunpack.c.l.s4 1983009808
        %v1123 = vunpack.c.0.s8 %v1122
        %v1124 = vperm.slane %v1120, %v1123
        %v1125 = vrot.slane %v1124, 4
        %v1126 = vsel %vm933, %v1125, %v1118
        %v1127 = vrot.slane %v1118, 4
        %v1128 = vsel %vm933, %v1124, %v1127
        %v1130 = vunpack.c.l.s4 1934713408
        %v1131 = vunpack.c.0.s8 %v1130
        %v1132 = vperm.slane %v1126, %v1131
        %v1134 = vunpack.c.l.s4 1934713408
        %v1135 = vunpack.c.0.s8 %v1134
        %v1136 = vperm.slane %v1128, %v1135
        %v1137 = vrot.slane %v1132, 4
        %v1138 = vsel %vm933, 0, %v1137
        %v1139 = vrot.slane %v1136, 4
        %v1140 = vsel %vm933, 0, %v1139
        %v1141 = vrot.slane %v1073, 4
        %v1142 = vsel %vm933, %v1141, %v1009
        %v1144 = vunpack.c.l.s4 1983009808
        %v1145 = vunpack.c.0.s8 %v1144
        %v1146 = vperm.slane %v1142, %v1145
        %v1147 = vrot.slane %v1105, 4
        %v1148 = vsel %vm933, %v1147, %v1041
        %v1150 = vunpack.c.l.s4 1983009808
        %v1151 = vunpack.c.0.s8 %v1150
        %v1152 = vperm.slane %v1148, %v1151
        %v1153 = vrot.slane %v1152, 4
        %v1154 = vsel %vm933, %v1153, %v1146
        %v1155 = vrot.slane %v1146, 4
        %v1156 = vsel %vm933, %v1152, %v1155
        %v1158 = vunpack.c.l.s4 1934713408
        %v1159 = vunpack.c.0.s8 %v1158
        %v1160 = vperm.slane %v1154, %v1159
        %v1162 = vunpack.c.l.s4 1934713408
        %v1163 = vunpack.c.0.s8 %v1162
        %v1164 = vperm.slane %v1156, %v1163
        %v1165 = vrot.slane %v1160, 4
        %v1166 = vsel %vm933, 0, %v1165
        %v1167 = vrot.slane %v1164, 4
        %v1168 = vsel %vm933, 0, %v1167
        %v1171 = vpack.i.b16 %v1160, %v1132
        %v1173 = vshrl.u32 %v1132, 16
        %v1174 = vshrl.u32 %v1160, 16
        %v1175 = vpack.i.b16 %v1174, %v1173
        %v1179 = vpack.i.b16 %v1166, %v1138
        %v1181 = vshrl.u32 %v1138, 16
        %v1182 = vshrl.u32 %v1166, 16
        %v1183 = vpack.i.b16 %v1182, %v1181
        %v1187 = vpack.i.b16 %v1164, %v1136
        %v1189 = vshrl.u32 %v1136, 16
        %v1190 = vshrl.u32 %v1164, 16
        %v1191 = vpack.i.b16 %v1190, %v1189
        %v1195 = vpack.i.b16 %v1168, %v1140
        %v1197 = vshrl.u32 %v1140, 16
        %v1198 = vshrl.u32 %v1168, 16
        %v1199 = vpack.i.b16 %v1198, %v1197
        %1201 = vxpose.xlu0.c.b16.start [1/8] %v1171, 128
        %1202 = vxpose.xlu0.c.b16.cont [2/8] 0, 128
        %1203 = vxpose.xlu0.c.b16.cont [3/8] 0, 128
        %1204 = vxpose.xlu0.c.b16.cont [4/8] 0, 128
        %1205 = vxpose.xlu0.c.b16.cont [5/8] 0, 128
        %1206 = vxpose.xlu0.c.b16.cont [6/8] 0, 128
        %1207 = vxpose.xlu0.c.b16.cont [7/8] 0, 128
        %1208 = vxpose.xlu0.c.b16.end [8/8] 0, 128
        %v1209 = vpop.trf.xlu0
        %v1210 = vpop.trf.xlu0
        %v1211 = vpop.trf.xlu0
        %v1212 = vpop.trf.xlu0
        %v1213 = vpop.trf.xlu0
        %v1214 = vpop.trf.xlu0
        %v1215 = vpop.trf.xlu0
        %v1216 = vpop.trf.xlu0
        %1217 = vxpose.xlu0.c.b16.start [1/8] %v1175, 128
        %1218 = vxpose.xlu0.c.b16.cont [2/8] 0, 128
        %1219 = vxpose.xlu0.c.b16.cont [3/8] 0, 128
        %1220 = vxpose.xlu0.c.b16.cont [4/8] 0, 128
        %1221 = vxpose.xlu0.c.b16.cont [5/8] 0, 128
        %1222 = vxpose.xlu0.c.b16.cont [6/8] 0, 128
        %1223 = vxpose.xlu0.c.b16.cont [7/8] 0, 128
        %1224 = vxpose.xlu0.c.b16.end [8/8] 0, 128
        %v1225 = vpop.trf.xlu0
        %v1226 = vpop.trf.xlu0
        %v1227 = vpop.trf.xlu0
        %v1228 = vpop.trf.xlu0
        %v1229 = vpop.trf.xlu0
        %v1230 = vpop.trf.xlu0
        %v1231 = vpop.trf.xlu0
        %v1232 = vpop.trf.xlu0
        %1233 = vxpose.xlu0.c.b16.start [1/8] %v1179, 128
        %1234 = vxpose.xlu0.c.b16.cont [2/8] 0, 128
        %1235 = vxpose.xlu0.c.b16.cont [3/8] 0, 128
        %1236 = vxpose.xlu0.c.b16.cont [4/8] 0, 128
        %1237 = vxpose.xlu0.c.b16.cont [5/8] 0, 128
        %1238 = vxpose.xlu0.c.b16.cont [6/8] 0, 128
        %1239 = vxpose.xlu0.c.b16.cont [7/8] 0, 128
        %1240 = vxpose.xlu0.c.b16.end [8/8] 0, 128
        %v1241 = vpop.trf.xlu0
        %v1242 = vpop.trf.xlu0
        %v1243 = vpop.trf.xlu0
        %v1244 = vpop.trf.xlu0
        %v1245 = vpop.trf.xlu0
        %v1246 = vpop.trf.xlu0
        %v1247 = vpop.trf.xlu0
        %v1248 = vpop.trf.xlu0
        %1249 = vxpose.xlu0.c.b16.start [1/8] %v1183, 128
        %1250 = vxpose.xlu0.c.b16.cont [2/8] 0, 128
        %1251 = vxpose.xlu0.c.b16.cont [3/8] 0, 128
        %1252 = vxpose.xlu0.c.b16.cont [4/8] 0, 128
        %1253 = vxpose.xlu0.c.b16.cont [5/8] 0, 128
        %1254 = vxpose.xlu0.c.b16.cont [6/8] 0, 128
        %1255 = vxpose.xlu0.c.b16.cont [7/8] 0, 128
        %1256 = vxpose.xlu0.c.b16.end [8/8] 0, 128
        %v1257 = vpop.trf.xlu0
        %v1258 = vpop.trf.xlu0
        %v1259 = vpop.trf.xlu0
        %v1260 = vpop.trf.xlu0
        %v1261 = vpop.trf.xlu0
        %v1262 = vpop.trf.xlu0
        %v1263 = vpop.trf.xlu0
        %v1264 = vpop.trf.xlu0
        %1265 = vxpose.xlu0.c.b16.start [1/8] %v1187, 128
        %1266 = vxpose.xlu0.c.b16.cont [2/8] 0, 128
        %1267 = vxpose.xlu0.c.b16.cont [3/8] 0, 128
        %1268 = vxpose.xlu0.c.b16.cont [4/8] 0, 128
        %1269 = vxpose.xlu0.c.b16.cont [5/8] 0, 128
        %1270 = vxpose.xlu0.c.b16.cont [6/8] 0, 128
        %1271 = vxpose.xlu0.c.b16.cont [7/8] 0, 128
        %1272 = vxpose.xlu0.c.b16.end [8/8] 0, 128
        %v1273 = vpop.trf.xlu0
        %v1274 = vpop.trf.xlu0
        %v1275 = vpop.trf.xlu0
        %v1276 = vpop.trf.xlu0
        %v1277 = vpop.trf.xlu0
        %v1278 = vpop.trf.xlu0
        %v1279 = vpop.trf.xlu0
        %v1280 = vpop.trf.xlu0
        %1281 = vxpose.xlu0.c.b16.start [1/8] %v1191, 128
        %1282 = vxpose.xlu0.c.b16.cont [2/8] 0, 128
        %1283 = vxpose.xlu0.c.b16.cont [3/8] 0, 128
        %1284 = vxpose.xlu0.c.b16.cont [4/8] 0, 128
        %1285 = vxpose.xlu0.c.b16.cont [5/8] 0, 128
        %1286 = vxpose.xlu0.c.b16.cont [6/8] 0, 128
        %1287 = vxpose.xlu0.c.b16.cont [7/8] 0, 128
        %1288 = vxpose.xlu0.c.b16.end [8/8] 0, 128
        %v1289 = vpop.trf.xlu0
        %v1290 = vpop.trf.xlu0
        %v1291 = vpop.trf.xlu0
        %v1292 = vpop.trf.xlu0
        %v1293 = vpop.trf.xlu0
        %v1294 = vpop.trf.xlu0
        %v1295 = vpop.trf.xlu0
        %v1296 = vpop.trf.xlu0
        %1297 = vxpose.xlu0.c.b16.start [1/8] %v1195, 128
        %1298 = vxpose.xlu0.c.b16.cont [2/8] 0, 128
        %1299 = vxpose.xlu0.c.b16.cont [3/8] 0, 128
        %1300 = vxpose.xlu0.c.b16.cont [4/8] 0, 128
        %1301 = vxpose.xlu0.c.b16.cont [5/8] 0, 128
        %1302 = vxpose.xlu0.c.b16.cont [6/8] 0, 128
        %1303 = vxpose.xlu0.c.b16.cont [7/8] 0, 128
        %1304 = vxpose.xlu0.c.b16.end [8/8] 0, 128
        %v1305 = vpop.trf.xlu0
        %v1306 = vpop.trf.xlu0
        %v1307 = vpop.trf.xlu0
        %v1308 = vpop.trf.xlu0
        %v1309 = vpop.trf.xlu0
        %v1310 = vpop.trf.xlu0
        %v1311 = vpop.trf.xlu0
        %v1312 = vpop.trf.xlu0
        %1313 = vxpose.xlu0.c.b16.start [1/8] %v1199, 128
        %1314 = vxpose.xlu0.c.b16.cont [2/8] 0, 128
        %1315 = vxpose.xlu0.c.b16.cont [3/8] 0, 128
        %1316 = vxpose.xlu0.c.b16.cont [4/8] 0, 128
        %1317 = vxpose.xlu0.c.b16.cont [5/8] 0, 128
        %1318 = vxpose.xlu0.c.b16.cont [6/8] 0, 128
        %1319 = vxpose.xlu0.c.b16.cont [7/8] 0, 128
        %1320 = vxpose.xlu0.c.b16.end [8/8] 0, 128
        %v1321 = vpop.trf.xlu0
        %v1322 = vpop.trf.xlu0
        %v1323 = vpop.trf.xlu0
        %v1324 = vpop.trf.xlu0
        %v1325 = vpop.trf.xlu0
        %v1326 = vpop.trf.xlu0
        %v1327 = vpop.trf.xlu0
        %v1328 = vpop.trf.xlu0
        %v1329 = vrot.slane %v1273, 4
        %v1330 = vsel %vm933, %v1329, %v1209
        %v1332 = vunpack.c.l.s4 1983009808
        %v1333 = vunpack.c.0.s8 %v1332
        %v1334 = vperm.slane %v1330, %v1333
        %v1335 = vrot.slane %v1305, 4
        %v1336 = vsel %vm933, %v1335, %v1241
        %v1338 = vunpack.c.l.s4 1983009808
        %v1339 = vunpack.c.0.s8 %v1338
        %v1340 = vperm.slane %v1336, %v1339
        %v1341 = vrot.slane %v1340, 4
        %v1342 = vsel %vm933, %v1341, %v1334
        %v1344 = vunpack.c.l.s4 1934713408
        %v1345 = vunpack.c.0.s8 %v1344
        %v1346 = vperm.slane %v1342, %v1345
        %v1347 = vrot.slane %v1346, 4
        %v1348 = vsel %vm933, 0, %v1347
        %v1349 = vrot.slane %v1289, 4
        %v1350 = vsel %vm933, %v1349, %v1225
        %v1352 = vunpack.c.l.s4 1983009808
        %v1353 = vunpack.c.0.s8 %v1352
        %v1354 = vperm.slane %v1350, %v1353
        %v1355 = vrot.slane %v1321, 4
        %v1356 = vsel %vm933, %v1355, %v1257
        %v1358 = vunpack.c.l.s4 1983009808
        %v1359 = vunpack.c.0.s8 %v1358
        %v1360 = vperm.slane %v1356, %v1359
        %v1361 = vrot.slane %v1360, 4
        %v1362 = vsel %vm933, %v1361, %v1354
        %v1364 = vunpack.c.l.s4 1934713408
        %v1365 = vunpack.c.0.s8 %v1364
        %v1366 = vperm.slane %v1362, %v1365
        %v1367 = vrot.slane %v1366, 4
        %v1368 = vsel %vm933, 0, %v1367
        %v1371 = vpack.i.b16 %v1366, %v1346
        %v1372 = vshrl.u32 %v1346, 16
        %v1373 = vshrl.u32 %v1366, 16
        %v1374 = vpack.i.b16 %v1373, %v1372
        %v1377 = vpack.i.b16 %v1368, %v1348
        %v1378 = vshrl.u32 %v1348, 16
        %v1379 = vshrl.u32 %v1368, 16
        %v1380 = vpack.i.b16 %v1379, %v1378
        %vm1381 = vcmask 64512
        %v1383 = vsel %vm1381, %v975, 0
        %vm1385 = vcmask 1043456
        %v1387 = vsel %vm1385, %v1371, 0
        %1389 = vmatpush.bf16.msra.mxu0 0
        %1390 = vmatpush.bf16.msra.mxu0 0
        %1391 = vmatpush.bf16.msra.mxu0 0
        %1392 = vmatpush.bf16.msra.mxu0 0
        %1393 = vmatpush.bf16.msra.mxu0 0
        %1394 = vmatpush.bf16.msra.mxu0 0
        %1395 = vmatpush.bf16.msra.mxu0 0
        %1396 = vmatpush.bf16.msra.mxu0 %v1387
        %1397 = vmatmul.bf16.gmra.mxu0 %v1383
        %v1398 = vpop.f32.mrf.mxu0
        %v1399 = vadd.f32 %v930, %v1398
        %v1400 = vpop.f32.mrf.mxu0
        %1401 = vdwg.mxu0
        %v1403 = vsel %vm1381, %v978, 0
        %v1406 = vsel %vm1385, %v1374, 0
        %1408 = vmatpush.bf16.msra.mxu0 0
        %1409 = vmatpush.bf16.msra.mxu0 0
        %1410 = vmatpush.bf16.msra.mxu0 0
        %1411 = vmatpush.bf16.msra.mxu0 0
        %1412 = vmatpush.bf16.msra.mxu0 0
        %1413 = vmatpush.bf16.msra.mxu0 0
        %1414 = vmatpush.bf16.msra.mxu0 0
        %1415 = vmatpush.bf16.msra.mxu0 %v1406
        %1416 = vmatmul.bf16.gmra.mxu0 %v1403
        %v1417 = vpop.f32.mrf.mxu0
        %v1418 = vadd.f32 %v930, %v1417
        %v1419 = vpop.f32.mrf.mxu0
        %1420 = vdwg.mxu0
        %v1422 = vsel %vm1381, %v981, 0
        %v1425 = vsel %vm1385, %v1377, 0
        %1427 = vmatpush.bf16.msra.mxu0 0
        %1428 = vmatpush.bf16.msra.mxu0 0
        %1429 = vmatpush.bf16.msra.mxu0 0
        %1430 = vmatpush.bf16.msra.mxu0 0
        %1431 = vmatpush.bf16.msra.mxu0 0
        %1432 = vmatpush.bf16.msra.mxu0 0
        %1433 = vmatpush.bf16.msra.mxu0 0
        %1434 = vmatpush.bf16.msra.mxu0 %v1425
        %1435 = vmatmul.bf16.gmra.mxu0 %v1422
        %v1436 = vpop.f32.mrf.mxu0
        %v1437 = vadd.f32 %v930, %v1436
        %v1438 = vpop.f32.mrf.mxu0
        %1439 = vdwg.mxu0
        %v1441 = vsel %vm1381, %v984, 0
        %v1444 = vsel %vm1385, %v1380, 0
        %1446 = vmatpush.bf16.msra.mxu0 0
        %1447 = vmatpush.bf16.msra.mxu0 0
        %1448 = vmatpush.bf16.msra.mxu0 0
        %1449 = vmatpush.bf16.msra.mxu0 0
        %1450 = vmatpush.bf16.msra.mxu0 0
        %1451 = vmatpush.bf16.msra.mxu0 0
        %1452 = vmatpush.bf16.msra.mxu0 0
        %1453 = vmatpush.bf16.msra.mxu0 %v1444
        %1454 = vmatmul.bf16.gmra.mxu0 %v1441
        %v1455 = vpop.f32.mrf.mxu0
        %v1456 = vadd.f32 %v930, %v1455
        %v1457 = vpop.f32.mrf.mxu0
        %1458 = vdwg.mxu0
        %v1459 = vsel %vm1381, %v1399, -inf
        %1460 = vmax.xlane.f32.xlu0 %v1459
        %v1461 = vpop.xlane.xlu0 %1460
        %v1462 = vsel %vm1381, %v1418, -inf
        %1463 = vmax.xlane.f32.xlu0 %v1462
        %v1464 = vpop.xlane.xlu0 %1463
        %v1465 = vsel %vm1381, %v1437, -inf
        %1466 = vmax.xlane.f32.xlu0 %v1465
        %v1467 = vpop.xlane.xlu0 %1466
        %v1468 = vsel %vm1381, %v1456, -inf
        %1469 = vmax.xlane.f32.xlu0 %v1468
        %v1470 = vpop.xlane.xlu0 %1469
        %v1471 = vsub.f32 %v1399, %v1461
        %v1472 = vsub.f32 %v1418, %v1464
        %v1473 = vsub.f32 %v1437, %v1467
        %v1474 = vsub.f32 %v1456, %v1470
        %v1475 = vmul.f32 %v1471, 1.442695
        %v1476 = vpow.pop %v1475
        %v1477 = vmul.f32 %v1472, 1.442695
        %v1478 = vpow.pop %v1477
        %v1479 = vmul.f32 %v1473, 1.442695
        %v1480 = vpow.pop %v1479
        %v1481 = vmul.f32 %v1474, 1.442695
        %v1482 = vpow.pop %v1481
        %v1483 = vsel %vm1381, %v1476, 0.0
        %1484 = vadd.xlane.f32.xlu0 %v1483
        %v1485 = vpop.xlane.xlu0 %1484
        %v1486 = vsel %vm1381, %v1478, 0.0
        %1487 = vadd.xlane.f32.xlu0 %v1486
        %v1488 = vpop.xlane.xlu0 %1487
        %v1489 = vsel %vm1381, %v1480, 0.0
        %1490 = vadd.xlane.f32.xlu0 %v1489
        %v1491 = vpop.xlane.xlu0 %1490
        %v1492 = vsel %vm1381, %v1482, 0.0
        %1493 = vadd.xlane.f32.xlu0 %v1492
        %v1494 = vpop.xlane.xlu0 %1493
        %v1495 = vrcp.pop %v1485
        %v1496 = vmul.f32 %v1485, %v1495
        %v1497 = vsub.f32 1.0, %v1496
        %v1498 = vmul.f32 %v1495, %v1497
        %v1499 = vadd.f32 %v1495, %v1498
        %vm1500 = vweird.f32 %v1485
        %vm1501 = vweird.f32 %v1495
        %vm1502 = vmor %vm1500, %vm1501
        %v1503 = vsel %vm1502, %v1495, %v1499
        %v1504 = vand.u32 2147483647, %v1485
        %vm1505 = vcmp.eq.f32.partialorder %v1504, 8.507059e+37
        %v1506 = vand.u32 %v1485, 2147483648
        %v1507 = vor.u32 1.1754944e-38, %v1506
        %v1508 = vsel %vm1505, %v1507, %v1503
        %v1509 = vrcp.pop %v1488
        %v1510 = vmul.f32 %v1488, %v1509
        %v1511 = vsub.f32 1.0, %v1510
        %v1512 = vmul.f32 %v1509, %v1511
        %v1513 = vadd.f32 %v1509, %v1512
        %vm1514 = vweird.f32 %v1488
        %vm1515 = vweird.f32 %v1509
        %vm1516 = vmor %vm1514, %vm1515
        %v1517 = vsel %vm1516, %v1509, %v1513
        %v1518 = vand.u32 2147483647, %v1488
        %vm1519 = vcmp.eq.f32.partialorder %v1518, 8.507059e+37
        %v1520 = vand.u32 %v1488, 2147483648
        %v1521 = vor.u32 1.1754944e-38, %v1520
        %v1522 = vsel %vm1519, %v1521, %v1517
        %v1523 = vrcp.pop %v1491
        %v1524 = vmul.f32 %v1491, %v1523
        %v1525 = vsub.f32 1.0, %v1524
        %v1526 = vmul.f32 %v1523, %v1525
        %v1527 = vadd.f32 %v1523, %v1526
        %vm1528 = vweird.f32 %v1491
        %vm1529 = vweird.f32 %v1523
        %vm1530 = vmor %vm1528, %vm1529
        %v1531 = vsel %vm1530, %v1523, %v1527
        %v1532 = vand.u32 2147483647, %v1491
        %vm1533 = vcmp.eq.f32.partialorder %v1532, 8.507059e+37
        %v1534 = vand.u32 %v1491, 2147483648
        %v1535 = vor.u32 1.1754944e-38, %v1534
        %v1536 = vsel %vm1533, %v1535, %v1531
        %v1537 = vrcp.pop %v1494
        %v1538 = vmul.f32 %v1494, %v1537
        %v1539 = vsub.f32 1.0, %v1538
        %v1540 = vmul.f32 %v1537, %v1539
        %v1541 = vadd.f32 %v1537, %v1540
        %vm1542 = vweird.f32 %v1494
        %vm1543 = vweird.f32 %v1537
        %vm1544 = vmor %vm1542, %vm1543
        %v1545 = vsel %vm1544, %v1537, %v1541
        %v1546 = vand.u32 2147483647, %v1494
        %vm1547 = vcmp.eq.f32.partialorder %v1546, 8.507059e+37
        %v1548 = vand.u32 %v1494, 2147483648
        %v1549 = vor.u32 1.1754944e-38, %v1548
        %v1550 = vsel %vm1547, %v1549, %v1545
        %v1551 = vmul.f32 %v1476, %v1508
        %v1552 = vmul.f32 %v1478, %v1522
        %v1553 = vmul.f32 %v1480, %v1536
        %v1554 = vmul.f32 %v1482, %v1550
        %v1555 = vpack.c.bf16 %v1551, %v1551
        %v1556 = vpack.c.bf16 %v1552, %v1552
        %v1557 = vpack.c.bf16 %v1553, %v1553
        %v1558 = vpack.c.bf16 %v1554, %v1554
        %1559 = vxpose.xlu0.c.b16.start [1/8] %v921, 128
        %1560 = vxpose.xlu0.c.b16.cont [2/8] 0, 128
        %1561 = vxpose.xlu0.c.b16.cont [3/8] 0, 128
        %1562 = vxpose.xlu0.c.b16.cont [4/8] 0, 128
        %1563 = vxpose.xlu0.c.b16.cont [5/8] 0, 128
        %1564 = vxpose.xlu0.c.b16.cont [6/8] 0, 128
        %1565 = vxpose.xlu0.c.b16.cont [7/8] 0, 128
        %1566 = vxpose.xlu0.c.b16.end [8/8] 0, 128
        %v1567 = vpop.trf.xlu0
        %v1568 = vpop.trf.xlu0
        %v1569 = vpop.trf.xlu0
        %v1570 = vpop.trf.xlu0
        %v1571 = vpop.trf.xlu0
        %v1572 = vpop.trf.xlu0
        %v1573 = vpop.trf.xlu0
        %v1574 = vpop.trf.xlu0
        %1575 = vxpose.xlu0.c.b16.start [1/8] %v922, 128
        %1576 = vxpose.xlu0.c.b16.cont [2/8] 0, 128
        %1577 = vxpose.xlu0.c.b16.cont [3/8] 0, 128
        %1578 = vxpose.xlu0.c.b16.cont [4/8] 0, 128
        %1579 = vxpose.xlu0.c.b16.cont [5/8] 0, 128
        %1580 = vxpose.xlu0.c.b16.cont [6/8] 0, 128
        %1581 = vxpose.xlu0.c.b16.cont [7/8] 0, 128
        %1582 = vxpose.xlu0.c.b16.end [8/8] 0, 128
        %v1583 = vpop.trf.xlu0
        %v1584 = vpop.trf.xlu0
        %v1585 = vpop.trf.xlu0
        %v1586 = vpop.trf.xlu0
        %v1587 = vpop.trf.xlu0
        %v1588 = vpop.trf.xlu0
        %v1589 = vpop.trf.xlu0
        %v1590 = vpop.trf.xlu0
        %1591 = vxpose.xlu0.c.b16.start [1/8] %v923, 128
        %1592 = vxpose.xlu0.c.b16.cont [2/8] 0, 128
        %1593 = vxpose.xlu0.c.b16.cont [3/8] 0, 128
        %1594 = vxpose.xlu0.c.b16.cont [4/8] 0, 128
        %1595 = vxpose.xlu0.c.b16.cont [5/8] 0, 128
        %1596 = vxpose.xlu0.c.b16.cont [6/8] 0, 128
        %1597 = vxpose.xlu0.c.b16.cont [7/8] 0, 128
        %1598 = vxpose.xlu0.c.b16.end [8/8] 0, 128
        %v1599 = vpop.trf.xlu0
        %v1600 = vpop.trf.xlu0
        %v1601 = vpop.trf.xlu0
        %v1602 = vpop.trf.xlu0
        %v1603 = vpop.trf.xlu0
        %v1604 = vpop.trf.xlu0
        %v1605 = vpop.trf.xlu0
        %v1606 = vpop.trf.xlu0
        %1607 = vxpose.xlu0.c.b16.start [1/8] %v924, 128
        %1608 = vxpose.xlu0.c.b16.cont [2/8] 0, 128
        %1609 = vxpose.xlu0.c.b16.cont [3/8] 0, 128
        %1610 = vxpose.xlu0.c.b16.cont [4/8] 0, 128
        %1611 = vxpose.xlu0.c.b16.cont [5/8] 0, 128
        %1612 = vxpose.xlu0.c.b16.cont [6/8] 0, 128
        %1613 = vxpose.xlu0.c.b16.cont [7/8] 0, 128
        %1614 = vxpose.xlu0.c.b16.end [8/8] 0, 128
        %v1615 = vpop.trf.xlu0
        %v1616 = vpop.trf.xlu0
        %v1617 = vpop.trf.xlu0
        %v1618 = vpop.trf.xlu0
        %v1619 = vpop.trf.xlu0
        %v1620 = vpop.trf.xlu0
        %v1621 = vpop.trf.xlu0
        %v1622 = vpop.trf.xlu0
        %1623 = vxpose.xlu0.c.b16.start [1/8] %v925, 128
        %1624 = vxpose.xlu0.c.b16.cont [2/8] 0, 128
        %1625 = vxpose.xlu0.c.b16.cont [3/8] 0, 128
        %1626 = vxpose.xlu0.c.b16.cont [4/8] 0, 128
        %1627 = vxpose.xlu0.c.b16.cont [5/8] 0, 128
        %1628 = vxpose.xlu0.c.b16.cont [6/8] 0, 128
        %1629 = vxpose.xlu0.c.b16.cont [7/8] 0, 128
        %1630 = vxpose.xlu0.c.b16.end [8/8] 0, 128
        %v1631 = vpop.trf.xlu0
        %v1632 = vpop.trf.xlu0
        %v1633 = vpop.trf.xlu0
        %v1634 = vpop.trf.xlu0
        %v1635 = vpop.trf.xlu0
        %v1636 = vpop.trf.xlu0
        %v1637 = vpop.trf.xlu0
        %v1638 = vpop.trf.xlu0
        %1639 = vxpose.xlu0.c.b16.start [1/8] %v926, 128
        %1640 = vxpose.xlu0.c.b16.cont [2/8] 0, 128
        %1641 = vxpose.xlu0.c.b16.cont [3/8] 0, 128
        %1642 = vxpose.xlu0.c.b16.cont [4/8] 0, 128
        %1643 = vxpose.xlu0.c.b16.cont [5/8] 0, 128
        %1644 = vxpose.xlu0.c.b16.cont [6/8] 0, 128
        %1645 = vxpose.xlu0.c.b16.cont [7/8] 0, 128
        %1646 = vxpose.xlu0.c.b16.end [8/8] 0, 128
        %v1647 = vpop.trf.xlu0
        %v1648 = vpop.trf.xlu0
        %v1649 = vpop.trf.xlu0
        %v1650 = vpop.trf.xlu0
        %v1651 = vpop.trf.xlu0
        %v1652 = vpop.trf.xlu0
        %v1653 = vpop.trf.xlu0
        %v1654 = vpop.trf.xlu0
        %1655 = vxpose.xlu0.c.b16.start [1/8] %v927, 128
        %1656 = vxpose.xlu0.c.b16.cont [2/8] 0, 128
        %1657 = vxpose.xlu0.c.b16.cont [3/8] 0, 128
        %1658 = vxpose.xlu0.c.b16.cont [4/8] 0, 128
        %1659 = vxpose.xlu0.c.b16.cont [5/8] 0, 128
        %1660 = vxpose.xlu0.c.b16.cont [6/8] 0, 128
        %1661 = vxpose.xlu0.c.b16.cont [7/8] 0, 128
        %1662 = vxpose.xlu0.c.b16.end [8/8] 0, 128
        %v1663 = vpop.trf.xlu0
        %v1664 = vpop.trf.xlu0
        %v1665 = vpop.trf.xlu0
        %v1666 = vpop.trf.xlu0
        %v1667 = vpop.trf.xlu0
        %v1668 = vpop.trf.xlu0
        %v1669 = vpop.trf.xlu0
        %v1670 = vpop.trf.xlu0
        %1671 = vxpose.xlu0.c.b16.start [1/8] %v928, 128
        %1672 = vxpose.xlu0.c.b16.cont [2/8] 0, 128
        %1673 = vxpose.xlu0.c.b16.cont [3/8] 0, 128
        %1674 = vxpose.xlu0.c.b16.cont [4/8] 0, 128
        %1675 = vxpose.xlu0.c.b16.cont [5/8] 0, 128
        %1676 = vxpose.xlu0.c.b16.cont [6/8] 0, 128
        %1677 = vxpose.xlu0.c.b16.cont [7/8] 0, 128
        %1678 = vxpose.xlu0.c.b16.end [8/8] 0, 128
        %v1679 = vpop.trf.xlu0
        %v1680 = vpop.trf.xlu0
        %v1681 = vpop.trf.xlu0
        %v1682 = vpop.trf.xlu0
        %v1683 = vpop.trf.xlu0
        %v1684 = vpop.trf.xlu0
        %v1685 = vpop.trf.xlu0
        %v1686 = vpop.trf.xlu0
        %v1687 = vrot.slane %v1631, 4
        %v1688 = vsel %vm933, %v1687, %v1567
        %v1690 = vunpack.c.l.s4 1983009808
        %v1691 = vunpack.c.0.s8 %v1690
        %v1692 = vperm.slane %v1688, %v1691
        %v1693 = vrot.slane %v1663, 4
        %v1694 = vsel %vm933, %v1693, %v1599
        %v1696 = vunpack.c.l.s4 1983009808
        %v1697 = vunpack.c.0.s8 %v1696
        %v1698 = vperm.slane %v1694, %v1697
        %v1699 = vrot.slane %v1698, 4
        %v1700 = vsel %vm933, %v1699, %v1692
        %v1701 = vrot.slane %v1692, 4
        %v1702 = vsel %vm933, %v1698, %v1701
        %v1704 = vunpack.c.l.s4 1934713408
        %v1705 = vunpack.c.0.s8 %v1704
        %v1706 = vperm.slane %v1700, %v1705
        %v1708 = vunpack.c.l.s4 1934713408
        %v1709 = vunpack.c.0.s8 %v1708
        %v1710 = vperm.slane %v1702, %v1709
        %v1711 = vrot.slane %v1706, 4
        %v1712 = vsel %vm933, 0, %v1711
        %v1713 = vrot.slane %v1710, 4
        %v1714 = vsel %vm933, 0, %v1713
        %v1715 = vrot.slane %v1647, 4
        %v1716 = vsel %vm933, %v1715, %v1583
        %v1718 = vunpack.c.l.s4 1983009808
        %v1719 = vunpack.c.0.s8 %v1718
        %v1720 = vperm.slane %v1716, %v1719
        %v1721 = vrot.slane %v1679, 4
        %v1722 = vsel %vm933, %v1721, %v1615
        %v1724 = vunpack.c.l.s4 1983009808
        %v1725 = vunpack.c.0.s8 %v1724
        %v1726 = vperm.slane %v1722, %v1725
        %v1727 = vrot.slane %v1726, 4
        %v1728 = vsel %vm933, %v1727, %v1720
        %v1729 = vrot.slane %v1720, 4
        %v1730 = vsel %vm933, %v1726, %v1729
        %v1732 = vunpack.c.l.s4 1934713408
        %v1733 = vunpack.c.0.s8 %v1732
        %v1734 = vperm.slane %v1728, %v1733
        %v1736 = vunpack.c.l.s4 1934713408
        %v1737 = vunpack.c.0.s8 %v1736
        %v1738 = vperm.slane %v1730, %v1737
        %v1739 = vrot.slane %v1734, 4
        %v1740 = vsel %vm933, 0, %v1739
        %v1741 = vrot.slane %v1738, 4
        %v1742 = vsel %vm933, 0, %v1741
        %v1745 = vpack.i.b16 %v1734, %v1706
        %v1747 = vshrl.u32 %v1706, 16
        %v1748 = vshrl.u32 %v1734, 16
        %v1749 = vpack.i.b16 %v1748, %v1747
        %v1753 = vpack.i.b16 %v1740, %v1712
        %v1755 = vshrl.u32 %v1712, 16
        %v1756 = vshrl.u32 %v1740, 16
        %v1757 = vpack.i.b16 %v1756, %v1755
        %v1761 = vpack.i.b16 %v1738, %v1710
        %v1763 = vshrl.u32 %v1710, 16
        %v1764 = vshrl.u32 %v1738, 16
        %v1765 = vpack.i.b16 %v1764, %v1763
        %v1769 = vpack.i.b16 %v1742, %v1714
        %v1771 = vshrl.u32 %v1714, 16
        %v1772 = vshrl.u32 %v1742, 16
        %v1773 = vpack.i.b16 %v1772, %v1771
        %1775 = vxpose.xlu0.c.b16.start [1/8] %v1745, 128
        %1776 = vxpose.xlu0.c.b16.cont [2/8] 0, 128
        %1777 = vxpose.xlu0.c.b16.cont [3/8] 0, 128
        %1778 = vxpose.xlu0.c.b16.cont [4/8] 0, 128
        %1779 = vxpose.xlu0.c.b16.cont [5/8] 0, 128
        %1780 = vxpose.xlu0.c.b16.cont [6/8] 0, 128
        %1781 = vxpose.xlu0.c.b16.cont [7/8] 0, 128
        %1782 = vxpose.xlu0.c.b16.end [8/8] 0, 128
        %v1783 = vpop.trf.xlu0
        %v1784 = vpop.trf.xlu0
        %v1785 = vpop.trf.xlu0
        %v1786 = vpop.trf.xlu0
        %v1787 = vpop.trf.xlu0
        %v1788 = vpop.trf.xlu0
        %v1789 = vpop.trf.xlu0
        %v1790 = vpop.trf.xlu0
        %1791 = vxpose.xlu0.c.b16.start [1/8] %v1749, 128
        %1792 = vxpose.xlu0.c.b16.cont [2/8] 0, 128
        %1793 = vxpose.xlu0.c.b16.cont [3/8] 0, 128
        %1794 = vxpose.xlu0.c.b16.cont [4/8] 0, 128
        %1795 = vxpose.xlu0.c.b16.cont [5/8] 0, 128
        %1796 = vxpose.xlu0.c.b16.cont [6/8] 0, 128
        %1797 = vxpose.xlu0.c.b16.cont [7/8] 0, 128
        %1798 = vxpose.xlu0.c.b16.end [8/8] 0, 128
        %v1799 = vpop.trf.xlu0
        %v1800 = vpop.trf.xlu0
        %v1801 = vpop.trf.xlu0
        %v1802 = vpop.trf.xlu0
        %v1803 = vpop.trf.xlu0
        %v1804 = vpop.trf.xlu0
        %v1805 = vpop.trf.xlu0
        %v1806 = vpop.trf.xlu0
        %1807 = vxpose.xlu0.c.b16.start [1/8] %v1753, 128
        %1808 = vxpose.xlu0.c.b16.cont [2/8] 0, 128
        %1809 = vxpose.xlu0.c.b16.cont [3/8] 0, 128
        %1810 = vxpose.xlu0.c.b16.cont [4/8] 0, 128
        %1811 = vxpose.xlu0.c.b16.cont [5/8] 0, 128
        %1812 = vxpose.xlu0.c.b16.cont [6/8] 0, 128
        %1813 = vxpose.xlu0.c.b16.cont [7/8] 0, 128
        %1814 = vxpose.xlu0.c.b16.end [8/8] 0, 128
        %v1815 = vpop.trf.xlu0
        %v1816 = vpop.trf.xlu0
        %v1817 = vpop.trf.xlu0
        %v1818 = vpop.trf.xlu0
        %v1819 = vpop.trf.xlu0
        %v1820 = vpop.trf.xlu0
        %v1821 = vpop.trf.xlu0
        %v1822 = vpop.trf.xlu0
        %1823 = vxpose.xlu0.c.b16.start [1/8] %v1757, 128
        %1824 = vxpose.xlu0.c.b16.cont [2/8] 0, 128
        %1825 = vxpose.xlu0.c.b16.cont [3/8] 0, 128
        %1826 = vxpose.xlu0.c.b16.cont [4/8] 0, 128
        %1827 = vxpose.xlu0.c.b16.cont [5/8] 0, 128
        %1828 = vxpose.xlu0.c.b16.cont [6/8] 0, 128
        %1829 = vxpose.xlu0.c.b16.cont [7/8] 0, 128
        %1830 = vxpose.xlu0.c.b16.end [8/8] 0, 128
        %v1831 = vpop.trf.xlu0
        %v1832 = vpop.trf.xlu0
        %v1833 = vpop.trf.xlu0
        %v1834 = vpop.trf.xlu0
        %v1835 = vpop.trf.xlu0
        %v1836 = vpop.trf.xlu0
        %v1837 = vpop.trf.xlu0
        %v1838 = vpop.trf.xlu0
        %1839 = vxpose.xlu0.c.b16.start [1/8] %v1761, 128
        %1840 = vxpose.xlu0.c.b16.cont [2/8] 0, 128
        %1841 = vxpose.xlu0.c.b16.cont [3/8] 0, 128
        %1842 = vxpose.xlu0.c.b16.cont [4/8] 0, 128
        %1843 = vxpose.xlu0.c.b16.cont [5/8] 0, 128
        %1844 = vxpose.xlu0.c.b16.cont [6/8] 0, 128
        %1845 = vxpose.xlu0.c.b16.cont [7/8] 0, 128
        %1846 = vxpose.xlu0.c.b16.end [8/8] 0, 128
        %v1847 = vpop.trf.xlu0
        %v1848 = vpop.trf.xlu0
        %v1849 = vpop.trf.xlu0
        %v1850 = vpop.trf.xlu0
        %v1851 = vpop.trf.xlu0
        %v1852 = vpop.trf.xlu0
        %v1853 = vpop.trf.xlu0
        %v1854 = vpop.trf.xlu0
        %1855 = vxpose.xlu0.c.b16.start [1/8] %v1765, 128
        %1856 = vxpose.xlu0.c.b16.cont [2/8] 0, 128
        %1857 = vxpose.xlu0.c.b16.cont [3/8] 0, 128
        %1858 = vxpose.xlu0.c.b16.cont [4/8] 0, 128
        %1859 = vxpose.xlu0.c.b16.cont [5/8] 0, 128
        %1860 = vxpose.xlu0.c.b16.cont [6/8] 0, 128
        %1861 = vxpose.xlu0.c.b16.cont [7/8] 0, 128
        %1862 = vxpose.xlu0.c.b16.end [8/8] 0, 128
        %v1863 = vpop.trf.xlu0
        %v1864 = vpop.trf.xlu0
        %v1865 = vpop.trf.xlu0
        %v1866 = vpop.trf.xlu0
        %v1867 = vpop.trf.xlu0
        %v1868 = vpop.trf.xlu0
        %v1869 = vpop.trf.xlu0
        %v1870 = vpop.trf.xlu0
        %1871 = vxpose.xlu0.c.b16.start [1/8] %v1769, 128
        %1872 = vxpose.xlu0.c.b16.cont [2/8] 0, 128
        %1873 = vxpose.xlu0.c.b16.cont [3/8] 0, 128
        %1874 = vxpose.xlu0.c.b16.cont [4/8] 0, 128
        %1875 = vxpose.xlu0.c.b16.cont [5/8] 0, 128
        %1876 = vxpose.xlu0.c.b16.cont [6/8] 0, 128
        %1877 = vxpose.xlu0.c.b16.cont [7/8] 0, 128
        %1878 = vxpose.xlu0.c.b16.end [8/8] 0, 128
        %v1879 = vpop.trf.xlu0
        %v1880 = vpop.trf.xlu0
        %v1881 = vpop.trf.xlu0
        %v1882 = vpop.trf.xlu0
        %v1883 = vpop.trf.xlu0
        %v1884 = vpop.trf.xlu0
        %v1885 = vpop.trf.xlu0
        %v1886 = vpop.trf.xlu0
        %1887 = vxpose.xlu0.c.b16.start [1/8] %v1773, 128
        %1888 = vxpose.xlu0.c.b16.cont [2/8] 0, 128
        %1889 = vxpose.xlu0.c.b16.cont [3/8] 0, 128
        %1890 = vxpose.xlu0.c.b16.cont [4/8] 0, 128
        %1891 = vxpose.xlu0.c.b16.cont [5/8] 0, 128
        %1892 = vxpose.xlu0.c.b16.cont [6/8] 0, 128
        %1893 = vxpose.xlu0.c.b16.cont [7/8] 0, 128
        %1894 = vxpose.xlu0.c.b16.end [8/8] 0, 128
        %v1895 = vpop.trf.xlu0
        %v1896 = vpop.trf.xlu0
        %v1897 = vpop.trf.xlu0
        %v1898 = vpop.trf.xlu0
        %v1899 = vpop.trf.xlu0
        %v1900 = vpop.trf.xlu0
        %v1901 = vpop.trf.xlu0
        %v1902 = vpop.trf.xlu0
        %v1903 = vrot.slane %v1847, 4
        %v1904 = vsel %vm933, %v1903, %v1783
        %v1906 = vunpack.c.l.s4 1983009808
        %v1907 = vunpack.c.0.s8 %v1906
        %v1908 = vperm.slane %v1904, %v1907
        %v1909 = vrot.slane %v1879, 4
        %v1910 = vsel %vm933, %v1909, %v1815
        %v1912 = vunpack.c.l.s4 1983009808
        %v1913 = vunpack.c.0.s8 %v1912
        %v1914 = vperm.slane %v1910, %v1913
        %v1915 = vrot.slane %v1914, 4
        %v1916 = vsel %vm933, %v1915, %v1908
        %v1918 = vunpack.c.l.s4 1934713408
        %v1919 = vunpack.c.0.s8 %v1918
        %v1920 = vperm.slane %v1916, %v1919
        %v1921 = vrot.slane %v1920, 4
        %v1922 = vsel %vm933, 0, %v1921
        %v1923 = vrot.slane %v1863, 4
        %v1924 = vsel %vm933, %v1923, %v1799
        %v1926 = vunpack.c.l.s4 1983009808
        %v1927 = vunpack.c.0.s8 %v1926
        %v1928 = vperm.slane %v1924, %v1927
        %v1929 = vrot.slane %v1895, 4
        %v1930 = vsel %vm933, %v1929, %v1831
        %v1932 = vunpack.c.l.s4 1983009808
        %v1933 = vunpack.c.0.s8 %v1932
        %v1934 = vperm.slane %v1930, %v1933
        %v1935 = vrot.slane %v1934, 4
        %v1936 = vsel %vm933, %v1935, %v1928
        %v1938 = vunpack.c.l.s4 1934713408
        %v1939 = vunpack.c.0.s8 %v1938
        %v1940 = vperm.slane %v1936, %v1939
        %v1941 = vrot.slane %v1940, 4
        %v1942 = vsel %vm933, 0, %v1941
        %v1945 = vpack.i.b16 %v1940, %v1920
        %v1946 = vshrl.u32 %v1920, 16
        %v1947 = vshrl.u32 %v1940, 16
        %v1948 = vpack.i.b16 %v1947, %v1946
        %v1951 = vpack.i.b16 %v1942, %v1922
        %v1952 = vshrl.u32 %v1922, 16
        %v1953 = vshrl.u32 %v1942, 16
        %v1954 = vpack.i.b16 %v1953, %v1952
        %v1956 = vsel %vm1381, %v1945, 0
        %v1959 = vsel %vm1381, %v1555, 0
        %1961 = vmatpush.bf16.xpose.msra.mxu0 0
        %1962 = vmatpush.bf16.xpose.msra.mxu0 0
        %1963 = vmatpush.bf16.xpose.msra.mxu0 0
        %1964 = vmatpush.bf16.xpose.msra.mxu0 0
        %1965 = vmatpush.bf16.xpose.msra.mxu0 0
        %1966 = vmatpush.bf16.xpose.msra.mxu0 0
        %1967 = vmatpush.bf16.xpose.msra.mxu0 0
        %1968 = vmatpush.bf16.xpose.msra.mxu0 %v1959
        %1969 = vmatmul.bf16.gmra.mxu0 %v1956
        %v1970 = vpop.f32.mrf.mxu0
        %v1971 = vadd.f32 0.0, %v1970
        %v1972 = vpop.f32.mrf.mxu0
        %1973 = vdwg.mxu0
        %v1975 = vsel %vm1381, %v1948, 0
        %v1978 = vsel %vm1381, %v1556, 0
        %1980 = vmatpush.bf16.xpose.msra.mxu0 0
        %1981 = vmatpush.bf16.xpose.msra.mxu0 0
        %1982 = vmatpush.bf16.xpose.msra.mxu0 0
        %1983 = vmatpush.bf16.xpose.msra.mxu0 0
        %1984 = vmatpush.bf16.xpose.msra.mxu0 0
        %1985 = vmatpush.bf16.xpose.msra.mxu0 0
        %1986 = vmatpush.bf16.xpose.msra.mxu0 0
        %1987 = vmatpush.bf16.xpose.msra.mxu0 %v1978
        %1988 = vmatmul.bf16.gmra.mxu0 %v1975
        %v1989 = vpop.f32.mrf.mxu0
        %v1990 = vadd.f32 0.0, %v1989
        %v1991 = vpop.f32.mrf.mxu0
        %1992 = vdwg.mxu0
        %v1994 = vsel %vm1381, %v1951, 0
        %v1997 = vsel %vm1381, %v1557, 0
        %1999 = vmatpush.bf16.xpose.msra.mxu0 0
        %2000 = vmatpush.bf16.xpose.msra.mxu0 0
        %2001 = vmatpush.bf16.xpose.msra.mxu0 0
        %2002 = vmatpush.bf16.xpose.msra.mxu0 0
        %2003 = vmatpush.bf16.xpose.msra.mxu0 0
        %2004 = vmatpush.bf16.xpose.msra.mxu0 0
        %2005 = vmatpush.bf16.xpose.msra.mxu0 0
        %2006 = vmatpush.bf16.xpose.msra.mxu0 %v1997
        %2007 = vmatmul.bf16.gmra.mxu0 %v1994
        %v2008 = vpop.f32.mrf.mxu0
        %v2009 = vadd.f32 0.0, %v2008
        %v2010 = vpop.f32.mrf.mxu0
        %2011 = vdwg.mxu0
        %v2013 = vsel %vm1381, %v1954, 0
        %v2016 = vsel %vm1381, %v1558, 0
        %2018 = vmatpush.bf16.xpose.msra.mxu0 0
        %2019 = vmatpush.bf16.xpose.msra.mxu0 0
        %2020 = vmatpush.bf16.xpose.msra.mxu0 0
        %2021 = vmatpush.bf16.xpose.msra.mxu0 0
        %2022 = vmatpush.bf16.xpose.msra.mxu0 0
        %2023 = vmatpush.bf16.xpose.msra.mxu0 0
        %2024 = vmatpush.bf16.xpose.msra.mxu0 0
        %2025 = vmatpush.bf16.xpose.msra.mxu0 %v2016
        %2026 = vmatmul.bf16.gmra.mxu0 %v2013
        %v2027 = vpop.f32.mrf.mxu0
        %v2028 = vadd.f32 0.0, %v2027
        %v2029 = vpop.f32.mrf.mxu0
        %2030 = vdwg.mxu0
        %2031 = vxpose.xlu0.b32.start [1/16] %v1971, 128
        %2032 = vxpose.xlu0.b32.cont [2/16] 0.0, 128
        %2033 = vxpose.xlu0.b32.cont [3/16] 0.0, 128
        %2034 = vxpose.xlu0.b32.cont [4/16] 0.0, 128
        %2035 = vxpose.xlu0.b32.cont [5/16] 0.0, 128
        %2036 = vxpose.xlu0.b32.cont [6/16] 0.0, 128
        %2037 = vxpose.xlu0.b32.cont [7/16] 0.0, 128
        %2038 = vxpose.xlu0.b32.cont [8/16] 0.0, 128
        %2039 = vxpose.xlu0.b32.cont [9/16] 0.0, 128
        %2040 = vxpose.xlu0.b32.cont [10/16] 0.0, 128
        %2041 = vxpose.xlu0.b32.cont [11/16] 0.0, 128
        %2042 = vxpose.xlu0.b32.cont [12/16] 0.0, 128
        %2043 = vxpose.xlu0.b32.cont [13/16] 0.0, 128
        %2044 = vxpose.xlu0.b32.cont [14/16] 0.0, 128
        %2045 = vxpose.xlu0.b32.cont [15/16] 0.0, 128
        %2046 = vxpose.xlu0.b32.end [16/16] 0.0, 128
        %v2047 = vpop.trf.xlu0
        %v2048 = vpop.trf.xlu0
        %v2049 = vpop.trf.xlu0
        %v2050 = vpop.trf.xlu0
        %v2051 = vpop.trf.xlu0
        %v2052 = vpop.trf.xlu0
        %v2053 = vpop.trf.xlu0
        %v2054 = vpop.trf.xlu0
        %v2055 = vpop.trf.xlu0
        %v2056 = vpop.trf.xlu0
        %v2057 = vpop.trf.xlu0
        %v2058 = vpop.trf.xlu0
        %v2059 = vpop.trf.xlu0
        %v2060 = vpop.trf.xlu0
        %v2061 = vpop.trf.xlu0
        %v2062 = vpop.trf.xlu0
        %2063 = vxpose.xlu0.b32.start [1/16] %v1990, 128
        %2064 = vxpose.xlu0.b32.cont [2/16] 0.0, 128
        %2065 = vxpose.xlu0.b32.cont [3/16] 0.0, 128
        %2066 = vxpose.xlu0.b32.cont [4/16] 0.0, 128
        %2067 = vxpose.xlu0.b32.cont [5/16] 0.0, 128
        %2068 = vxpose.xlu0.b32.cont [6/16] 0.0, 128
        %2069 = vxpose.xlu0.b32.cont [7/16] 0.0, 128
        %2070 = vxpose.xlu0.b32.cont [8/16] 0.0, 128
        %2071 = vxpose.xlu0.b32.cont [9/16] 0.0, 128
        %2072 = vxpose.xlu0.b32.cont [10/16] 0.0, 128
        %2073 = vxpose.xlu0.b32.cont [11/16] 0.0, 128
        %2074 = vxpose.xlu0.b32.cont [12/16] 0.0, 128
        %2075 = vxpose.xlu0.b32.cont [13/16] 0.0, 128
        %2076 = vxpose.xlu0.b32.cont [14/16] 0.0, 128
        %2077 = vxpose.xlu0.b32.cont [15/16] 0.0, 128
        %2078 = vxpose.xlu0.b32.end [16/16] 0.0, 128
        %v2079 = vpop.trf.xlu0
        %v2080 = vpop.trf.xlu0
        %v2081 = vpop.trf.xlu0
        %v2082 = vpop.trf.xlu0
        %v2083 = vpop.trf.xlu0
        %v2084 = vpop.trf.xlu0
        %v2085 = vpop.trf.xlu0
        %v2086 = vpop.trf.xlu0
        %v2087 = vpop.trf.xlu0
        %v2088 = vpop.trf.xlu0
        %v2089 = vpop.trf.xlu0
        %v2090 = vpop.trf.xlu0
        %v2091 = vpop.trf.xlu0
        %v2092 = vpop.trf.xlu0
        %v2093 = vpop.trf.xlu0
        %v2094 = vpop.trf.xlu0
        %2095 = vxpose.xlu0.b32.start [1/16] %v2009, 128
        %2096 = vxpose.xlu0.b32.cont [2/16] 0.0, 128
        %2097 = vxpose.xlu0.b32.cont [3/16] 0.0, 128
        %2098 = vxpose.xlu0.b32.cont [4/16] 0.0, 128
        %2099 = vxpose.xlu0.b32.cont [5/16] 0.0, 128
        %2100 = vxpose.xlu0.b32.cont [6/16] 0.0, 128
        %2101 = vxpose.xlu0.b32.cont [7/16] 0.0, 128
        %2102 = vxpose.xlu0.b32.cont [8/16] 0.0, 128
        %2103 = vxpose.xlu0.b32.cont [9/16] 0.0, 128
        %2104 = vxpose.xlu0.b32.cont [10/16] 0.0, 128
        %2105 = vxpose.xlu0.b32.cont [11/16] 0.0, 128
        %2106 = vxpose.xlu0.b32.cont [12/16] 0.0, 128
        %2107 = vxpose.xlu0.b32.cont [13/16] 0.0, 128
        %2108 = vxpose.xlu0.b32.cont [14/16] 0.0, 128
        %2109 = vxpose.xlu0.b32.cont [15/16] 0.0, 128
        %2110 = vxpose.xlu0.b32.end [16/16] 0.0, 128
        %v2111 = vpop.trf.xlu0
        %v2112 = vpop.trf.xlu0
        %v2113 = vpop.trf.xlu0
        %v2114 = vpop.trf.xlu0
        %v2115 = vpop.trf.xlu0
        %v2116 = vpop.trf.xlu0
        %v2117 = vpop.trf.xlu0
        %v2118 = vpop.trf.xlu0
        %v2119 = vpop.trf.xlu0
        %v2120 = vpop.trf.xlu0
        %v2121 = vpop.trf.xlu0
        %v2122 = vpop.trf.xlu0
        %v2123 = vpop.trf.xlu0
        %v2124 = vpop.trf.xlu0
        %v2125 = vpop.trf.xlu0
        %v2126 = vpop.trf.xlu0
        %2127 = vxpose.xlu0.b32.start [1/16] %v2028, 128
        %2128 = vxpose.xlu0.b32.cont [2/16] 0.0, 128
        %2129 = vxpose.xlu0.b32.cont [3/16] 0.0, 128
        %2130 = vxpose.xlu0.b32.cont [4/16] 0.0, 128
        %2131 = vxpose.xlu0.b32.cont [5/16] 0.0, 128
        %2132 = vxpose.xlu0.b32.cont [6/16] 0.0, 128
        %2133 = vxpose.xlu0.b32.cont [7/16] 0.0, 128
        %2134 = vxpose.xlu0.b32.cont [8/16] 0.0, 128
        %2135 = vxpose.xlu0.b32.cont [9/16] 0.0, 128
        %2136 = vxpose.xlu0.b32.cont [10/16] 0.0, 128
        %2137 = vxpose.xlu0.b32.cont [11/16] 0.0, 128
        %2138 = vxpose.xlu0.b32.cont [12/16] 0.0, 128
        %2139 = vxpose.xlu0.b32.cont [13/16] 0.0, 128
        %2140 = vxpose.xlu0.b32.cont [14/16] 0.0, 128
        %2141 = vxpose.xlu0.b32.cont [15/16] 0.0, 128
        %2142 = vxpose.xlu0.b32.end [16/16] 0.0, 128
        %v2143 = vpop.trf.xlu0
        %v2144 = vpop.trf.xlu0
        %v2145 = vpop.trf.xlu0
        %v2146 = vpop.trf.xlu0
        %v2147 = vpop.trf.xlu0
        %v2148 = vpop.trf.xlu0
        %v2149 = vpop.trf.xlu0
        %v2150 = vpop.trf.xlu0
        %v2151 = vpop.trf.xlu0
        %v2152 = vpop.trf.xlu0
        %v2153 = vpop.trf.xlu0
        %v2154 = vpop.trf.xlu0
        %v2155 = vpop.trf.xlu0
        %v2156 = vpop.trf.xlu0
        %v2157 = vpop.trf.xlu0
        %v2158 = vpop.trf.xlu0
        %v2159 = vrot.slane %v2111, 4
        %v2160 = vsel %vm715, %v2159, %v2047
        %v2161 = vrot.slane %v2047, 4
        %v2162 = vsel %vm715, %v2111, %v2161
        %v2164 = vunpack.c.l.s4 1983009808
        %v2165 = vunpack.c.0.s8 %v2164
        %v2166 = vperm.slane %v2160, %v2165
        %v2168 = vunpack.c.l.s4 1983009808
        %v2169 = vunpack.c.0.s8 %v2168
        %v2170 = vperm.slane %v2162, %v2169
        %v2171 = vrot.slane %v2143, 4
        %v2172 = vsel %vm715, %v2171, %v2079
        %v2173 = vrot.slane %v2079, 4
        %v2174 = vsel %vm715, %v2143, %v2173
        %v2176 = vunpack.c.l.s4 1983009808
        %v2177 = vunpack.c.0.s8 %v2176
        %v2178 = vperm.slane %v2172, %v2177
        %v2180 = vunpack.c.l.s4 1983009808
        %v2181 = vunpack.c.0.s8 %v2180
        %v2182 = vperm.slane %v2174, %v2181
        %v2183 = vrot.slane %v2178, 4
        %v2184 = vsel %vm715, %v2183, %v2166
        %v2185 = vrot.slane %v2166, 4
        %v2186 = vsel %vm715, %v2178, %v2185
        %v2188 = vunpack.c.l.s4 1934713408
        %v2189 = vunpack.c.0.s8 %v2188
        %v2190 = vperm.slane %v2184, %v2189
        %v2192 = vunpack.c.l.s4 1934713408
        %v2193 = vunpack.c.0.s8 %v2192
        %v2194 = vperm.slane %v2186, %v2193
        %v2195 = vrot.slane %v2182, 4
        %v2196 = vsel %vm715, %v2195, %v2170
        %v2197 = vrot.slane %v2170, 4
        %v2198 = vsel %vm715, %v2182, %v2197
        %v2200 = vunpack.c.l.s4 1934713408
        %v2201 = vunpack.c.0.s8 %v2200
        %v2202 = vperm.slane %v2196, %v2201
        %v2204 = vunpack.c.l.s4 1934713408
        %v2205 = vunpack.c.0.s8 %v2204
        %v2206 = vperm.slane %v2198, %v2205
        %v2207 = vrot.slane %v2190, 4
        %v2208 = vsel %vm715, 0.0, %v2207
        %v2209 = vrot.slane %v2194, 4
        %v2210 = vsel %vm715, 0.0, %v2209
        %v2211 = vrot.slane %v2202, 4
        %v2212 = vsel %vm715, 0.0, %v2211
        %v2213 = vrot.slane %v2206, 4
        %v2214 = vsel %vm715, 0.0, %v2213
        %v2215 = vsel %vm715, %v2209, %v2190
        %v2217 = vunpack.c.l.s4 1983009808
        %v2218 = vunpack.c.0.s8 %v2217
        %v2219 = vperm.slane %v2215, %v2218
        %v2220 = vrot.slane %v2210, 4
        %v2221 = vsel %vm715, %v2220, %v2208
        %v2223 = vunpack.c.l.s4 1983009808
        %v2224 = vunpack.c.0.s8 %v2223
        %v2225 = vperm.slane %v2221, %v2224
        %v2226 = vsel %vm715, %v2213, %v2202
        %v2228 = vunpack.c.l.s4 1983009808
        %v2229 = vunpack.c.0.s8 %v2228
        %v2230 = vperm.slane %v2226, %v2229
        %v2231 = vrot.slane %v2214, 4
        %v2232 = vsel %vm715, %v2231, %v2212
        %v2234 = vunpack.c.l.s4 1983009808
        %v2235 = vunpack.c.0.s8 %v2234
        %v2236 = vperm.slane %v2232, %v2235
        %v2237 = vrot.slane %v2225, 4
        %v2238 = vsel %vm715, %v2237, %v2219
        %v2239 = vrot.slane %v2219, 4
        %v2240 = vsel %vm715, %v2225, %v2239
        %v2242 = vunpack.c.l.s4 1934713408
        %v2243 = vunpack.c.0.s8 %v2242
        %v2244 = vperm.slane %v2238, %v2243
        %v2246 = vunpack.c.l.s4 1934713408
        %v2247 = vunpack.c.0.s8 %v2246
        %v2248 = vperm.slane %v2240, %v2247
        %v2249 = vrot.slane %v2236, 4
        %v2250 = vsel %vm715, %v2249, %v2230
        %v2251 = vrot.slane %v2230, 4
        %v2252 = vsel %vm715, %v2236, %v2251
        %v2254 = vunpack.c.l.s4 1934713408
        %v2255 = vunpack.c.0.s8 %v2254
        %v2256 = vperm.slane %v2250, %v2255
        %v2258 = vunpack.c.l.s4 1934713408
        %v2259 = vunpack.c.0.s8 %v2258
        %v2260 = vperm.slane %v2252, %v2259
        %v2261 = vrot.slane %v2256, 4
        %v2262 = vsel %vm715, %v2261, %v2244
        %v2263 = vrot.slane %v2244, 4
        %v2264 = vsel %vm715, %v2256, %v2263
        %v2265 = vrot.slane %v2260, 4
        %v2266 = vsel %vm715, %v2265, %v2248
        %v2267 = vrot.slane %v2248, 4
        %v2268 = vsel %vm715, %v2260, %v2267
        %2270 = vrot.lane.b32.xlu0 %v2264, 8
        %v2271 = vpop.permute.xlu0 %2270
        %2274 = vrot.lane.b32.xlu0 %v2266, 16
        %v2275 = vpop.permute.xlu0 %2274
        %2278 = vrot.lane.b32.xlu0 %v2268, 24
        %v2279 = vpop.permute.xlu0 %2278
        %v2281 = vsel %vm1381, %v2262, %v2271
        %vm2282 = vcmask 130048
        %v2283 = vsel %vm2282, %v2281, %v2275
        %vm2284 = vcmask 195584
        %v2285 = vsel %vm2284, %v2283, %v2279
        %v2286 = vpack.c.bf16 %v2285, %v2285
        %v2287 = vld [vmem:[#allocation12] sm:$0xf]
        %v2288 = vld [vmem:[#allocation12 + $0x4] sm:$0xf]
        %v2289 = vld [vmem:[#allocation12 + $0x8] sm:$0xf]
        %v2290 = vld [vmem:[#allocation12 + $0xc] sm:$0xf]
        %v2291 = vld [vmem:[#allocation13] sm:$0x1]
        %v2293 = vperm.slane %v2291, 0
        %v2299 = vunpack.c.l.b16 %v2287
        %v2300 = vunpack.c.l.b16 %v2288
        %v2301 = vunpack.c.l.b16 %v2289
        %v2302 = vunpack.c.l.b16 %v2290
        %v2303 = vpack.c.b16 %v2300, %v2299
        %v2304 = vpack.c.b16 %v2302, %v2301
        %v2308 = vsel %vm564, %v2286, 0
        %2310 = vmatpush.bf16.msra.mxu0 0
        %2311 = vmatpush.bf16.msra.mxu0 0
        %2312 = vmatpush.bf16.msra.mxu0 0
        %2313 = vmatpush.bf16.msra.mxu0 0
        %2314 = vmatpush.bf16.msra.mxu0 0
        %2315 = vmatpush.bf16.msra.mxu0 0
        %2316 = vmatpush.bf16.msra.mxu0 %v2304
        %2317 = vmatpush.bf16.msra.mxu0 %v2303
        %2318 = vmatmul.bf16.gmra.mxu0 %v2308
        %v2319 = vpop.f32.mrf.mxu0
        %v2320 = vadd.f32 %v2293, %v2319
        %v2321 = vpop.f32.mrf.mxu0
        %2322 = vdwg.mxu0
        %v2323 = vadd.f32 %v561, %v2320
        %2324 = vst.msk [vmem:[%s559] sm:$0xff] %vm564, %v2323
        %p2325 = scmp.lt.s32.totalorder %s33, 1
        %s2326 = scalar_select %p2325, %s33, 1
        %p2327 = scmp.lt.s32.totalorder %s34, 0
        %s2328 = scalar_select %p2327, %s34, 0
        %s2329 = sadd.s32 %s2328, %s2326
        %s2330 = smul.addr %s2329, 8
        %s2331 = scalar_lea.vmem %s11, %s2330
        // Predicated region
        $region97: #{decoder_forward.7} parent=63 // pred_check
          %p2332 = pneg %p307
        $region98: #{decoder_forward.7} parent=63 // pred_check_branch
          %2334 = sbr.rel (%p2332) target = $region100
        $region99: #{decoder_forward.7} parent=63 // pred_region
          _
        $region100: #{decoder_forward.7} parent=63 // pred_fallthru
          _
      $region64: #{decoder_forward.7} parent=5 // pred_fallthru
        _
      %p2335 = scmp.le.s32.totalorder 2, %s24
      // Predicated region
      $region101: #{decoder_forward.7} parent=5 // pred_check
        %p2336 = pneg %p2335
      $region102: #{decoder_forward.7} parent=5 // pred_check_branch
        %2338 = sbr.rel (%p2336) target = $region104
      $region103: #{decoder_forward.7} parent=5 // pred_region
        %s2339 = ssub.s32 %s24, 2
        // Predicated region
        $region105: #{decoder_forward.7} parent=103 // pred_check
          %p2340 = pneg %p313
        $region106: #{decoder_forward.7} parent=103 // pred_check_branch
          %2342 = sbr.rel (%p2340) target = $region108
        $region107: #{decoder_forward.7} parent=103 // pred_region
          %p2343 = scmp.lt.s32.totalorder %s35, 1
          %s2344 = scalar_select %p2343, %s35, 1
          %p2345 = scmp.lt.s32.totalorder %s36, 0
          %s2346 = scalar_select %p2345, %s36, 0
          %s2347 = sadd.s32 %s2346, %s2344
          %s2348 = smul.addr %s2347, 8
          %s2349 = scalar_lea.vmem %s11, %s2348
        $region108: #{decoder_forward.7} parent=103 // pred_fallthru
          _
      $region104: #{decoder_forward.7} parent=5 // pred_fallthru
        _
    $region6: #{decoder_forward.7} parent=1 // loop_footer
      %s28 = sadd.s32 1, %s24
    $region7: #{decoder_forward.7} parent=1 // loop_footer_branch
      %23 = sbr.rel target = $region3
    $region8: #{decoder_forward.7} parent=1 // loop_exit
      _
    %2350 = vsyncpa [#allocation3], 1
    %s2351 = scalar_lea.sflag [#allocation3], 1
    %2352 = vsyncpa %s2351, 1
    %2353 = vsyncpa [#allocation5], 1
    %2354 = vsyncpa [#allocation8], 1
    %2355 = vsyncpa [#allocation11], 1
    %2356 = vsyncpa [#allocation14], 1

// kernel: decoder_forward.9
$region0: #{decoder_forward.9}
  #allocation0 [shape = 'u32[]', space=smem, size = 0x4, offset = 0x4, fixed_abs, tag = 'smem constant byte address 0x4 - core index']
  #allocation1 [shape = 'u32[72,128]{1,0:T(1,128)}', space=vmem, size = 0x9000, scoped, tag = 'internal scratch']
  %s0 = inlined_call_operand.vmem [shape: f32[2,8,32], index: 0, kind: input, shape index: {}]
  %s1 = inlined_call_operand.vmem [shape: f32[1,8,8], index: 1, kind: input, shape index: {}]
  %s2 = inlined_call_operand.hbm [shape: f32[1,32], index: 2, kind: input, shape index: {}]
  %s3 = inlined_call_operand.hbm [shape: f32[1,32], index: 3, kind: input, shape index: {}]
  %s4 = inlined_call_operand.vmem [shape: bf16[32,96], index: 4, kind: input, shape index: {}]
  %s5 = inlined_call_operand.hbm [shape: f32[1,96], index: 5, kind: input, shape index: {}]
  %s6 = inlined_call_operand.hbm [shape: bf16[32,32], index: 6, kind: input, shape index: {}]
  %s7 = inlined_call_operand.hbm [shape: f32[1,32], index: 7, kind: input, shape index: {}]
  %s8 = inlined_call_operand.vmem [shape: f32[2,8,32], index: 8, kind: output, shape index: {}]
  %s9 = sld [smem:[#allocation0]]
  $region85: #{decoder_forward.9} parent=0
    _
  %s11 = ssub.s32 1, %s9
  %s12 = scalar_select 0, %s11, %s9
  $region1: #{decoder_forward.9} parent=0
    #allocation2 [shape = 'u8[512]{0}', space=vmem, size = 0x400, scoped, tag = 'input window, operand 2, single buffered']
    #allocation3 [shape = 's32[2]{0}', space=sflag, size = 0x8, scoped, tag = 'scoped memory for decoder_forward.9']
    #allocation4 [shape = 'u8[512]{0}', space=vmem, size = 0x400, scoped, tag = 'input window, operand 3, single buffered']
    #allocation5 [shape = 's32[1]{0}', space=sflag, size = 0x4, scoped, tag = 'scoped memory for decoder_forward.9']
    #allocation6 [shape = 'u8[512]{0}', space=vmem, size = 0x400, scoped, tag = 'input window, operand 5, single buffered']
    #allocation7 [shape = 'u8[8192]{0}', space=vmem, size = 0x2000, scoped, tag = 'input window, operand 6, single buffered']
    #allocation8 [shape = 's32[1]{0}', space=sflag, size = 0x4, scoped, tag = 'scoped memory for decoder_forward.9']
    #allocation9 [shape = 'u8[512]{0}', space=vmem, size = 0x400, scoped, tag = 'input window, operand 7, single buffered']
    %13 = vsyncpa [#allocation3], 0
    %14 = vsyncpa [#allocation5], 0
    %15 = vsyncpa [#allocation8], 0
    loop: start=0, step=1, limit=4
    $region2: #{decoder_forward.9} parent=1 // loop_pre_header
      _
    $region3: #{decoder_forward.9} parent=1 // loop_header
      %s17 = sphi 0, %s21
      %p18 = scmp.ge.s32.totalorder %s17, 4
      %s24 = sphi 0, %s36
      %s25 = sphi 0, %s32
      %s26 = sphi 0, %s24
      %s27 = sphi 0, %s25
      %s28 = sphi 0, %s26
      %s29 = sphi 0, %s27
      %s39 = sphi 0, %s41
      %s42 = sphi 0, %s39
      %s43 = sphi 0, %s42
      %s59 = sphi 0, %s43
      %s65 = sphi 0, %s67
      %s68 = sphi 0, %s65
      %s69 = sphi 0, %s68
      %s85 = sphi 0, %s69
      %s89 = sphi 0, %s89
      %s91 = sphi 0, %s89
      %s92 = sphi 0, %s91
      %s106 = sphi 0, %s92
      %s110 = sphi 0, %s110
      %s112 = sphi 0, %s110
      %s113 = sphi 0, %s112
      %s127 = sphi 0, %s113
      %s131 = sphi 0, %s131
      %s133 = sphi 0, %s131
      %s134 = sphi 0, %s133
      %s148 = sphi 0, %s134
      %s152 = sphi 0, %s152
      %s154 = sphi 0, %s152
      %s155 = sphi 0, %s154
      %s169 = sphi 0, %s155
      %s173 = sphi 0, %s173
      %s175 = sphi 0, %s173
      %s176 = sphi 0, %s175
      %s190 = sphi 0, %s176
      %s194 = sphi 0, %s194
      %s196 = sphi 0, %s194
      %s197 = sphi 0, %s196
      %s211 = sphi 0, %s197
      %s219 = sphi 0, %s221
      %s222 = sphi 0, %s219
      %s223 = sphi 0, %s222
      %s239 = sphi 0, %s223
    $region4: #{decoder_forward.9} parent=1 // loop_header_branch
      %20 = sbr.rel (%p18) target = $region8
    $region5: #{decoder_forward.9} parent=1 // loop_body
      %s22 = ssub.s32 %s17, 1
      %s23 = ssub.s32 %s17, 2
      %s30 = sadd.s32 1, %s25
      %p31 = scmp.ge.s32.totalorder %s30, 1
      %s32 = scalar_select %p31, 0, %s30
      %s33 = sadd.s32 1, %s24
      %s34 = scalar_select %p31, %s33, %s24
      %p35 = scmp.ge.s32.totalorder %s34, 2
      %s36 = scalar_select %p35, 0, %s34
      %s37 = ssub.s32 %s24, %s36
      %p38 = scmp.eq.s32.totalorder %s37, 0
      %s40 = sadd.s32 %s39, 1
      %s41 = scalar_select %p38, %s39, %s40
      %p44 = pneg %p38
      %p45 = scmp.eq.s32.totalorder %s17, 1
      %p46 = por %p44, %p45
      %p47 = scmp.ne.s32.totalorder %s39, %s42
      %p48 = scmp.eq.s32.totalorder %s17, 0
      %p49 = por %p47, %p48
      %p50 = scmp.ne.s32.totalorder %s39, %s42
      %p51 = scmp.eq.s32.totalorder %s22, 1
      %p52 = por %p50, %p51
      %p53 = scmp.ne.s32.totalorder %s42, %s43
      %p54 = scmp.eq.s32.totalorder %s22, 0
      %p55 = por %p53, %p54
      %p56 = scmp.ne.s32.totalorder %s42, %s43
      %p57 = scmp.eq.s32.totalorder %s23, 1
      %p58 = por %p56, %p57
      %p60 = scmp.ne.s32.totalorder %s43, %s59
      %p61 = scmp.eq.s32.totalorder %s23, 0
      %p62 = por %p60, %p61
      %s63 = ssub.s32 %s25, %s32
      %p64 = scmp.eq.s32.totalorder %s63, 0
      %s66 = sadd.s32 %s65, 1
      %s67 = scalar_select %p64, %s65, %s66
      %p70 = pneg %p64
      %p71 = scmp.eq.s32.totalorder %s17, 1
      %p72 = por %p70, %p71
      %p73 = scmp.ne.s32.totalorder %s65, %s68
      %p74 = scmp.eq.s32.totalorder %s17, 0
      %p75 = por %p73, %p74
      %p76 = scmp.ne.s32.totalorder %s65, %s68
      %p77 = scmp.eq.s32.totalorder %s22, 1
      %p78 = por %p76, %p77
      %p79 = scmp.ne.s32.totalorder %s68, %s69
      %p80 = scmp.eq.s32.totalorder %s22, 0
      %p81 = por %p79, %p80
      %p82 = scmp.ne.s32.totalorder %s68, %s69
      %p83 = scmp.eq.s32.totalorder %s23, 1
      %p84 = por %p82, %p83
      %p86 = scmp.ne.s32.totalorder %s69, %s85
      %p87 = scmp.eq.s32.totalorder %s23, 0
      %p88 = por %p86, %p87
      %s90 = sadd.s32 %s89, 1
      %p93 = scmp.eq.s32.totalorder %s17, 1
      %p94 = scmp.ne.s32.totalorder %s89, %s91
      %p95 = scmp.eq.s32.totalorder %s17, 0
      %p96 = por %p94, %p95
      %p97 = scmp.ne.s32.totalorder %s89, %s91
      %p98 = scmp.eq.s32.totalorder %s22, 1
      %p99 = por %p97, %p98
      %p100 = scmp.ne.s32.totalorder %s91, %s92
      %p101 = scmp.eq.s32.totalorder %s22, 0
      %p102 = por %p100, %p101
      %p103 = scmp.ne.s32.totalorder %s91, %s92
      %p104 = scmp.eq.s32.totalorder %s23, 1
      %p105 = por %p103, %p104
      %p107 = scmp.ne.s32.totalorder %s92, %s106
      %p108 = scmp.eq.s32.totalorder %s23, 0
      %p109 = por %p107, %p108
      %s111 = sadd.s32 %s110, 1
      %p114 = scmp.eq.s32.totalorder %s17, 1
      %p115 = scmp.ne.s32.totalorder %s110, %s112
      %p116 = scmp.eq.s32.totalorder %s17, 0
      %p117 = por %p115, %p116
      %p118 = scmp.ne.s32.totalorder %s110, %s112
      %p119 = scmp.eq.s32.totalorder %s22, 1
      %p120 = por %p118, %p119
      %p121 = scmp.ne.s32.totalorder %s112, %s113
      %p122 = scmp.eq.s32.totalorder %s22, 0
      %p123 = por %p121, %p122
      %p124 = scmp.ne.s32.totalorder %s112, %s113
      %p125 = scmp.eq.s32.totalorder %s23, 1
      %p126 = por %p124, %p125
      %p128 = scmp.ne.s32.totalorder %s113, %s127
      %p129 = scmp.eq.s32.totalorder %s23, 0
      %p130 = por %p128, %p129
      %s132 = sadd.s32 %s131, 1
      %p135 = scmp.eq.s32.totalorder %s17, 1
      %p136 = scmp.ne.s32.totalorder %s131, %s133
      %p137 = scmp.eq.s32.totalorder %s17, 0
      %p138 = por %p136, %p137
      %p139 = scmp.ne.s32.totalorder %s131, %s133
      %p140 = scmp.eq.s32.totalorder %s22, 1
      %p141 = por %p139, %p140
      %p142 = scmp.ne.s32.totalorder %s133, %s134
      %p143 = scmp.eq.s32.totalorder %s22, 0
      %p144 = por %p142, %p143
      %p145 = scmp.ne.s32.totalorder %s133, %s134
      %p146 = scmp.eq.s32.totalorder %s23, 1
      %p147 = por %p145, %p146
      %p149 = scmp.ne.s32.totalorder %s134, %s148
      %p150 = scmp.eq.s32.totalorder %s23, 0
      %p151 = por %p149, %p150
      %s153 = sadd.s32 %s152, 1
      %p156 = scmp.eq.s32.totalorder %s17, 1
      %p157 = scmp.ne.s32.totalorder %s152, %s154
      %p158 = scmp.eq.s32.totalorder %s17, 0
      %p159 = por %p157, %p158
      %p160 = scmp.ne.s32.totalorder %s152, %s154
      %p161 = scmp.eq.s32.totalorder %s22, 1
      %p162 = por %p160, %p161
      %p163 = scmp.ne.s32.totalorder %s154, %s155
      %p164 = scmp.eq.s32.totalorder %s22, 0
      %p165 = por %p163, %p164
      %p166 = scmp.ne.s32.totalorder %s154, %s155
      %p167 = scmp.eq.s32.totalorder %s23, 1
      %p168 = por %p166, %p167
      %p170 = scmp.ne.s32.totalorder %s155, %s169
      %p171 = scmp.eq.s32.totalorder %s23, 0
      %p172 = por %p170, %p171
      %s174 = sadd.s32 %s173, 1
      %p177 = scmp.eq.s32.totalorder %s17, 1
      %p178 = scmp.ne.s32.totalorder %s173, %s175
      %p179 = scmp.eq.s32.totalorder %s17, 0
      %p180 = por %p178, %p179
      %p181 = scmp.ne.s32.totalorder %s173, %s175
      %p182 = scmp.eq.s32.totalorder %s22, 1
      %p183 = por %p181, %p182
      %p184 = scmp.ne.s32.totalorder %s175, %s176
      %p185 = scmp.eq.s32.totalorder %s22, 0
      %p186 = por %p184, %p185
      %p187 = scmp.ne.s32.totalorder %s175, %s176
      %p188 = scmp.eq.s32.totalorder %s23, 1
      %p189 = por %p187, %p188
      %p191 = scmp.ne.s32.totalorder %s176, %s190
      %p192 = scmp.eq.s32.totalorder %s23, 0
      %p193 = por %p191, %p192
      %s195 = sadd.s32 %s194, 1
      %p198 = scmp.eq.s32.totalorder %s17, 1
      %p199 = scmp.ne.s32.totalorder %s194, %s196
      %p200 = scmp.eq.s32.totalorder %s17, 0
      %p201 = por %p199, %p200
      %p202 = scmp.ne.s32.totalorder %s194, %s196
      %p203 = scmp.eq.s32.totalorder %s22, 1
      %p204 = por %p202, %p203
      %p205 = scmp.ne.s32.totalorder %s196, %s197
      %p206 = scmp.eq.s32.totalorder %s22, 0
      %p207 = por %p205, %p206
      %p208 = scmp.ne.s32.totalorder %s196, %s197
      %p209 = scmp.eq.s32.totalorder %s23, 1
      %p210 = por %p208, %p209
      %p212 = scmp.ne.s32.totalorder %s197, %s211
      %p213 = scmp.eq.s32.totalorder %s23, 0
      %p214 = por %p212, %p213
      %s215 = ssub.s32 %s24, %s36
      %s216 = ssub.s32 %s25, %s32
      %s217 = sor.u32 %s215, %s216
      %p218 = scmp.eq.s32.totalorder %s217, 0
      %s220 = sadd.s32 %s219, 1
      %s221 = scalar_select %p218, %s219, %s220
      %p224 = pneg %p218
      %p225 = scmp.eq.s32.totalorder %s17, 1
      %p226 = por %p224, %p225
      %p227 = scmp.ne.s32.totalorder %s219, %s222
      %p228 = scmp.eq.s32.totalorder %s17, 0
      %p229 = por %p227, %p228
      %p230 = scmp.ne.s32.totalorder %s219, %s222
      %p231 = scmp.eq.s32.totalorder %s22, 1
      %p232 = por %p230, %p231
      %p233 = scmp.ne.s32.totalorder %s222, %s223
      %p234 = scmp.eq.s32.totalorder %s22, 0
      %p235 = por %p233, %p234
      %p236 = scmp.ne.s32.totalorder %s222, %s223
      %p237 = scmp.eq.s32.totalorder %s23, 1
      %p238 = por %p236, %p237
      %p240 = scmp.ne.s32.totalorder %s223, %s239
      %p241 = scmp.eq.s32.totalorder %s23, 0
      %p242 = por %p240, %p241
      %p243 = scmp.le.s32.totalorder 1, %s17
      %p244 = scmp.lt.s32.totalorder %s17, 3
      %p245 = pnand %p243, %p244
      %p246 = pneg %p245
      // Predicated region
      $region9: #{decoder_forward.9} parent=5 // pred_check
        _
      $region10: #{decoder_forward.9} parent=5 // pred_check_branch
        %248 = sbr.rel (%p245) target = $region12
      $region11: #{decoder_forward.9} parent=5 // pred_region
        %s249 = ssub.s32 %s17, 1
        // Predicated region
        $region13: #{decoder_forward.9} parent=11 // pred_check
          %p250 = pneg %p81
        $region14: #{decoder_forward.9} parent=11 // pred_check_branch
          %252 = sbr.rel (%p250) target = $region16
        $region15: #{decoder_forward.9} parent=11 // pred_region
          %p253 = scmp.lt.s32.totalorder %s27, 0
          %s254 = scalar_select %p253, %s27, 0
          %s255 = smul.addr %s254, 8
          %s256 = scalar_lea.vmem %s1, %s255
        $region16: #{decoder_forward.9} parent=11 // pred_fallthru
          _
        // Predicated region
        $region17: #{decoder_forward.9} parent=11 // pred_check
          %p257 = pneg %p102
        $region18: #{decoder_forward.9} parent=11 // pred_check_branch
          %259 = sbr.rel (%p257) target = $region20
        $region19: #{decoder_forward.9} parent=11 // pred_region
          %261 = vsyncadd [#allocation3], 0
          %s263 = sshll.u32 %s2, 4
          %s264 = int_to_ptr.hbm [resolvable:$true] %s263
          %s265 = sshll.u32 [#allocation2], 4
          %s266 = int_to_ptr.vmem [resolvable:$true] %s265
          %268 = dma.hbm_to_vmem [thread:$0]  %s264, 16, %s266, [#allocation3]
        $region20: #{decoder_forward.9} parent=11 // pred_fallthru
          _
        // Predicated region
        $region21: #{decoder_forward.9} parent=11 // pred_check
          %p269 = pneg %p123
        $region22: #{decoder_forward.9} parent=11 // pred_check_branch
          %271 = sbr.rel (%p269) target = $region24
        $region23: #{decoder_forward.9} parent=11 // pred_region
          %273 = vsyncadd [#allocation5], 0
          %s275 = sshll.u32 %s3, 4
          %s276 = int_to_ptr.hbm [resolvable:$true] %s275
          %s277 = sshll.u32 [#allocation4], 4
          %s278 = int_to_ptr.vmem [resolvable:$true] %s277
          %280 = dma.hbm_to_vmem [thread:$0]  %s276, 16, %s278, [#allocation5]
        $region24: #{decoder_forward.9} parent=11 // pred_fallthru
          _
        // Predicated region
        $region25: #{decoder_forward.9} parent=11 // pred_check
          %p281 = pneg %p144
        $region26: #{decoder_forward.9} parent=11 // pred_check_branch
          %283 = sbr.rel (%p281) target = $region28
        $region27: #{decoder_forward.9} parent=11 // pred_region
          _
        $region28: #{decoder_forward.9} parent=11 // pred_fallthru
          _
        // Predicated region
        $region29: #{decoder_forward.9} parent=11 // pred_check
          %p284 = pneg %p165
        $region30: #{decoder_forward.9} parent=11 // pred_check_branch
          %286 = sbr.rel (%p284) target = $region32
        $region31: #{decoder_forward.9} parent=11 // pred_region
          %288 = vsyncadd [#allocation5], 0
          %s290 = sshll.u32 %s5, 4
          %s291 = int_to_ptr.hbm [resolvable:$true] %s290
          %s292 = sshll.u32 [#allocation6], 4
          %s293 = int_to_ptr.vmem [resolvable:$true] %s292
          %295 = dma.hbm_to_vmem [thread:$0]  %s291, 16, %s293, [#allocation5]
        $region32: #{decoder_forward.9} parent=11 // pred_fallthru
          _
        // Predicated region
        $region33: #{decoder_forward.9} parent=11 // pred_check
          %p296 = pneg %p186
        $region34: #{decoder_forward.9} parent=11 // pred_check_branch
          %298 = sbr.rel (%p296) target = $region36
        $region35: #{decoder_forward.9} parent=11 // pred_region
          %300 = vsyncadd [#allocation8], 0
          %s301 = sshll.u32 %s6, 4
          %s302 = int_to_ptr.hbm [resolvable:$true] %s301
          %s303 = sshll.u32 [#allocation7], 4
          %s304 = int_to_ptr.vmem [resolvable:$true] %s303
          %309 = dma.hbm_to_vmem [thread:$0]  %s302, 256, %s304, [#allocation8], 64, 64, 4
        $region36: #{decoder_forward.9} parent=11 // pred_fallthru
          _
        // Predicated region
        $region37: #{decoder_forward.9} parent=11 // pred_check
          %p310 = pneg %p207
        $region38: #{decoder_forward.9} parent=11 // pred_check_branch
          %312 = sbr.rel (%p310) target = $region40
        $region39: #{decoder_forward.9} parent=11 // pred_region
          %314 = vsyncadd [#allocation8], 0
          %s316 = sshll.u32 %s7, 4
          %s317 = int_to_ptr.hbm [resolvable:$true] %s316
          %s318 = sshll.u32 [#allocation9], 4
          %s319 = int_to_ptr.vmem [resolvable:$true] %s318
          %321 = dma.hbm_to_vmem [thread:$0]  %s317, 16, %s319, [#allocation8]
        $region40: #{decoder_forward.9} parent=11 // pred_fallthru
          _
      $region12: #{decoder_forward.9} parent=5 // pred_fallthru
        _
      %p322 = scmp.lt.s32.totalorder %s17, 2
      // Predicated region
      $region41: #{decoder_forward.9} parent=5 // pred_check
        %p323 = pneg %p322
      $region42: #{decoder_forward.9} parent=5 // pred_check_branch
        %325 = sbr.rel (%p323) target = $region44
      $region43: #{decoder_forward.9} parent=5 // pred_region
        // Predicated region
        $region45: #{decoder_forward.9} parent=43 // pred_check
          %p326 = pneg %p49
        $region46: #{decoder_forward.9} parent=43 // pred_check_branch
          %328 = sbr.rel (%p326) target = $region48
        $region47: #{decoder_forward.9} parent=43 // pred_region
          %p329 = scmp.lt.s32.totalorder %s24, 1
          %s330 = scalar_select %p329, %s24, 1
          %s331 = smul.addr %s330, 8
          %s332 = scalar_lea.vmem %s0, %s331
        $region48: #{decoder_forward.9} parent=43 // pred_fallthru
          _
      $region44: #{decoder_forward.9} parent=5 // pred_fallthru
        _
      %p333 = scmp.le.s32.totalorder 1, %s17
      %p334 = scmp.lt.s32.totalorder %s17, 3
      %p335 = pnand %p333, %p334
      %p336 = pneg %p335
      // Predicated region
      $region49: #{decoder_forward.9} parent=5 // pred_check
        _
      $region50: #{decoder_forward.9} parent=5 // pred_check_branch
        %338 = sbr.rel (%p335) target = $region52
      $region51: #{decoder_forward.9} parent=5 // pred_region
        %s339 = ssub.s32 %s17, 1
        // Predicated region
        $region53: #{decoder_forward.9} parent=51 // pred_check
          %p340 = pneg %p102
        $region54: #{decoder_forward.9} parent=51 // pred_check_branch
          %342 = sbr.rel (%p340) target = $region56
        $region55: #{decoder_forward.9} parent=51 // pred_region
          %344 = dma.done [#allocation3], 16
        $region56: #{decoder_forward.9} parent=51 // pred_fallthru
          _
        // Predicated region
        $region57: #{decoder_forward.9} parent=51 // pred_check
          %p345 = pneg %p123
        $region58: #{decoder_forward.9} parent=51 // pred_check_branch
          %347 = sbr.rel (%p345) target = $region60
        $region59: #{decoder_forward.9} parent=51 // pred_region
          %349 = dma.done [#allocation5], 16
        $region60: #{decoder_forward.9} parent=51 // pred_fallthru
          _
        // Predicated region
        $region61: #{decoder_forward.9} parent=51 // pred_check
          %p350 = pneg %p165
        $region62: #{decoder_forward.9} parent=51 // pred_check_branch
          %352 = sbr.rel (%p350) target = $region64
        $region63: #{decoder_forward.9} parent=51 // pred_region
          %354 = dma.done [#allocation5], 16
        $region64: #{decoder_forward.9} parent=51 // pred_fallthru
          _
        // Predicated region
        $region65: #{decoder_forward.9} parent=51 // pred_check
          %p355 = pneg %p186
        $region66: #{decoder_forward.9} parent=51 // pred_check_branch
          %357 = sbr.rel (%p355) target = $region68
        $region67: #{decoder_forward.9} parent=51 // pred_region
          %359 = dma.done [#allocation8], 256
        $region68: #{decoder_forward.9} parent=51 // pred_fallthru
          _
        // Predicated region
        $region69: #{decoder_forward.9} parent=51 // pred_check
          %p360 = pneg %p207
        $region70: #{decoder_forward.9} parent=51 // pred_check_branch
          %362 = sbr.rel (%p360) target = $region72
        $region71: #{decoder_forward.9} parent=51 // pred_region
          %364 = dma.done [#allocation8], 16
        $region72: #{decoder_forward.9} parent=51 // pred_fallthru
          _
        %p365 = scmp.lt.s32.totalorder %s26, 1
        %s366 = scalar_select %p365, %s26, 1
        %s367 = smul.addr %s366, 8
        %s368 = scalar_lea.vmem %s0, %s367
        %p369 = pneg %p55
        %p370 = pneg %p52
        %p371 = scmp.lt.s32.totalorder %s27, 0
        %s372 = scalar_select %p371, %s27, 0
        %s373 = smul.addr %s372, 8
        %s374 = scalar_lea.vmem %s1, %s373
        %p375 = pneg %p81
        %p376 = pneg %p78
        %p377 = pneg %p102
        %p378 = pneg %p99
        %p379 = pneg %p123
        %p380 = pneg %p120
        %p381 = pneg %p144
        %p382 = pneg %p141
        %p383 = pneg %p165
        %p384 = pneg %p162
        %p385 = pneg %p186
        %p386 = pneg %p183
        %p387 = pneg %p207
        %p388 = pneg %p204
        %p389 = pneg %p235
        %p390 = pneg %p232
        %p391 = scmp.lt.s32.totalorder %s26, 1
        %s392 = scalar_select %p391, %s26, 1
        %p393 = scmp.lt.s32.totalorder %s27, 0
        %s394 = scalar_select %p393, %s27, 0
        %s395 = sadd.s32 %s394, %s392
        %s396 = smul.addr %s395, 8
        %s397 = scalar_lea.vmem %s8, %s396
        %p398 = scmp.lt.s32.totalorder %s26, 1
        %s399 = scalar_select %p398, %s26, 1
        %s400 = smul.addr %s399, 8
        %s401 = scalar_lea.vmem %s0, %s400
        %p402 = scmp.lt.s32.totalorder %s27, 0
        %s403 = scalar_select %p402, %s27, 0
        %s404 = smul.addr %s403, 8
        %s405 = scalar_lea.vmem %s1, %s404
        %p406 = scmp.lt.s32.totalorder %s26, 1
        %s407 = scalar_select %p406, %s26, 1
        %p408 = scmp.lt.s32.totalorder %s27, 0
        %s409 = scalar_select %p408, %s27, 0
        %s410 = sadd.s32 %s409, %s407
        %s411 = smul.addr %s410, 8
        %s412 = scalar_lea.vmem %s8, %s411
        %v414 = vld [vmem:[%s401] sm:$0xff]
        %v415 = vld [vmem:[#allocation2] sm:$0x1]
        %v416 = vld [vmem:[#allocation4] sm:$0x1]
        %vm417 = vcmask 261120
        %v418 = vsel %vm417, %v414, 0.0
        %419 = vadd.xlane.f32.xlu0 %v418
        %v420 = vpop.xlane.xlu0 %419
        %v421 = vrcp.pop 32.0
        %v422 = vmul.f32 32.0, %v421
        %v423 = vsub.f32 1.0, %v422
        %v424 = vmul.f32 %v421, %v423
        %v425 = vadd.f32 %v421, %v424
        %vm426 = vweird.f32 %v421
        %v427 = vsel %vm426, %v421, %v425
        %v428 = vmul.f32 %v420, %v427
        %v429 = vsub.f32 %v414, %v428
        %v430 = vmul.f32 %v429, %v429
        %v431 = vsel %vm417, %v430, 0.0
        %432 = vadd.xlane.f32.xlu0 %v431
        %v433 = vpop.xlane.xlu0 %432
        %v434 = vrcp.pop 31.0
        %v435 = vmul.f32 31.0, %v434
        %v436 = vsub.f32 1.0, %v435
        %v437 = vmul.f32 %v434, %v436
        %v438 = vadd.f32 %v434, %v437
        %vm439 = vweird.f32 %v434
        %v440 = vsel %vm439, %v434, %v438
        %v441 = vmul.f32 %v433, %v440
        %v442 = vrsqrt.pop %v441
        %v443 = vmul.f32 %v442, %v441
        %v444 = vmul.f32 %v443, %v442
        %v445 = vmul.f32 0.5, %v444
        %v446 = vsub.f32 1.5, %v445
        %v447 = vmul.f32 %v442, %v446
        %v448 = vmul.f32 %v441, %v447
        %vm449 = vcmp.eq.f32.partialorder %v441, inf
        %v450 = vsel %vm449, %v441, %v448
        %vm451 = vcmp.eq.f32.partialorder %v441, 0.0
        %v452 = vand.u32 %v441, 2147483648
        %v453 = vsel %vm451, %v452, %v450
        %v454 = vadd.f32 %v453, 1e-06
        %v455 = vrcp.pop %v454
        %v456 = vmul.f32 %v454, %v455
        %v457 = vsub.f32 1.0, %v456
        %v458 = vmul.f32 %v455, %v457
        %v459 = vadd.f32 %v455, %v458
        %vm460 = vweird.f32 %v454
        %vm461 = vweird.f32 %v455
        %vm462 = vmor %vm460, %vm461
        %v463 = vsel %vm462, %v455, %v459
        %v464 = vand.u32 2147483647, %v454
        %vm465 = vcmp.eq.f32.partialorder %v464, 8.507059e+37
        %v466 = vand.u32 %v454, 2147483648
        %v467 = vor.u32 1.1754944e-38, %v466
        %v468 = vsel %vm465, %v467, %v463
        %v470 = vperm.slane %v415, 0
        %v472 = vmul.f32 %v470, %v429
        %v473 = vmul.f32 %v472, %v468
        %v475 = vperm.slane %v416, 0
        %v477 = vadd.f32 %v473, %v475
        %v478 = vld [vmem:[%s4] sm:$0xf]
        %v479 = vld [vmem:[%s4 + $0x4] sm:$0xf]
        %v480 = vld [vmem:[%s4 + $0x8] sm:$0xf]
        %v481 = vld [vmem:[%s4 + $0xc] sm:$0xf]
        %v482 = vld [vmem:[#allocation6] sm:$0x1]
        %v483 = vpack.c.bf16 %v477, %v477
        %v485 = vperm.slane %v482, 0
        %v490 = vunpack.c.l.b16 %v478
        %v491 = vunpack.c.l.b16 %v479
        %v492 = vunpack.c.l.b16 %v480
        %v493 = vunpack.c.l.b16 %v481
        %v494 = vpack.c.b16 %v491, %v490
        %v495 = vpack.c.b16 %v493, %v492
        %496 = vrot.lane.b32.xlu0 %v494, 96
        %v497 = vpop.permute.xlu0 %496
        %498 = vrot.lane.b32.xlu0 %v495, 96
        %v499 = vpop.permute.xlu0 %498
        %502 = vrot.lane.b32.xlu0 %v485, 96
        %v503 = vpop.permute.xlu0 %502
        %v506 = vsel %vm417, %v483, 0
        %508 = vmatpush.bf16.msra.mxu0 0
        %509 = vmatpush.bf16.msra.mxu0 0
        %510 = vmatpush.bf16.msra.mxu0 0
        %511 = vmatpush.bf16.msra.mxu0 0
        %512 = vmatpush.bf16.msra.mxu0 0
        %513 = vmatpush.bf16.msra.mxu0 0
        %514 = vmatpush.bf16.msra.mxu0 %v499
        %515 = vmatpush.bf16.msra.mxu0 %v497
        %516 = vmatmul.bf16.gmra.mxu0 %v506
        %v517 = vpop.f32.mrf.mxu0
        %v518 = vadd.f32 %v503, %v517
        %v519 = vpop.f32.mrf.mxu0
        %520 = vdwg.mxu0
        %524 = vmatpush.bf16.msra.mxu0 0
        %525 = vmatpush.bf16.msra.mxu0 0
        %526 = vmatpush.bf16.msra.mxu0 0
        %527 = vmatpush.bf16.msra.mxu0 0
        %528 = vmatpush.bf16.msra.mxu0 0
        %529 = vmatpush.bf16.msra.mxu0 0
        %530 = vmatpush.bf16.msra.mxu0 %v495
        %531 = vmatpush.bf16.msra.mxu0 %v494
        %532 = vmatmul.bf16.gmra.mxu0 %v506
        %v533 = vpop.f32.mrf.mxu0
        %v534 = vadd.f32 %v485, %v533
        %v535 = vpop.f32.mrf.mxu0
        %536 = vdwg.mxu0
        %v537 = vmul.f32 %v534, 0.35355338
        %v538 = vld [vmem:[%s405] sm:$0xff]
        %vm539 = vcmp.eq.f32.partialorder %v538, 0.0
        %v540 = vsel %vm539, -1e+09, 0.0
        %542 = vrot.lane.b32.xlu0 %v537, 120
        %v543 = vpop.permute.xlu0 %542
        %545 = vrot.lane.b32.xlu0 %v537, 112
        %v546 = vpop.permute.xlu0 %545
        %548 = vrot.lane.b32.xlu0 %v537, 104
        %v549 = vpop.permute.xlu0 %548
        %v551 = vrot.slane %v546, 4
        %vm552 = vcmask 1047556
        %v553 = vsel %vm552, %v551, %v537
        %v554 = vrot.slane %v537, 4
        %v555 = vsel %vm552, %v546, %v554
        %v557 = vunpack.c.l.s4 1983009808
        %v558 = vunpack.c.0.s8 %v557
        %v559 = vperm.slane %v553, %v558
        %v561 = vunpack.c.l.s4 1983009808
        %v562 = vunpack.c.0.s8 %v561
        %v563 = vperm.slane %v555, %v562
        %v564 = vrot.slane %v549, 4
        %v565 = vsel %vm552, %v564, %v543
        %v566 = vrot.slane %v543, 4
        %v567 = vsel %vm552, %v549, %v566
        %v569 = vunpack.c.l.s4 1983009808
        %v570 = vunpack.c.0.s8 %v569
        %v571 = vperm.slane %v565, %v570
        %v573 = vunpack.c.l.s4 1983009808
        %v574 = vunpack.c.0.s8 %v573
        %v575 = vperm.slane %v567, %v574
        %v576 = vrot.slane %v571, 4
        %v577 = vsel %vm552, %v576, %v559
        %v578 = vrot.slane %v559, 4
        %v579 = vsel %vm552, %v571, %v578
        %v581 = vunpack.c.l.s4 1934713408
        %v582 = vunpack.c.0.s8 %v581
        %v583 = vperm.slane %v577, %v582
        %v585 = vunpack.c.l.s4 1934713408
        %v586 = vunpack.c.0.s8 %v585
        %v587 = vperm.slane %v579, %v586
        %v588 = vrot.slane %v575, 4
        %v589 = vsel %vm552, %v588, %v563
        %v590 = vrot.slane %v563, 4
        %v591 = vsel %vm552, %v575, %v590
        %v593 = vunpack.c.l.s4 1934713408
        %v594 = vunpack.c.0.s8 %v593
        %v595 = vperm.slane %v589, %v594
        %v597 = vunpack.c.l.s4 1934713408
        %v598 = vunpack.c.0.s8 %v597
        %v599 = vperm.slane %v591, %v598
        %v600 = vrot.slane %v583, 4
        %v601 = vsel %vm552, 0.0, %v600
        %v602 = vrot.slane %v587, 4
        %v603 = vsel %vm552, 0.0, %v602
        %v604 = vrot.slane %v595, 4
        %v605 = vsel %vm552, 0.0, %v604
        %v606 = vrot.slane %v599, 4
        %v607 = vsel %vm552, 0.0, %v606
        %v608 = vpack.c.bf16 %v583, %v583
        %v609 = vpack.c.bf16 %v601, %v601
        %v610 = vpack.c.bf16 %v587, %v587
        %v611 = vpack.c.bf16 %v603, %v603
        %v612 = vpack.c.bf16 %v595, %v595
        %v613 = vpack.c.bf16 %v605, %v605
        %v614 = vpack.c.bf16 %v599, %v599
        %v615 = vpack.c.bf16 %v607, %v607
        %617 = vrot.lane.b32.xlu0 %v518, 120
        %v618 = vpop.permute.xlu0 %617
        %620 = vrot.lane.b32.xlu0 %v518, 112
        %v621 = vpop.permute.xlu0 %620
        %623 = vrot.lane.b32.xlu0 %v518, 104
        %v624 = vpop.permute.xlu0 %623
        %v626 = vrot.slane %v621, 4
        %v627 = vsel %vm552, %v626, %v518
        %v628 = vrot.slane %v518, 4
        %v629 = vsel %vm552, %v621, %v628
        %v631 = vunpack.c.l.s4 1983009808
        %v632 = vunpack.c.0.s8 %v631
        %v633 = vperm.slane %v627, %v632
        %v635 = vunpack.c.l.s4 1983009808
        %v636 = vunpack.c.0.s8 %v635
        %v637 = vperm.slane %v629, %v636
        %v638 = vrot.slane %v624, 4
        %v639 = vsel %vm552, %v638, %v618
        %v640 = vrot.slane %v618, 4
        %v641 = vsel %vm552, %v624, %v640
        %v643 = vunpack.c.l.s4 1983009808
        %v644 = vunpack.c.0.s8 %v643
        %v645 = vperm.slane %v639, %v644
        %v647 = vunpack.c.l.s4 1983009808
        %v648 = vunpack.c.0.s8 %v647
        %v649 = vperm.slane %v641, %v648
        %v650 = vrot.slane %v645, 4
        %v651 = vsel %vm552, %v650, %v633
        %v652 = vrot.slane %v633, 4
        %v653 = vsel %vm552, %v645, %v652
        %v655 = vunpack.c.l.s4 1934713408
        %v656 = vunpack.c.0.s8 %v655
        %v657 = vperm.slane %v651, %v656
        %v659 = vunpack.c.l.s4 1934713408
        %v660 = vunpack.c.0.s8 %v659
        %v661 = vperm.slane %v653, %v660
        %v662 = vrot.slane %v649, 4
        %v663 = vsel %vm552, %v662, %v637
        %v664 = vrot.slane %v637, 4
        %v665 = vsel %vm552, %v649, %v664
        %v667 = vunpack.c.l.s4 1934713408
        %v668 = vunpack.c.0.s8 %v667
        %v669 = vperm.slane %v663, %v668
        %v671 = vunpack.c.l.s4 1934713408
        %v672 = vunpack.c.0.s8 %v671
        %v673 = vperm.slane %v665, %v672
        %v674 = vrot.slane %v657, 4
        %v675 = vsel %vm552, 0.0, %v674
        %v676 = vrot.slane %v661, 4
        %v677 = vsel %vm552, 0.0, %v676
        %v678 = vrot.slane %v669, 4
        %v679 = vsel %vm552, 0.0, %v678
        %v680 = vrot.slane %v673, 4
        %v681 = vsel %vm552, 0.0, %v680
        %v682 = vpack.c.bf16 %v657, %v657
        %v683 = vpack.c.bf16 %v675, %v675
        %v684 = vpack.c.bf16 %v661, %v661
        %v685 = vpack.c.bf16 %v677, %v677
        %v686 = vpack.c.bf16 %v669, %v669
        %v687 = vpack.c.bf16 %v679, %v679
        %v688 = vpack.c.bf16 %v673, %v673
        %v689 = vpack.c.bf16 %v681, %v681
        %690 = vrot.lane.b32.xlu0 %v518, 96
        %v691 = vpop.permute.xlu0 %690
        %692 = vrot.lane.b32.xlu0 %v618, 96
        %v693 = vpop.permute.xlu0 %692
        %694 = vrot.lane.b32.xlu0 %v621, 96
        %v695 = vpop.permute.xlu0 %694
        %696 = vrot.lane.b32.xlu0 %v624, 96
        %v697 = vpop.permute.xlu0 %696
        %v702 = vrot.slane %v695, 4
        %v703 = vsel %vm552, %v702, %v691
        %v704 = vrot.slane %v691, 4
        %v705 = vsel %vm552, %v695, %v704
        %v707 = vunpack.c.l.s4 1983009808
        %v708 = vunpack.c.0.s8 %v707
        %v709 = vperm.slane %v703, %v708
        %v711 = vunpack.c.l.s4 1983009808
        %v712 = vunpack.c.0.s8 %v711
        %v713 = vperm.slane %v705, %v712
        %v714 = vrot.slane %v697, 4
        %v715 = vsel %vm552, %v714, %v693
        %v716 = vrot.slane %v693, 4
        %v717 = vsel %vm552, %v697, %v716
        %v719 = vunpack.c.l.s4 1983009808
        %v720 = vunpack.c.0.s8 %v719
        %v721 = vperm.slane %v715, %v720
        %v723 = vunpack.c.l.s4 1983009808
        %v724 = vunpack.c.0.s8 %v723
        %v725 = vperm.slane %v717, %v724
        %v726 = vrot.slane %v721, 4
        %v727 = vsel %vm552, %v726, %v709
        %v728 = vrot.slane %v709, 4
        %v729 = vsel %vm552, %v721, %v728
        %v731 = vunpack.c.l.s4 1934713408
        %v732 = vunpack.c.0.s8 %v731
        %v733 = vperm.slane %v727, %v732
        %v735 = vunpack.c.l.s4 1934713408
        %v736 = vunpack.c.0.s8 %v735
        %v737 = vperm.slane %v729, %v736
        %v738 = vrot.slane %v725, 4
        %v739 = vsel %vm552, %v738, %v713
        %v740 = vrot.slane %v713, 4
        %v741 = vsel %vm552, %v725, %v740
        %v743 = vunpack.c.l.s4 1934713408
        %v744 = vunpack.c.0.s8 %v743
        %v745 = vperm.slane %v739, %v744
        %v747 = vunpack.c.l.s4 1934713408
        %v748 = vunpack.c.0.s8 %v747
        %v749 = vperm.slane %v741, %v748
        %v750 = vrot.slane %v733, 4
        %v751 = vsel %vm552, 0.0, %v750
        %v752 = vrot.slane %v737, 4
        %v753 = vsel %vm552, 0.0, %v752
        %v754 = vrot.slane %v745, 4
        %v755 = vsel %vm552, 0.0, %v754
        %v756 = vrot.slane %v749, 4
        %v757 = vsel %vm552, 0.0, %v756
        %v758 = vpack.c.bf16 %v733, %v733
        %v759 = vpack.c.bf16 %v751, %v751
        %v760 = vpack.c.bf16 %v737, %v737
        %v761 = vpack.c.bf16 %v753, %v753
        %v762 = vpack.c.bf16 %v745, %v745
        %v763 = vpack.c.bf16 %v755, %v755
        %v764 = vpack.c.bf16 %v749, %v749
        %v765 = vpack.c.bf16 %v757, %v757
        %v766 = vrot.slane %v612, 4
        %vm767 = vcmask 1047556
        %v768 = vsel %vm767, %v766, %v608
        %v770 = vunpack.c.l.s4 1983009808
        %v771 = vunpack.c.0.s8 %v770
        %v772 = vperm.slane %v768, %v771
        %v773 = vrot.slane %v614, 4
        %v774 = vsel %vm767, %v773, %v610
        %v776 = vunpack.c.l.s4 1983009808
        %v777 = vunpack.c.0.s8 %v776
        %v778 = vperm.slane %v774, %v777
        %v779 = vrot.slane %v778, 4
        %v780 = vsel %vm767, %v779, %v772
        %v782 = vunpack.c.l.s4 1934713408
        %v783 = vunpack.c.0.s8 %v782
        %v784 = vperm.slane %v780, %v783
        %v785 = vrot.slane %v784, 4
        %v786 = vsel %vm767, 0, %v785
        %v787 = vrot.slane %v613, 4
        %v788 = vsel %vm767, %v787, %v609
        %v790 = vunpack.c.l.s4 1983009808
        %v791 = vunpack.c.0.s8 %v790
        %v792 = vperm.slane %v788, %v791
        %v793 = vrot.slane %v615, 4
        %v794 = vsel %vm767, %v793, %v611
        %v796 = vunpack.c.l.s4 1983009808
        %v797 = vunpack.c.0.s8 %v796
        %v798 = vperm.slane %v794, %v797
        %v799 = vrot.slane %v798, 4
        %v800 = vsel %vm767, %v799, %v792
        %v802 = vunpack.c.l.s4 1934713408
        %v803 = vunpack.c.0.s8 %v802
        %v804 = vperm.slane %v800, %v803
        %v805 = vrot.slane %v804, 4
        %v806 = vsel %vm767, 0, %v805
        %v809 = vpack.i.b16 %v804, %v784
        %v810 = vshrl.u32 %v784, 16
        %v811 = vshrl.u32 %v804, 16
        %v812 = vpack.i.b16 %v811, %v810
        %v815 = vpack.i.b16 %v806, %v786
        %v816 = vshrl.u32 %v786, 16
        %v817 = vshrl.u32 %v806, 16
        %v818 = vpack.i.b16 %v817, %v816
        %819 = vxpose.xlu0.c.b16.start [1/8] %v682, 128
        %820 = vxpose.xlu0.c.b16.cont [2/8] 0, 128
        %821 = vxpose.xlu0.c.b16.cont [3/8] 0, 128
        %822 = vxpose.xlu0.c.b16.cont [4/8] 0, 128
        %823 = vxpose.xlu0.c.b16.cont [5/8] 0, 128
        %824 = vxpose.xlu0.c.b16.cont [6/8] 0, 128
        %825 = vxpose.xlu0.c.b16.cont [7/8] 0, 128
        %826 = vxpose.xlu0.c.b16.end [8/8] 0, 128
        %v827 = vpop.trf.xlu0
        %v828 = vpop.trf.xlu0
        %v829 = vpop.trf.xlu0
        %v830 = vpop.trf.xlu0
        %v831 = vpop.trf.xlu0
        %v832 = vpop.trf.xlu0
        %v833 = vpop.trf.xlu0
        %v834 = vpop.trf.xlu0
        %835 = vxpose.xlu0.c.b16.start [1/8] %v683, 128
        %836 = vxpose.xlu0.c.b16.cont [2/8] 0, 128
        %837 = vxpose.xlu0.c.b16.cont [3/8] 0, 128
        %838 = vxpose.xlu0.c.b16.cont [4/8] 0, 128
        %839 = vxpose.xlu0.c.b16.cont [5/8] 0, 128
        %840 = vxpose.xlu0.c.b16.cont [6/8] 0, 128
        %841 = vxpose.xlu0.c.b16.cont [7/8] 0, 128
        %842 = vxpose.xlu0.c.b16.end [8/8] 0, 128
        %v843 = vpop.trf.xlu0
        %v844 = vpop.trf.xlu0
        %v845 = vpop.trf.xlu0
        %v846 = vpop.trf.xlu0
        %v847 = vpop.trf.xlu0
        %v848 = vpop.trf.xlu0
        %v849 = vpop.trf.xlu0
        %v850 = vpop.trf.xlu0
        %851 = vxpose.xlu0.c.b16.start [1/8] %v684, 128
        %852 = vxpose.xlu0.c.b16.cont [2/8] 0, 128
        %853 = vxpose.xlu0.c.b16.cont [3/8] 0, 128
        %854 = vxpose.xlu0.c.b16.cont [4/8] 0, 128
        %855 = vxpose.xlu0.c.b16.cont [5/8] 0, 128
        %856 = vxpose.xlu0.c.b16.cont [6/8] 0, 128
        %857 = vxpose.xlu0.c.b16.cont [7/8] 0, 128
        %858 = vxpose.xlu0.c.b16.end [8/8] 0, 128
        %v859 = vpop.trf.xlu0
        %v860 = vpop.trf.xlu0
        %v861 = vpop.trf.xlu0
        %v862 = vpop.trf.xlu0
        %v863 = vpop.trf.xlu0
        %v864 = vpop.trf.xlu0
        %v865 = vpop.trf.xlu0
        %v866 = vpop.trf.xlu0
        %867 = vxpose.xlu0.c.b16.start [1/8] %v685, 128
        %868 = vxpose.xlu0.c.b16.cont [2/8] 0, 128
        %869 = vxpose.xlu0.c.b16.cont [3/8] 0, 128
        %870 = vxpose.xlu0.c.b16.cont [4/8] 0, 128
        %871 = vxpose.xlu0.c.b16.cont [5/8] 0, 128
        %872 = vxpose.xlu0.c.b16.cont [6/8] 0, 128
        %873 = vxpose.xlu0.c.b16.cont [7/8] 0, 128
        %874 = vxpose.xlu0.c.b16.end [8/8] 0, 128
        %v875 = vpop.trf.xlu0
        %v876 = vpop.trf.xlu0
        %v877 = vpop.trf.xlu0
        %v878 = vpop.trf.xlu0
        %v879 = vpop.trf.xlu0
        %v880 = vpop.trf.xlu0
        %v881 = vpop.trf.xlu0
        %v882 = vpop.trf.xlu0
        %883 = vxpose.xlu0.c.b16.start [1/8] %v686, 128
        %884 = vxpose.xlu0.c.b16.cont [2/8] 0, 128
        %885 = vxpose.xlu0.c.b16.cont [3/8] 0, 128
        %886 = vxpose.xlu0.c.b16.cont [4/8] 0, 128
        %887 = vxpose.xlu0.c.b16.cont [5/8] 0, 128
        %888 = vxpose.xlu0.c.b16.cont [6/8] 0, 128
        %889 = vxpose.xlu0.c.b16.cont [7/8] 0, 128
        %890 = vxpose.xlu0.c.b16.end [8/8] 0, 128
        %v891 = vpop.trf.xlu0
        %v892 = vpop.trf.xlu0
        %v893 = vpop.trf.xlu0
        %v894 = vpop.trf.xlu0
        %v895 = vpop.trf.xlu0
        %v896 = vpop.trf.xlu0
        %v897 = vpop.trf.xlu0
        %v898 = vpop.trf.xlu0
        %899 = vxpose.xlu0.c.b16.start [1/8] %v687, 128
        %900 = vxpose.xlu0.c.b16.cont [2/8] 0, 128
        %901 = vxpose.xlu0.c.b16.cont [3/8] 0, 128
        %902 = vxpose.xlu0.c.b16.cont [4/8] 0, 128
        %903 = vxpose.xlu0.c.b16.cont [5/8] 0, 128
        %904 = vxpose.xlu0.c.b16.cont [6/8] 0, 128
        %905 = vxpose.xlu0.c.b16.cont [7/8] 0, 128
        %906 = vxpose.xlu0.c.b16.end [8/8] 0, 128
        %v907 = vpop.trf.xlu0
        %v908 = vpop.trf.xlu0
        %v909 = vpop.trf.xlu0
        %v910 = vpop.trf.xlu0
        %v911 = vpop.trf.xlu0
        %v912 = vpop.trf.xlu0
        %v913 = vpop.trf.xlu0
        %v914 = vpop.trf.xlu0
        %915 = vxpose.xlu0.c.b16.start [1/8] %v688, 128
        %916 = vxpose.xlu0.c.b16.cont [2/8] 0, 128
        %917 = vxpose.xlu0.c.b16.cont [3/8] 0, 128
        %918 = vxpose.xlu0.c.b16.cont [4/8] 0, 128
        %919 = vxpose.xlu0.c.b16.cont [5/8] 0, 128
        %920 = vxpose.xlu0.c.b16.cont [6/8] 0, 128
        %921 = vxpose.xlu0.c.b16.cont [7/8] 0, 128
        %922 = vxpose.xlu0.c.b16.end [8/8] 0, 128
        %v923 = vpop.trf.xlu0
        %v924 = vpop.trf.xlu0
        %v925 = vpop.trf.xlu0
        %v926 = vpop.trf.xlu0
        %v927 = vpop.trf.xlu0
        %v928 = vpop.trf.xlu0
        %v929 = vpop.trf.xlu0
        %v930 = vpop.trf.xlu0
        %931 = vxpose.xlu0.c.b16.start [1/8] %v689, 128
        %932 = vxpose.xlu0.c.b16.cont [2/8] 0, 128
        %933 = vxpose.xlu0.c.b16.cont [3/8] 0, 128
        %934 = vxpose.xlu0.c.b16.cont [4/8] 0, 128
        %935 = vxpose.xlu0.c.b16.cont [5/8] 0, 128
        %936 = vxpose.xlu0.c.b16.cont [6/8] 0, 128
        %937 = vxpose.xlu0.c.b16.cont [7/8] 0, 128
        %938 = vxpose.xlu0.c.b16.end [8/8] 0, 128
        %v939 = vpop.trf.xlu0
        %v940 = vpop.trf.xlu0
        %v941 = vpop.trf.xlu0
        %v942 = vpop.trf.xlu0
        %v943 = vpop.trf.xlu0
        %v944 = vpop.trf.xlu0
        %v945 = vpop.trf.xlu0
        %v946 = vpop.trf.xlu0
        %v947 = vrot.slane %v891, 4
        %v948 = vsel %vm767, %v947, %v827
        %v950 = vunpack.c.l.s4 1983009808
        %v951 = vunpack.c.0.s8 %v950
        %v952 = vperm.slane %v948, %v951
        %v953 = vrot.slane %v923, 4
        %v954 = vsel %vm767, %v953, %v859
        %v956 = vunpack.c.l.s4 1983009808
        %v957 = vunpack.c.0.s8 %v956
        %v958 = vperm.slane %v954, %v957
        %v959 = vrot.slane %v958, 4
        %v960 = vsel %vm767, %v959, %v952
        %v961 = vrot.slane %v952, 4
        %v962 = vsel %vm767, %v958, %v961
        %v964 = vunpack.c.l.s4 1934713408
        %v965 = vunpack.c.0.s8 %v964
        %v966 = vperm.slane %v960, %v965
        %v968 = vunpack.c.l.s4 1934713408
        %v969 = vunpack.c.0.s8 %v968
        %v970 = vperm.slane %v962, %v969
        %v971 = vrot.slane %v966, 4
        %v972 = vsel %vm767, 0, %v971
        %v973 = vrot.slane %v970, 4
        %v974 = vsel %vm767, 0, %v973
        %v975 = vrot.slane %v907, 4
        %v976 = vsel %vm767, %v975, %v843
        %v978 = vunpack.c.l.s4 1983009808
        %v979 = vunpack.c.0.s8 %v978
        %v980 = vperm.slane %v976, %v979
        %v981 = vrot.slane %v939, 4
        %v982 = vsel %vm767, %v981, %v875
        %v984 = vunpack.c.l.s4 1983009808
        %v985 = vunpack.c.0.s8 %v984
        %v986 = vperm.slane %v982, %v985
        %v987 = vrot.slane %v986, 4
        %v988 = vsel %vm767, %v987, %v980
        %v989 = vrot.slane %v980, 4
        %v990 = vsel %vm767, %v986, %v989
        %v992 = vunpack.c.l.s4 1934713408
        %v993 = vunpack.c.0.s8 %v992
        %v994 = vperm.slane %v988, %v993
        %v996 = vunpack.c.l.s4 1934713408
        %v997 = vunpack.c.0.s8 %v996
        %v998 = vperm.slane %v990, %v997
        %v999 = vrot.slane %v994, 4
        %v1000 = vsel %vm767, 0, %v999
        %v1001 = vrot.slane %v998, 4
        %v1002 = vsel %vm767, 0, %v1001
        %v1005 = vpack.i.b16 %v994, %v966
        %v1007 = vshrl.u32 %v966, 16
        %v1008 = vshrl.u32 %v994, 16
        %v1009 = vpack.i.b16 %v1008, %v1007
        %v1013 = vpack.i.b16 %v1000, %v972
        %v1015 = vshrl.u32 %v972, 16
        %v1016 = vshrl.u32 %v1000, 16
        %v1017 = vpack.i.b16 %v1016, %v1015
        %v1021 = vpack.i.b16 %v998, %v970
        %v1023 = vshrl.u32 %v970, 16
        %v1024 = vshrl.u32 %v998, 16
        %v1025 = vpack.i.b16 %v1024, %v1023
        %v1029 = vpack.i.b16 %v1002, %v974
        %v1031 = vshrl.u32 %v974, 16
        %v1032 = vshrl.u32 %v1002, 16
        %v1033 = vpack.i.b16 %v1032, %v1031
        %1035 = vxpose.xlu0.c.b16.start [1/8] %v1005, 128
        %1036 = vxpose.xlu0.c.b16.cont [2/8] 0, 128
        %1037 = vxpose.xlu0.c.b16.cont [3/8] 0, 128
        %1038 = vxpose.xlu0.c.b16.cont [4/8] 0, 128
        %1039 = vxpose.xlu0.c.b16.cont [5/8] 0, 128
        %1040 = vxpose.xlu0.c.b16.cont [6/8] 0, 128
        %1041 = vxpose.xlu0.c.b16.cont [7/8] 0, 128
        %1042 = vxpose.xlu0.c.b16.end [8/8] 0, 128
        %v1043 = vpop.trf.xlu0
        %v1044 = vpop.trf.xlu0
        %v1045 = vpop.trf.xlu0
        %v1046 = vpop.trf.xlu0
        %v1047 = vpop.trf.xlu0
        %v1048 = vpop.trf.xlu0
        %v1049 = vpop.trf.xlu0
        %v1050 = vpop.trf.xlu0
        %1051 = vxpose.xlu0.c.b16.start [1/8] %v1009, 128
        %1052 = vxpose.xlu0.c.b16.cont [2/8] 0, 128
        %1053 = vxpose.xlu0.c.b16.cont [3/8] 0, 128
        %1054 = vxpose.xlu0.c.b16.cont [4/8] 0, 128
        %1055 = vxpose.xlu0.c.b16.cont [5/8] 0, 128
        %1056 = vxpose.xlu0.c.b16.cont [6/8] 0, 128
        %1057 = vxpose.xlu0.c.b16.cont [7/8] 0, 128
        %1058 = vxpose.xlu0.c.b16.end [8/8] 0, 128
        %v1059 = vpop.trf.xlu0
        %v1060 = vpop.trf.xlu0
        %v1061 = vpop.trf.xlu0
        %v1062 = vpop.trf.xlu0
        %v1063 = vpop.trf.xlu0
        %v1064 = vpop.trf.xlu0
        %v1065 = vpop.trf.xlu0
        %v1066 = vpop.trf.xlu0
        %1067 = vxpose.xlu0.c.b16.start [1/8] %v1013, 128
        %1068 = vxpose.xlu0.c.b16.cont [2/8] 0, 128
        %1069 = vxpose.xlu0.c.b16.cont [3/8] 0, 128
        %1070 = vxpose.xlu0.c.b16.cont [4/8] 0, 128
        %1071 = vxpose.xlu0.c.b16.cont [5/8] 0, 128
        %1072 = vxpose.xlu0.c.b16.cont [6/8] 0, 128
        %1073 = vxpose.xlu0.c.b16.cont [7/8] 0, 128
        %1074 = vxpose.xlu0.c.b16.end [8/8] 0, 128
        %v1075 = vpop.trf.xlu0
        %v1076 = vpop.trf.xlu0
        %v1077 = vpop.trf.xlu0
        %v1078 = vpop.trf.xlu0
        %v1079 = vpop.trf.xlu0
        %v1080 = vpop.trf.xlu0
        %v1081 = vpop.trf.xlu0
        %v1082 = vpop.trf.xlu0
        %1083 = vxpose.xlu0.c.b16.start [1/8] %v1017, 128
        %1084 = vxpose.xlu0.c.b16.cont [2/8] 0, 128
        %1085 = vxpose.xlu0.c.b16.cont [3/8] 0, 128
        %1086 = vxpose.xlu0.c.b16.cont [4/8] 0, 128
        %1087 = vxpose.xlu0.c.b16.cont [5/8] 0, 128
        %1088 = vxpose.xlu0.c.b16.cont [6/8] 0, 128
        %1089 = vxpose.xlu0.c.b16.cont [7/8] 0, 128
        %1090 = vxpose.xlu0.c.b16.end [8/8] 0, 128
        %v1091 = vpop.trf.xlu0
        %v1092 = vpop.trf.xlu0
        %v1093 = vpop.trf.xlu0
        %v1094 = vpop.trf.xlu0
        %v1095 = vpop.trf.xlu0
        %v1096 = vpop.trf.xlu0
        %v1097 = vpop.trf.xlu0
        %v1098 = vpop.trf.xlu0
        %1099 = vxpose.xlu0.c.b16.start [1/8] %v1021, 128
        %1100 = vxpose.xlu0.c.b16.cont [2/8] 0, 128
        %1101 = vxpose.xlu0.c.b16.cont [3/8] 0, 128
        %1102 = vxpose.xlu0.c.b16.cont [4/8] 0, 128
        %1103 = vxpose.xlu0.c.b16.cont [5/8] 0, 128
        %1104 = vxpose.xlu0.c.b16.cont [6/8] 0, 128
        %1105 = vxpose.xlu0.c.b16.cont [7/8] 0, 128
        %1106 = vxpose.xlu0.c.b16.end [8/8] 0, 128
        %v1107 = vpop.trf.xlu0
        %v1108 = vpop.trf.xlu0
        %v1109 = vpop.trf.xlu0
        %v1110 = vpop.trf.xlu0
        %v1111 = vpop.trf.xlu0
        %v1112 = vpop.trf.xlu0
        %v1113 = vpop.trf.xlu0
        %v1114 = vpop.trf.xlu0
        %1115 = vxpose.xlu0.c.b16.start [1/8] %v1025, 128
        %1116 = vxpose.xlu0.c.b16.cont [2/8] 0, 128
        %1117 = vxpose.xlu0.c.b16.cont [3/8] 0, 128
        %1118 = vxpose.xlu0.c.b16.cont [4/8] 0, 128
        %1119 = vxpose.xlu0.c.b16.cont [5/8] 0, 128
        %1120 = vxpose.xlu0.c.b16.cont [6/8] 0, 128
        %1121 = vxpose.xlu0.c.b16.cont [7/8] 0, 128
        %1122 = vxpose.xlu0.c.b16.end [8/8] 0, 128
        %v1123 = vpop.trf.xlu0
        %v1124 = vpop.trf.xlu0
        %v1125 = vpop.trf.xlu0
        %v1126 = vpop.trf.xlu0
        %v1127 = vpop.trf.xlu0
        %v1128 = vpop.trf.xlu0
        %v1129 = vpop.trf.xlu0
        %v1130 = vpop.trf.xlu0
        %1131 = vxpose.xlu0.c.b16.start [1/8] %v1029, 128
        %1132 = vxpose.xlu0.c.b16.cont [2/8] 0, 128
        %1133 = vxpose.xlu0.c.b16.cont [3/8] 0, 128
        %1134 = vxpose.xlu0.c.b16.cont [4/8] 0, 128
        %1135 = vxpose.xlu0.c.b16.cont [5/8] 0, 128
        %1136 = vxpose.xlu0.c.b16.cont [6/8] 0, 128
        %1137 = vxpose.xlu0.c.b16.cont [7/8] 0, 128
        %1138 = vxpose.xlu0.c.b16.end [8/8] 0, 128
        %v1139 = vpop.trf.xlu0
        %v1140 = vpop.trf.xlu0
        %v1141 = vpop.trf.xlu0
        %v1142 = vpop.trf.xlu0
        %v1143 = vpop.trf.xlu0
        %v1144 = vpop.trf.xlu0
        %v1145 = vpop.trf.xlu0
        %v1146 = vpop.trf.xlu0
        %1147 = vxpose.xlu0.c.b16.start [1/8] %v1033, 128
        %1148 = vxpose.xlu0.c.b16.cont [2/8] 0, 128
        %1149 = vxpose.xlu0.c.b16.cont [3/8] 0, 128
        %1150 = vxpose.xlu0.c.b16.cont [4/8] 0, 128
        %1151 = vxpose.xlu0.c.b16.cont [5/8] 0, 128
        %1152 = vxpose.xlu0.c.b16.cont [6/8] 0, 128
        %1153 = vxpose.xlu0.c.b16.cont [7/8] 0, 128
        %1154 = vxpose.xlu0.c.b16.end [8/8] 0, 128
        %v1155 = vpop.trf.xlu0
        %v1156 = vpop.trf.xlu0
        %v1157 = vpop.trf.xlu0
        %v1158 = vpop.trf.xlu0
        %v1159 = vpop.trf.xlu0
        %v1160 = vpop.trf.xlu0
        %v1161 = vpop.trf.xlu0
        %v1162 = vpop.trf.xlu0
        %v1163 = vrot.slane %v1107, 4
        %v1164 = vsel %vm767, %v1163, %v1043
        %v1166 = vunpack.c.l.s4 1983009808
        %v1167 = vunpack.c.0.s8 %v1166
        %v1168 = vperm.slane %v1164, %v1167
        %v1169 = vrot.slane %v1139, 4
        %v1170 = vsel %vm767, %v1169, %v1075
        %v1172 = vunpack.c.l.s4 1983009808
        %v1173 = vunpack.c.0.s8 %v1172
        %v1174 = vperm.slane %v1170, %v1173
        %v1175 = vrot.slane %v1174, 4
        %v1176 = vsel %vm767, %v1175, %v1168
        %v1178 = vunpack.c.l.s4 1934713408
        %v1179 = vunpack.c.0.s8 %v1178
        %v1180 = vperm.slane %v1176, %v1179
        %v1181 = vrot.slane %v1180, 4
        %v1182 = vsel %vm767, 0, %v1181
        %v1183 = vrot.slane %v1123, 4
        %v1184 = vsel %vm767, %v1183, %v1059
        %v1186 = vunpack.c.l.s4 1983009808
        %v1187 = vunpack.c.0.s8 %v1186
        %v1188 = vperm.slane %v1184, %v1187
        %v1189 = vrot.slane %v1155, 4
        %v1190 = vsel %vm767, %v1189, %v1091
        %v1192 = vunpack.c.l.s4 1983009808
        %v1193 = vunpack.c.0.s8 %v1192
        %v1194 = vperm.slane %v1190, %v1193
        %v1195 = vrot.slane %v1194, 4
        %v1196 = vsel %vm767, %v1195, %v1188
        %v1198 = vunpack.c.l.s4 1934713408
        %v1199 = vunpack.c.0.s8 %v1198
        %v1200 = vperm.slane %v1196, %v1199
        %v1201 = vrot.slane %v1200, 4
        %v1202 = vsel %vm767, 0, %v1201
        %v1205 = vpack.i.b16 %v1200, %v1180
        %v1206 = vshrl.u32 %v1180, 16
        %v1207 = vshrl.u32 %v1200, 16
        %v1208 = vpack.i.b16 %v1207, %v1206
        %v1211 = vpack.i.b16 %v1202, %v1182
        %v1212 = vshrl.u32 %v1182, 16
        %v1213 = vshrl.u32 %v1202, 16
        %v1214 = vpack.i.b16 %v1213, %v1212
        %vm1215 = vcmask 64512
        %v1217 = vsel %vm1215, %v809, 0
        %vm1219 = vcmask 1043456
        %v1221 = vsel %vm1219, %v1205, 0
        %1223 = vmatpush.bf16.msra.mxu0 0
        %1224 = vmatpush.bf16.msra.mxu0 0
        %1225 = vmatpush.bf16.msra.mxu0 0
        %1226 = vmatpush.bf16.msra.mxu0 0
        %1227 = vmatpush.bf16.msra.mxu0 0
        %1228 = vmatpush.bf16.msra.mxu0 0
        %1229 = vmatpush.bf16.msra.mxu0 0
        %1230 = vmatpush.bf16.msra.mxu0 %v1221
        %1231 = vmatmul.bf16.gmra.mxu0 %v1217
        %v1232 = vpop.f32.mrf.mxu0
        %v1233 = vadd.f32 %v540, %v1232
        %v1234 = vpop.f32.mrf.mxu0
        %1235 = vdwg.mxu0
        %v1237 = vsel %vm1215, %v812, 0
        %v1240 = vsel %vm1219, %v1208, 0
        %1242 = vmatpush.bf16.msra.mxu0 0
        %1243 = vmatpush.bf16.msra.mxu0 0
        %1244 = vmatpush.bf16.msra.mxu0 0
        %1245 = vmatpush.bf16.msra.mxu0 0
        %1246 = vmatpush.bf16.msra.mxu0 0
        %1247 = vmatpush.bf16.msra.mxu0 0
        %1248 = vmatpush.bf16.msra.mxu0 0
        %1249 = vmatpush.bf16.msra.mxu0 %v1240
        %1250 = vmatmul.bf16.gmra.mxu0 %v1237
        %v1251 = vpop.f32.mrf.mxu0
        %v1252 = vadd.f32 %v540, %v1251
        %v1253 = vpop.f32.mrf.mxu0
        %1254 = vdwg.mxu0
        %v1256 = vsel %vm1215, %v815, 0
        %v1259 = vsel %vm1219, %v1211, 0
        %1261 = vmatpush.bf16.msra.mxu0 0
        %1262 = vmatpush.bf16.msra.mxu0 0
        %1263 = vmatpush.bf16.msra.mxu0 0
        %1264 = vmatpush.bf16.msra.mxu0 0
        %1265 = vmatpush.bf16.msra.mxu0 0
        %1266 = vmatpush.bf16.msra.mxu0 0
        %1267 = vmatpush.bf16.msra.mxu0 0
        %1268 = vmatpush.bf16.msra.mxu0 %v1259
        %1269 = vmatmul.bf16.gmra.mxu0 %v1256
        %v1270 = vpop.f32.mrf.mxu0
        %v1271 = vadd.f32 %v540, %v1270
        %v1272 = vpop.f32.mrf.mxu0
        %1273 = vdwg.mxu0
        %v1275 = vsel %vm1215, %v818, 0
        %v1278 = vsel %vm1219, %v1214, 0
        %1280 = vmatpush.bf16.msra.mxu0 0
        %1281 = vmatpush.bf16.msra.mxu0 0
        %1282 = vmatpush.bf16.msra.mxu0 0
        %1283 = vmatpush.bf16.msra.mxu0 0
        %1284 = vmatpush.bf16.msra.mxu0 0
        %1285 = vmatpush.bf16.msra.mxu0 0
        %1286 = vmatpush.bf16.msra.mxu0 0
        %1287 = vmatpush.bf16.msra.mxu0 %v1278
        %1288 = vmatmul.bf16.gmra.mxu0 %v1275
        %v1289 = vpop.f32.mrf.mxu0
        %v1290 = vadd.f32 %v540, %v1289
        %v1291 = vpop.f32.mrf.mxu0
        %1292 = vdwg.mxu0
        %v1293 = vsel %vm1215, %v1233, -inf
        %1294 = vmax.xlane.f32.xlu0 %v1293
        %v1295 = vpop.xlane.xlu0 %1294
        %v1296 = vsel %vm1215, %v1252, -inf
        %1297 = vmax.xlane.f32.xlu0 %v1296
        %v1298 = vpop.xlane.xlu0 %1297
        %v1299 = vsel %vm1215, %v1271, -inf
        %1300 = vmax.xlane.f32.xlu0 %v1299
        %v1301 = vpop.xlane.xlu0 %1300
        %v1302 = vsel %vm1215, %v1290, -inf
        %1303 = vmax.xlane.f32.xlu0 %v1302
        %v1304 = vpop.xlane.xlu0 %1303
        %v1305 = vsub.f32 %v1233, %v1295
        %v1306 = vsub.f32 %v1252, %v1298
        %v1307 = vsub.f32 %v1271, %v1301
        %v1308 = vsub.f32 %v1290, %v1304
        %v1309 = vmul.f32 %v1305, 1.442695
        %v1310 = vpow.pop %v1309
        %v1311 = vmul.f32 %v1306, 1.442695
        %v1312 = vpow.pop %v1311
        %v1313 = vmul.f32 %v1307, 1.442695
        %v1314 = vpow.pop %v1313
        %v1315 = vmul.f32 %v1308, 1.442695
        %v1316 = vpow.pop %v1315
        %v1317 = vsel %vm1215, %v1310, 0.0
        %1318 = vadd.xlane.f32.xlu0 %v1317
        %v1319 = vpop.xlane.xlu0 %1318
        %v1320 = vsel %vm1215, %v1312, 0.0
        %1321 = vadd.xlane.f32.xlu0 %v1320
        %v1322 = vpop.xlane.xlu0 %1321
        %v1323 = vsel %vm1215, %v1314, 0.0
        %1324 = vadd.xlane.f32.xlu0 %v1323
        %v1325 = vpop.xlane.xlu0 %1324
        %v1326 = vsel %vm1215, %v1316, 0.0
        %1327 = vadd.xlane.f32.xlu0 %v1326
        %v1328 = vpop.xlane.xlu0 %1327
        %v1329 = vrcp.pop %v1319
        %v1330 = vmul.f32 %v1319, %v1329
        %v1331 = vsub.f32 1.0, %v1330
        %v1332 = vmul.f32 %v1329, %v1331
        %v1333 = vadd.f32 %v1329, %v1332
        %vm1334 = vweird.f32 %v1319
        %vm1335 = vweird.f32 %v1329
        %vm1336 = vmor %vm1334, %vm1335
        %v1337 = vsel %vm1336, %v1329, %v1333
        %v1338 = vand.u32 2147483647, %v1319
        %vm1339 = vcmp.eq.f32.partialorder %v1338, 8.507059e+37
        %v1340 = vand.u32 %v1319, 2147483648
        %v1341 = vor.u32 1.1754944e-38, %v1340
        %v1342 = vsel %vm1339, %v1341, %v1337
        %v1343 = vrcp.pop %v1322
        %v1344 = vmul.f32 %v1322, %v1343
        %v1345 = vsub.f32 1.0, %v1344
        %v1346 = vmul.f32 %v1343, %v1345
        %v1347 = vadd.f32 %v1343, %v1346
        %vm1348 = vweird.f32 %v1322
        %vm1349 = vweird.f32 %v1343
        %vm1350 = vmor %vm1348, %vm1349
        %v1351 = vsel %vm1350, %v1343, %v1347
        %v1352 = vand.u32 2147483647, %v1322
        %vm1353 = vcmp.eq.f32.partialorder %v1352, 8.507059e+37
        %v1354 = vand.u32 %v1322, 2147483648
        %v1355 = vor.u32 1.1754944e-38, %v1354
        %v1356 = vsel %vm1353, %v1355, %v1351
        %v1357 = vrcp.pop %v1325
        %v1358 = vmul.f32 %v1325, %v1357
        %v1359 = vsub.f32 1.0, %v1358
        %v1360 = vmul.f32 %v1357, %v1359
        %v1361 = vadd.f32 %v1357, %v1360
        %vm1362 = vweird.f32 %v1325
        %vm1363 = vweird.f32 %v1357
        %vm1364 = vmor %vm1362, %vm1363
        %v1365 = vsel %vm1364, %v1357, %v1361
        %v1366 = vand.u32 2147483647, %v1325
        %vm1367 = vcmp.eq.f32.partialorder %v1366, 8.507059e+37
        %v1368 = vand.u32 %v1325, 2147483648
        %v1369 = vor.u32 1.1754944e-38, %v1368
        %v1370 = vsel %vm1367, %v1369, %v1365
        %v1371 = vrcp.pop %v1328
        %v1372 = vmul.f32 %v1328, %v1371
        %v1373 = vsub.f32 1.0, %v1372
        %v1374 = vmul.f32 %v1371, %v1373
        %v1375 = vadd.f32 %v1371, %v1374
        %vm1376 = vweird.f32 %v1328
        %vm1377 = vweird.f32 %v1371
        %vm1378 = vmor %vm1376, %vm1377
        %v1379 = vsel %vm1378, %v1371, %v1375
        %v1380 = vand.u32 2147483647, %v1328
        %vm1381 = vcmp.eq.f32.partialorder %v1380, 8.507059e+37
        %v1382 = vand.u32 %v1328, 2147483648
        %v1383 = vor.u32 1.1754944e-38, %v1382
        %v1384 = vsel %vm1381, %v1383, %v1379
        %v1385 = vmul.f32 %v1310, %v1342
        %v1386 = vmul.f32 %v1312, %v1356
        %v1387 = vmul.f32 %v1314, %v1370
        %v1388 = vmul.f32 %v1316, %v1384
        %v1389 = vpack.c.bf16 %v1385, %v1385
        %v1390 = vpack.c.bf16 %v1386, %v1386
        %v1391 = vpack.c.bf16 %v1387, %v1387
        %v1392 = vpack.c.bf16 %v1388, %v1388
        %1393 = vxpose.xlu0.c.b16.start [1/8] %v758, 128
        %1394 = vxpose.xlu0.c.b16.cont [2/8] 0, 128
        %1395 = vxpose.xlu0.c.b16.cont [3/8] 0, 128
        %1396 = vxpose.xlu0.c.b16.cont [4/8] 0, 128
        %1397 = vxpose.xlu0.c.b16.cont [5/8] 0, 128
        %1398 = vxpose.xlu0.c.b16.cont [6/8] 0, 128
        %1399 = vxpose.xlu0.c.b16.cont [7/8] 0, 128
        %1400 = vxpose.xlu0.c.b16.end [8/8] 0, 128
        %v1401 = vpop.trf.xlu0
        %v1402 = vpop.trf.xlu0
        %v1403 = vpop.trf.xlu0
        %v1404 = vpop.trf.xlu0
        %v1405 = vpop.trf.xlu0
        %v1406 = vpop.trf.xlu0
        %v1407 = vpop.trf.xlu0
        %v1408 = vpop.trf.xlu0
        %1409 = vxpose.xlu0.c.b16.start [1/8] %v759, 128
        %1410 = vxpose.xlu0.c.b16.cont [2/8] 0, 128
        %1411 = vxpose.xlu0.c.b16.cont [3/8] 0, 128
        %1412 = vxpose.xlu0.c.b16.cont [4/8] 0, 128
        %1413 = vxpose.xlu0.c.b16.cont [5/8] 0, 128
        %1414 = vxpose.xlu0.c.b16.cont [6/8] 0, 128
        %1415 = vxpose.xlu0.c.b16.cont [7/8] 0, 128
        %1416 = vxpose.xlu0.c.b16.end [8/8] 0, 128
        %v1417 = vpop.trf.xlu0
        %v1418 = vpop.trf.xlu0
        %v1419 = vpop.trf.xlu0
        %v1420 = vpop.trf.xlu0
        %v1421 = vpop.trf.xlu0
        %v1422 = vpop.trf.xlu0
        %v1423 = vpop.trf.xlu0
        %v1424 = vpop.trf.xlu0
        %1425 = vxpose.xlu0.c.b16.start [1/8] %v760, 128
        %1426 = vxpose.xlu0.c.b16.cont [2/8] 0, 128
        %1427 = vxpose.xlu0.c.b16.cont [3/8] 0, 128
        %1428 = vxpose.xlu0.c.b16.cont [4/8] 0, 128
        %1429 = vxpose.xlu0.c.b16.cont [5/8] 0, 128
        %1430 = vxpose.xlu0.c.b16.cont [6/8] 0, 128
        %1431 = vxpose.xlu0.c.b16.cont [7/8] 0, 128
        %1432 = vxpose.xlu0.c.b16.end [8/8] 0, 128
        %v1433 = vpop.trf.xlu0
        %v1434 = vpop.trf.xlu0
        %v1435 = vpop.trf.xlu0
        %v1436 = vpop.trf.xlu0
        %v1437 = vpop.trf.xlu0
        %v1438 = vpop.trf.xlu0
        %v1439 = vpop.trf.xlu0
        %v1440 = vpop.trf.xlu0
        %1441 = vxpose.xlu0.c.b16.start [1/8] %v761, 128
        %1442 = vxpose.xlu0.c.b16.cont [2/8] 0, 128
        %1443 = vxpose.xlu0.c.b16.cont [3/8] 0, 128
        %1444 = vxpose.xlu0.c.b16.cont [4/8] 0, 128
        %1445 = vxpose.xlu0.c.b16.cont [5/8] 0, 128
        %1446 = vxpose.xlu0.c.b16.cont [6/8] 0, 128
        %1447 = vxpose.xlu0.c.b16.cont [7/8] 0, 128
        %1448 = vxpose.xlu0.c.b16.end [8/8] 0, 128
        %v1449 = vpop.trf.xlu0
        %v1450 = vpop.trf.xlu0
        %v1451 = vpop.trf.xlu0
        %v1452 = vpop.trf.xlu0
        %v1453 = vpop.trf.xlu0
        %v1454 = vpop.trf.xlu0
        %v1455 = vpop.trf.xlu0
        %v1456 = vpop.trf.xlu0
        %1457 = vxpose.xlu0.c.b16.start [1/8] %v762, 128
        %1458 = vxpose.xlu0.c.b16.cont [2/8] 0, 128
        %1459 = vxpose.xlu0.c.b16.cont [3/8] 0, 128
        %1460 = vxpose.xlu0.c.b16.cont [4/8] 0, 128
        %1461 = vxpose.xlu0.c.b16.cont [5/8] 0, 128
        %1462 = vxpose.xlu0.c.b16.cont [6/8] 0, 128
        %1463 = vxpose.xlu0.c.b16.cont [7/8] 0, 128
        %1464 = vxpose.xlu0.c.b16.end [8/8] 0, 128
        %v1465 = vpop.trf.xlu0
        %v1466 = vpop.trf.xlu0
        %v1467 = vpop.trf.xlu0
        %v1468 = vpop.trf.xlu0
        %v1469 = vpop.trf.xlu0
        %v1470 = vpop.trf.xlu0
        %v1471 = vpop.trf.xlu0
        %v1472 = vpop.trf.xlu0
        %1473 = vxpose.xlu0.c.b16.start [1/8] %v763, 128
        %1474 = vxpose.xlu0.c.b16.cont [2/8] 0, 128
        %1475 = vxpose.xlu0.c.b16.cont [3/8] 0, 128
        %1476 = vxpose.xlu0.c.b16.cont [4/8] 0, 128
        %1477 = vxpose.xlu0.c.b16.cont [5/8] 0, 128
        %1478 = vxpose.xlu0.c.b16.cont [6/8] 0, 128
        %1479 = vxpose.xlu0.c.b16.cont [7/8] 0, 128
        %1480 = vxpose.xlu0.c.b16.end [8/8] 0, 128
        %v1481 = vpop.trf.xlu0
        %v1482 = vpop.trf.xlu0
        %v1483 = vpop.trf.xlu0
        %v1484 = vpop.trf.xlu0
        %v1485 = vpop.trf.xlu0
        %v1486 = vpop.trf.xlu0
        %v1487 = vpop.trf.xlu0
        %v1488 = vpop.trf.xlu0
        %1489 = vxpose.xlu0.c.b16.start [1/8] %v764, 128
        %1490 = vxpose.xlu0.c.b16.cont [2/8] 0, 128
        %1491 = vxpose.xlu0.c.b16.cont [3/8] 0, 128
        %1492 = vxpose.xlu0.c.b16.cont [4/8] 0, 128
        %1493 = vxpose.xlu0.c.b16.cont [5/8] 0, 128
        %1494 = vxpose.xlu0.c.b16.cont [6/8] 0, 128
        %1495 = vxpose.xlu0.c.b16.cont [7/8] 0, 128
        %1496 = vxpose.xlu0.c.b16.end [8/8] 0, 128
        %v1497 = vpop.trf.xlu0
        %v1498 = vpop.trf.xlu0
        %v1499 = vpop.trf.xlu0
        %v1500 = vpop.trf.xlu0
        %v1501 = vpop.trf.xlu0
        %v1502 = vpop.trf.xlu0
        %v1503 = vpop.trf.xlu0
        %v1504 = vpop.trf.xlu0
        %1505 = vxpose.xlu0.c.b16.start [1/8] %v765, 128
        %1506 = vxpose.xlu0.c.b16.cont [2/8] 0, 128
        %1507 = vxpose.xlu0.c.b16.cont [3/8] 0, 128
        %1508 = vxpose.xlu0.c.b16.cont [4/8] 0, 128
        %1509 = vxpose.xlu0.c.b16.cont [5/8] 0, 128
        %1510 = vxpose.xlu0.c.b16.cont [6/8] 0, 128
        %1511 = vxpose.xlu0.c.b16.cont [7/8] 0, 128
        %1512 = vxpose.xlu0.c.b16.end [8/8] 0, 128
        %v1513 = vpop.trf.xlu0
        %v1514 = vpop.trf.xlu0
        %v1515 = vpop.trf.xlu0
        %v1516 = vpop.trf.xlu0
        %v1517 = vpop.trf.xlu0
        %v1518 = vpop.trf.xlu0
        %v1519 = vpop.trf.xlu0
        %v1520 = vpop.trf.xlu0
        %v1521 = vrot.slane %v1465, 4
        %v1522 = vsel %vm767, %v1521, %v1401
        %v1524 = vunpack.c.l.s4 1983009808
        %v1525 = vunpack.c.0.s8 %v1524
        %v1526 = vperm.slane %v1522, %v1525
        %v1527 = vrot.slane %v1497, 4
        %v1528 = vsel %vm767, %v1527, %v1433
        %v1530 = vunpack.c.l.s4 1983009808
        %v1531 = vunpack.c.0.s8 %v1530
        %v1532 = vperm.slane %v1528, %v1531
        %v1533 = vrot.slane %v1532, 4
        %v1534 = vsel %vm767, %v1533, %v1526
        %v1535 = vrot.slane %v1526, 4
        %v1536 = vsel %vm767, %v1532, %v1535
        %v1538 = vunpack.c.l.s4 1934713408
        %v1539 = vunpack.c.0.s8 %v1538
        %v1540 = vperm.slane %v1534, %v1539
        %v1542 = vunpack.c.l.s4 1934713408
        %v1543 = vunpack.c.0.s8 %v1542
        %v1544 = vperm.slane %v1536, %v1543
        %v1545 = vrot.slane %v1540, 4
        %v1546 = vsel %vm767, 0, %v1545
        %v1547 = vrot.slane %v1544, 4
        %v1548 = vsel %vm767, 0, %v1547
        %v1549 = vrot.slane %v1481, 4
        %v1550 = vsel %vm767, %v1549, %v1417
        %v1552 = vunpack.c.l.s4 1983009808
        %v1553 = vunpack.c.0.s8 %v1552
        %v1554 = vperm.slane %v1550, %v1553
        %v1555 = vrot.slane %v1513, 4
        %v1556 = vsel %vm767, %v1555, %v1449
        %v1558 = vunpack.c.l.s4 1983009808
        %v1559 = vunpack.c.0.s8 %v1558
        %v1560 = vperm.slane %v1556, %v1559
        %v1561 = vrot.slane %v1560, 4
        %v1562 = vsel %vm767, %v1561, %v1554
        %v1563 = vrot.slane %v1554, 4
        %v1564 = vsel %vm767, %v1560, %v1563
        %v1566 = vunpack.c.l.s4 1934713408
        %v1567 = vunpack.c.0.s8 %v1566
        %v1568 = vperm.slane %v1562, %v1567
        %v1570 = vunpack.c.l.s4 1934713408
        %v1571 = vunpack.c.0.s8 %v1570
        %v1572 = vperm.slane %v1564, %v1571
        %v1573 = vrot.slane %v1568, 4
        %v1574 = vsel %vm767, 0, %v1573
        %v1575 = vrot.slane %v1572, 4
        %v1576 = vsel %vm767, 0, %v1575
        %v1579 = vpack.i.b16 %v1568, %v1540
        %v1581 = vshrl.u32 %v1540, 16
        %v1582 = vshrl.u32 %v1568, 16
        %v1583 = vpack.i.b16 %v1582, %v1581
        %v1587 = vpack.i.b16 %v1574, %v1546
        %v1589 = vshrl.u32 %v1546, 16
        %v1590 = vshrl.u32 %v1574, 16
        %v1591 = vpack.i.b16 %v1590, %v1589
        %v1595 = vpack.i.b16 %v1572, %v1544
        %v1597 = vshrl.u32 %v1544, 16
        %v1598 = vshrl.u32 %v1572, 16
        %v1599 = vpack.i.b16 %v1598, %v1597
        %v1603 = vpack.i.b16 %v1576, %v1548
        %v1605 = vshrl.u32 %v1548, 16
        %v1606 = vshrl.u32 %v1576, 16
        %v1607 = vpack.i.b16 %v1606, %v1605
        %1609 = vxpose.xlu0.c.b16.start [1/8] %v1579, 128
        %1610 = vxpose.xlu0.c.b16.cont [2/8] 0, 128
        %1611 = vxpose.xlu0.c.b16.cont [3/8] 0, 128
        %1612 = vxpose.xlu0.c.b16.cont [4/8] 0, 128
        %1613 = vxpose.xlu0.c.b16.cont [5/8] 0, 128
        %1614 = vxpose.xlu0.c.b16.cont [6/8] 0, 128
        %1615 = vxpose.xlu0.c.b16.cont [7/8] 0, 128
        %1616 = vxpose.xlu0.c.b16.end [8/8] 0, 128
        %v1617 = vpop.trf.xlu0
        %v1618 = vpop.trf.xlu0
        %v1619 = vpop.trf.xlu0
        %v1620 = vpop.trf.xlu0
        %v1621 = vpop.trf.xlu0
        %v1622 = vpop.trf.xlu0
        %v1623 = vpop.trf.xlu0
        %v1624 = vpop.trf.xlu0
        %1625 = vxpose.xlu0.c.b16.start [1/8] %v1583, 128
        %1626 = vxpose.xlu0.c.b16.cont [2/8] 0, 128
        %1627 = vxpose.xlu0.c.b16.cont [3/8] 0, 128
        %1628 = vxpose.xlu0.c.b16.cont [4/8] 0, 128
        %1629 = vxpose.xlu0.c.b16.cont [5/8] 0, 128
        %1630 = vxpose.xlu0.c.b16.cont [6/8] 0, 128
        %1631 = vxpose.xlu0.c.b16.cont [7/8] 0, 128
        %1632 = vxpose.xlu0.c.b16.end [8/8] 0, 128
        %v1633 = vpop.trf.xlu0
        %v1634 = vpop.trf.xlu0
        %v1635 = vpop.trf.xlu0
        %v1636 = vpop.trf.xlu0
        %v1637 = vpop.trf.xlu0
        %v1638 = vpop.trf.xlu0
        %v1639 = vpop.trf.xlu0
        %v1640 = vpop.trf.xlu0
        %1641 = vxpose.xlu0.c.b16.start [1/8] %v1587, 128
        %1642 = vxpose.xlu0.c.b16.cont [2/8] 0, 128
        %1643 = vxpose.xlu0.c.b16.cont [3/8] 0, 128
        %1644 = vxpose.xlu0.c.b16.cont [4/8] 0, 128
        %1645 = vxpose.xlu0.c.b16.cont [5/8] 0, 128
        %1646 = vxpose.xlu0.c.b16.cont [6/8] 0, 128
        %1647 = vxpose.xlu0.c.b16.cont [7/8] 0, 128
        %1648 = vxpose.xlu0.c.b16.end [8/8] 0, 128
        %v1649 = vpop.trf.xlu0
        %v1650 = vpop.trf.xlu0
        %v1651 = vpop.trf.xlu0
        %v1652 = vpop.trf.xlu0
        %v1653 = vpop.trf.xlu0
        %v1654 = vpop.trf.xlu0
        %v1655 = vpop.trf.xlu0
        %v1656 = vpop.trf.xlu0
        %1657 = vxpose.xlu0.c.b16.start [1/8] %v1591, 128
        %1658 = vxpose.xlu0.c.b16.cont [2/8] 0, 128
        %1659 = vxpose.xlu0.c.b16.cont [3/8] 0, 128
        %1660 = vxpose.xlu0.c.b16.cont [4/8] 0, 128
        %1661 = vxpose.xlu0.c.b16.cont [5/8] 0, 128
        %1662 = vxpose.xlu0.c.b16.cont [6/8] 0, 128
        %1663 = vxpose.xlu0.c.b16.cont [7/8] 0, 128
        %1664 = vxpose.xlu0.c.b16.end [8/8] 0, 128
        %v1665 = vpop.trf.xlu0
        %v1666 = vpop.trf.xlu0
        %v1667 = vpop.trf.xlu0
        %v1668 = vpop.trf.xlu0
        %v1669 = vpop.trf.xlu0
        %v1670 = vpop.trf.xlu0
        %v1671 = vpop.trf.xlu0
        %v1672 = vpop.trf.xlu0
        %1673 = vxpose.xlu0.c.b16.start [1/8] %v1595, 128
        %1674 = vxpose.xlu0.c.b16.cont [2/8] 0, 128
        %1675 = vxpose.xlu0.c.b16.cont [3/8] 0, 128
        %1676 = vxpose.xlu0.c.b16.cont [4/8] 0, 128
        %1677 = vxpose.xlu0.c.b16.cont [5/8] 0, 128
        %1678 = vxpose.xlu0.c.b16.cont [6/8] 0, 128
        %1679 = vxpose.xlu0.c.b16.cont [7/8] 0, 128
        %1680 = vxpose.xlu0.c.b16.end [8/8] 0, 128
        %v1681 = vpop.trf.xlu0
        %v1682 = vpop.trf.xlu0
        %v1683 = vpop.trf.xlu0
        %v1684 = vpop.trf.xlu0
        %v1685 = vpop.trf.xlu0
        %v1686 = vpop.trf.xlu0
        %v1687 = vpop.trf.xlu0
        %v1688 = vpop.trf.xlu0
        %1689 = vxpose.xlu0.c.b16.start [1/8] %v1599, 128
        %1690 = vxpose.xlu0.c.b16.cont [2/8] 0, 128
        %1691 = vxpose.xlu0.c.b16.cont [3/8] 0, 128
        %1692 = vxpose.xlu0.c.b16.cont [4/8] 0, 128
        %1693 = vxpose.xlu0.c.b16.cont [5/8] 0, 128
        %1694 = vxpose.xlu0.c.b16.cont [6/8] 0, 128
        %1695 = vxpose.xlu0.c.b16.cont [7/8] 0, 128
        %1696 = vxpose.xlu0.c.b16.end [8/8] 0, 128
        %v1697 = vpop.trf.xlu0
        %v1698 = vpop.trf.xlu0
        %v1699 = vpop.trf.xlu0
        %v1700 = vpop.trf.xlu0
        %v1701 = vpop.trf.xlu0
        %v1702 = vpop.trf.xlu0
        %v1703 = vpop.trf.xlu0
        %v1704 = vpop.trf.xlu0
        %1705 = vxpose.xlu0.c.b16.start [1/8] %v1603, 128
        %1706 = vxpose.xlu0.c.b16.cont [2/8] 0, 128
        %1707 = vxpose.xlu0.c.b16.cont [3/8] 0, 128
        %1708 = vxpose.xlu0.c.b16.cont [4/8] 0, 128
        %1709 = vxpose.xlu0.c.b16.cont [5/8] 0, 128
        %1710 = vxpose.xlu0.c.b16.cont [6/8] 0, 128
        %1711 = vxpose.xlu0.c.b16.cont [7/8] 0, 128
        %1712 = vxpose.xlu0.c.b16.end [8/8] 0, 128
        %v1713 = vpop.trf.xlu0
        %v1714 = vpop.trf.xlu0
        %v1715 = vpop.trf.xlu0
        %v1716 = vpop.trf.xlu0
        %v1717 = vpop.trf.xlu0
        %v1718 = vpop.trf.xlu0
        %v1719 = vpop.trf.xlu0
        %v1720 = vpop.trf.xlu0
        %1721 = vxpose.xlu0.c.b16.start [1/8] %v1607, 128
        %1722 = vxpose.xlu0.c.b16.cont [2/8] 0, 128
        %1723 = vxpose.xlu0.c.b16.cont [3/8] 0, 128
        %1724 = vxpose.xlu0.c.b16.cont [4/8] 0, 128
        %1725 = vxpose.xlu0.c.b16.cont [5/8] 0, 128
        %1726 = vxpose.xlu0.c.b16.cont [6/8] 0, 128
        %1727 = vxpose.xlu0.c.b16.cont [7/8] 0, 128
        %1728 = vxpose.xlu0.c.b16.end [8/8] 0, 128
        %v1729 = vpop.trf.xlu0
        %v1730 = vpop.trf.xlu0
        %v1731 = vpop.trf.xlu0
        %v1732 = vpop.trf.xlu0
        %v1733 = vpop.trf.xlu0
        %v1734 = vpop.trf.xlu0
        %v1735 = vpop.trf.xlu0
        %v1736 = vpop.trf.xlu0
        %v1737 = vrot.slane %v1681, 4
        %v1738 = vsel %vm767, %v1737, %v1617
        %v1740 = vunpack.c.l.s4 1983009808
        %v1741 = vunpack.c.0.s8 %v1740
        %v1742 = vperm.slane %v1738, %v1741
        %v1743 = vrot.slane %v1713, 4
        %v1744 = vsel %vm767, %v1743, %v1649
        %v1746 = vunpack.c.l.s4 1983009808
        %v1747 = vunpack.c.0.s8 %v1746
        %v1748 = vperm.slane %v1744, %v1747
        %v1749 = vrot.slane %v1748, 4
        %v1750 = vsel %vm767, %v1749, %v1742
        %v1752 = vunpack.c.l.s4 1934713408
        %v1753 = vunpack.c.0.s8 %v1752
        %v1754 = vperm.slane %v1750, %v1753
        %v1755 = vrot.slane %v1754, 4
        %v1756 = vsel %vm767, 0, %v1755
        %v1757 = vrot.slane %v1697, 4
        %v1758 = vsel %vm767, %v1757, %v1633
        %v1760 = vunpack.c.l.s4 1983009808
        %v1761 = vunpack.c.0.s8 %v1760
        %v1762 = vperm.slane %v1758, %v1761
        %v1763 = vrot.slane %v1729, 4
        %v1764 = vsel %vm767, %v1763, %v1665
        %v1766 = vunpack.c.l.s4 1983009808
        %v1767 = vunpack.c.0.s8 %v1766
        %v1768 = vperm.slane %v1764, %v1767
        %v1769 = vrot.slane %v1768, 4
        %v1770 = vsel %vm767, %v1769, %v1762
        %v1772 = vunpack.c.l.s4 1934713408
        %v1773 = vunpack.c.0.s8 %v1772
        %v1774 = vperm.slane %v1770, %v1773
        %v1775 = vrot.slane %v1774, 4
        %v1776 = vsel %vm767, 0, %v1775
        %v1779 = vpack.i.b16 %v1774, %v1754
        %v1780 = vshrl.u32 %v1754, 16
        %v1781 = vshrl.u32 %v1774, 16
        %v1782 = vpack.i.b16 %v1781, %v1780
        %v1785 = vpack.i.b16 %v1776, %v1756
        %v1786 = vshrl.u32 %v1756, 16
        %v1787 = vshrl.u32 %v1776, 16
        %v1788 = vpack.i.b16 %v1787, %v1786
        %v1790 = vsel %vm1215, %v1779, 0
        %v1793 = vsel %vm1215, %v1389, 0
        %1795 = vmatpush.bf16.xpose.msra.mxu0 0
        %1796 = vmatpush.bf16.xpose.msra.mxu0 0
        %1797 = vmatpush.bf16.xpose.msra.mxu0 0
        %1798 = vmatpush.bf16.xpose.msra.mxu0 0
        %1799 = vmatpush.bf16.xpose.msra.mxu0 0
        %1800 = vmatpush.bf16.xpose.msra.mxu0 0
        %1801 = vmatpush.bf16.xpose.msra.mxu0 0
        %1802 = vmatpush.bf16.xpose.msra.mxu0 %v1793
        %1803 = vmatmul.bf16.gmra.mxu0 %v1790
        %v1804 = vpop.f32.mrf.mxu0
        %v1805 = vadd.f32 0.0, %v1804
        %v1806 = vpop.f32.mrf.mxu0
        %1807 = vdwg.mxu0
        %v1809 = vsel %vm1215, %v1782, 0
        %v1812 = vsel %vm1215, %v1390, 0
        %1814 = vmatpush.bf16.xpose.msra.mxu0 0
        %1815 = vmatpush.bf16.xpose.msra.mxu0 0
        %1816 = vmatpush.bf16.xpose.msra.mxu0 0
        %1817 = vmatpush.bf16.xpose.msra.mxu0 0
        %1818 = vmatpush.bf16.xpose.msra.mxu0 0
        %1819 = vmatpush.bf16.xpose.msra.mxu0 0
        %1820 = vmatpush.bf16.xpose.msra.mxu0 0
        %1821 = vmatpush.bf16.xpose.msra.mxu0 %v1812
        %1822 = vmatmul.bf16.gmra.mxu0 %v1809
        %v1823 = vpop.f32.mrf.mxu0
        %v1824 = vadd.f32 0.0, %v1823
        %v1825 = vpop.f32.mrf.mxu0
        %1826 = vdwg.mxu0
        %v1828 = vsel %vm1215, %v1785, 0
        %v1831 = vsel %vm1215, %v1391, 0
        %1833 = vmatpush.bf16.xpose.msra.mxu0 0
        %1834 = vmatpush.bf16.xpose.msra.mxu0 0
        %1835 = vmatpush.bf16.xpose.msra.mxu0 0
        %1836 = vmatpush.bf16.xpose.msra.mxu0 0
        %1837 = vmatpush.bf16.xpose.msra.mxu0 0
        %1838 = vmatpush.bf16.xpose.msra.mxu0 0
        %1839 = vmatpush.bf16.xpose.msra.mxu0 0
        %1840 = vmatpush.bf16.xpose.msra.mxu0 %v1831
        %1841 = vmatmul.bf16.gmra.mxu0 %v1828
        %v1842 = vpop.f32.mrf.mxu0
        %v1843 = vadd.f32 0.0, %v1842
        %v1844 = vpop.f32.mrf.mxu0
        %1845 = vdwg.mxu0
        %v1847 = vsel %vm1215, %v1788, 0
        %v1850 = vsel %vm1215, %v1392, 0
        %1852 = vmatpush.bf16.xpose.msra.mxu0 0
        %1853 = vmatpush.bf16.xpose.msra.mxu0 0
        %1854 = vmatpush.bf16.xpose.msra.mxu0 0
        %1855 = vmatpush.bf16.xpose.msra.mxu0 0
        %1856 = vmatpush.bf16.xpose.msra.mxu0 0
        %1857 = vmatpush.bf16.xpose.msra.mxu0 0
        %1858 = vmatpush.bf16.xpose.msra.mxu0 0
        %1859 = vmatpush.bf16.xpose.msra.mxu0 %v1850
        %1860 = vmatmul.bf16.gmra.mxu0 %v1847
        %v1861 = vpop.f32.mrf.mxu0
        %v1862 = vadd.f32 0.0, %v1861
        %v1863 = vpop.f32.mrf.mxu0
        %1864 = vdwg.mxu0
        %1865 = vxpose.xlu0.b32.start [1/16] %v1805, 128
        %1866 = vxpose.xlu0.b32.cont [2/16] 0.0, 128
        %1867 = vxpose.xlu0.b32.cont [3/16] 0.0, 128
        %1868 = vxpose.xlu0.b32.cont [4/16] 0.0, 128
        %1869 = vxpose.xlu0.b32.cont [5/16] 0.0, 128
        %1870 = vxpose.xlu0.b32.cont [6/16] 0.0, 128
        %1871 = vxpose.xlu0.b32.cont [7/16] 0.0, 128
        %1872 = vxpose.xlu0.b32.cont [8/16] 0.0, 128
        %1873 = vxpose.xlu0.b32.cont [9/16] 0.0, 128
        %1874 = vxpose.xlu0.b32.cont [10/16] 0.0, 128
        %1875 = vxpose.xlu0.b32.cont [11/16] 0.0, 128
        %1876 = vxpose.xlu0.b32.cont [12/16] 0.0, 128
        %1877 = vxpose.xlu0.b32.cont [13/16] 0.0, 128
        %1878 = vxpose.xlu0.b32.cont [14/16] 0.0, 128
        %1879 = vxpose.xlu0.b32.cont [15/16] 0.0, 128
        %1880 = vxpose.xlu0.b32.end [16/16] 0.0, 128
        %v1881 = vpop.trf.xlu0
        %v1882 = vpop.trf.xlu0
        %v1883 = vpop.trf.xlu0
        %v1884 = vpop.trf.xlu0
        %v1885 = vpop.trf.xlu0
        %v1886 = vpop.trf.xlu0
        %v1887 = vpop.trf.xlu0
        %v1888 = vpop.trf.xlu0
        %v1889 = vpop.trf.xlu0
        %v1890 = vpop.trf.xlu0
        %v1891 = vpop.trf.xlu0
        %v1892 = vpop.trf.xlu0
        %v1893 = vpop.trf.xlu0
        %v1894 = vpop.trf.xlu0
        %v1895 = vpop.trf.xlu0
        %v1896 = vpop.trf.xlu0
        %1897 = vxpose.xlu0.b32.start [1/16] %v1824, 128
        %1898 = vxpose.xlu0.b32.cont [2/16] 0.0, 128
        %1899 = vxpose.xlu0.b32.cont [3/16] 0.0, 128
        %1900 = vxpose.xlu0.b32.cont [4/16] 0.0, 128
        %1901 = vxpose.xlu0.b32.cont [5/16] 0.0, 128
        %1902 = vxpose.xlu0.b32.cont [6/16] 0.0, 128
        %1903 = vxpose.xlu0.b32.cont [7/16] 0.0, 128
        %1904 = vxpose.xlu0.b32.cont [8/16] 0.0, 128
        %1905 = vxpose.xlu0.b32.cont [9/16] 0.0, 128
        %1906 = vxpose.xlu0.b32.cont [10/16] 0.0, 128
        %1907 = vxpose.xlu0.b32.cont [11/16] 0.0, 128
        %1908 = vxpose.xlu0.b32.cont [12/16] 0.0, 128
        %1909 = vxpose.xlu0.b32.cont [13/16] 0.0, 128
        %1910 = vxpose.xlu0.b32.cont [14/16] 0.0, 128
        %1911 = vxpose.xlu0.b32.cont [15/16] 0.0, 128
        %1912 = vxpose.xlu0.b32.end [16/16] 0.0, 128
        %v1913 = vpop.trf.xlu0
        %v1914 = vpop.trf.xlu0
        %v1915 = vpop.trf.xlu0
        %v1916 = vpop.trf.xlu0
        %v1917 = vpop.trf.xlu0
        %v1918 = vpop.trf.xlu0
        %v1919 = vpop.trf.xlu0
        %v1920 = vpop.trf.xlu0
        %v1921 = vpop.trf.xlu0
        %v1922 = vpop.trf.xlu0
        %v1923 = vpop.trf.xlu0
        %v1924 = vpop.trf.xlu0
        %v1925 = vpop.trf.xlu0
        %v1926 = vpop.trf.xlu0
        %v1927 = vpop.trf.xlu0
        %v1928 = vpop.trf.xlu0
        %1929 = vxpose.xlu0.b32.start [1/16] %v1843, 128
        %1930 = vxpose.xlu0.b32.cont [2/16] 0.0, 128
        %1931 = vxpose.xlu0.b32.cont [3/16] 0.0, 128
        %1932 = vxpose.xlu0.b32.cont [4/16] 0.0, 128
        %1933 = vxpose.xlu0.b32.cont [5/16] 0.0, 128
        %1934 = vxpose.xlu0.b32.cont [6/16] 0.0, 128
        %1935 = vxpose.xlu0.b32.cont [7/16] 0.0, 128
        %1936 = vxpose.xlu0.b32.cont [8/16] 0.0, 128
        %1937 = vxpose.xlu0.b32.cont [9/16] 0.0, 128
        %1938 = vxpose.xlu0.b32.cont [10/16] 0.0, 128
        %1939 = vxpose.xlu0.b32.cont [11/16] 0.0, 128
        %1940 = vxpose.xlu0.b32.cont [12/16] 0.0, 128
        %1941 = vxpose.xlu0.b32.cont [13/16] 0.0, 128
        %1942 = vxpose.xlu0.b32.cont [14/16] 0.0, 128
        %1943 = vxpose.xlu0.b32.cont [15/16] 0.0, 128
        %1944 = vxpose.xlu0.b32.end [16/16] 0.0, 128
        %v1945 = vpop.trf.xlu0
        %v1946 = vpop.trf.xlu0
        %v1947 = vpop.trf.xlu0
        %v1948 = vpop.trf.xlu0
        %v1949 = vpop.trf.xlu0
        %v1950 = vpop.trf.xlu0
        %v1951 = vpop.trf.xlu0
        %v1952 = vpop.trf.xlu0
        %v1953 = vpop.trf.xlu0
        %v1954 = vpop.trf.xlu0
        %v1955 = vpop.trf.xlu0
        %v1956 = vpop.trf.xlu0
        %v1957 = vpop.trf.xlu0
        %v1958 = vpop.trf.xlu0
        %v1959 = vpop.trf.xlu0
        %v1960 = vpop.trf.xlu0
        %1961 = vxpose.xlu0.b32.start [1/16] %v1862, 128
        %1962 = vxpose.xlu0.b32.cont [2/16] 0.0, 128
        %1963 = vxpose.xlu0.b32.cont [3/16] 0.0, 128
        %1964 = vxpose.xlu0.b32.cont [4/16] 0.0, 128
        %1965 = vxpose.xlu0.b32.cont [5/16] 0.0, 128
        %1966 = vxpose.xlu0.b32.cont [6/16] 0.0, 128
        %1967 = vxpose.xlu0.b32.cont [7/16] 0.0, 128
        %1968 = vxpose.xlu0.b32.cont [8/16] 0.0, 128
        %1969 = vxpose.xlu0.b32.cont [9/16] 0.0, 128
        %1970 = vxpose.xlu0.b32.cont [10/16] 0.0, 128
        %1971 = vxpose.xlu0.b32.cont [11/16] 0.0, 128
        %1972 = vxpose.xlu0.b32.cont [12/16] 0.0, 128
        %1973 = vxpose.xlu0.b32.cont [13/16] 0.0, 128
        %1974 = vxpose.xlu0.b32.cont [14/16] 0.0, 128
        %1975 = vxpose.xlu0.b32.cont [15/16] 0.0, 128
        %1976 = vxpose.xlu0.b32.end [16/16] 0.0, 128
        %v1977 = vpop.trf.xlu0
        %v1978 = vpop.trf.xlu0
        %v1979 = vpop.trf.xlu0
        %v1980 = vpop.trf.xlu0
        %v1981 = vpop.trf.xlu0
        %v1982 = vpop.trf.xlu0
        %v1983 = vpop.trf.xlu0
        %v1984 = vpop.trf.xlu0
        %v1985 = vpop.trf.xlu0
        %v1986 = vpop.trf.xlu0
        %v1987 = vpop.trf.xlu0
        %v1988 = vpop.trf.xlu0
        %v1989 = vpop.trf.xlu0
        %v1990 = vpop.trf.xlu0
        %v1991 = vpop.trf.xlu0
        %v1992 = vpop.trf.xlu0
        %v1993 = vrot.slane %v1945, 4
        %v1994 = vsel %vm552, %v1993, %v1881
        %v1995 = vrot.slane %v1881, 4
        %v1996 = vsel %vm552, %v1945, %v1995
        %v1998 = vunpack.c.l.s4 1983009808
        %v1999 = vunpack.c.0.s8 %v1998
        %v2000 = vperm.slane %v1994, %v1999
        %v2002 = vunpack.c.l.s4 1983009808
        %v2003 = vunpack.c.0.s8 %v2002
        %v2004 = vperm.slane %v1996, %v2003
        %v2005 = vrot.slane %v1977, 4
        %v2006 = vsel %vm552, %v2005, %v1913
        %v2007 = vrot.slane %v1913, 4
        %v2008 = vsel %vm552, %v1977, %v2007
        %v2010 = vunpack.c.l.s4 1983009808
        %v2011 = vunpack.c.0.s8 %v2010
        %v2012 = vperm.slane %v2006, %v2011
        %v2014 = vunpack.c.l.s4 1983009808
        %v2015 = vunpack.c.0.s8 %v2014
        %v2016 = vperm.slane %v2008, %v2015
        %v2017 = vrot.slane %v2012, 4
        %v2018 = vsel %vm552, %v2017, %v2000
        %v2019 = vrot.slane %v2000, 4
        %v2020 = vsel %vm552, %v2012, %v2019
        %v2022 = vunpack.c.l.s4 1934713408
        %v2023 = vunpack.c.0.s8 %v2022
        %v2024 = vperm.slane %v2018, %v2023
        %v2026 = vunpack.c.l.s4 1934713408
        %v2027 = vunpack.c.0.s8 %v2026
        %v2028 = vperm.slane %v2020, %v2027
        %v2029 = vrot.slane %v2016, 4
        %v2030 = vsel %vm552, %v2029, %v2004
        %v2031 = vrot.slane %v2004, 4
        %v2032 = vsel %vm552, %v2016, %v2031
        %v2034 = vunpack.c.l.s4 1934713408
        %v2035 = vunpack.c.0.s8 %v2034
        %v2036 = vperm.slane %v2030, %v2035
        %v2038 = vunpack.c.l.s4 1934713408
        %v2039 = vunpack.c.0.s8 %v2038
        %v2040 = vperm.slane %v2032, %v2039
        %v2041 = vrot.slane %v2024, 4
        %v2042 = vsel %vm552, 0.0, %v2041
        %v2043 = vrot.slane %v2028, 4
        %v2044 = vsel %vm552, 0.0, %v2043
        %v2045 = vrot.slane %v2036, 4
        %v2046 = vsel %vm552, 0.0, %v2045
        %v2047 = vrot.slane %v2040, 4
        %v2048 = vsel %vm552, 0.0, %v2047
        %v2049 = vsel %vm552, %v2043, %v2024
        %v2051 = vunpack.c.l.s4 1983009808
        %v2052 = vunpack.c.0.s8 %v2051
        %v2053 = vperm.slane %v2049, %v2052
        %v2054 = vrot.slane %v2044, 4
        %v2055 = vsel %vm552, %v2054, %v2042
        %v2057 = vunpack.c.l.s4 1983009808
        %v2058 = vunpack.c.0.s8 %v2057
        %v2059 = vperm.slane %v2055, %v2058
        %v2060 = vsel %vm552, %v2047, %v2036
        %v2062 = vunpack.c.l.s4 1983009808
        %v2063 = vunpack.c.0.s8 %v2062
        %v2064 = vperm.slane %v2060, %v2063
        %v2065 = vrot.slane %v2048, 4
        %v2066 = vsel %vm552, %v2065, %v2046
        %v2068 = vunpack.c.l.s4 1983009808
        %v2069 = vunpack.c.0.s8 %v2068
        %v2070 = vperm.slane %v2066, %v2069
        %v2071 = vrot.slane %v2059, 4
        %v2072 = vsel %vm552, %v2071, %v2053
        %v2073 = vrot.slane %v2053, 4
        %v2074 = vsel %vm552, %v2059, %v2073
        %v2076 = vunpack.c.l.s4 1934713408
        %v2077 = vunpack.c.0.s8 %v2076
        %v2078 = vperm.slane %v2072, %v2077
        %v2080 = vunpack.c.l.s4 1934713408
        %v2081 = vunpack.c.0.s8 %v2080
        %v2082 = vperm.slane %v2074, %v2081
        %v2083 = vrot.slane %v2070, 4
        %v2084 = vsel %vm552, %v2083, %v2064
        %v2085 = vrot.slane %v2064, 4
        %v2086 = vsel %vm552, %v2070, %v2085
        %v2088 = vunpack.c.l.s4 1934713408
        %v2089 = vunpack.c.0.s8 %v2088
        %v2090 = vperm.slane %v2084, %v2089
        %v2092 = vunpack.c.l.s4 1934713408
        %v2093 = vunpack.c.0.s8 %v2092
        %v2094 = vperm.slane %v2086, %v2093
        %v2095 = vrot.slane %v2090, 4
        %v2096 = vsel %vm552, %v2095, %v2078
        %v2097 = vrot.slane %v2078, 4
        %v2098 = vsel %vm552, %v2090, %v2097
        %v2099 = vrot.slane %v2094, 4
        %v2100 = vsel %vm552, %v2099, %v2082
        %v2101 = vrot.slane %v2082, 4
        %v2102 = vsel %vm552, %v2094, %v2101
        %2104 = vrot.lane.b32.xlu0 %v2098, 8
        %v2105 = vpop.permute.xlu0 %2104
        %2108 = vrot.lane.b32.xlu0 %v2100, 16
        %v2109 = vpop.permute.xlu0 %2108
        %2112 = vrot.lane.b32.xlu0 %v2102, 24
        %v2113 = vpop.permute.xlu0 %2112
        %v2115 = vsel %vm1215, %v2096, %v2105
        %vm2116 = vcmask 130048
        %v2117 = vsel %vm2116, %v2115, %v2109
        %vm2118 = vcmask 195584
        %v2119 = vsel %vm2118, %v2117, %v2113
        %v2120 = vpack.c.bf16 %v2119, %v2119
        %v2121 = vld [vmem:[#allocation7] sm:$0xf]
        %v2122 = vld [vmem:[#allocation7 + $0x4] sm:$0xf]
        %v2123 = vld [vmem:[#allocation7 + $0x8] sm:$0xf]
        %v2124 = vld [vmem:[#allocation7 + $0xc] sm:$0xf]
        %v2125 = vld [vmem:[#allocation9] sm:$0x1]
        %v2127 = vperm.slane %v2125, 0
        %v2133 = vunpack.c.l.b16 %v2121
        %v2134 = vunpack.c.l.b16 %v2122
        %v2135 = vunpack.c.l.b16 %v2123
        %v2136 = vunpack.c.l.b16 %v2124
        %v2137 = vpack.c.b16 %v2134, %v2133
        %v2138 = vpack.c.b16 %v2136, %v2135
        %v2142 = vsel %vm417, %v2120, 0
        %2144 = vmatpush.bf16.msra.mxu0 0
        %2145 = vmatpush.bf16.msra.mxu0 0
        %2146 = vmatpush.bf16.msra.mxu0 0
        %2147 = vmatpush.bf16.msra.mxu0 0
        %2148 = vmatpush.bf16.msra.mxu0 0
        %2149 = vmatpush.bf16.msra.mxu0 0
        %2150 = vmatpush.bf16.msra.mxu0 %v2138
        %2151 = vmatpush.bf16.msra.mxu0 %v2137
        %2152 = vmatmul.bf16.gmra.mxu0 %v2142
        %v2153 = vpop.f32.mrf.mxu0
        %v2154 = vadd.f32 %v2127, %v2153
        %v2155 = vpop.f32.mrf.mxu0
        %2156 = vdwg.mxu0
        %v2157 = vadd.f32 %v414, %v2154
        %2158 = vst.msk [vmem:[%s412] sm:$0xff] %vm417, %v2157
        %p2159 = scmp.lt.s32.totalorder %s26, 1
        %s2160 = scalar_select %p2159, %s26, 1
        %p2161 = scmp.lt.s32.totalorder %s27, 0
        %s2162 = scalar_select %p2161, %s27, 0
        %s2163 = sadd.s32 %s2162, %s2160
        %s2164 = smul.addr %s2163, 8
        %s2165 = scalar_lea.vmem %s8, %s2164
        // Predicated region
        $region73: #{decoder_forward.9} parent=51 // pred_check
          %p2166 = pneg %p232
        $region74: #{decoder_forward.9} parent=51 // pred_check_branch
          %2168 = sbr.rel (%p2166) target = $region76
        $region75: #{decoder_forward.9} parent=51 // pred_region
          _
        $region76: #{decoder_forward.9} parent=51 // pred_fallthru
          _
      $region52: #{decoder_forward.9} parent=5 // pred_fallthru
        _
      %p2169 = scmp.le.s32.totalorder 2, %s17
      // Predicated region
      $region77: #{decoder_forward.9} parent=5 // pred_check
        %p2170 = pneg %p2169
      $region78: #{decoder_forward.9} parent=5 // pred_check_branch
        %2172 = sbr.rel (%p2170) target = $region80
      $region79: #{decoder_forward.9} parent=5 // pred_region
        %s2173 = ssub.s32 %s17, 2
        // Predicated region
        $region81: #{decoder_forward.9} parent=79 // pred_check
          %p2174 = pneg %p238
        $region82: #{decoder_forward.9} parent=79 // pred_check_branch
          %2176 = sbr.rel (%p2174) target = $region84
        $region83: #{decoder_forward.9} parent=79 // pred_region
          %p2177 = scmp.lt.s32.totalorder %s28, 1
          %s2178 = scalar_select %p2177, %s28, 1
          %p2179 = scmp.lt.s32.totalorder %s29, 0
          %s2180 = scalar_select %p2179, %s29, 0
          %s2181 = sadd.s32 %s2180, %s2178
          %s2182 = smul.addr %s2181, 8
          %s2183 = scalar_lea.vmem %s8, %s2182
        $region84: #{decoder_forward.9} parent=79 // pred_fallthru
          _
      $region80: #{decoder_forward.9} parent=5 // pred_fallthru
        _
    $region6: #{decoder_forward.9} parent=1 // loop_footer
      %s21 = sadd.s32 1, %s17
    $region7: #{decoder_forward.9} parent=1 // loop_footer_branch
      %16 = sbr.rel target = $region3
    $region8: #{decoder_forward.9} parent=1 // loop_exit
      _
    %2184 = vsyncpa [#allocation3], 1
    %s2185 = scalar_lea.sflag [#allocation3], 1
    %2186 = vsyncpa %s2185, 1
    %2187 = vsyncpa [#allocation5], 1
    %2188 = vsyncpa [#allocation8], 1

// kernel: decoder_forward.11
$region0: #{decoder_forward.11}
  #allocation0 [shape = 'u32[]', space=smem, size = 0x4, offset = 0x4, fixed_abs, tag = 'smem constant byte address 0x4 - core index']
  #allocation1 [shape = 'u32[72,128]{1,0:T(1,128)}', space=vmem, size = 0x9000, scoped, tag = 'internal scratch']
  %s0 = inlined_call_operand.vmem [shape: f32[16,32], index: 0, kind: input, shape index: {}]
  %s1 = inlined_call_operand.vmem [shape: f32[1,32], index: 1, kind: input, shape index: {}]
  %s2 = inlined_call_operand.vmem [shape: f32[1,32], index: 2, kind: input, shape index: {}]
  %s3 = inlined_call_operand.vmem [shape: bf16[32,64], index: 3, kind: input, shape index: {}]
  %s4 = inlined_call_operand.vmem [shape: f32[1,64], index: 4, kind: input, shape index: {}]
  %s5 = inlined_call_operand.vmem [shape: bf16[64,32], index: 5, kind: input, shape index: {}]
  %s6 = inlined_call_operand.vmem [shape: f32[1,32], index: 6, kind: input, shape index: {}]
  %s7 = inlined_call_operand.vmem [shape: f32[1,32], index: 7, kind: input, shape index: {}]
  %s8 = inlined_call_operand.vmem [shape: f32[1,32], index: 8, kind: input, shape index: {}]
  %s9 = inlined_call_operand.hbm [shape: f32[16,32], index: 9, kind: output, shape index: {}]
  %s10 = sld [smem:[#allocation0]]
  $region46: #{decoder_forward.11} parent=0
    _
  %s12 = ssub.s32 1, %s10
  %s13 = scalar_select 0, %s12, %s10
  $region1: #{decoder_forward.11} parent=0
    #allocation2 [shape = 'u8[8192]{0}', space=vmem, size = 0x2000, scoped, tag = 'output window, operand 0, single buffered']
    #allocation3 [shape = 's32[1]{0}', space=sflag, size = 0x4, scoped, tag = 'scoped memory for decoder_forward.11']
    %14 = vsyncpa [#allocation3], 0
    // Predicated region
    $region2: #{decoder_forward.11} parent=1 // pred_check
      _
    $region3: #{decoder_forward.11} parent=1 // pred_check_branch
      %16 = sbr.rel (0) target = $region5
    $region4: #{decoder_forward.11} parent=1 // pred_region
      _
    $region5: #{decoder_forward.11} parent=1 // pred_fallthru
      _
    // Predicated region
    $region6: #{decoder_forward.11} parent=1 // pred_check
      _
    $region7: #{decoder_forward.11} parent=1 // pred_check_branch
      %18 = sbr.rel (0) target = $region9
    $region8: #{decoder_forward.11} parent=1 // pred_region
      _
    $region9: #{decoder_forward.11} parent=1 // pred_fallthru
      _
    // Predicated region
    $region10: #{decoder_forward.11} parent=1 // pred_check
      _
    $region11: #{decoder_forward.11} parent=1 // pred_check_branch
      %20 = sbr.rel (0) target = $region13
    $region12: #{decoder_forward.11} parent=1 // pred_region
      _
    $region13: #{decoder_forward.11} parent=1 // pred_fallthru
      _
    // Predicated region
    $region14: #{decoder_forward.11} parent=1 // pred_check
      _
    $region15: #{decoder_forward.11} parent=1 // pred_check_branch
      %22 = sbr.rel (0) target = $region17
    $region16: #{decoder_forward.11} parent=1 // pred_region
      _
    $region17: #{decoder_forward.11} parent=1 // pred_fallthru
      _
    // Predicated region
    $region18: #{decoder_forward.11} parent=1 // pred_check
      _
    $region19: #{decoder_forward.11} parent=1 // pred_check_branch
      %24 = sbr.rel (0) target = $region21
    $region20: #{decoder_forward.11} parent=1 // pred_region
      _
    $region21: #{decoder_forward.11} parent=1 // pred_fallthru
      _
    // Predicated region
    $region22: #{decoder_forward.11} parent=1 // pred_check
      _
    $region23: #{decoder_forward.11} parent=1 // pred_check_branch
      %26 = sbr.rel (0) target = $region25
    $region24: #{decoder_forward.11} parent=1 // pred_region
      _
    $region25: #{decoder_forward.11} parent=1 // pred_fallthru
      _
    // Predicated region
    $region26: #{decoder_forward.11} parent=1 // pred_check
      _
    $region27: #{decoder_forward.11} parent=1 // pred_check_branch
      %28 = sbr.rel (0) target = $region29
    $region28: #{decoder_forward.11} parent=1 // pred_region
      _
    $region29: #{decoder_forward.11} parent=1 // pred_fallthru
      _
    // Predicated region
    $region30: #{decoder_forward.11} parent=1 // pred_check
      _
    $region31: #{decoder_forward.11} parent=1 // pred_check_branch
      %30 = sbr.rel (0) target = $region33
    $region32: #{decoder_forward.11} parent=1 // pred_region
      _
    $region33: #{decoder_forward.11} parent=1 // pred_fallthru
      _
    // Predicated region
    $region34: #{decoder_forward.11} parent=1 // pred_check
      _
    $region35: #{decoder_forward.11} parent=1 // pred_check_branch
      %32 = sbr.rel (0) target = $region37
    $region36: #{decoder_forward.11} parent=1 // pred_region
      _
    $region37: #{decoder_forward.11} parent=1 // pred_fallthru
      _
    %v34 = vld [vmem:[%s0] sm:$0xff]
    %v35 = vld [vmem:[%s0 + $0x8] sm:$0xff]
    %v36 = vld [vmem:[%s1] sm:$0x1]
    %v37 = vld [vmem:[%s2] sm:$0x1]
    %vm38 = vcmask 261120
    %v39 = vsel %vm38, %v34, 0.0
    %40 = vadd.xlane.f32.xlu0 %v39
    %v41 = vpop.xlane.xlu0 %40
    %v42 = vsel %vm38, %v35, 0.0
    %43 = vadd.xlane.f32.xlu0 %v42
    %v44 = vpop.xlane.xlu0 %43
    %v45 = vrcp.pop 32.0
    %v46 = vmul.f32 32.0, %v45
    %v47 = vsub.f32 1.0, %v46
    %v48 = vmul.f32 %v45, %v47
    %v49 = vadd.f32 %v45, %v48
    %vm50 = vweird.f32 %v45
    %v51 = vsel %vm50, %v45, %v49
    %v52 = vmul.f32 %v41, %v51
    %v53 = vmul.f32 %v44, %v51
    %v54 = vsub.f32 %v34, %v52
    %v55 = vsub.f32 %v35, %v53
    %v56 = vmul.f32 %v54, %v54
    %v57 = vmul.f32 %v55, %v55
    %v58 = vsel %vm38, %v56, 0.0
    %59 = vadd.xlane.f32.xlu0 %v58
    %v60 = vpop.xlane.xlu0 %59
    %v61 = vsel %vm38, %v57, 0.0
    %62 = vadd.xlane.f32.xlu0 %v61
    %v63 = vpop.xlane.xlu0 %62
    %v64 = vrcp.pop 31.0
    %v65 = vmul.f32 31.0, %v64
    %v66 = vsub.f32 1.0, %v65
    %v67 = vmul.f32 %v64, %v66
    %v68 = vadd.f32 %v64, %v67
    %vm69 = vweird.f32 %v64
    %v70 = vsel %vm69, %v64, %v68
    %v71 = vmul.f32 %v60, %v70
    %v72 = vmul.f32 %v63, %v70
    %v73 = vrsqrt.pop %v71
    %v74 = vmul.f32 %v73, %v71
    %v75 = vmul.f32 %v74, %v73
    %v76 = vmul.f32 0.5, %v75
    %v77 = vsub.f32 1.5, %v76
    %v78 = vmul.f32 %v73, %v77
    %v79 = vmul.f32 %v71, %v78
    %vm80 = vcmp.eq.f32.partialorder %v71, inf
    %v81 = vsel %vm80, %v71, %v79
    %vm82 = vcmp.eq.f32.partialorder %v71, 0.0
    %v83 = vand.u32 %v71, 2147483648
    %v84 = vsel %vm82, %v83, %v81
    %v85 = vrsqrt.pop %v72
    %v86 = vmul.f32 %v85, %v72
    %v87 = vmul.f32 %v86, %v85
    %v88 = vmul.f32 0.5, %v87
    %v89 = vsub.f32 1.5, %v88
    %v90 = vmul.f32 %v85, %v89
    %v91 = vmul.f32 %v72, %v90
    %vm92 = vcmp.eq.f32.partialorder %v72, inf
    %v93 = vsel %vm92, %v72, %v91
    %vm94 = vcmp.eq.f32.partialorder %v72, 0.0
    %v95 = vand.u32 %v72, 2147483648
    %v96 = vsel %vm94, %v95, %v93
    %v97 = vadd.f32 %v84, 1e-06
    %v98 = vadd.f32 %v96, 1e-06
    %v99 = vrcp.pop %v97
    %v100 = vmul.f32 %v97, %v99
    %v101 = vsub.f32 1.0, %v100
    %v102 = vmul.f32 %v99, %v101
    %v103 = vadd.f32 %v99, %v102
    %vm104 = vweird.f32 %v97
    %vm105 = vweird.f32 %v99
    %vm106 = vmor %vm104, %vm105
    %v107 = vsel %vm106, %v99, %v103
    %v108 = vand.u32 2147483647, %v97
    %vm109 = vcmp.eq.f32.partialorder %v108, 8.507059e+37
    %v110 = vand.u32 %v97, 2147483648
    %v111 = vor.u32 1.1754944e-38, %v110
    %v112 = vsel %vm109, %v111, %v107
    %v113 = vrcp.pop %v98
    %v114 = vmul.f32 %v98, %v113
    %v115 = vsub.f32 1.0, %v114
    %v116 = vmul.f32 %v113, %v115
    %v117 = vadd.f32 %v113, %v116
    %vm118 = vweird.f32 %v98
    %vm119 = vweird.f32 %v113
    %vm120 = vmor %vm118, %vm119
    %v121 = vsel %vm120, %v113, %v117
    %v122 = vand.u32 2147483647, %v98
    %vm123 = vcmp.eq.f32.partialorder %v122, 8.507059e+37
    %v124 = vand.u32 %v98, 2147483648
    %v125 = vor.u32 1.1754944e-38, %v124
    %v126 = vsel %vm123, %v125, %v121
    %v128 = vperm.slane %v36, 0
    %v130 = vmul.f32 %v128, %v54
    %v131 = vmul.f32 %v128, %v55
    %v132 = vmul.f32 %v130, %v112
    %v133 = vmul.f32 %v131, %v126
    %v135 = vperm.slane %v37, 0
    %v137 = vadd.f32 %v132, %v135
    %v138 = vadd.f32 %v133, %v135
    %v139 = vpack.c.bf16 %v138, %v137
    %v140 = vld [vmem:[%s3] sm:$0xf]
    %v141 = vld [vmem:[%s3 + $0x4] sm:$0xf]
    %v142 = vld [vmem:[%s3 + $0x8] sm:$0xf]
    %v143 = vld [vmem:[%s3 + $0xc] sm:$0xf]
    %v144 = vld [vmem:[%s4] sm:$0x1]
    %v146 = vperm.slane %v144, 0
    %v152 = vunpack.c.l.b16 %v140
    %v153 = vunpack.c.l.b16 %v141
    %v154 = vunpack.c.l.b16 %v142
    %v155 = vunpack.c.l.b16 %v143
    %v156 = vpack.c.b16 %v153, %v152
    %v157 = vpack.c.b16 %v155, %v154
    %v161 = vsel %vm38, %v139, 0
    %163 = vmatpush.bf16.msra.mxu0 0
    %164 = vmatpush.bf16.msra.mxu0 0
    %165 = vmatpush.bf16.msra.mxu0 0
    %166 = vmatpush.bf16.msra.mxu0 0
    %167 = vmatpush.bf16.msra.mxu0 0
    %168 = vmatpush.bf16.msra.mxu0 0
    %169 = vmatpush.bf16.msra.mxu0 %v157
    %170 = vmatpush.bf16.msra.mxu0 %v156
    %171 = vmatmul.bf16.gmra.mxu0 %v161
    %v172 = vpop.f32.mrf.mxu0
    %v173 = vadd.f32 %v146, %v172
    %v174 = vpop.f32.mrf.mxu0
    %v175 = vadd.f32 %v146, %v174
    %176 = vdwg.mxu0
    %v177 = vmax.f32 %v173, 0.0
    %v178 = vmax.f32 %v175, 0.0
    %v179 = vpack.c.bf16 %v178, %v177
    %v180 = vld [vmem:[%s5] sm:$0xf]
    %v181 = vld [vmem:[%s5 + $0x4] sm:$0xf]
    %v182 = vld [vmem:[%s5 + $0x8] sm:$0xf]
    %v183 = vld [vmem:[%s5 + $0xc] sm:$0xf]
    %v184 = vld [vmem:[%s5 + $0x10] sm:$0xf]
    %v185 = vld [vmem:[%s5 + $0x14] sm:$0xf]
    %v186 = vld [vmem:[%s5 + $0x18] sm:$0xf]
    %v187 = vld [vmem:[%s5 + $0x1c] sm:$0xf]
    %v196 = vunpack.c.l.b16 %v180
    %v197 = vunpack.c.l.b16 %v181
    %v198 = vunpack.c.l.b16 %v182
    %v199 = vunpack.c.l.b16 %v183
    %v200 = vunpack.c.l.b16 %v184
    %v201 = vunpack.c.l.b16 %v185
    %v202 = vunpack.c.l.b16 %v186
    %v203 = vunpack.c.l.b16 %v187
    %v204 = vpack.c.b16 %v197, %v196
    %v205 = vpack.c.b16 %v199, %v198
    %v206 = vpack.c.b16 %v201, %v200
    %v207 = vpack.c.b16 %v203, %v202
    %vm212 = vcmask 523264
    %v214 = vsel %vm212, %v179, 0
    %216 = vmatpush.bf16.msra.mxu0 0
    %217 = vmatpush.bf16.msra.mxu0 0
    %218 = vmatpush.bf16.msra.mxu0 0
    %219 = vmatpush.bf16.msra.mxu0 0
    %220 = vmatpush.bf16.msra.mxu0 %v207
    %221 = vmatpush.bf16.msra.mxu0 %v206
    %222 = vmatpush.bf16.msra.mxu0 %v205
    %223 = vmatpush.bf16.msra.mxu0 %v204
    %224 = vmatmul.bf16.gmra.mxu0 %v214
    %v225 = vpop.f32.mrf.mxu0
    %v226 = vadd.f32 0.0, %v225
    %v227 = vpop.f32.mrf.mxu0
    %v228 = vadd.f32 0.0, %v227
    %229 = vdwg.mxu0
    %v230 = vadd.f32 %v34, %v226
    %v231 = vadd.f32 %v35, %v228
    %v232 = vld [vmem:[%s6] sm:$0x1]
    %v234 = vperm.slane %v232, 0
    %v236 = vadd.f32 %v230, %v234
    %v237 = vadd.f32 %v231, %v234
    %v238 = vld [vmem:[%s7] sm:$0x1]
    %v239 = vld [vmem:[%s8] sm:$0x1]
    %v240 = vsel %vm38, %v236, 0.0
    %241 = vadd.xlane.f32.xlu0 %v240
    %v242 = vpop.xlane.xlu0 %241
    %v243 = vsel %vm38, %v237, 0.0
    %244 = vadd.xlane.f32.xlu0 %v243
    %v245 = vpop.xlane.xlu0 %244
    %v246 = vmul.f32 %v242, %v51
    %v247 = vmul.f32 %v245, %v51
    %v248 = vsub.f32 %v236, %v246
    %v249 = vsub.f32 %v237, %v247
    %v250 = vmul.f32 %v248, %v248
    %v251 = vmul.f32 %v249, %v249
    %v252 = vsel %vm38, %v250, 0.0
    %253 = vadd.xlane.f32.xlu0 %v252
    %v254 = vpop.xlane.xlu0 %253
    %v255 = vsel %vm38, %v251, 0.0
    %256 = vadd.xlane.f32.xlu0 %v255
    %v257 = vpop.xlane.xlu0 %256
    %v258 = vmul.f32 %v254, %v70
    %v259 = vmul.f32 %v257, %v70
    %v260 = vrsqrt.pop %v258
    %v261 = vmul.f32 %v260, %v258
    %v262 = vmul.f32 %v261, %v260
    %v263 = vmul.f32 0.5, %v262
    %v264 = vsub.f32 1.5, %v263
    %v265 = vmul.f32 %v260, %v264
    %v266 = vmul.f32 %v258, %v265
    %vm267 = vcmp.eq.f32.partialorder %v258, inf
    %v268 = vsel %vm267, %v258, %v266
    %vm269 = vcmp.eq.f32.partialorder %v258, 0.0
    %v270 = vand.u32 %v258, 2147483648
    %v271 = vsel %vm269, %v270, %v268
    %v272 = vrsqrt.pop %v259
    %v273 = vmul.f32 %v272, %v259
    %v274 = vmul.f32 %v273, %v272
    %v275 = vmul.f32 0.5, %v274
    %v276 = vsub.f32 1.5, %v275
    %v277 = vmul.f32 %v272, %v276
    %v278 = vmul.f32 %v259, %v277
    %vm279 = vcmp.eq.f32.partialorder %v259, inf
    %v280 = vsel %vm279, %v259, %v278
    %vm281 = vcmp.eq.f32.partialorder %v259, 0.0
    %v282 = vand.u32 %v259, 2147483648
    %v283 = vsel %vm281, %v282, %v280
    %v284 = vadd.f32 %v271, 1e-06
    %v285 = vadd.f32 %v283, 1e-06
    %v286 = vrcp.pop %v284
    %v287 = vmul.f32 %v284, %v286
    %v288 = vsub.f32 1.0, %v287
    %v289 = vmul.f32 %v286, %v288
    %v290 = vadd.f32 %v286, %v289
    %vm291 = vweird.f32 %v284
    %vm292 = vweird.f32 %v286
    %vm293 = vmor %vm291, %vm292
    %v294 = vsel %vm293, %v286, %v290
    %v295 = vand.u32 2147483647, %v284
    %vm296 = vcmp.eq.f32.partialorder %v295, 8.507059e+37
    %v297 = vand.u32 %v284, 2147483648
    %v298 = vor.u32 1.1754944e-38, %v297
    %v299 = vsel %vm296, %v298, %v294
    %v300 = vrcp.pop %v285
    %v301 = vmul.f32 %v285, %v300
    %v302 = vsub.f32 1.0, %v301
    %v303 = vmul.f32 %v300, %v302
    %v304 = vadd.f32 %v300, %v303
    %vm305 = vweird.f32 %v285
    %vm306 = vweird.f32 %v300
    %vm307 = vmor %vm305, %vm306
    %v308 = vsel %vm307, %v300, %v304
    %v309 = vand.u32 2147483647, %v285
    %vm310 = vcmp.eq.f32.partialorder %v309, 8.507059e+37
    %v311 = vand.u32 %v285, 2147483648
    %v312 = vor.u32 1.1754944e-38, %v311
    %v313 = vsel %vm310, %v312, %v308
    %v315 = vperm.slane %v238, 0
    %v317 = vmul.f32 %v315, %v248
    %v318 = vmul.f32 %v315, %v249
    %v319 = vmul.f32 %v317, %v299
    %v320 = vmul.f32 %v318, %v313
    %v322 = vperm.slane %v239, 0
    %v324 = vadd.f32 %v319, %v322
    %v325 = vadd.f32 %v320, %v322
    %326 = vst.msk [vmem:[#allocation2] sm:$0xff] %vm38, %v324
    %327 = vst.msk [vmem:[#allocation2 + $0x8] sm:$0xff] %vm38, %v325
    // Predicated region
    $region38: #{decoder_forward.11} parent=1 // pred_check
      _
    $region39: #{decoder_forward.11} parent=1 // pred_check_branch
      %329 = sbr.rel (0) target = $region41
    $region40: #{decoder_forward.11} parent=1 // pred_region
      %331 = vsyncadd [#allocation3], 0
      %s332 = sshll.u32 [#allocation2], 4
      %s333 = int_to_ptr.vmem [resolvable:$true] %s332
      %s334 = sshll.u32 %s9, 4
      %s335 = int_to_ptr.hbm [resolvable:$true] %s334
      %340 = dma.vmem_to_hbm [thread:$0]  %s333, 256, %s335, [#allocation3], 128, 128, 8
    $region41: #{decoder_forward.11} parent=1 // pred_fallthru
      _
    // Predicated region
    $region42: #{decoder_forward.11} parent=1 // pred_check
      _
    $region43: #{decoder_forward.11} parent=1 // pred_check_branch
      %342 = sbr.rel (0) target = $region45
    $region44: #{decoder_forward.11} parent=1 // pred_region
      %344 = dma.done [#allocation3], 256
    $region45: #{decoder_forward.11} parent=1 // pred_fallthru
      _
    %345 = vsyncpa [#allocation3], 1

// kernel: decoder_forward.10
$region0: #{decoder_forward.10}
  #allocation0 [shape = 'u32[]', space=smem, size = 0x4, offset = 0x4, fixed_abs, tag = 'smem constant byte address 0x4 - core index']
  #allocation1 [shape = 'u32[72,128]{1,0:T(1,128)}', space=vmem, size = 0x9000, scoped, tag = 'internal scratch']
  %s0 = inlined_call_operand.vmem [shape: f32[2,8,32], index: 0, kind: input, shape index: {}]
  %s1 = inlined_call_operand.vmem [shape: f32[2,8,32], index: 1, kind: input, shape index: {}]
  %s2 = inlined_call_operand.vmem [shape: f32[2,1,8], index: 2, kind: input, shape index: {}]
  %s3 = inlined_call_operand.hbm [shape: f32[1,32], index: 3, kind: input, shape index: {}]
  %s4 = inlined_call_operand.hbm [shape: f32[1,32], index: 4, kind: input, shape index: {}]
  %s5 = inlined_call_operand.hbm [shape: bf16[32,32], index: 5, kind: input, shape index: {}]
  %s6 = inlined_call_operand.hbm [shape: f32[1,32], index: 6, kind: input, shape index: {}]
  %s7 = inlined_call_operand.hbm [shape: bf16[32,64], index: 7, kind: input, shape index: {}]
  %s8 = inlined_call_operand.hbm [shape: f32[1,64], index: 8, kind: input, shape index: {}]
  %s9 = inlined_call_operand.hbm [shape: bf16[32,32], index: 9, kind: input, shape index: {}]
  %s10 = inlined_call_operand.hbm [shape: f32[1,32], index: 10, kind: input, shape index: {}]
  %s11 = inlined_call_operand.vmem [shape: f32[2,8,32], index: 11, kind: output, shape index: {}]
  %s12 = sld [smem:[#allocation0]]
  $region109: #{decoder_forward.10} parent=0
    _
  %s14 = ssub.s32 1, %s12
  %s15 = scalar_select 0, %s14, %s12
  $region1: #{decoder_forward.10} parent=0
    #allocation2 [shape = 'u8[512]{0}', space=vmem, size = 0x400, scoped, tag = 'input window, operand 3, single buffered']
    #allocation3 [shape = 's32[2]{0}', space=sflag, size = 0x8, scoped, tag = 'scoped memory for decoder_forward.10']
    #allocation4 [shape = 'u8[512]{0}', space=vmem, size = 0x400, scoped, tag = 'input window, operand 4, single buffered']
    #allocation5 [shape = 's32[1]{0}', space=sflag, size = 0x4, scoped, tag = 'scoped memory for decoder_forward.10']
    #allocation6 [shape = 'u8[8192]{0}', space=vmem, size = 0x2000, scoped, tag = 'input window, operand 5, single buffered']
    #allocation7 [shape = 'u8[512]{0}', space=vmem, size = 0x400, scoped, tag = 'input window, operand 6, single buffered']
    #allocation8 [shape = 's32[1]{0}', space=sflag, size = 0x4, scoped, tag = 'scoped memory for decoder_forward.10']
    #allocation9 [shape = 'u8[8192]{0}', space=vmem, size = 0x2000, scoped, tag = 'input window, operand 7, single buffered']
    #allocation10 [shape = 'u8[512]{0}', space=vmem, size = 0x400, scoped, tag = 'input window, operand 8, single buffered']
    #allocation11 [shape = 's32[1]{0}', space=sflag, size = 0x4, scoped, tag = 'scoped memory for decoder_forward.10']
    #allocation12 [shape = 'u8[8192]{0}', space=vmem, size = 0x2000, scoped, tag = 'input window, operand 9, single buffered']
    #allocation13 [shape = 'u8[512]{0}', space=vmem, size = 0x400, scoped, tag = 'input window, operand 10, single buffered']
    #allocation14 [shape = 's32[1]{0}', space=sflag, size = 0x4, scoped, tag = 'scoped memory for decoder_forward.10']
    %16 = vsyncpa [#allocation3], 0
    %17 = vsyncpa [#allocation5], 0
    %18 = vsyncpa [#allocation8], 0
    %19 = vsyncpa [#allocation11], 0
    %20 = vsyncpa [#allocation14], 0
    loop: start=0, step=1, limit=4
    $region2: #{decoder_forward.10} parent=1 // loop_pre_header
      _
    $region3: #{decoder_forward.10} parent=1 // loop_header
      %s22 = sphi 0, %s26
      %p23 = scmp.ge.s32.totalorder %s22, 4
      %s29 = sphi 0, %s41
      %s30 = sphi 0, %s37
      %s31 = sphi 0, %s29
      %s32 = sphi 0, %s30
      %s33 = sphi 0, %s31
      %s34 = sphi 0, %s32
      %s44 = sphi 0, %s46
      %s47 = sphi 0, %s44
      %s48 = sphi 0, %s47
      %s64 = sphi 0, %s48
      %s70 = sphi 0, %s72
      %s73 = sphi 0, %s70
      %s74 = sphi 0, %s73
      %s90 = sphi 0, %s74
      %s96 = sphi 0, %s98
      %s99 = sphi 0, %s96
      %s100 = sphi 0, %s99
      %s116 = sphi 0, %s100
      %s120 = sphi 0, %s120
      %s122 = sphi 0, %s120
      %s123 = sphi 0, %s122
      %s137 = sphi 0, %s123
      %s141 = sphi 0, %s141
      %s143 = sphi 0, %s141
      %s144 = sphi 0, %s143
      %s158 = sphi 0, %s144
      %s162 = sphi 0, %s162
      %s164 = sphi 0, %s162
      %s165 = sphi 0, %s164
      %s179 = sphi 0, %s165
      %s183 = sphi 0, %s183
      %s185 = sphi 0, %s183
      %s186 = sphi 0, %s185
      %s200 = sphi 0, %s186
      %s204 = sphi 0, %s204
      %s206 = sphi 0, %s204
      %s207 = sphi 0, %s206
      %s221 = sphi 0, %s207
      %s225 = sphi 0, %s225
      %s227 = sphi 0, %s225
      %s228 = sphi 0, %s227
      %s242 = sphi 0, %s228
      %s246 = sphi 0, %s246
      %s248 = sphi 0, %s246
      %s249 = sphi 0, %s248
      %s263 = sphi 0, %s249
      %s267 = sphi 0, %s267
      %s269 = sphi 0, %s267
      %s270 = sphi 0, %s269
      %s284 = sphi 0, %s270
      %s292 = sphi 0, %s294
      %s295 = sphi 0, %s292
      %s296 = sphi 0, %s295
      %s312 = sphi 0, %s296
    $region4: #{decoder_forward.10} parent=1 // loop_header_branch
      %25 = sbr.rel (%p23) target = $region8
    $region5: #{decoder_forward.10} parent=1 // loop_body
      %s27 = ssub.s32 %s22, 1
      %s28 = ssub.s32 %s22, 2
      %s35 = sadd.s32 1, %s30
      %p36 = scmp.ge.s32.totalorder %s35, 1
      %s37 = scalar_select %p36, 0, %s35
      %s38 = sadd.s32 1, %s29
      %s39 = scalar_select %p36, %s38, %s29
      %p40 = scmp.ge.s32.totalorder %s39, 2
      %s41 = scalar_select %p40, 0, %s39
      %s42 = ssub.s32 %s29, %s41
      %p43 = scmp.eq.s32.totalorder %s42, 0
      %s45 = sadd.s32 %s44, 1
      %s46 = scalar_select %p43, %s44, %s45
      %p49 = pneg %p43
      %p50 = scmp.eq.s32.totalorder %s22, 1
      %p51 = por %p49, %p50
      %p52 = scmp.ne.s32.totalorder %s44, %s47
      %p53 = scmp.eq.s32.totalorder %s22, 0
      %p54 = por %p52, %p53
      %p55 = scmp.ne.s32.totalorder %s44, %s47
      %p56 = scmp.eq.s32.totalorder %s27, 1
      %p57 = por %p55, %p56
      %p58 = scmp.ne.s32.totalorder %s47, %s48
      %p59 = scmp.eq.s32.totalorder %s27, 0
      %p60 = por %p58, %p59
      %p61 = scmp.ne.s32.totalorder %s47, %s48
      %p62 = scmp.eq.s32.totalorder %s28, 1
      %p63 = por %p61, %p62
      %p65 = scmp.ne.s32.totalorder %s48, %s64
      %p66 = scmp.eq.s32.totalorder %s28, 0
      %p67 = por %p65, %p66
      %s68 = ssub.s32 %s29, %s41
      %p69 = scmp.eq.s32.totalorder %s68, 0
      %s71 = sadd.s32 %s70, 1
      %s72 = scalar_select %p69, %s70, %s71
      %p75 = pneg %p69
      %p76 = scmp.eq.s32.totalorder %s22, 1
      %p77 = por %p75, %p76
      %p78 = scmp.ne.s32.totalorder %s70, %s73
      %p79 = scmp.eq.s32.totalorder %s22, 0
      %p80 = por %p78, %p79
      %p81 = scmp.ne.s32.totalorder %s70, %s73
      %p82 = scmp.eq.s32.totalorder %s27, 1
      %p83 = por %p81, %p82
      %p84 = scmp.ne.s32.totalorder %s73, %s74
      %p85 = scmp.eq.s32.totalorder %s27, 0
      %p86 = por %p84, %p85
      %p87 = scmp.ne.s32.totalorder %s73, %s74
      %p88 = scmp.eq.s32.totalorder %s28, 1
      %p89 = por %p87, %p88
      %p91 = scmp.ne.s32.totalorder %s74, %s90
      %p92 = scmp.eq.s32.totalorder %s28, 0
      %p93 = por %p91, %p92
      %s94 = ssub.s32 %s29, %s41
      %p95 = scmp.eq.s32.totalorder %s94, 0
      %s97 = sadd.s32 %s96, 1
      %s98 = scalar_select %p95, %s96, %s97
      %p101 = pneg %p95
      %p102 = scmp.eq.s32.totalorder %s22, 1
      %p103 = por %p101, %p102
      %p104 = scmp.ne.s32.totalorder %s96, %s99
      %p105 = scmp.eq.s32.totalorder %s22, 0
      %p106 = por %p104, %p105
      %p107 = scmp.ne.s32.totalorder %s96, %s99
      %p108 = scmp.eq.s32.totalorder %s27, 1
      %p109 = por %p107, %p108
      %p110 = scmp.ne.s32.totalorder %s99, %s100
      %p111 = scmp.eq.s32.totalorder %s27, 0
      %p112 = por %p110, %p111
      %p113 = scmp.ne.s32.totalorder %s99, %s100
      %p114 = scmp.eq.s32.totalorder %s28, 1
      %p115 = por %p113, %p114
      %p117 = scmp.ne.s32.totalorder %s100, %s116
      %p118 = scmp.eq.s32.totalorder %s28, 0
      %p119 = por %p117, %p118
      %s121 = sadd.s32 %s120, 1
      %p124 = scmp.eq.s32.totalorder %s22, 1
      %p125 = scmp.ne.s32.totalorder %s120, %s122
      %p126 = scmp.eq.s32.totalorder %s22, 0
      %p127 = por %p125, %p126
      %p128 = scmp.ne.s32.totalorder %s120, %s122
      %p129 = scmp.eq.s32.totalorder %s27, 1
      %p130 = por %p128, %p129
      %p131 = scmp.ne.s32.totalorder %s122, %s123
      %p132 = scmp.eq.s32.totalorder %s27, 0
      %p133 = por %p131, %p132
      %p134 = scmp.ne.s32.totalorder %s122, %s123
      %p135 = scmp.eq.s32.totalorder %s28, 1
      %p136 = por %p134, %p135
      %p138 = scmp.ne.s32.totalorder %s123, %s137
      %p139 = scmp.eq.s32.totalorder %s28, 0
      %p140 = por %p138, %p139
      %s142 = sadd.s32 %s141, 1
      %p145 = scmp.eq.s32.totalorder %s22, 1
      %p146 = scmp.ne.s32.totalorder %s141, %s143
      %p147 = scmp.eq.s32.totalorder %s22, 0
      %p148 = por %p146, %p147
      %p149 = scmp.ne.s32.totalorder %s141, %s143
      %p150 = scmp.eq.s32.totalorder %s27, 1
      %p151 = por %p149, %p150
      %p152 = scmp.ne.s32.totalorder %s143, %s144
      %p153 = scmp.eq.s32.totalorder %s27, 0
      %p154 = por %p152, %p153
      %p155 = scmp.ne.s32.totalorder %s143, %s144
      %p156 = scmp.eq.s32.totalorder %s28, 1
      %p157 = por %p155, %p156
      %p159 = scmp.ne.s32.totalorder %s144, %s158
      %p160 = scmp.eq.s32.totalorder %s28, 0
      %p161 = por %p159, %p160
      %s163 = sadd.s32 %s162, 1
      %p166 = scmp.eq.s32.totalorder %s22, 1
      %p167 = scmp.ne.s32.totalorder %s162, %s164
      %p168 = scmp.eq.s32.totalorder %s22, 0
      %p169 = por %p167, %p168
      %p170 = scmp.ne.s32.totalorder %s162, %s164
      %p171 = scmp.eq.s32.totalorder %s27, 1
      %p172 = por %p170, %p171
      %p173 = scmp.ne.s32.totalorder %s164, %s165
      %p174 = scmp.eq.s32.totalorder %s27, 0
      %p175 = por %p173, %p174
      %p176 = scmp.ne.s32.totalorder %s164, %s165
      %p177 = scmp.eq.s32.totalorder %s28, 1
      %p178 = por %p176, %p177
      %p180 = scmp.ne.s32.totalorder %s165, %s179
      %p181 = scmp.eq.s32.totalorder %s28, 0
      %p182 = por %p180, %p181
      %s184 = sadd.s32 %s183, 1
      %p187 = scmp.eq.s32.totalorder %s22, 1
      %p188 = scmp.ne.s32.totalorder %s183, %s185
      %p189 = scmp.eq.s32.totalorder %s22, 0
      %p190 = por %p188, %p189
      %p191 = scmp.ne.s32.totalorder %s183, %s185
      %p192 = scmp.eq.s32.totalorder %s27, 1
      %p193 = por %p191, %p192
      %p194 = scmp.ne.s32.totalorder %s185, %s186
      %p195 = scmp.eq.s32.totalorder %s27, 0
      %p196 = por %p194, %p195
      %p197 = scmp.ne.s32.totalorder %s185, %s186
      %p198 = scmp.eq.s32.totalorder %s28, 1
      %p199 = por %p197, %p198
      %p201 = scmp.ne.s32.totalorder %s186, %s200
      %p202 = scmp.eq.s32.totalorder %s28, 0
      %p203 = por %p201, %p202
      %s205 = sadd.s32 %s204, 1
      %p208 = scmp.eq.s32.totalorder %s22, 1
      %p209 = scmp.ne.s32.totalorder %s204, %s206
      %p210 = scmp.eq.s32.totalorder %s22, 0
      %p211 = por %p209, %p210
      %p212 = scmp.ne.s32.totalorder %s204, %s206
      %p213 = scmp.eq.s32.totalorder %s27, 1
      %p214 = por %p212, %p213
      %p215 = scmp.ne.s32.totalorder %s206, %s207
      %p216 = scmp.eq.s32.totalorder %s27, 0
      %p217 = por %p215, %p216
      %p218 = scmp.ne.s32.totalorder %s206, %s207
      %p219 = scmp.eq.s32.totalorder %s28, 1
      %p220 = por %p218, %p219
      %p222 = scmp.ne.s32.totalorder %s207, %s221
      %p223 = scmp.eq.s32.totalorder %s28, 0
      %p224 = por %p222, %p223
      %s226 = sadd.s32 %s225, 1
      %p229 = scmp.eq.s32.totalorder %s22, 1
      %p230 = scmp.ne.s32.totalorder %s225, %s227
      %p231 = scmp.eq.s32.totalorder %s22, 0
      %p232 = por %p230, %p231
      %p233 = scmp.ne.s32.totalorder %s225, %s227
      %p234 = scmp.eq.s32.totalorder %s27, 1
      %p235 = por %p233, %p234
      %p236 = scmp.ne.s32.totalorder %s227, %s228
      %p237 = scmp.eq.s32.totalorder %s27, 0
      %p238 = por %p236, %p237
      %p239 = scmp.ne.s32.totalorder %s227, %s228
      %p240 = scmp.eq.s32.totalorder %s28, 1
      %p241 = por %p239, %p240
      %p243 = scmp.ne.s32.totalorder %s228, %s242
      %p244 = scmp.eq.s32.totalorder %s28, 0
      %p245 = por %p243, %p244
      %s247 = sadd.s32 %s246, 1
      %p250 = scmp.eq.s32.totalorder %s22, 1
      %p251 = scmp.ne.s32.totalorder %s246, %s248
      %p252 = scmp.eq.s32.totalorder %s22, 0
      %p253 = por %p251, %p252
      %p254 = scmp.ne.s32.totalorder %s246, %s248
      %p255 = scmp.eq.s32.totalorder %s27, 1
      %p256 = por %p254, %p255
      %p257 = scmp.ne.s32.totalorder %s248, %s249
      %p258 = scmp.eq.s32.totalorder %s27, 0
      %p259 = por %p257, %p258
      %p260 = scmp.ne.s32.totalorder %s248, %s249
      %p261 = scmp.eq.s32.totalorder %s28, 1
      %p262 = por %p260, %p261
      %p264 = scmp.ne.s32.totalorder %s249, %s263
      %p265 = scmp.eq.s32.totalorder %s28, 0
      %p266 = por %p264, %p265
      %s268 = sadd.s32 %s267, 1
      %p271 = scmp.eq.s32.totalorder %s22, 1
      %p272 = scmp.ne.s32.totalorder %s267, %s269
      %p273 = scmp.eq.s32.totalorder %s22, 0
      %p274 = por %p272, %p273
      %p275 = scmp.ne.s32.totalorder %s267, %s269
      %p276 = scmp.eq.s32.totalorder %s27, 1
      %p277 = por %p275, %p276
      %p278 = scmp.ne.s32.totalorder %s269, %s270
      %p279 = scmp.eq.s32.totalorder %s27, 0
      %p280 = por %p278, %p279
      %p281 = scmp.ne.s32.totalorder %s269, %s270
      %p282 = scmp.eq.s32.totalorder %s28, 1
      %p283 = por %p281, %p282
      %p285 = scmp.ne.s32.totalorder %s270, %s284
      %p286 = scmp.eq.s32.totalorder %s28, 0
      %p287 = por %p285, %p286
      %s288 = ssub.s32 %s29, %s41
      %s289 = ssub.s32 %s30, %s37
      %s290 = sor.u32 %s288, %s289
      %p291 = scmp.eq.s32.totalorder %s290, 0
      %s293 = sadd.s32 %s292, 1
      %s294 = scalar_select %p291, %s292, %s293
      %p297 = pneg %p291
      %p298 = scmp.eq.s32.totalorder %s22, 1
      %p299 = por %p297, %p298
      %p300 = scmp.ne.s32.totalorder %s292, %s295
      %p301 = scmp.eq.s32.totalorder %s22, 0
      %p302 = por %p300, %p301
      %p303 = scmp.ne.s32.totalorder %s292, %s295
      %p304 = scmp.eq.s32.totalorder %s27, 1
      %p305 = por %p303, %p304
      %p306 = scmp.ne.s32.totalorder %s295, %s296
      %p307 = scmp.eq.s32.totalorder %s27, 0
      %p308 = por %p306, %p307
      %p309 = scmp.ne.s32.totalorder %s295, %s296
      %p310 = scmp.eq.s32.totalorder %s28, 1
      %p311 = por %p309, %p310
      %p313 = scmp.ne.s32.totalorder %s296, %s312
      %p314 = scmp.eq.s32.totalorder %s28, 0
      %p315 = por %p313, %p314
      %p316 = scmp.le.s32.totalorder 1, %s22
      %p317 = scmp.lt.s32.totalorder %s22, 3
      %p318 = pnand %p316, %p317
      %p319 = pneg %p318
      // Predicated region
      $region9: #{decoder_forward.10} parent=5 // pred_check
        _
      $region10: #{decoder_forward.10} parent=5 // pred_check_branch
        %321 = sbr.rel (%p318) target = $region12
      $region11: #{decoder_forward.10} parent=5 // pred_region
        %s322 = ssub.s32 %s22, 1
        // Predicated region
        $region13: #{decoder_forward.10} parent=11 // pred_check
          %p323 = pneg %p133
        $region14: #{decoder_forward.10} parent=11 // pred_check_branch
          %325 = sbr.rel (%p323) target = $region16
        $region15: #{decoder_forward.10} parent=11 // pred_region
          %327 = vsyncadd [#allocation3], 0
          %s329 = sshll.u32 %s3, 4
          %s330 = int_to_ptr.hbm [resolvable:$true] %s329
          %s331 = sshll.u32 [#allocation2], 4
          %s332 = int_to_ptr.vmem [resolvable:$true] %s331
          %334 = dma.hbm_to_vmem [thread:$0]  %s330, 16, %s332, [#allocation3]
        $region16: #{decoder_forward.10} parent=11 // pred_fallthru
          _
        // Predicated region
        $region17: #{decoder_forward.10} parent=11 // pred_check
          %p335 = pneg %p154
        $region18: #{decoder_forward.10} parent=11 // pred_check_branch
          %337 = sbr.rel (%p335) target = $region20
        $region19: #{decoder_forward.10} parent=11 // pred_region
          %339 = vsyncadd [#allocation5], 0
          %s341 = sshll.u32 %s4, 4
          %s342 = int_to_ptr.hbm [resolvable:$true] %s341
          %s343 = sshll.u32 [#allocation4], 4
          %s344 = int_to_ptr.vmem [resolvable:$true] %s343
          %346 = dma.hbm_to_vmem [thread:$0]  %s342, 16, %s344, [#allocation5]
        $region20: #{decoder_forward.10} parent=11 // pred_fallthru
          _
        // Predicated region
        $region21: #{decoder_forward.10} parent=11 // pred_check
          %p347 = pneg %p175
        $region22: #{decoder_forward.10} parent=11 // pred_check_branch
          %349 = sbr.rel (%p347) target = $region24
        $region23: #{decoder_forward.10} parent=11 // pred_region
          %351 = vsyncadd [#allocation5], 0
          %s352 = sshll.u32 %s5, 4
          %s353 = int_to_ptr.hbm [resolvable:$true] %s352
          %s354 = sshll.u32 [#allocation6], 4
          %s355 = int_to_ptr.vmem [resolvable:$true] %s354
          %360 = dma.hbm_to_vmem [thread:$0]  %s353, 256, %s355, [#allocation5], 64, 64, 4
        $region24: #{decoder_forward.10} parent=11 // pred_fallthru
          _
        // Predicated region
        $region25: #{decoder_forward.10} parent=11 // pred_check
          %p361 = pneg %p196
        $region26: #{decoder_forward.10} parent=11 // pred_check_branch
          %363 = sbr.rel (%p361) target = $region28
        $region27: #{decoder_forward.10} parent=11 // pred_region
          %365 = vsyncadd [#allocation8], 0
          %s367 = sshll.u32 %s6, 4
          %s368 = int_to_ptr.hbm [resolvable:$true] %s367
          %s369 = sshll.u32 [#allocation7], 4
          %s370 = int_to_ptr.vmem [resolvable:$true] %s369
          %372 = dma.hbm_to_vmem [thread:$0]  %s368, 16, %s370, [#allocation8]
        $region28: #{decoder_forward.10} parent=11 // pred_fallthru
          _
        // Predicated region
        $region29: #{decoder_forward.10} parent=11 // pred_check
          %p373 = pneg %p217
        $region30: #{decoder_forward.10} parent=11 // pred_check_branch
          %375 = sbr.rel (%p373) target = $region32
        $region31: #{decoder_forward.10} parent=11 // pred_region
          %377 = vsyncadd [#allocation8], 0
          %s378 = sshll.u32 %s7, 4
          %s379 = int_to_ptr.hbm [resolvable:$true] %s378
          %s380 = sshll.u32 [#allocation9], 4
          %s381 = int_to_ptr.vmem [resolvable:$true] %s380
          %386 = dma.hbm_to_vmem [thread:$0]  %s379, 256, %s381, [#allocation8], 64, 64, 4
        $region32: #{decoder_forward.10} parent=11 // pred_fallthru
          _
        // Predicated region
        $region33: #{decoder_forward.10} parent=11 // pred_check
          %p387 = pneg %p238
        $region34: #{decoder_forward.10} parent=11 // pred_check_branch
          %389 = sbr.rel (%p387) target = $region36
        $region35: #{decoder_forward.10} parent=11 // pred_region
          %391 = vsyncadd [#allocation11], 0
          %s393 = sshll.u32 %s8, 4
          %s394 = int_to_ptr.hbm [resolvable:$true] %s393
          %s395 = sshll.u32 [#allocation10], 4
          %s396 = int_to_ptr.vmem [resolvable:$true] %s395
          %398 = dma.hbm_to_vmem [thread:$0]  %s394, 16, %s396, [#allocation11]
        $region36: #{decoder_forward.10} parent=11 // pred_fallthru
          _
        // Predicated region
        $region37: #{decoder_forward.10} parent=11 // pred_check
          %p399 = pneg %p259
        $region38: #{decoder_forward.10} parent=11 // pred_check_branch
          %401 = sbr.rel (%p399) target = $region40
        $region39: #{decoder_forward.10} parent=11 // pred_region
          %403 = vsyncadd [#allocation11], 0
          %s404 = sshll.u32 %s9, 4
          %s405 = int_to_ptr.hbm [resolvable:$true] %s404
          %s406 = sshll.u32 [#allocation12], 4
          %s407 = int_to_ptr.vmem [resolvable:$true] %s406
          %412 = dma.hbm_to_vmem [thread:$0]  %s405, 256, %s407, [#allocation11], 64, 64, 4
        $region40: #{decoder_forward.10} parent=11 // pred_fallthru
          _
        // Predicated region
        $region41: #{decoder_forward.10} parent=11 // pred_check
          %p413 = pneg %p280
        $region42: #{decoder_forward.10} parent=11 // pred_check_branch
          %415 = sbr.rel (%p413) target = $region44
        $region43: #{decoder_forward.10} parent=11 // pred_region
          %417 = vsyncadd [#allocation14], 0
          %s419 = sshll.u32 %s10, 4
          %s420 = int_to_ptr.hbm [resolvable:$true] %s419
          %s421 = sshll.u32 [#allocation13], 4
          %s422 = int_to_ptr.vmem [resolvable:$true] %s421
          %424 = dma.hbm_to_vmem [thread:$0]  %s420, 16, %s422, [#allocation14]
        $region44: #{decoder_forward.10} parent=11 // pred_fallthru
          _
      $region12: #{decoder_forward.10} parent=5 // pred_fallthru
        _
      %p425 = scmp.lt.s32.totalorder %s22, 2
      // Predicated region
      $region45: #{decoder_forward.10} parent=5 // pred_check
        %p426 = pneg %p425
      $region46: #{decoder_forward.10} parent=5 // pred_check_branch
        %428 = sbr.rel (%p426) target = $region48
      $region47: #{decoder_forward.10} parent=5 // pred_region
        // Predicated region
        $region49: #{decoder_forward.10} parent=47 // pred_check
          %p429 = pneg %p54
        $region50: #{decoder_forward.10} parent=47 // pred_check_branch
          %431 = sbr.rel (%p429) target = $region52
        $region51: #{decoder_forward.10} parent=47 // pred_region
          %p432 = scmp.lt.s32.totalorder %s29, 1
          %s433 = scalar_select %p432, %s29, 1
          %s434 = smul.addr %s433, 8
          %s435 = scalar_lea.vmem %s0, %s434
        $region52: #{decoder_forward.10} parent=47 // pred_fallthru
          _
        // Predicated region
        $region53: #{decoder_forward.10} parent=47 // pred_check
          %p436 = pneg %p80
        $region54: #{decoder_forward.10} parent=47 // pred_check_branch
          %438 = sbr.rel (%p436) target = $region56
        $region55: #{decoder_forward.10} parent=47 // pred_region
          %p439 = scmp.lt.s32.totalorder %s29, 1
          %s440 = scalar_select %p439, %s29, 1
          %s441 = smul.addr %s440, 8
          %s442 = scalar_lea.vmem %s1, %s441
        $region56: #{decoder_forward.10} parent=47 // pred_fallthru
          _
        // Predicated region
        $region57: #{decoder_forward.10} parent=47 // pred_check
          %p443 = pneg %p106
        $region58: #{decoder_forward.10} parent=47 // pred_check_branch
          %445 = sbr.rel (%p443) target = $region60
        $region59: #{decoder_forward.10} parent=47 // pred_region
          %p446 = scmp.lt.s32.totalorder %s29, 1
          %s447 = scalar_select %p446, %s29, 1
          %s448 = scalar_lea.vmem %s2, %s447
        $region60: #{decoder_forward.10} parent=47 // pred_fallthru
          _
      $region48: #{decoder_forward.10} parent=5 // pred_fallthru
        _
      %p449 = scmp.le.s32.totalorder 1, %s22
      %p450 = scmp.lt.s32.totalorder %s22, 3
      %p451 = pnand %p449, %p450
      %p452 = pneg %p451
      // Predicated region
      $region61: #{decoder_forward.10} parent=5 // pred_check
        _
      $region62: #{decoder_forward.10} parent=5 // pred_check_branch
        %454 = sbr.rel (%p451) target = $region64
      $region63: #{decoder_forward.10} parent=5 // pred_region
        %s455 = ssub.s32 %s22, 1
        // Predicated region
        $region65: #{decoder_forward.10} parent=63 // pred_check
          %p456 = pneg %p133
        $region66: #{decoder_forward.10} parent=63 // pred_check_branch
          %458 = sbr.rel (%p456) target = $region68
        $region67: #{decoder_forward.10} parent=63 // pred_region
          %460 = dma.done [#allocation3], 16
        $region68: #{decoder_forward.10} parent=63 // pred_fallthru
          _
        // Predicated region
        $region69: #{decoder_forward.10} parent=63 // pred_check
          %p461 = pneg %p154
        $region70: #{decoder_forward.10} parent=63 // pred_check_branch
          %463 = sbr.rel (%p461) target = $region72
        $region71: #{decoder_forward.10} parent=63 // pred_region
          %465 = dma.done [#allocation5], 16
        $region72: #{decoder_forward.10} parent=63 // pred_fallthru
          _
        // Predicated region
        $region73: #{decoder_forward.10} parent=63 // pred_check
          %p466 = pneg %p175
        $region74: #{decoder_forward.10} parent=63 // pred_check_branch
          %468 = sbr.rel (%p466) target = $region76
        $region75: #{decoder_forward.10} parent=63 // pred_region
          %470 = dma.done [#allocation5], 256
        $region76: #{decoder_forward.10} parent=63 // pred_fallthru
          _
        // Predicated region
        $region77: #{decoder_forward.10} parent=63 // pred_check
          %p471 = pneg %p196
        $region78: #{decoder_forward.10} parent=63 // pred_check_branch
          %473 = sbr.rel (%p471) target = $region80
        $region79: #{decoder_forward.10} parent=63 // pred_region
          %475 = dma.done [#allocation8], 16
        $region80: #{decoder_forward.10} parent=63 // pred_fallthru
          _
        // Predicated region
        $region81: #{decoder_forward.10} parent=63 // pred_check
          %p476 = pneg %p217
        $region82: #{decoder_forward.10} parent=63 // pred_check_branch
          %478 = sbr.rel (%p476) target = $region84
        $region83: #{decoder_forward.10} parent=63 // pred_region
          %480 = dma.done [#allocation8], 256
        $region84: #{decoder_forward.10} parent=63 // pred_fallthru
          _
        // Predicated region
        $region85: #{decoder_forward.10} parent=63 // pred_check
          %p481 = pneg %p238
        $region86: #{decoder_forward.10} parent=63 // pred_check_branch
          %483 = sbr.rel (%p481) target = $region88
        $region87: #{decoder_forward.10} parent=63 // pred_region
          %485 = dma.done [#allocation11], 16
        $region88: #{decoder_forward.10} parent=63 // pred_fallthru
          _
        // Predicated region
        $region89: #{decoder_forward.10} parent=63 // pred_check
          %p486 = pneg %p259
        $region90: #{decoder_forward.10} parent=63 // pred_check_branch
          %488 = sbr.rel (%p486) target = $region92
        $region91: #{decoder_forward.10} parent=63 // pred_region
          %490 = dma.done [#allocation11], 256
        $region92: #{decoder_forward.10} parent=63 // pred_fallthru
          _
        // Predicated region
        $region93: #{decoder_forward.10} parent=63 // pred_check
          %p491 = pneg %p280
        $region94: #{decoder_forward.10} parent=63 // pred_check_branch
          %493 = sbr.rel (%p491) target = $region96
        $region95: #{decoder_forward.10} parent=63 // pred_region
          %495 = dma.done [#allocation14], 16
        $region96: #{decoder_forward.10} parent=63 // pred_fallthru
          _
        %p496 = scmp.lt.s32.totalorder %s31, 1
        %s497 = scalar_select %p496, %s31, 1
        %s498 = smul.addr %s497, 8
        %s499 = scalar_lea.vmem %s0, %s498
        %p500 = pneg %p60
        %p501 = pneg %p57
        %p502 = scmp.lt.s32.totalorder %s31, 1
        %s503 = scalar_select %p502, %s31, 1
        %s504 = smul.addr %s503, 8
        %s505 = scalar_lea.vmem %s1, %s504
        %p506 = pneg %p86
        %p507 = pneg %p83
        %p508 = scmp.lt.s32.totalorder %s31, 1
        %s509 = scalar_select %p508, %s31, 1
        %s510 = scalar_lea.vmem %s2, %s509
        %p511 = pneg %p112
        %p512 = pneg %p109
        %p513 = pneg %p133
        %p514 = pneg %p130
        %p515 = pneg %p154
        %p516 = pneg %p151
        %p517 = pneg %p175
        %p518 = pneg %p172
        %p519 = pneg %p196
        %p520 = pneg %p193
        %p521 = pneg %p217
        %p522 = pneg %p214
        %p523 = pneg %p238
        %p524 = pneg %p235
        %p525 = pneg %p259
        %p526 = pneg %p256
        %p527 = pneg %p280
        %p528 = pneg %p277
        %p529 = pneg %p308
        %p530 = pneg %p305
        %p531 = scmp.lt.s32.totalorder %s31, 1
        %s532 = scalar_select %p531, %s31, 1
        %p533 = scmp.lt.s32.totalorder %s32, 0
        %s534 = scalar_select %p533, %s32, 0
        %s535 = sadd.s32 %s534, %s532
        %s536 = smul.addr %s535, 8
        %s537 = scalar_lea.vmem %s11, %s536
        %p538 = scmp.lt.s32.totalorder %s31, 1
        %s539 = scalar_select %p538, %s31, 1
        %s540 = smul.addr %s539, 8
        %s541 = scalar_lea.vmem %s0, %s540
        %p542 = scmp.lt.s32.totalorder %s31, 1
        %s543 = scalar_select %p542, %s31, 1
        %s544 = smul.addr %s543, 8
        %s545 = scalar_lea.vmem %s1, %s544
        %p546 = scmp.lt.s32.totalorder %s31, 1
        %s547 = scalar_select %p546, %s31, 1
        %s548 = scalar_lea.vmem %s2, %s547
        %p549 = scmp.lt.s32.totalorder %s31, 1
        %s550 = scalar_select %p549, %s31, 1
        %p551 = scmp.lt.s32.totalorder %s32, 0
        %s552 = scalar_select %p551, %s32, 0
        %s553 = sadd.s32 %s552, %s550
        %s554 = smul.addr %s553, 8
        %s555 = scalar_lea.vmem %s11, %s554
        %v557 = vld [vmem:[%s541] sm:$0xff]
        %v558 = vld [vmem:[#allocation2] sm:$0x1]
        %v559 = vld [vmem:[#allocation4] sm:$0x1]
        %vm560 = vcmask 261120
        %v561 = vsel %vm560, %v557, 0.0
        %562 = vadd.xlane.f32.xlu0 %v561
        %v563 = vpop.xlane.xlu0 %562
        %v564 = vrcp.pop 32.0
        %v565 = vmul.f32 32.0, %v564
        %v566 = vsub.f32 1.0, %v565
        %v567 = vmul.f32 %v564, %v566
        %v568 = vadd.f32 %v564, %v567
        %vm569 = vweird.f32 %v564
        %v570 = vsel %vm569, %v564, %v568
        %v571 = vmul.f32 %v563, %v570
        %v572 = vsub.f32 %v557, %v571
        %v573 = vmul.f32 %v572, %v572
        %v574 = vsel %vm560, %v573, 0.0
        %575 = vadd.xlane.f32.xlu0 %v574
        %v576 = vpop.xlane.xlu0 %575
        %v577 = vrcp.pop 31.0
        %v578 = vmul.f32 31.0, %v577
        %v579 = vsub.f32 1.0, %v578
        %v580 = vmul.f32 %v577, %v579
        %v581 = vadd.f32 %v577, %v580
        %vm582 = vweird.f32 %v577
        %v583 = vsel %vm582, %v577, %v581
        %v584 = vmul.f32 %v576, %v583
        %v585 = vrsqrt.pop %v584
        %v586 = vmul.f32 %v585, %v584
        %v587 = vmul.f32 %v586, %v585
        %v588 = vmul.f32 0.5, %v587
        %v589 = vsub.f32 1.5, %v588
        %v590 = vmul.f32 %v585, %v589
        %v591 = vmul.f32 %v584, %v590
        %vm592 = vcmp.eq.f32.partialorder %v584, inf
        %v593 = vsel %vm592, %v584, %v591
        %vm594 = vcmp.eq.f32.partialorder %v584, 0.0
        %v595 = vand.u32 %v584, 2147483648
        %v596 = vsel %vm594, %v595, %v593
        %v597 = vadd.f32 %v596, 1e-06
        %v598 = vrcp.pop %v597
        %v599 = vmul.f32 %v597, %v598
        %v600 = vsub.f32 1.0, %v599
        %v601 = vmul.f32 %v598, %v600
        %v602 = vadd.f32 %v598, %v601
        %vm603 = vweird.f32 %v597
        %vm604 = vweird.f32 %v598
        %vm605 = vmor %vm603, %vm604
        %v606 = vsel %vm605, %v598, %v602
        %v607 = vand.u32 2147483647, %v597
        %vm608 = vcmp.eq.f32.partialorder %v607, 8.507059e+37
        %v609 = vand.u32 %v597, 2147483648
        %v610 = vor.u32 1.1754944e-38, %v609
        %v611 = vsel %vm608, %v610, %v606
        %v613 = vperm.slane %v558, 0
        %v615 = vmul.f32 %v613, %v572
        %v616 = vmul.f32 %v615, %v611
        %v618 = vperm.slane %v559, 0
        %v620 = vadd.f32 %v616, %v618
        %v621 = vpack.c.bf16 %v620, %v620
        %v622 = vld [vmem:[#allocation6] sm:$0xf]
        %v623 = vld [vmem:[#allocation6 + $0x4] sm:$0xf]
        %v624 = vld [vmem:[#allocation6 + $0x8] sm:$0xf]
        %v625 = vld [vmem:[#allocation6 + $0xc] sm:$0xf]
        %v626 = vld [vmem:[#allocation7] sm:$0x1]
        %v628 = vperm.slane %v626, 0
        %v634 = vunpack.c.l.b16 %v622
        %v635 = vunpack.c.l.b16 %v623
        %v636 = vunpack.c.l.b16 %v624
        %v637 = vunpack.c.l.b16 %v625
        %v638 = vpack.c.b16 %v635, %v634
        %v639 = vpack.c.b16 %v637, %v636
        %v643 = vsel %vm560, %v621, 0
        %645 = vmatpush.bf16.msra.mxu0 0
        %646 = vmatpush.bf16.msra.mxu0 0
        %647 = vmatpush.bf16.msra.mxu0 0
        %648 = vmatpush.bf16.msra.mxu0 0
        %649 = vmatpush.bf16.msra.mxu0 0
        %650 = vmatpush.bf16.msra.mxu0 0
        %651 = vmatpush.bf16.msra.mxu0 %v639
        %652 = vmatpush.bf16.msra.mxu0 %v638
        %653 = vmatmul.bf16.gmra.mxu0 %v643
        %v654 = vpop.f32.mrf.mxu0
        %v655 = vadd.f32 %v628, %v654
        %v656 = vpop.f32.mrf.mxu0
        %657 = vdwg.mxu0
        %v658 = vmul.f32 %v655, 0.35355338
        %v659 = vld [vmem:[%s545] sm:$0xff]
        %v660 = vpack.c.bf16 %v659, %v659
        %v661 = vld [vmem:[#allocation9] sm:$0xf]
        %v662 = vld [vmem:[#allocation9 + $0x4] sm:$0xf]
        %v663 = vld [vmem:[#allocation9 + $0x8] sm:$0xf]
        %v664 = vld [vmem:[#allocation9 + $0xc] sm:$0xf]
        %v665 = vld [vmem:[#allocation10] sm:$0x1]
        %v667 = vperm.slane %v665, 0
        %v673 = vunpack.c.l.b16 %v661
        %v674 = vunpack.c.l.b16 %v662
        %v675 = vunpack.c.l.b16 %v663
        %v676 = vunpack.c.l.b16 %v664
        %v677 = vpack.c.b16 %v674, %v673
        %v678 = vpack.c.b16 %v676, %v675
        %v682 = vsel %vm560, %v660, 0
        %684 = vmatpush.bf16.msra.mxu0 0
        %685 = vmatpush.bf16.msra.mxu0 0
        %686 = vmatpush.bf16.msra.mxu0 0
        %687 = vmatpush.bf16.msra.mxu0 0
        %688 = vmatpush.bf16.msra.mxu0 0
        %689 = vmatpush.bf16.msra.mxu0 0
        %690 = vmatpush.bf16.msra.mxu0 %v678
        %691 = vmatpush.bf16.msra.mxu0 %v677
        %692 = vmatmul.bf16.gmra.mxu0 %v682
        %v693 = vpop.f32.mrf.mxu0
        %v694 = vadd.f32 %v667, %v693
        %v695 = vpop.f32.mrf.mxu0
        %696 = vdwg.mxu0
        %v697 = vld [vmem:[%s548] sm:$0x1]
        %vm698 = vcmp.eq.f32.partialorder %v697, 0.0
        %v699 = vsel %vm698, -1e+09, 0.0
        %701 = vrot.lane.b32.xlu0 %v658, 120
        %v702 = vpop.permute.xlu0 %701
        %704 = vrot.lane.b32.xlu0 %v658, 112
        %v705 = vpop.permute.xlu0 %704
        %707 = vrot.lane.b32.xlu0 %v658, 104
        %v708 = vpop.permute.xlu0 %707
        %v710 = vrot.slane %v705, 4
        %vm711 = vcmask 1047556
        %v712 = vsel %vm711, %v710, %v658
        %v713 = vrot.slane %v658, 4
        %v714 = vsel %vm711, %v705, %v713
        %v716 = vunpack.c.l.s4 1983009808
        %v717 = vunpack.c.0.s8 %v716
        %v718 = vperm.slane %v712, %v717
        %v720 = vunpack.c.l.s4 1983009808
        %v721 = vunpack.c.0.s8 %v720
        %v722 = vperm.slane %v714, %v721
        %v723 = vrot.slane %v708, 4
        %v724 = vsel %vm711, %v723, %v702
        %v725 = vrot.slane %v702, 4
        %v726 = vsel %vm711, %v708, %v725
        %v728 = vunpack.c.l.s4 1983009808
        %v729 = vunpack.c.0.s8 %v728
        %v730 = vperm.slane %v724, %v729
        %v732 = vunpack.c.l.s4 1983009808
        %v733 = vunpack.c.0.s8 %v732
        %v734 = vperm.slane %v726, %v733
        %v735 = vrot.slane %v730, 4
        %v736 = vsel %vm711, %v735, %v718
        %v737 = vrot.slane %v718, 4
        %v738 = vsel %vm711, %v730, %v737
        %v740 = vunpack.c.l.s4 1934713408
        %v741 = vunpack.c.0.s8 %v740
        %v742 = vperm.slane %v736, %v741
        %v744 = vunpack.c.l.s4 1934713408
        %v745 = vunpack.c.0.s8 %v744
        %v746 = vperm.slane %v738, %v745
        %v747 = vrot.slane %v734, 4
        %v748 = vsel %vm711, %v747, %v722
        %v749 = vrot.slane %v722, 4
        %v750 = vsel %vm711, %v734, %v749
        %v752 = vunpack.c.l.s4 1934713408
        %v753 = vunpack.c.0.s8 %v752
        %v754 = vperm.slane %v748, %v753
        %v756 = vunpack.c.l.s4 1934713408
        %v757 = vunpack.c.0.s8 %v756
        %v758 = vperm.slane %v750, %v757
        %v759 = vrot.slane %v742, 4
        %v760 = vsel %vm711, 0.0, %v759
        %v761 = vrot.slane %v746, 4
        %v762 = vsel %vm711, 0.0, %v761
        %v763 = vrot.slane %v754, 4
        %v764 = vsel %vm711, 0.0, %v763
        %v765 = vrot.slane %v758, 4
        %v766 = vsel %vm711, 0.0, %v765
        %v767 = vpack.c.bf16 %v742, %v742
        %v768 = vpack.c.bf16 %v760, %v760
        %v769 = vpack.c.bf16 %v746, %v746
        %v770 = vpack.c.bf16 %v762, %v762
        %v771 = vpack.c.bf16 %v754, %v754
        %v772 = vpack.c.bf16 %v764, %v764
        %v773 = vpack.c.bf16 %v758, %v758
        %v774 = vpack.c.bf16 %v766, %v766
        %776 = vrot.lane.b32.xlu0 %v694, 120
        %v777 = vpop.permute.xlu0 %776
        %779 = vrot.lane.b32.xlu0 %v694, 112
        %v780 = vpop.permute.xlu0 %779
        %782 = vrot.lane.b32.xlu0 %v694, 104
        %v783 = vpop.permute.xlu0 %782
        %v785 = vrot.slane %v780, 4
        %v786 = vsel %vm711, %v785, %v694
        %v787 = vrot.slane %v694, 4
        %v788 = vsel %vm711, %v780, %v787
        %v790 = vunpack.c.l.s4 1983009808
        %v791 = vunpack.c.0.s8 %v790
        %v792 = vperm.slane %v786, %v791
        %v794 = vunpack.c.l.s4 1983009808
        %v795 = vunpack.c.0.s8 %v794
        %v796 = vperm.slane %v788, %v795
        %v797 = vrot.slane %v783, 4
        %v798 = vsel %vm711, %v797, %v777
        %v799 = vrot.slane %v777, 4
        %v800 = vsel %vm711, %v783, %v799
        %v802 = vunpack.c.l.s4 1983009808
        %v803 = vunpack.c.0.s8 %v802
        %v804 = vperm.slane %v798, %v803
        %v806 = vunpack.c.l.s4 1983009808
        %v807 = vunpack.c.0.s8 %v806
        %v808 = vperm.slane %v800, %v807
        %v809 = vrot.slane %v804, 4
        %v810 = vsel %vm711, %v809, %v792
        %v811 = vrot.slane %v792, 4
        %v812 = vsel %vm711, %v804, %v811
        %v814 = vunpack.c.l.s4 1934713408
        %v815 = vunpack.c.0.s8 %v814
        %v816 = vperm.slane %v810, %v815
        %v818 = vunpack.c.l.s4 1934713408
        %v819 = vunpack.c.0.s8 %v818
        %v820 = vperm.slane %v812, %v819
        %v821 = vrot.slane %v808, 4
        %v822 = vsel %vm711, %v821, %v796
        %v823 = vrot.slane %v796, 4
        %v824 = vsel %vm711, %v808, %v823
        %v826 = vunpack.c.l.s4 1934713408
        %v827 = vunpack.c.0.s8 %v826
        %v828 = vperm.slane %v822, %v827
        %v830 = vunpack.c.l.s4 1934713408
        %v831 = vunpack.c.0.s8 %v830
        %v832 = vperm.slane %v824, %v831
        %v833 = vrot.slane %v816, 4
        %v834 = vsel %vm711, 0.0, %v833
        %v835 = vrot.slane %v820, 4
        %v836 = vsel %vm711, 0.0, %v835
        %v837 = vrot.slane %v828, 4
        %v838 = vsel %vm711, 0.0, %v837
        %v839 = vrot.slane %v832, 4
        %v840 = vsel %vm711, 0.0, %v839
        %v841 = vpack.c.bf16 %v816, %v816
        %v842 = vpack.c.bf16 %v834, %v834
        %v843 = vpack.c.bf16 %v820, %v820
        %v844 = vpack.c.bf16 %v836, %v836
        %v845 = vpack.c.bf16 %v828, %v828
        %v846 = vpack.c.bf16 %v838, %v838
        %v847 = vpack.c.bf16 %v832, %v832
        %v848 = vpack.c.bf16 %v840, %v840
        %849 = vrot.lane.b32.xlu0 %v694, 96
        %v850 = vpop.permute.xlu0 %849
        %851 = vrot.lane.b32.xlu0 %v777, 96
        %v852 = vpop.permute.xlu0 %851
        %853 = vrot.lane.b32.xlu0 %v780, 96
        %v854 = vpop.permute.xlu0 %853
        %855 = vrot.lane.b32.xlu0 %v783, 96
        %v856 = vpop.permute.xlu0 %855
        %v861 = vrot.slane %v854, 4
        %v862 = vsel %vm711, %v861, %v850
        %v863 = vrot.slane %v850, 4
        %v864 = vsel %vm711, %v854, %v863
        %v866 = vunpack.c.l.s4 1983009808
        %v867 = vunpack.c.0.s8 %v866
        %v868 = vperm.slane %v862, %v867
        %v870 = vunpack.c.l.s4 1983009808
        %v871 = vunpack.c.0.s8 %v870
        %v872 = vperm.slane %v864, %v871
        %v873 = vrot.slane %v856, 4
        %v874 = vsel %vm711, %v873, %v852
        %v875 = vrot.slane %v852, 4
        %v876 = vsel %vm711, %v856, %v875
        %v878 = vunpack.c.l.s4 1983009808
        %v879 = vunpack.c.0.s8 %v878
        %v880 = vperm.slane %v874, %v879
        %v882 = vunpack.c.l.s4 1983009808
        %v883 = vunpack.c.0.s8 %v882
        %v884 = vperm.slane %v876, %v883
        %v885 = vrot.slane %v880, 4
        %v886 = vsel %vm711, %v885, %v868
        %v887 = vrot.slane %v868, 4
        %v888 = vsel %vm711, %v880, %v887
        %v890 = vunpack.c.l.s4 1934713408
        %v891 = vunpack.c.0.s8 %v890
        %v892 = vperm.slane %v886, %v891
        %v894 = vunpack.c.l.s4 1934713408
        %v895 = vunpack.c.0.s8 %v894
        %v896 = vperm.slane %v888, %v895
        %v897 = vrot.slane %v884, 4
        %v898 = vsel %vm711, %v897, %v872
        %v899 = vrot.slane %v872, 4
        %v900 = vsel %vm711, %v884, %v899
        %v902 = vunpack.c.l.s4 1934713408
        %v903 = vunpack.c.0.s8 %v902
        %v904 = vperm.slane %v898, %v903
        %v906 = vunpack.c.l.s4 1934713408
        %v907 = vunpack.c.0.s8 %v906
        %v908 = vperm.slane %v900, %v907
        %v909 = vrot.slane %v892, 4
        %v910 = vsel %vm711, 0.0, %v909
        %v911 = vrot.slane %v896, 4
        %v912 = vsel %vm711, 0.0, %v911
        %v913 = vrot.slane %v904, 4
        %v914 = vsel %vm711, 0.0, %v913
        %v915 = vrot.slane %v908, 4
        %v916 = vsel %vm711, 0.0, %v915
        %v917 = vpack.c.bf16 %v892, %v892
        %v918 = vpack.c.bf16 %v910, %v910
        %v919 = vpack.c.bf16 %v896, %v896
        %v920 = vpack.c.bf16 %v912, %v912
        %v921 = vpack.c.bf16 %v904, %v904
        %v922 = vpack.c.bf16 %v914, %v914
        %v923 = vpack.c.bf16 %v908, %v908
        %v924 = vpack.c.bf16 %v916, %v916
        %v926 = vperm.slane %v699, 0
        %v928 = vrot.slane %v771, 4
        %vm929 = vcmask 1047556
        %v930 = vsel %vm929, %v928, %v767
        %v932 = vunpack.c.l.s4 1983009808
        %v933 = vunpack.c.0.s8 %v932
        %v934 = vperm.slane %v930, %v933
        %v935 = vrot.slane %v773, 4
        %v936 = vsel %vm929, %v935, %v769
        %v938 = vunpack.c.l.s4 1983009808
        %v939 = vunpack.c.0.s8 %v938
        %v940 = vperm.slane %v936, %v939
        %v941 = vrot.slane %v940, 4
        %v942 = vsel %vm929, %v941, %v934
        %v944 = vunpack.c.l.s4 1934713408
        %v945 = vunpack.c.0.s8 %v944
        %v946 = vperm.slane %v942, %v945
        %v947 = vrot.slane %v946, 4
        %v948 = vsel %vm929, 0, %v947
        %v949 = vrot.slane %v772, 4
        %v950 = vsel %vm929, %v949, %v768
        %v952 = vunpack.c.l.s4 1983009808
        %v953 = vunpack.c.0.s8 %v952
        %v954 = vperm.slane %v950, %v953
        %v955 = vrot.slane %v774, 4
        %v956 = vsel %vm929, %v955, %v770
        %v958 = vunpack.c.l.s4 1983009808
        %v959 = vunpack.c.0.s8 %v958
        %v960 = vperm.slane %v956, %v959
        %v961 = vrot.slane %v960, 4
        %v962 = vsel %vm929, %v961, %v954
        %v964 = vunpack.c.l.s4 1934713408
        %v965 = vunpack.c.0.s8 %v964
        %v966 = vperm.slane %v962, %v965
        %v967 = vrot.slane %v966, 4
        %v968 = vsel %vm929, 0, %v967
        %v971 = vpack.i.b16 %v966, %v946
        %v972 = vshrl.u32 %v946, 16
        %v973 = vshrl.u32 %v966, 16
        %v974 = vpack.i.b16 %v973, %v972
        %v977 = vpack.i.b16 %v968, %v948
        %v978 = vshrl.u32 %v948, 16
        %v979 = vshrl.u32 %v968, 16
        %v980 = vpack.i.b16 %v979, %v978
        %981 = vxpose.xlu0.c.b16.start [1/8] %v841, 128
        %982 = vxpose.xlu0.c.b16.cont [2/8] 0, 128
        %983 = vxpose.xlu0.c.b16.cont [3/8] 0, 128
        %984 = vxpose.xlu0.c.b16.cont [4/8] 0, 128
        %985 = vxpose.xlu0.c.b16.cont [5/8] 0, 128
        %986 = vxpose.xlu0.c.b16.cont [6/8] 0, 128
        %987 = vxpose.xlu0.c.b16.cont [7/8] 0, 128
        %988 = vxpose.xlu0.c.b16.end [8/8] 0, 128
        %v989 = vpop.trf.xlu0
        %v990 = vpop.trf.xlu0
        %v991 = vpop.trf.xlu0
        %v992 = vpop.trf.xlu0
        %v993 = vpop.trf.xlu0
        %v994 = vpop.trf.xlu0
        %v995 = vpop.trf.xlu0
        %v996 = vpop.trf.xlu0
        %997 = vxpose.xlu0.c.b16.start [1/8] %v842, 128
        %998 = vxpose.xlu0.c.b16.cont [2/8] 0, 128
        %999 = vxpose.xlu0.c.b16.cont [3/8] 0, 128
        %1000 = vxpose.xlu0.c.b16.cont [4/8] 0, 128
        %1001 = vxpose.xlu0.c.b16.cont [5/8] 0, 128
        %1002 = vxpose.xlu0.c.b16.cont [6/8] 0, 128
        %1003 = vxpose.xlu0.c.b16.cont [7/8] 0, 128
        %1004 = vxpose.xlu0.c.b16.end [8/8] 0, 128
        %v1005 = vpop.trf.xlu0
        %v1006 = vpop.trf.xlu0
        %v1007 = vpop.trf.xlu0
        %v1008 = vpop.trf.xlu0
        %v1009 = vpop.trf.xlu0
        %v1010 = vpop.trf.xlu0
        %v1011 = vpop.trf.xlu0
        %v1012 = vpop.trf.xlu0
        %1013 = vxpose.xlu0.c.b16.start [1/8] %v843, 128
        %1014 = vxpose.xlu0.c.b16.cont [2/8] 0, 128
        %1015 = vxpose.xlu0.c.b16.cont [3/8] 0, 128
        %1016 = vxpose.xlu0.c.b16.cont [4/8] 0, 128
        %1017 = vxpose.xlu0.c.b16.cont [5/8] 0, 128
        %1018 = vxpose.xlu0.c.b16.cont [6/8] 0, 128
        %1019 = vxpose.xlu0.c.b16.cont [7/8] 0, 128
        %1020 = vxpose.xlu0.c.b16.end [8/8] 0, 128
        %v1021 = vpop.trf.xlu0
        %v1022 = vpop.trf.xlu0
        %v1023 = vpop.trf.xlu0
        %v1024 = vpop.trf.xlu0
        %v1025 = vpop.trf.xlu0
        %v1026 = vpop.trf.xlu0
        %v1027 = vpop.trf.xlu0
        %v1028 = vpop.trf.xlu0
        %1029 = vxpose.xlu0.c.b16.start [1/8] %v844, 128
        %1030 = vxpose.xlu0.c.b16.cont [2/8] 0, 128
        %1031 = vxpose.xlu0.c.b16.cont [3/8] 0, 128
        %1032 = vxpose.xlu0.c.b16.cont [4/8] 0, 128
        %1033 = vxpose.xlu0.c.b16.cont [5/8] 0, 128
        %1034 = vxpose.xlu0.c.b16.cont [6/8] 0, 128
        %1035 = vxpose.xlu0.c.b16.cont [7/8] 0, 128
        %1036 = vxpose.xlu0.c.b16.end [8/8] 0, 128
        %v1037 = vpop.trf.xlu0
        %v1038 = vpop.trf.xlu0
        %v1039 = vpop.trf.xlu0
        %v1040 = vpop.trf.xlu0
        %v1041 = vpop.trf.xlu0
        %v1042 = vpop.trf.xlu0
        %v1043 = vpop.trf.xlu0
        %v1044 = vpop.trf.xlu0
        %1045 = vxpose.xlu0.c.b16.start [1/8] %v845, 128
        %1046 = vxpose.xlu0.c.b16.cont [2/8] 0, 128
        %1047 = vxpose.xlu0.c.b16.cont [3/8] 0, 128
        %1048 = vxpose.xlu0.c.b16.cont [4/8] 0, 128
        %1049 = vxpose.xlu0.c.b16.cont [5/8] 0, 128
        %1050 = vxpose.xlu0.c.b16.cont [6/8] 0, 128
        %1051 = vxpose.xlu0.c.b16.cont [7/8] 0, 128
        %1052 = vxpose.xlu0.c.b16.end [8/8] 0, 128
        %v1053 = vpop.trf.xlu0
        %v1054 = vpop.trf.xlu0
        %v1055 = vpop.trf.xlu0
        %v1056 = vpop.trf.xlu0
        %v1057 = vpop.trf.xlu0
        %v1058 = vpop.trf.xlu0
        %v1059 = vpop.trf.xlu0
        %v1060 = vpop.trf.xlu0
        %1061 = vxpose.xlu0.c.b16.start [1/8] %v846, 128
        %1062 = vxpose.xlu0.c.b16.cont [2/8] 0, 128
        %1063 = vxpose.xlu0.c.b16.cont [3/8] 0, 128
        %1064 = vxpose.xlu0.c.b16.cont [4/8] 0, 128
        %1065 = vxpose.xlu0.c.b16.cont [5/8] 0, 128
        %1066 = vxpose.xlu0.c.b16.cont [6/8] 0, 128
        %1067 = vxpose.xlu0.c.b16.cont [7/8] 0, 128
        %1068 = vxpose.xlu0.c.b16.end [8/8] 0, 128
        %v1069 = vpop.trf.xlu0
        %v1070 = vpop.trf.xlu0
        %v1071 = vpop.trf.xlu0
        %v1072 = vpop.trf.xlu0
        %v1073 = vpop.trf.xlu0
        %v1074 = vpop.trf.xlu0
        %v1075 = vpop.trf.xlu0
        %v1076 = vpop.trf.xlu0
        %1077 = vxpose.xlu0.c.b16.start [1/8] %v847, 128
        %1078 = vxpose.xlu0.c.b16.cont [2/8] 0, 128
        %1079 = vxpose.xlu0.c.b16.cont [3/8] 0, 128
        %1080 = vxpose.xlu0.c.b16.cont [4/8] 0, 128
        %1081 = vxpose.xlu0.c.b16.cont [5/8] 0, 128
        %1082 = vxpose.xlu0.c.b16.cont [6/8] 0, 128
        %1083 = vxpose.xlu0.c.b16.cont [7/8] 0, 128
        %1084 = vxpose.xlu0.c.b16.end [8/8] 0, 128
        %v1085 = vpop.trf.xlu0
        %v1086 = vpop.trf.xlu0
        %v1087 = vpop.trf.xlu0
        %v1088 = vpop.trf.xlu0
        %v1089 = vpop.trf.xlu0
        %v1090 = vpop.trf.xlu0
        %v1091 = vpop.trf.xlu0
        %v1092 = vpop.trf.xlu0
        %1093 = vxpose.xlu0.c.b16.start [1/8] %v848, 128
        %1094 = vxpose.xlu0.c.b16.cont [2/8] 0, 128
        %1095 = vxpose.xlu0.c.b16.cont [3/8] 0, 128
        %1096 = vxpose.xlu0.c.b16.cont [4/8] 0, 128
        %1097 = vxpose.xlu0.c.b16.cont [5/8] 0, 128
        %1098 = vxpose.xlu0.c.b16.cont [6/8] 0, 128
        %1099 = vxpose.xlu0.c.b16.cont [7/8] 0, 128
        %1100 = vxpose.xlu0.c.b16.end [8/8] 0, 128
        %v1101 = vpop.trf.xlu0
        %v1102 = vpop.trf.xlu0
        %v1103 = vpop.trf.xlu0
        %v1104 = vpop.trf.xlu0
        %v1105 = vpop.trf.xlu0
        %v1106 = vpop.trf.xlu0
        %v1107 = vpop.trf.xlu0
        %v1108 = vpop.trf.xlu0
        %v1109 = vrot.slane %v1053, 4
        %v1110 = vsel %vm929, %v1109, %v989
        %v1112 = vunpack.c.l.s4 1983009808
        %v1113 = vunpack.c.0.s8 %v1112
        %v1114 = vperm.slane %v1110, %v1113
        %v1115 = vrot.slane %v1085, 4
        %v1116 = vsel %vm929, %v1115, %v1021
        %v1118 = vunpack.c.l.s4 1983009808
        %v1119 = vunpack.c.0.s8 %v1118
        %v1120 = vperm.slane %v1116, %v1119
        %v1121 = vrot.slane %v1120, 4
        %v1122 = vsel %vm929, %v1121, %v1114
        %v1123 = vrot.slane %v1114, 4
        %v1124 = vsel %vm929, %v1120, %v1123
        %v1126 = vunpack.c.l.s4 1934713408
        %v1127 = vunpack.c.0.s8 %v1126
        %v1128 = vperm.slane %v1122, %v1127
        %v1130 = vunpack.c.l.s4 1934713408
        %v1131 = vunpack.c.0.s8 %v1130
        %v1132 = vperm.slane %v1124, %v1131
        %v1133 = vrot.slane %v1128, 4
        %v1134 = vsel %vm929, 0, %v1133
        %v1135 = vrot.slane %v1132, 4
        %v1136 = vsel %vm929, 0, %v1135
        %v1137 = vrot.slane %v1069, 4
        %v1138 = vsel %vm929, %v1137, %v1005
        %v1140 = vunpack.c.l.s4 1983009808
        %v1141 = vunpack.c.0.s8 %v1140
        %v1142 = vperm.slane %v1138, %v1141
        %v1143 = vrot.slane %v1101, 4
        %v1144 = vsel %vm929, %v1143, %v1037
        %v1146 = vunpack.c.l.s4 1983009808
        %v1147 = vunpack.c.0.s8 %v1146
        %v1148 = vperm.slane %v1144, %v1147
        %v1149 = vrot.slane %v1148, 4
        %v1150 = vsel %vm929, %v1149, %v1142
        %v1151 = vrot.slane %v1142, 4
        %v1152 = vsel %vm929, %v1148, %v1151
        %v1154 = vunpack.c.l.s4 1934713408
        %v1155 = vunpack.c.0.s8 %v1154
        %v1156 = vperm.slane %v1150, %v1155
        %v1158 = vunpack.c.l.s4 1934713408
        %v1159 = vunpack.c.0.s8 %v1158
        %v1160 = vperm.slane %v1152, %v1159
        %v1161 = vrot.slane %v1156, 4
        %v1162 = vsel %vm929, 0, %v1161
        %v1163 = vrot.slane %v1160, 4
        %v1164 = vsel %vm929, 0, %v1163
        %v1167 = vpack.i.b16 %v1156, %v1128
        %v1169 = vshrl.u32 %v1128, 16
        %v1170 = vshrl.u32 %v1156, 16
        %v1171 = vpack.i.b16 %v1170, %v1169
        %v1175 = vpack.i.b16 %v1162, %v1134
        %v1177 = vshrl.u32 %v1134, 16
        %v1178 = vshrl.u32 %v1162, 16
        %v1179 = vpack.i.b16 %v1178, %v1177
        %v1183 = vpack.i.b16 %v1160, %v1132
        %v1185 = vshrl.u32 %v1132, 16
        %v1186 = vshrl.u32 %v1160, 16
        %v1187 = vpack.i.b16 %v1186, %v1185
        %v1191 = vpack.i.b16 %v1164, %v1136
        %v1193 = vshrl.u32 %v1136, 16
        %v1194 = vshrl.u32 %v1164, 16
        %v1195 = vpack.i.b16 %v1194, %v1193
        %1197 = vxpose.xlu0.c.b16.start [1/8] %v1167, 128
        %1198 = vxpose.xlu0.c.b16.cont [2/8] 0, 128
        %1199 = vxpose.xlu0.c.b16.cont [3/8] 0, 128
        %1200 = vxpose.xlu0.c.b16.cont [4/8] 0, 128
        %1201 = vxpose.xlu0.c.b16.cont [5/8] 0, 128
        %1202 = vxpose.xlu0.c.b16.cont [6/8] 0, 128
        %1203 = vxpose.xlu0.c.b16.cont [7/8] 0, 128
        %1204 = vxpose.xlu0.c.b16.end [8/8] 0, 128
        %v1205 = vpop.trf.xlu0
        %v1206 = vpop.trf.xlu0
        %v1207 = vpop.trf.xlu0
        %v1208 = vpop.trf.xlu0
        %v1209 = vpop.trf.xlu0
        %v1210 = vpop.trf.xlu0
        %v1211 = vpop.trf.xlu0
        %v1212 = vpop.trf.xlu0
        %1213 = vxpose.xlu0.c.b16.start [1/8] %v1171, 128
        %1214 = vxpose.xlu0.c.b16.cont [2/8] 0, 128
        %1215 = vxpose.xlu0.c.b16.cont [3/8] 0, 128
        %1216 = vxpose.xlu0.c.b16.cont [4/8] 0, 128
        %1217 = vxpose.xlu0.c.b16.cont [5/8] 0, 128
        %1218 = vxpose.xlu0.c.b16.cont [6/8] 0, 128
        %1219 = vxpose.xlu0.c.b16.cont [7/8] 0, 128
        %1220 = vxpose.xlu0.c.b16.end [8/8] 0, 128
        %v1221 = vpop.trf.xlu0
        %v1222 = vpop.trf.xlu0
        %v1223 = vpop.trf.xlu0
        %v1224 = vpop.trf.xlu0
        %v1225 = vpop.trf.xlu0
        %v1226 = vpop.trf.xlu0
        %v1227 = vpop.trf.xlu0
        %v1228 = vpop.trf.xlu0
        %1229 = vxpose.xlu0.c.b16.start [1/8] %v1175, 128
        %1230 = vxpose.xlu0.c.b16.cont [2/8] 0, 128
        %1231 = vxpose.xlu0.c.b16.cont [3/8] 0, 128
        %1232 = vxpose.xlu0.c.b16.cont [4/8] 0, 128
        %1233 = vxpose.xlu0.c.b16.cont [5/8] 0, 128
        %1234 = vxpose.xlu0.c.b16.cont [6/8] 0, 128
        %1235 = vxpose.xlu0.c.b16.cont [7/8] 0, 128
        %1236 = vxpose.xlu0.c.b16.end [8/8] 0, 128
        %v1237 = vpop.trf.xlu0
        %v1238 = vpop.trf.xlu0
        %v1239 = vpop.trf.xlu0
        %v1240 = vpop.trf.xlu0
        %v1241 = vpop.trf.xlu0
        %v1242 = vpop.trf.xlu0
        %v1243 = vpop.trf.xlu0
        %v1244 = vpop.trf.xlu0
        %1245 = vxpose.xlu0.c.b16.start [1/8] %v1179, 128
        %1246 = vxpose.xlu0.c.b16.cont [2/8] 0, 128
        %1247 = vxpose.xlu0.c.b16.cont [3/8] 0, 128
        %1248 = vxpose.xlu0.c.b16.cont [4/8] 0, 128
        %1249 = vxpose.xlu0.c.b16.cont [5/8] 0, 128
        %1250 = vxpose.xlu0.c.b16.cont [6/8] 0, 128
        %1251 = vxpose.xlu0.c.b16.cont [7/8] 0, 128
        %1252 = vxpose.xlu0.c.b16.end [8/8] 0, 128
        %v1253 = vpop.trf.xlu0
        %v1254 = vpop.trf.xlu0
        %v1255 = vpop.trf.xlu0
        %v1256 = vpop.trf.xlu0
        %v1257 = vpop.trf.xlu0
        %v1258 = vpop.trf.xlu0
        %v1259 = vpop.trf.xlu0
        %v1260 = vpop.trf.xlu0
        %1261 = vxpose.xlu0.c.b16.start [1/8] %v1183, 128
        %1262 = vxpose.xlu0.c.b16.cont [2/8] 0, 128
        %1263 = vxpose.xlu0.c.b16.cont [3/8] 0, 128
        %1264 = vxpose.xlu0.c.b16.cont [4/8] 0, 128
        %1265 = vxpose.xlu0.c.b16.cont [5/8] 0, 128
        %1266 = vxpose.xlu0.c.b16.cont [6/8] 0, 128
        %1267 = vxpose.xlu0.c.b16.cont [7/8] 0, 128
        %1268 = vxpose.xlu0.c.b16.end [8/8] 0, 128
        %v1269 = vpop.trf.xlu0
        %v1270 = vpop.trf.xlu0
        %v1271 = vpop.trf.xlu0
        %v1272 = vpop.trf.xlu0
        %v1273 = vpop.trf.xlu0
        %v1274 = vpop.trf.xlu0
        %v1275 = vpop.trf.xlu0
        %v1276 = vpop.trf.xlu0
        %1277 = vxpose.xlu0.c.b16.start [1/8] %v1187, 128
        %1278 = vxpose.xlu0.c.b16.cont [2/8] 0, 128
        %1279 = vxpose.xlu0.c.b16.cont [3/8] 0, 128
        %1280 = vxpose.xlu0.c.b16.cont [4/8] 0, 128
        %1281 = vxpose.xlu0.c.b16.cont [5/8] 0, 128
        %1282 = vxpose.xlu0.c.b16.cont [6/8] 0, 128
        %1283 = vxpose.xlu0.c.b16.cont [7/8] 0, 128
        %1284 = vxpose.xlu0.c.b16.end [8/8] 0, 128
        %v1285 = vpop.trf.xlu0
        %v1286 = vpop.trf.xlu0
        %v1287 = vpop.trf.xlu0
        %v1288 = vpop.trf.xlu0
        %v1289 = vpop.trf.xlu0
        %v1290 = vpop.trf.xlu0
        %v1291 = vpop.trf.xlu0
        %v1292 = vpop.trf.xlu0
        %1293 = vxpose.xlu0.c.b16.start [1/8] %v1191, 128
        %1294 = vxpose.xlu0.c.b16.cont [2/8] 0, 128
        %1295 = vxpose.xlu0.c.b16.cont [3/8] 0, 128
        %1296 = vxpose.xlu0.c.b16.cont [4/8] 0, 128
        %1297 = vxpose.xlu0.c.b16.cont [5/8] 0, 128
        %1298 = vxpose.xlu0.c.b16.cont [6/8] 0, 128
        %1299 = vxpose.xlu0.c.b16.cont [7/8] 0, 128
        %1300 = vxpose.xlu0.c.b16.end [8/8] 0, 128
        %v1301 = vpop.trf.xlu0
        %v1302 = vpop.trf.xlu0
        %v1303 = vpop.trf.xlu0
        %v1304 = vpop.trf.xlu0
        %v1305 = vpop.trf.xlu0
        %v1306 = vpop.trf.xlu0
        %v1307 = vpop.trf.xlu0
        %v1308 = vpop.trf.xlu0
        %1309 = vxpose.xlu0.c.b16.start [1/8] %v1195, 128
        %1310 = vxpose.xlu0.c.b16.cont [2/8] 0, 128
        %1311 = vxpose.xlu0.c.b16.cont [3/8] 0, 128
        %1312 = vxpose.xlu0.c.b16.cont [4/8] 0, 128
        %1313 = vxpose.xlu0.c.b16.cont [5/8] 0, 128
        %1314 = vxpose.xlu0.c.b16.cont [6/8] 0, 128
        %1315 = vxpose.xlu0.c.b16.cont [7/8] 0, 128
        %1316 = vxpose.xlu0.c.b16.end [8/8] 0, 128
        %v1317 = vpop.trf.xlu0
        %v1318 = vpop.trf.xlu0
        %v1319 = vpop.trf.xlu0
        %v1320 = vpop.trf.xlu0
        %v1321 = vpop.trf.xlu0
        %v1322 = vpop.trf.xlu0
        %v1323 = vpop.trf.xlu0
        %v1324 = vpop.trf.xlu0
        %v1325 = vrot.slane %v1269, 4
        %v1326 = vsel %vm929, %v1325, %v1205
        %v1328 = vunpack.c.l.s4 1983009808
        %v1329 = vunpack.c.0.s8 %v1328
        %v1330 = vperm.slane %v1326, %v1329
        %v1331 = vrot.slane %v1301, 4
        %v1332 = vsel %vm929, %v1331, %v1237
        %v1334 = vunpack.c.l.s4 1983009808
        %v1335 = vunpack.c.0.s8 %v1334
        %v1336 = vperm.slane %v1332, %v1335
        %v1337 = vrot.slane %v1336, 4
        %v1338 = vsel %vm929, %v1337, %v1330
        %v1340 = vunpack.c.l.s4 1934713408
        %v1341 = vunpack.c.0.s8 %v1340
        %v1342 = vperm.slane %v1338, %v1341
        %v1343 = vrot.slane %v1342, 4
        %v1344 = vsel %vm929, 0, %v1343
        %v1345 = vrot.slane %v1285, 4
        %v1346 = vsel %vm929, %v1345, %v1221
        %v1348 = vunpack.c.l.s4 1983009808
        %v1349 = vunpack.c.0.s8 %v1348
        %v1350 = vperm.slane %v1346, %v1349
        %v1351 = vrot.slane %v1317, 4
        %v1352 = vsel %vm929, %v1351, %v1253
        %v1354 = vunpack.c.l.s4 1983009808
        %v1355 = vunpack.c.0.s8 %v1354
        %v1356 = vperm.slane %v1352, %v1355
        %v1357 = vrot.slane %v1356, 4
        %v1358 = vsel %vm929, %v1357, %v1350
        %v1360 = vunpack.c.l.s4 1934713408
        %v1361 = vunpack.c.0.s8 %v1360
        %v1362 = vperm.slane %v1358, %v1361
        %v1363 = vrot.slane %v1362, 4
        %v1364 = vsel %vm929, 0, %v1363
        %v1367 = vpack.i.b16 %v1362, %v1342
        %v1368 = vshrl.u32 %v1342, 16
        %v1369 = vshrl.u32 %v1362, 16
        %v1370 = vpack.i.b16 %v1369, %v1368
        %v1373 = vpack.i.b16 %v1364, %v1344
        %v1374 = vshrl.u32 %v1344, 16
        %v1375 = vshrl.u32 %v1364, 16
        %v1376 = vpack.i.b16 %v1375, %v1374
        %vm1377 = vcmask 64512
        %v1379 = vsel %vm1377, %v971, 0
        %vm1381 = vcmask 1043456
        %v1383 = vsel %vm1381, %v1367, 0
        %1385 = vmatpush.bf16.msra.mxu0 0
        %1386 = vmatpush.bf16.msra.mxu0 0
        %1387 = vmatpush.bf16.msra.mxu0 0
        %1388 = vmatpush.bf16.msra.mxu0 0
        %1389 = vmatpush.bf16.msra.mxu0 0
        %1390 = vmatpush.bf16.msra.mxu0 0
        %1391 = vmatpush.bf16.msra.mxu0 0
        %1392 = vmatpush.bf16.msra.mxu0 %v1383
        %1393 = vmatmul.bf16.gmra.mxu0 %v1379
        %v1394 = vpop.f32.mrf.mxu0
        %v1395 = vadd.f32 %v926, %v1394
        %v1396 = vpop.f32.mrf.mxu0
        %1397 = vdwg.mxu0
        %v1399 = vsel %vm1377, %v974, 0
        %v1402 = vsel %vm1381, %v1370, 0
        %1404 = vmatpush.bf16.msra.mxu0 0
        %1405 = vmatpush.bf16.msra.mxu0 0
        %1406 = vmatpush.bf16.msra.mxu0 0
        %1407 = vmatpush.bf16.msra.mxu0 0
        %1408 = vmatpush.bf16.msra.mxu0 0
        %1409 = vmatpush.bf16.msra.mxu0 0
        %1410 = vmatpush.bf16.msra.mxu0 0
        %1411 = vmatpush.bf16.msra.mxu0 %v1402
        %1412 = vmatmul.bf16.gmra.mxu0 %v1399
        %v1413 = vpop.f32.mrf.mxu0
        %v1414 = vadd.f32 %v926, %v1413
        %v1415 = vpop.f32.mrf.mxu0
        %1416 = vdwg.mxu0
        %v1418 = vsel %vm1377, %v977, 0
        %v1421 = vsel %vm1381, %v1373, 0
        %1423 = vmatpush.bf16.msra.mxu0 0
        %1424 = vmatpush.bf16.msra.mxu0 0
        %1425 = vmatpush.bf16.msra.mxu0 0
        %1426 = vmatpush.bf16.msra.mxu0 0
        %1427 = vmatpush.bf16.msra.mxu0 0
        %1428 = vmatpush.bf16.msra.mxu0 0
        %1429 = vmatpush.bf16.msra.mxu0 0
        %1430 = vmatpush.bf16.msra.mxu0 %v1421
        %1431 = vmatmul.bf16.gmra.mxu0 %v1418
        %v1432 = vpop.f32.mrf.mxu0
        %v1433 = vadd.f32 %v926, %v1432
        %v1434 = vpop.f32.mrf.mxu0
        %1435 = vdwg.mxu0
        %v1437 = vsel %vm1377, %v980, 0
        %v1440 = vsel %vm1381, %v1376, 0
        %1442 = vmatpush.bf16.msra.mxu0 0
        %1443 = vmatpush.bf16.msra.mxu0 0
        %1444 = vmatpush.bf16.msra.mxu0 0
        %1445 = vmatpush.bf16.msra.mxu0 0
        %1446 = vmatpush.bf16.msra.mxu0 0
        %1447 = vmatpush.bf16.msra.mxu0 0
        %1448 = vmatpush.bf16.msra.mxu0 0
        %1449 = vmatpush.bf16.msra.mxu0 %v1440
        %1450 = vmatmul.bf16.gmra.mxu0 %v1437
        %v1451 = vpop.f32.mrf.mxu0
        %v1452 = vadd.f32 %v926, %v1451
        %v1453 = vpop.f32.mrf.mxu0
        %1454 = vdwg.mxu0
        %v1455 = vsel %vm1377, %v1395, -inf
        %1456 = vmax.xlane.f32.xlu0 %v1455
        %v1457 = vpop.xlane.xlu0 %1456
        %v1458 = vsel %vm1377, %v1414, -inf
        %1459 = vmax.xlane.f32.xlu0 %v1458
        %v1460 = vpop.xlane.xlu0 %1459
        %v1461 = vsel %vm1377, %v1433, -inf
        %1462 = vmax.xlane.f32.xlu0 %v1461
        %v1463 = vpop.xlane.xlu0 %1462
        %v1464 = vsel %vm1377, %v1452, -inf
        %1465 = vmax.xlane.f32.xlu0 %v1464
        %v1466 = vpop.xlane.xlu0 %1465
        %v1467 = vsub.f32 %v1395, %v1457
        %v1468 = vsub.f32 %v1414, %v1460
        %v1469 = vsub.f32 %v1433, %v1463
        %v1470 = vsub.f32 %v1452, %v1466
        %v1471 = vmul.f32 %v1467, 1.442695
        %v1472 = vpow.pop %v1471
        %v1473 = vmul.f32 %v1468, 1.442695
        %v1474 = vpow.pop %v1473
        %v1475 = vmul.f32 %v1469, 1.442695
        %v1476 = vpow.pop %v1475
        %v1477 = vmul.f32 %v1470, 1.442695
        %v1478 = vpow.pop %v1477
        %v1479 = vsel %vm1377, %v1472, 0.0
        %1480 = vadd.xlane.f32.xlu0 %v1479
        %v1481 = vpop.xlane.xlu0 %1480
        %v1482 = vsel %vm1377, %v1474, 0.0
        %1483 = vadd.xlane.f32.xlu0 %v1482
        %v1484 = vpop.xlane.xlu0 %1483
        %v1485 = vsel %vm1377, %v1476, 0.0
        %1486 = vadd.xlane.f32.xlu0 %v1485
        %v1487 = vpop.xlane.xlu0 %1486
        %v1488 = vsel %vm1377, %v1478, 0.0
        %1489 = vadd.xlane.f32.xlu0 %v1488
        %v1490 = vpop.xlane.xlu0 %1489
        %v1491 = vrcp.pop %v1481
        %v1492 = vmul.f32 %v1481, %v1491
        %v1493 = vsub.f32 1.0, %v1492
        %v1494 = vmul.f32 %v1491, %v1493
        %v1495 = vadd.f32 %v1491, %v1494
        %vm1496 = vweird.f32 %v1481
        %vm1497 = vweird.f32 %v1491
        %vm1498 = vmor %vm1496, %vm1497
        %v1499 = vsel %vm1498, %v1491, %v1495
        %v1500 = vand.u32 2147483647, %v1481
        %vm1501 = vcmp.eq.f32.partialorder %v1500, 8.507059e+37
        %v1502 = vand.u32 %v1481, 2147483648
        %v1503 = vor.u32 1.1754944e-38, %v1502
        %v1504 = vsel %vm1501, %v1503, %v1499
        %v1505 = vrcp.pop %v1484
        %v1506 = vmul.f32 %v1484, %v1505
        %v1507 = vsub.f32 1.0, %v1506
        %v1508 = vmul.f32 %v1505, %v1507
        %v1509 = vadd.f32 %v1505, %v1508
        %vm1510 = vweird.f32 %v1484
        %vm1511 = vweird.f32 %v1505
        %vm1512 = vmor %vm1510, %vm1511
        %v1513 = vsel %vm1512, %v1505, %v1509
        %v1514 = vand.u32 2147483647, %v1484
        %vm1515 = vcmp.eq.f32.partialorder %v1514, 8.507059e+37
        %v1516 = vand.u32 %v1484, 2147483648
        %v1517 = vor.u32 1.1754944e-38, %v1516
        %v1518 = vsel %vm1515, %v1517, %v1513
        %v1519 = vrcp.pop %v1487
        %v1520 = vmul.f32 %v1487, %v1519
        %v1521 = vsub.f32 1.0, %v1520
        %v1522 = vmul.f32 %v1519, %v1521
        %v1523 = vadd.f32 %v1519, %v1522
        %vm1524 = vweird.f32 %v1487
        %vm1525 = vweird.f32 %v1519
        %vm1526 = vmor %vm1524, %vm1525
        %v1527 = vsel %vm1526, %v1519, %v1523
        %v1528 = vand.u32 2147483647, %v1487
        %vm1529 = vcmp.eq.f32.partialorder %v1528, 8.507059e+37
        %v1530 = vand.u32 %v1487, 2147483648
        %v1531 = vor.u32 1.1754944e-38, %v1530
        %v1532 = vsel %vm1529, %v1531, %v1527
        %v1533 = vrcp.pop %v1490
        %v1534 = vmul.f32 %v1490, %v1533
        %v1535 = vsub.f32 1.0, %v1534
        %v1536 = vmul.f32 %v1533, %v1535
        %v1537 = vadd.f32 %v1533, %v1536
        %vm1538 = vweird.f32 %v1490
        %vm1539 = vweird.f32 %v1533
        %vm1540 = vmor %vm1538, %vm1539
        %v1541 = vsel %vm1540, %v1533, %v1537
        %v1542 = vand.u32 2147483647, %v1490
        %vm1543 = vcmp.eq.f32.partialorder %v1542, 8.507059e+37
        %v1544 = vand.u32 %v1490, 2147483648
        %v1545 = vor.u32 1.1754944e-38, %v1544
        %v1546 = vsel %vm1543, %v1545, %v1541
        %v1547 = vmul.f32 %v1472, %v1504
        %v1548 = vmul.f32 %v1474, %v1518
        %v1549 = vmul.f32 %v1476, %v1532
        %v1550 = vmul.f32 %v1478, %v1546
        %v1551 = vpack.c.bf16 %v1547, %v1547
        %v1552 = vpack.c.bf16 %v1548, %v1548
        %v1553 = vpack.c.bf16 %v1549, %v1549
        %v1554 = vpack.c.bf16 %v1550, %v1550
        %1555 = vxpose.xlu0.c.b16.start [1/8] %v917, 128
        %1556 = vxpose.xlu0.c.b16.cont [2/8] 0, 128
        %1557 = vxpose.xlu0.c.b16.cont [3/8] 0, 128
        %1558 = vxpose.xlu0.c.b16.cont [4/8] 0, 128
        %1559 = vxpose.xlu0.c.b16.cont [5/8] 0, 128
        %1560 = vxpose.xlu0.c.b16.cont [6/8] 0, 128
        %1561 = vxpose.xlu0.c.b16.cont [7/8] 0, 128
        %1562 = vxpose.xlu0.c.b16.end [8/8] 0, 128
        %v1563 = vpop.trf.xlu0
        %v1564 = vpop.trf.xlu0
        %v1565 = vpop.trf.xlu0
        %v1566 = vpop.trf.xlu0
        %v1567 = vpop.trf.xlu0
        %v1568 = vpop.trf.xlu0
        %v1569 = vpop.trf.xlu0
        %v1570 = vpop.trf.xlu0
        %1571 = vxpose.xlu0.c.b16.start [1/8] %v918, 128
        %1572 = vxpose.xlu0.c.b16.cont [2/8] 0, 128
        %1573 = vxpose.xlu0.c.b16.cont [3/8] 0, 128
        %1574 = vxpose.xlu0.c.b16.cont [4/8] 0, 128
        %1575 = vxpose.xlu0.c.b16.cont [5/8] 0, 128
        %1576 = vxpose.xlu0.c.b16.cont [6/8] 0, 128
        %1577 = vxpose.xlu0.c.b16.cont [7/8] 0, 128
        %1578 = vxpose.xlu0.c.b16.end [8/8] 0, 128
        %v1579 = vpop.trf.xlu0
        %v1580 = vpop.trf.xlu0
        %v1581 = vpop.trf.xlu0
        %v1582 = vpop.trf.xlu0
        %v1583 = vpop.trf.xlu0
        %v1584 = vpop.trf.xlu0
        %v1585 = vpop.trf.xlu0
        %v1586 = vpop.trf.xlu0
        %1587 = vxpose.xlu0.c.b16.start [1/8] %v919, 128
        %1588 = vxpose.xlu0.c.b16.cont [2/8] 0, 128
        %1589 = vxpose.xlu0.c.b16.cont [3/8] 0, 128
        %1590 = vxpose.xlu0.c.b16.cont [4/8] 0, 128
        %1591 = vxpose.xlu0.c.b16.cont [5/8] 0, 128
        %1592 = vxpose.xlu0.c.b16.cont [6/8] 0, 128
        %1593 = vxpose.xlu0.c.b16.cont [7/8] 0, 128
        %1594 = vxpose.xlu0.c.b16.end [8/8] 0, 128
        %v1595 = vpop.trf.xlu0
        %v1596 = vpop.trf.xlu0
        %v1597 = vpop.trf.xlu0
        %v1598 = vpop.trf.xlu0
        %v1599 = vpop.trf.xlu0
        %v1600 = vpop.trf.xlu0
        %v1601 = vpop.trf.xlu0
        %v1602 = vpop.trf.xlu0
        %1603 = vxpose.xlu0.c.b16.start [1/8] %v920, 128
        %1604 = vxpose.xlu0.c.b16.cont [2/8] 0, 128
        %1605 = vxpose.xlu0.c.b16.cont [3/8] 0, 128
        %1606 = vxpose.xlu0.c.b16.cont [4/8] 0, 128
        %1607 = vxpose.xlu0.c.b16.cont [5/8] 0, 128
        %1608 = vxpose.xlu0.c.b16.cont [6/8] 0, 128
        %1609 = vxpose.xlu0.c.b16.cont [7/8] 0, 128
        %1610 = vxpose.xlu0.c.b16.end [8/8] 0, 128
        %v1611 = vpop.trf.xlu0
        %v1612 = vpop.trf.xlu0
        %v1613 = vpop.trf.xlu0
        %v1614 = vpop.trf.xlu0
        %v1615 = vpop.trf.xlu0
        %v1616 = vpop.trf.xlu0
        %v1617 = vpop.trf.xlu0
        %v1618 = vpop.trf.xlu0
        %1619 = vxpose.xlu0.c.b16.start [1/8] %v921, 128
        %1620 = vxpose.xlu0.c.b16.cont [2/8] 0, 128
        %1621 = vxpose.xlu0.c.b16.cont [3/8] 0, 128
        %1622 = vxpose.xlu0.c.b16.cont [4/8] 0, 128
        %1623 = vxpose.xlu0.c.b16.cont [5/8] 0, 128
        %1624 = vxpose.xlu0.c.b16.cont [6/8] 0, 128
        %1625 = vxpose.xlu0.c.b16.cont [7/8] 0, 128
        %1626 = vxpose.xlu0.c.b16.end [8/8] 0, 128
        %v1627 = vpop.trf.xlu0
        %v1628 = vpop.trf.xlu0
        %v1629 = vpop.trf.xlu0
        %v1630 = vpop.trf.xlu0
        %v1631 = vpop.trf.xlu0
        %v1632 = vpop.trf.xlu0
        %v1633 = vpop.trf.xlu0
        %v1634 = vpop.trf.xlu0
        %1635 = vxpose.xlu0.c.b16.start [1/8] %v922, 128
        %1636 = vxpose.xlu0.c.b16.cont [2/8] 0, 128
        %1637 = vxpose.xlu0.c.b16.cont [3/8] 0, 128
        %1638 = vxpose.xlu0.c.b16.cont [4/8] 0, 128
        %1639 = vxpose.xlu0.c.b16.cont [5/8] 0, 128
        %1640 = vxpose.xlu0.c.b16.cont [6/8] 0, 128
        %1641 = vxpose.xlu0.c.b16.cont [7/8] 0, 128
        %1642 = vxpose.xlu0.c.b16.end [8/8] 0, 128
        %v1643 = vpop.trf.xlu0
        %v1644 = vpop.trf.xlu0
        %v1645 = vpop.trf.xlu0
        %v1646 = vpop.trf.xlu0
        %v1647 = vpop.trf.xlu0
        %v1648 = vpop.trf.xlu0
        %v1649 = vpop.trf.xlu0
        %v1650 = vpop.trf.xlu0
        %1651 = vxpose.xlu0.c.b16.start [1/8] %v923, 128
        %1652 = vxpose.xlu0.c.b16.cont [2/8] 0, 128
        %1653 = vxpose.xlu0.c.b16.cont [3/8] 0, 128
        %1654 = vxpose.xlu0.c.b16.cont [4/8] 0, 128
        %1655 = vxpose.xlu0.c.b16.cont [5/8] 0, 128
        %1656 = vxpose.xlu0.c.b16.cont [6/8] 0, 128
        %1657 = vxpose.xlu0.c.b16.cont [7/8] 0, 128
        %1658 = vxpose.xlu0.c.b16.end [8/8] 0, 128
        %v1659 = vpop.trf.xlu0
        %v1660 = vpop.trf.xlu0
        %v1661 = vpop.trf.xlu0
        %v1662 = vpop.trf.xlu0
        %v1663 = vpop.trf.xlu0
        %v1664 = vpop.trf.xlu0
        %v1665 = vpop.trf.xlu0
        %v1666 = vpop.trf.xlu0
        %1667 = vxpose.xlu0.c.b16.start [1/8] %v924, 128
        %1668 = vxpose.xlu0.c.b16.cont [2/8] 0, 128
        %1669 = vxpose.xlu0.c.b16.cont [3/8] 0, 128
        %1670 = vxpose.xlu0.c.b16.cont [4/8] 0, 128
        %1671 = vxpose.xlu0.c.b16.cont [5/8] 0, 128
        %1672 = vxpose.xlu0.c.b16.cont [6/8] 0, 128
        %1673 = vxpose.xlu0.c.b16.cont [7/8] 0, 128
        %1674 = vxpose.xlu0.c.b16.end [8/8] 0, 128
        %v1675 = vpop.trf.xlu0
        %v1676 = vpop.trf.xlu0
        %v1677 = vpop.trf.xlu0
        %v1678 = vpop.trf.xlu0
        %v1679 = vpop.trf.xlu0
        %v1680 = vpop.trf.xlu0
        %v1681 = vpop.trf.xlu0
        %v1682 = vpop.trf.xlu0
        %v1683 = vrot.slane %v1627, 4
        %v1684 = vsel %vm929, %v1683, %v1563
        %v1686 = vunpack.c.l.s4 1983009808
        %v1687 = vunpack.c.0.s8 %v1686
        %v1688 = vperm.slane %v1684, %v1687
        %v1689 = vrot.slane %v1659, 4
        %v1690 = vsel %vm929, %v1689, %v1595
        %v1692 = vunpack.c.l.s4 1983009808
        %v1693 = vunpack.c.0.s8 %v1692
        %v1694 = vperm.slane %v1690, %v1693
        %v1695 = vrot.slane %v1694, 4
        %v1696 = vsel %vm929, %v1695, %v1688
        %v1697 = vrot.slane %v1688, 4
        %v1698 = vsel %vm929, %v1694, %v1697
        %v1700 = vunpack.c.l.s4 1934713408
        %v1701 = vunpack.c.0.s8 %v1700
        %v1702 = vperm.slane %v1696, %v1701
        %v1704 = vunpack.c.l.s4 1934713408
        %v1705 = vunpack.c.0.s8 %v1704
        %v1706 = vperm.slane %v1698, %v1705
        %v1707 = vrot.slane %v1702, 4
        %v1708 = vsel %vm929, 0, %v1707
        %v1709 = vrot.slane %v1706, 4
        %v1710 = vsel %vm929, 0, %v1709
        %v1711 = vrot.slane %v1643, 4
        %v1712 = vsel %vm929, %v1711, %v1579
        %v1714 = vunpack.c.l.s4 1983009808
        %v1715 = vunpack.c.0.s8 %v1714
        %v1716 = vperm.slane %v1712, %v1715
        %v1717 = vrot.slane %v1675, 4
        %v1718 = vsel %vm929, %v1717, %v1611
        %v1720 = vunpack.c.l.s4 1983009808
        %v1721 = vunpack.c.0.s8 %v1720
        %v1722 = vperm.slane %v1718, %v1721
        %v1723 = vrot.slane %v1722, 4
        %v1724 = vsel %vm929, %v1723, %v1716
        %v1725 = vrot.slane %v1716, 4
        %v1726 = vsel %vm929, %v1722, %v1725
        %v1728 = vunpack.c.l.s4 1934713408
        %v1729 = vunpack.c.0.s8 %v1728
        %v1730 = vperm.slane %v1724, %v1729
        %v1732 = vunpack.c.l.s4 1934713408
        %v1733 = vunpack.c.0.s8 %v1732
        %v1734 = vperm.slane %v1726, %v1733
        %v1735 = vrot.slane %v1730, 4
        %v1736 = vsel %vm929, 0, %v1735
        %v1737 = vrot.slane %v1734, 4
        %v1738 = vsel %vm929, 0, %v1737
        %v1741 = vpack.i.b16 %v1730, %v1702
        %v1743 = vshrl.u32 %v1702, 16
        %v1744 = vshrl.u32 %v1730, 16
        %v1745 = vpack.i.b16 %v1744, %v1743
        %v1749 = vpack.i.b16 %v1736, %v1708
        %v1751 = vshrl.u32 %v1708, 16
        %v1752 = vshrl.u32 %v1736, 16
        %v1753 = vpack.i.b16 %v1752, %v1751
        %v1757 = vpack.i.b16 %v1734, %v1706
        %v1759 = vshrl.u32 %v1706, 16
        %v1760 = vshrl.u32 %v1734, 16
        %v1761 = vpack.i.b16 %v1760, %v1759
        %v1765 = vpack.i.b16 %v1738, %v1710
        %v1767 = vshrl.u32 %v1710, 16
        %v1768 = vshrl.u32 %v1738, 16
        %v1769 = vpack.i.b16 %v1768, %v1767
        %1771 = vxpose.xlu0.c.b16.start [1/8] %v1741, 128
        %1772 = vxpose.xlu0.c.b16.cont [2/8] 0, 128
        %1773 = vxpose.xlu0.c.b16.cont [3/8] 0, 128
        %1774 = vxpose.xlu0.c.b16.cont [4/8] 0, 128
        %1775 = vxpose.xlu0.c.b16.cont [5/8] 0, 128
        %1776 = vxpose.xlu0.c.b16.cont [6/8] 0, 128
        %1777 = vxpose.xlu0.c.b16.cont [7/8] 0, 128
        %1778 = vxpose.xlu0.c.b16.end [8/8] 0, 128
        %v1779 = vpop.trf.xlu0
        %v1780 = vpop.trf.xlu0
        %v1781 = vpop.trf.xlu0
        %v1782 = vpop.trf.xlu0
        %v1783 = vpop.trf.xlu0
        %v1784 = vpop.trf.xlu0
        %v1785 = vpop.trf.xlu0
        %v1786 = vpop.trf.xlu0
        %1787 = vxpose.xlu0.c.b16.start [1/8] %v1745, 128
        %1788 = vxpose.xlu0.c.b16.cont [2/8] 0, 128
        %1789 = vxpose.xlu0.c.b16.cont [3/8] 0, 128
        %1790 = vxpose.xlu0.c.b16.cont [4/8] 0, 128
        %1791 = vxpose.xlu0.c.b16.cont [5/8] 0, 128
        %1792 = vxpose.xlu0.c.b16.cont [6/8] 0, 128
        %1793 = vxpose.xlu0.c.b16.cont [7/8] 0, 128
        %1794 = vxpose.xlu0.c.b16.end [8/8] 0, 128
        %v1795 = vpop.trf.xlu0
        %v1796 = vpop.trf.xlu0
        %v1797 = vpop.trf.xlu0
        %v1798 = vpop.trf.xlu0
        %v1799 = vpop.trf.xlu0
        %v1800 = vpop.trf.xlu0
        %v1801 = vpop.trf.xlu0
        %v1802 = vpop.trf.xlu0
        %1803 = vxpose.xlu0.c.b16.start [1/8] %v1749, 128
        %1804 = vxpose.xlu0.c.b16.cont [2/8] 0, 128
        %1805 = vxpose.xlu0.c.b16.cont [3/8] 0, 128
        %1806 = vxpose.xlu0.c.b16.cont [4/8] 0, 128
        %1807 = vxpose.xlu0.c.b16.cont [5/8] 0, 128
        %1808 = vxpose.xlu0.c.b16.cont [6/8] 0, 128
        %1809 = vxpose.xlu0.c.b16.cont [7/8] 0, 128
        %1810 = vxpose.xlu0.c.b16.end [8/8] 0, 128
        %v1811 = vpop.trf.xlu0
        %v1812 = vpop.trf.xlu0
        %v1813 = vpop.trf.xlu0
        %v1814 = vpop.trf.xlu0
        %v1815 = vpop.trf.xlu0
        %v1816 = vpop.trf.xlu0
        %v1817 = vpop.trf.xlu0
        %v1818 = vpop.trf.xlu0
        %1819 = vxpose.xlu0.c.b16.start [1/8] %v1753, 128
        %1820 = vxpose.xlu0.c.b16.cont [2/8] 0, 128
        %1821 = vxpose.xlu0.c.b16.cont [3/8] 0, 128
        %1822 = vxpose.xlu0.c.b16.cont [4/8] 0, 128
        %1823 = vxpose.xlu0.c.b16.cont [5/8] 0, 128
        %1824 = vxpose.xlu0.c.b16.cont [6/8] 0, 128
        %1825 = vxpose.xlu0.c.b16.cont [7/8] 0, 128
        %1826 = vxpose.xlu0.c.b16.end [8/8] 0, 128
        %v1827 = vpop.trf.xlu0
        %v1828 = vpop.trf.xlu0
        %v1829 = vpop.trf.xlu0
        %v1830 = vpop.trf.xlu0
        %v1831 = vpop.trf.xlu0
        %v1832 = vpop.trf.xlu0
        %v1833 = vpop.trf.xlu0
        %v1834 = vpop.trf.xlu0
        %1835 = vxpose.xlu0.c.b16.start [1/8] %v1757, 128
        %1836 = vxpose.xlu0.c.b16.cont [2/8] 0, 128
        %1837 = vxpose.xlu0.c.b16.cont [3/8] 0, 128
        %1838 = vxpose.xlu0.c.b16.cont [4/8] 0, 128
        %1839 = vxpose.xlu0.c.b16.cont [5/8] 0, 128
        %1840 = vxpose.xlu0.c.b16.cont [6/8] 0, 128
        %1841 = vxpose.xlu0.c.b16.cont [7/8] 0, 128
        %1842 = vxpose.xlu0.c.b16.end [8/8] 0, 128
        %v1843 = vpop.trf.xlu0
        %v1844 = vpop.trf.xlu0
        %v1845 = vpop.trf.xlu0
        %v1846 = vpop.trf.xlu0
        %v1847 = vpop.trf.xlu0
        %v1848 = vpop.trf.xlu0
        %v1849 = vpop.trf.xlu0
        %v1850 = vpop.trf.xlu0
        %1851 = vxpose.xlu0.c.b16.start [1/8] %v1761, 128
        %1852 = vxpose.xlu0.c.b16.cont [2/8] 0, 128
        %1853 = vxpose.xlu0.c.b16.cont [3/8] 0, 128
        %1854 = vxpose.xlu0.c.b16.cont [4/8] 0, 128
        %1855 = vxpose.xlu0.c.b16.cont [5/8] 0, 128
        %1856 = vxpose.xlu0.c.b16.cont [6/8] 0, 128
        %1857 = vxpose.xlu0.c.b16.cont [7/8] 0, 128
        %1858 = vxpose.xlu0.c.b16.end [8/8] 0, 128
        %v1859 = vpop.trf.xlu0
        %v1860 = vpop.trf.xlu0
        %v1861 = vpop.trf.xlu0
        %v1862 = vpop.trf.xlu0
        %v1863 = vpop.trf.xlu0
        %v1864 = vpop.trf.xlu0
        %v1865 = vpop.trf.xlu0
        %v1866 = vpop.trf.xlu0
        %1867 = vxpose.xlu0.c.b16.start [1/8] %v1765, 128
        %1868 = vxpose.xlu0.c.b16.cont [2/8] 0, 128
        %1869 = vxpose.xlu0.c.b16.cont [3/8] 0, 128
        %1870 = vxpose.xlu0.c.b16.cont [4/8] 0, 128
        %1871 = vxpose.xlu0.c.b16.cont [5/8] 0, 128
        %1872 = vxpose.xlu0.c.b16.cont [6/8] 0, 128
        %1873 = vxpose.xlu0.c.b16.cont [7/8] 0, 128
        %1874 = vxpose.xlu0.c.b16.end [8/8] 0, 128
        %v1875 = vpop.trf.xlu0
        %v1876 = vpop.trf.xlu0
        %v1877 = vpop.trf.xlu0
        %v1878 = vpop.trf.xlu0
        %v1879 = vpop.trf.xlu0
        %v1880 = vpop.trf.xlu0
        %v1881 = vpop.trf.xlu0
        %v1882 = vpop.trf.xlu0
        %1883 = vxpose.xlu0.c.b16.start [1/8] %v1769, 128
        %1884 = vxpose.xlu0.c.b16.cont [2/8] 0, 128
        %1885 = vxpose.xlu0.c.b16.cont [3/8] 0, 128
        %1886 = vxpose.xlu0.c.b16.cont [4/8] 0, 128
        %1887 = vxpose.xlu0.c.b16.cont [5/8] 0, 128
        %1888 = vxpose.xlu0.c.b16.cont [6/8] 0, 128
        %1889 = vxpose.xlu0.c.b16.cont [7/8] 0, 128
        %1890 = vxpose.xlu0.c.b16.end [8/8] 0, 128
        %v1891 = vpop.trf.xlu0
        %v1892 = vpop.trf.xlu0
        %v1893 = vpop.trf.xlu0
        %v1894 = vpop.trf.xlu0
        %v1895 = vpop.trf.xlu0
        %v1896 = vpop.trf.xlu0
        %v1897 = vpop.trf.xlu0
        %v1898 = vpop.trf.xlu0
        %v1899 = vrot.slane %v1843, 4
        %v1900 = vsel %vm929, %v1899, %v1779
        %v1902 = vunpack.c.l.s4 1983009808
        %v1903 = vunpack.c.0.s8 %v1902
        %v1904 = vperm.slane %v1900, %v1903
        %v1905 = vrot.slane %v1875, 4
        %v1906 = vsel %vm929, %v1905, %v1811
        %v1908 = vunpack.c.l.s4 1983009808
        %v1909 = vunpack.c.0.s8 %v1908
        %v1910 = vperm.slane %v1906, %v1909
        %v1911 = vrot.slane %v1910, 4
        %v1912 = vsel %vm929, %v1911, %v1904
        %v1914 = vunpack.c.l.s4 1934713408
        %v1915 = vunpack.c.0.s8 %v1914
        %v1916 = vperm.slane %v1912, %v1915
        %v1917 = vrot.slane %v1916, 4
        %v1918 = vsel %vm929, 0, %v1917
        %v1919 = vrot.slane %v1859, 4
        %v1920 = vsel %vm929, %v1919, %v1795
        %v1922 = vunpack.c.l.s4 1983009808
        %v1923 = vunpack.c.0.s8 %v1922
        %v1924 = vperm.slane %v1920, %v1923
        %v1925 = vrot.slane %v1891, 4
        %v1926 = vsel %vm929, %v1925, %v1827
        %v1928 = vunpack.c.l.s4 1983009808
        %v1929 = vunpack.c.0.s8 %v1928
        %v1930 = vperm.slane %v1926, %v1929
        %v1931 = vrot.slane %v1930, 4
        %v1932 = vsel %vm929, %v1931, %v1924
        %v1934 = vunpack.c.l.s4 1934713408
        %v1935 = vunpack.c.0.s8 %v1934
        %v1936 = vperm.slane %v1932, %v1935
        %v1937 = vrot.slane %v1936, 4
        %v1938 = vsel %vm929, 0, %v1937
        %v1941 = vpack.i.b16 %v1936, %v1916
        %v1942 = vshrl.u32 %v1916, 16
        %v1943 = vshrl.u32 %v1936, 16
        %v1944 = vpack.i.b16 %v1943, %v1942
        %v1947 = vpack.i.b16 %v1938, %v1918
        %v1948 = vshrl.u32 %v1918, 16
        %v1949 = vshrl.u32 %v1938, 16
        %v1950 = vpack.i.b16 %v1949, %v1948
        %v1952 = vsel %vm1377, %v1941, 0
        %v1955 = vsel %vm1377, %v1551, 0
        %1957 = vmatpush.bf16.xpose.msra.mxu0 0
        %1958 = vmatpush.bf16.xpose.msra.mxu0 0
        %1959 = vmatpush.bf16.xpose.msra.mxu0 0
        %1960 = vmatpush.bf16.xpose.msra.mxu0 0
        %1961 = vmatpush.bf16.xpose.msra.mxu0 0
        %1962 = vmatpush.bf16.xpose.msra.mxu0 0
        %1963 = vmatpush.bf16.xpose.msra.mxu0 0
        %1964 = vmatpush.bf16.xpose.msra.mxu0 %v1955
        %1965 = vmatmul.bf16.gmra.mxu0 %v1952
        %v1966 = vpop.f32.mrf.mxu0
        %v1967 = vadd.f32 0.0, %v1966
        %v1968 = vpop.f32.mrf.mxu0
        %1969 = vdwg.mxu0
        %v1971 = vsel %vm1377, %v1944, 0
        %v1974 = vsel %vm1377, %v1552, 0
        %1976 = vmatpush.bf16.xpose.msra.mxu0 0
        %1977 = vmatpush.bf16.xpose.msra.mxu0 0
        %1978 = vmatpush.bf16.xpose.msra.mxu0 0
        %1979 = vmatpush.bf16.xpose.msra.mxu0 0
        %1980 = vmatpush.bf16.xpose.msra.mxu0 0
        %1981 = vmatpush.bf16.xpose.msra.mxu0 0
        %1982 = vmatpush.bf16.xpose.msra.mxu0 0
        %1983 = vmatpush.bf16.xpose.msra.mxu0 %v1974
        %1984 = vmatmul.bf16.gmra.mxu0 %v1971
        %v1985 = vpop.f32.mrf.mxu0
        %v1986 = vadd.f32 0.0, %v1985
        %v1987 = vpop.f32.mrf.mxu0
        %1988 = vdwg.mxu0
        %v1990 = vsel %vm1377, %v1947, 0
        %v1993 = vsel %vm1377, %v1553, 0
        %1995 = vmatpush.bf16.xpose.msra.mxu0 0
        %1996 = vmatpush.bf16.xpose.msra.mxu0 0
        %1997 = vmatpush.bf16.xpose.msra.mxu0 0
        %1998 = vmatpush.bf16.xpose.msra.mxu0 0
        %1999 = vmatpush.bf16.xpose.msra.mxu0 0
        %2000 = vmatpush.bf16.xpose.msra.mxu0 0
        %2001 = vmatpush.bf16.xpose.msra.mxu0 0
        %2002 = vmatpush.bf16.xpose.msra.mxu0 %v1993
        %2003 = vmatmul.bf16.gmra.mxu0 %v1990
        %v2004 = vpop.f32.mrf.mxu0
        %v2005 = vadd.f32 0.0, %v2004
        %v2006 = vpop.f32.mrf.mxu0
        %2007 = vdwg.mxu0
        %v2009 = vsel %vm1377, %v1950, 0
        %v2012 = vsel %vm1377, %v1554, 0
        %2014 = vmatpush.bf16.xpose.msra.mxu0 0
        %2015 = vmatpush.bf16.xpose.msra.mxu0 0
        %2016 = vmatpush.bf16.xpose.msra.mxu0 0
        %2017 = vmatpush.bf16.xpose.msra.mxu0 0
        %2018 = vmatpush.bf16.xpose.msra.mxu0 0
        %2019 = vmatpush.bf16.xpose.msra.mxu0 0
        %2020 = vmatpush.bf16.xpose.msra.mxu0 0
        %2021 = vmatpush.bf16.xpose.msra.mxu0 %v2012
        %2022 = vmatmul.bf16.gmra.mxu0 %v2009
        %v2023 = vpop.f32.mrf.mxu0
        %v2024 = vadd.f32 0.0, %v2023
        %v2025 = vpop.f32.mrf.mxu0
        %2026 = vdwg.mxu0
        %2027 = vxpose.xlu0.b32.start [1/16] %v1967, 128
        %2028 = vxpose.xlu0.b32.cont [2/16] 0.0, 128
        %2029 = vxpose.xlu0.b32.cont [3/16] 0.0, 128
        %2030 = vxpose.xlu0.b32.cont [4/16] 0.0, 128
        %2031 = vxpose.xlu0.b32.cont [5/16] 0.0, 128
        %2032 = vxpose.xlu0.b32.cont [6/16] 0.0, 128
        %2033 = vxpose.xlu0.b32.cont [7/16] 0.0, 128
        %2034 = vxpose.xlu0.b32.cont [8/16] 0.0, 128
        %2035 = vxpose.xlu0.b32.cont [9/16] 0.0, 128
        %2036 = vxpose.xlu0.b32.cont [10/16] 0.0, 128
        %2037 = vxpose.xlu0.b32.cont [11/16] 0.0, 128
        %2038 = vxpose.xlu0.b32.cont [12/16] 0.0, 128
        %2039 = vxpose.xlu0.b32.cont [13/16] 0.0, 128
        %2040 = vxpose.xlu0.b32.cont [14/16] 0.0, 128
        %2041 = vxpose.xlu0.b32.cont [15/16] 0.0, 128
        %2042 = vxpose.xlu0.b32.end [16/16] 0.0, 128
        %v2043 = vpop.trf.xlu0
        %v2044 = vpop.trf.xlu0
        %v2045 = vpop.trf.xlu0
        %v2046 = vpop.trf.xlu0
        %v2047 = vpop.trf.xlu0
        %v2048 = vpop.trf.xlu0
        %v2049 = vpop.trf.xlu0
        %v2050 = vpop.trf.xlu0
        %v2051 = vpop.trf.xlu0
        %v2052 = vpop.trf.xlu0
        %v2053 = vpop.trf.xlu0
        %v2054 = vpop.trf.xlu0
        %v2055 = vpop.trf.xlu0
        %v2056 = vpop.trf.xlu0
        %v2057 = vpop.trf.xlu0
        %v2058 = vpop.trf.xlu0
        %2059 = vxpose.xlu0.b32.start [1/16] %v1986, 128
        %2060 = vxpose.xlu0.b32.cont [2/16] 0.0, 128
        %2061 = vxpose.xlu0.b32.cont [3/16] 0.0, 128
        %2062 = vxpose.xlu0.b32.cont [4/16] 0.0, 128
        %2063 = vxpose.xlu0.b32.cont [5/16] 0.0, 128
        %2064 = vxpose.xlu0.b32.cont [6/16] 0.0, 128
        %2065 = vxpose.xlu0.b32.cont [7/16] 0.0, 128
        %2066 = vxpose.xlu0.b32.cont [8/16] 0.0, 128
        %2067 = vxpose.xlu0.b32.cont [9/16] 0.0, 128
        %2068 = vxpose.xlu0.b32.cont [10/16] 0.0, 128
        %2069 = vxpose.xlu0.b32.cont [11/16] 0.0, 128
        %2070 = vxpose.xlu0.b32.cont [12/16] 0.0, 128
        %2071 = vxpose.xlu0.b32.cont [13/16] 0.0, 128
        %2072 = vxpose.xlu0.b32.cont [14/16] 0.0, 128
        %2073 = vxpose.xlu0.b32.cont [15/16] 0.0, 128
        %2074 = vxpose.xlu0.b32.end [16/16] 0.0, 128
        %v2075 = vpop.trf.xlu0
        %v2076 = vpop.trf.xlu0
        %v2077 = vpop.trf.xlu0
        %v2078 = vpop.trf.xlu0
        %v2079 = vpop.trf.xlu0
        %v2080 = vpop.trf.xlu0
        %v2081 = vpop.trf.xlu0
        %v2082 = vpop.trf.xlu0
        %v2083 = vpop.trf.xlu0
        %v2084 = vpop.trf.xlu0
        %v2085 = vpop.trf.xlu0
        %v2086 = vpop.trf.xlu0
        %v2087 = vpop.trf.xlu0
        %v2088 = vpop.trf.xlu0
        %v2089 = vpop.trf.xlu0
        %v2090 = vpop.trf.xlu0
        %2091 = vxpose.xlu0.b32.start [1/16] %v2005, 128
        %2092 = vxpose.xlu0.b32.cont [2/16] 0.0, 128
        %2093 = vxpose.xlu0.b32.cont [3/16] 0.0, 128
        %2094 = vxpose.xlu0.b32.cont [4/16] 0.0, 128
        %2095 = vxpose.xlu0.b32.cont [5/16] 0.0, 128
        %2096 = vxpose.xlu0.b32.cont [6/16] 0.0, 128
        %2097 = vxpose.xlu0.b32.cont [7/16] 0.0, 128
        %2098 = vxpose.xlu0.b32.cont [8/16] 0.0, 128
        %2099 = vxpose.xlu0.b32.cont [9/16] 0.0, 128
        %2100 = vxpose.xlu0.b32.cont [10/16] 0.0, 128
        %2101 = vxpose.xlu0.b32.cont [11/16] 0.0, 128
        %2102 = vxpose.xlu0.b32.cont [12/16] 0.0, 128
        %2103 = vxpose.xlu0.b32.cont [13/16] 0.0, 128
        %2104 = vxpose.xlu0.b32.cont [14/16] 0.0, 128
        %2105 = vxpose.xlu0.b32.cont [15/16] 0.0, 128
        %2106 = vxpose.xlu0.b32.end [16/16] 0.0, 128
        %v2107 = vpop.trf.xlu0
        %v2108 = vpop.trf.xlu0
        %v2109 = vpop.trf.xlu0
        %v2110 = vpop.trf.xlu0
        %v2111 = vpop.trf.xlu0
        %v2112 = vpop.trf.xlu0
        %v2113 = vpop.trf.xlu0
        %v2114 = vpop.trf.xlu0
        %v2115 = vpop.trf.xlu0
        %v2116 = vpop.trf.xlu0
        %v2117 = vpop.trf.xlu0
        %v2118 = vpop.trf.xlu0
        %v2119 = vpop.trf.xlu0
        %v2120 = vpop.trf.xlu0
        %v2121 = vpop.trf.xlu0
        %v2122 = vpop.trf.xlu0
        %2123 = vxpose.xlu0.b32.start [1/16] %v2024, 128
        %2124 = vxpose.xlu0.b32.cont [2/16] 0.0, 128
        %2125 = vxpose.xlu0.b32.cont [3/16] 0.0, 128
        %2126 = vxpose.xlu0.b32.cont [4/16] 0.0, 128
        %2127 = vxpose.xlu0.b32.cont [5/16] 0.0, 128
        %2128 = vxpose.xlu0.b32.cont [6/16] 0.0, 128
        %2129 = vxpose.xlu0.b32.cont [7/16] 0.0, 128
        %2130 = vxpose.xlu0.b32.cont [8/16] 0.0, 128
        %2131 = vxpose.xlu0.b32.cont [9/16] 0.0, 128
        %2132 = vxpose.xlu0.b32.cont [10/16] 0.0, 128
        %2133 = vxpose.xlu0.b32.cont [11/16] 0.0, 128
        %2134 = vxpose.xlu0.b32.cont [12/16] 0.0, 128
        %2135 = vxpose.xlu0.b32.cont [13/16] 0.0, 128
        %2136 = vxpose.xlu0.b32.cont [14/16] 0.0, 128
        %2137 = vxpose.xlu0.b32.cont [15/16] 0.0, 128
        %2138 = vxpose.xlu0.b32.end [16/16] 0.0, 128
        %v2139 = vpop.trf.xlu0
        %v2140 = vpop.trf.xlu0
        %v2141 = vpop.trf.xlu0
        %v2142 = vpop.trf.xlu0
        %v2143 = vpop.trf.xlu0
        %v2144 = vpop.trf.xlu0
        %v2145 = vpop.trf.xlu0
        %v2146 = vpop.trf.xlu0
        %v2147 = vpop.trf.xlu0
        %v2148 = vpop.trf.xlu0
        %v2149 = vpop.trf.xlu0
        %v2150 = vpop.trf.xlu0
        %v2151 = vpop.trf.xlu0
        %v2152 = vpop.trf.xlu0
        %v2153 = vpop.trf.xlu0
        %v2154 = vpop.trf.xlu0
        %v2155 = vrot.slane %v2107, 4
        %v2156 = vsel %vm711, %v2155, %v2043
        %v2157 = vrot.slane %v2043, 4
        %v2158 = vsel %vm711, %v2107, %v2157
        %v2160 = vunpack.c.l.s4 1983009808
        %v2161 = vunpack.c.0.s8 %v2160
        %v2162 = vperm.slane %v2156, %v2161
        %v2164 = vunpack.c.l.s4 1983009808
        %v2165 = vunpack.c.0.s8 %v2164
        %v2166 = vperm.slane %v2158, %v2165
        %v2167 = vrot.slane %v2139, 4
        %v2168 = vsel %vm711, %v2167, %v2075
        %v2169 = vrot.slane %v2075, 4
        %v2170 = vsel %vm711, %v2139, %v2169
        %v2172 = vunpack.c.l.s4 1983009808
        %v2173 = vunpack.c.0.s8 %v2172
        %v2174 = vperm.slane %v2168, %v2173
        %v2176 = vunpack.c.l.s4 1983009808
        %v2177 = vunpack.c.0.s8 %v2176
        %v2178 = vperm.slane %v2170, %v2177
        %v2179 = vrot.slane %v2174, 4
        %v2180 = vsel %vm711, %v2179, %v2162
        %v2181 = vrot.slane %v2162, 4
        %v2182 = vsel %vm711, %v2174, %v2181
        %v2184 = vunpack.c.l.s4 1934713408
        %v2185 = vunpack.c.0.s8 %v2184
        %v2186 = vperm.slane %v2180, %v2185
        %v2188 = vunpack.c.l.s4 1934713408
        %v2189 = vunpack.c.0.s8 %v2188
        %v2190 = vperm.slane %v2182, %v2189
        %v2191 = vrot.slane %v2178, 4
        %v2192 = vsel %vm711, %v2191, %v2166
        %v2193 = vrot.slane %v2166, 4
        %v2194 = vsel %vm711, %v2178, %v2193
        %v2196 = vunpack.c.l.s4 1934713408
        %v2197 = vunpack.c.0.s8 %v2196
        %v2198 = vperm.slane %v2192, %v2197
        %v2200 = vunpack.c.l.s4 1934713408
        %v2201 = vunpack.c.0.s8 %v2200
        %v2202 = vperm.slane %v2194, %v2201
        %v2203 = vrot.slane %v2186, 4
        %v2204 = vsel %vm711, 0.0, %v2203
        %v2205 = vrot.slane %v2190, 4
        %v2206 = vsel %vm711, 0.0, %v2205
        %v2207 = vrot.slane %v2198, 4
        %v2208 = vsel %vm711, 0.0, %v2207
        %v2209 = vrot.slane %v2202, 4
        %v2210 = vsel %vm711, 0.0, %v2209
        %v2211 = vsel %vm711, %v2205, %v2186
        %v2213 = vunpack.c.l.s4 1983009808
        %v2214 = vunpack.c.0.s8 %v2213
        %v2215 = vperm.slane %v2211, %v2214
        %v2216 = vrot.slane %v2206, 4
        %v2217 = vsel %vm711, %v2216, %v2204
        %v2219 = vunpack.c.l.s4 1983009808
        %v2220 = vunpack.c.0.s8 %v2219
        %v2221 = vperm.slane %v2217, %v2220
        %v2222 = vsel %vm711, %v2209, %v2198
        %v2224 = vunpack.c.l.s4 1983009808
        %v2225 = vunpack.c.0.s8 %v2224
        %v2226 = vperm.slane %v2222, %v2225
        %v2227 = vrot.slane %v2210, 4
        %v2228 = vsel %vm711, %v2227, %v2208
        %v2230 = vunpack.c.l.s4 1983009808
        %v2231 = vunpack.c.0.s8 %v2230
        %v2232 = vperm.slane %v2228, %v2231
        %v2233 = vrot.slane %v2221, 4
        %v2234 = vsel %vm711, %v2233, %v2215
        %v2235 = vrot.slane %v2215, 4
        %v2236 = vsel %vm711, %v2221, %v2235
        %v2238 = vunpack.c.l.s4 1934713408
        %v2239 = vunpack.c.0.s8 %v2238
        %v2240 = vperm.slane %v2234, %v2239
        %v2242 = vunpack.c.l.s4 1934713408
        %v2243 = vunpack.c.0.s8 %v2242
        %v2244 = vperm.slane %v2236, %v2243
        %v2245 = vrot.slane %v2232, 4
        %v2246 = vsel %vm711, %v2245, %v2226
        %v2247 = vrot.slane %v2226, 4
        %v2248 = vsel %vm711, %v2232, %v2247
        %v2250 = vunpack.c.l.s4 1934713408
        %v2251 = vunpack.c.0.s8 %v2250
        %v2252 = vperm.slane %v2246, %v2251
        %v2254 = vunpack.c.l.s4 1934713408
        %v2255 = vunpack.c.0.s8 %v2254
        %v2256 = vperm.slane %v2248, %v2255
        %v2257 = vrot.slane %v2252, 4
        %v2258 = vsel %vm711, %v2257, %v2240
        %v2259 = vrot.slane %v2240, 4
        %v2260 = vsel %vm711, %v2252, %v2259
        %v2261 = vrot.slane %v2256, 4
        %v2262 = vsel %vm711, %v2261, %v2244
        %v2263 = vrot.slane %v2244, 4
        %v2264 = vsel %vm711, %v2256, %v2263
        %2266 = vrot.lane.b32.xlu0 %v2260, 8
        %v2267 = vpop.permute.xlu0 %2266
        %2270 = vrot.lane.b32.xlu0 %v2262, 16
        %v2271 = vpop.permute.xlu0 %2270
        %2274 = vrot.lane.b32.xlu0 %v2264, 24
        %v2275 = vpop.permute.xlu0 %2274
        %v2277 = vsel %vm1377, %v2258, %v2267
        %vm2278 = vcmask 130048
        %v2279 = vsel %vm2278, %v2277, %v2271
        %vm2280 = vcmask 195584
        %v2281 = vsel %vm2280, %v2279, %v2275
        %v2282 = vpack.c.bf16 %v2281, %v2281
        %v2283 = vld [vmem:[#allocation12] sm:$0xf]
        %v2284 = vld [vmem:[#allocation12 + $0x4] sm:$0xf]
        %v2285 = vld [vmem:[#allocation12 + $0x8] sm:$0xf]
        %v2286 = vld [vmem:[#allocation12 + $0xc] sm:$0xf]
        %v2287 = vld [vmem:[#allocation13] sm:$0x1]
        %v2289 = vperm.slane %v2287, 0
        %v2295 = vunpack.c.l.b16 %v2283
        %v2296 = vunpack.c.l.b16 %v2284
        %v2297 = vunpack.c.l.b16 %v2285
        %v2298 = vunpack.c.l.b16 %v2286
        %v2299 = vpack.c.b16 %v2296, %v2295
        %v2300 = vpack.c.b16 %v2298, %v2297
        %v2304 = vsel %vm560, %v2282, 0
        %2306 = vmatpush.bf16.msra.mxu0 0
        %2307 = vmatpush.bf16.msra.mxu0 0
        %2308 = vmatpush.bf16.msra.mxu0 0
        %2309 = vmatpush.bf16.msra.mxu0 0
        %2310 = vmatpush.bf16.msra.mxu0 0
        %2311 = vmatpush.bf16.msra.mxu0 0
        %2312 = vmatpush.bf16.msra.mxu0 %v2300
        %2313 = vmatpush.bf16.msra.mxu0 %v2299
        %2314 = vmatmul.bf16.gmra.mxu0 %v2304
        %v2315 = vpop.f32.mrf.mxu0
        %v2316 = vadd.f32 %v2289, %v2315
        %v2317 = vpop.f32.mrf.mxu0
        %2318 = vdwg.mxu0
        %v2319 = vadd.f32 %v557, %v2316
        %2320 = vst.msk [vmem:[%s555] sm:$0xff] %vm560, %v2319
        %p2321 = scmp.lt.s32.totalorder %s31, 1
        %s2322 = scalar_select %p2321, %s31, 1
        %p2323 = scmp.lt.s32.totalorder %s32, 0
        %s2324 = scalar_select %p2323, %s32, 0
        %s2325 = sadd.s32 %s2324, %s2322
        %s2326 = smul.addr %s2325, 8
        %s2327 = scalar_lea.vmem %s11, %s2326
        // Predicated region
        $region97: #{decoder_forward.10} parent=63 // pred_check
          %p2328 = pneg %p305
        $region98: #{decoder_forward.10} parent=63 // pred_check_branch
          %2330 = sbr.rel (%p2328) target = $region100
        $region99: #{decoder_forward.10} parent=63 // pred_region
          _
        $region100: #{decoder_forward.10} parent=63 // pred_fallthru
          _
      $region64: #{decoder_forward.10} parent=5 // pred_fallthru
        _
      %p2331 = scmp.le.s32.totalorder 2, %s22
      // Predicated region
      $region101: #{decoder_forward.10} parent=5 // pred_check
        %p2332 = pneg %p2331
      $region102: #{decoder_forward.10} parent=5 // pred_check_branch
        %2334 = sbr.rel (%p2332) target = $region104
      $region103: #{decoder_forward.10} parent=5 // pred_region
        %s2335 = ssub.s32 %s22, 2
        // Predicated region
        $region105: #{decoder_forward.10} parent=103 // pred_check
          %p2336 = pneg %p311
        $region106: #{decoder_forward.10} parent=103 // pred_check_branch
          %2338 = sbr.rel (%p2336) target = $region108
        $region107: #{decoder_forward.10} parent=103 // pred_region
          %p2339 = scmp.lt.s32.totalorder %s33, 1
          %s2340 = scalar_select %p2339, %s33, 1
          %p2341 = scmp.lt.s32.totalorder %s34, 0
          %s2342 = scalar_select %p2341, %s34, 0
          %s2343 = sadd.s32 %s2342, %s2340
          %s2344 = smul.addr %s2343, 8
          %s2345 = scalar_lea.vmem %s11, %s2344
        $region108: #{decoder_forward.10} parent=103 // pred_fallthru
          _
      $region104: #{decoder_forward.10} parent=5 // pred_fallthru
        _
    $region6: #{decoder_forward.10} parent=1 // loop_footer
      %s26 = sadd.s32 1, %s22
    $region7: #{decoder_forward.10} parent=1 // loop_footer_branch
      %21 = sbr.rel target = $region3
    $region8: #{decoder_forward.10} parent=1 // loop_exit
      _
    %2346 = vsyncpa [#allocation3], 1
    %s2347 = scalar_lea.sflag [#allocation3], 1
    %2348 = vsyncpa %s2347, 1
    %2349 = vsyncpa [#allocation5], 1
    %2350 = vsyncpa [#allocation8], 1
    %2351 = vsyncpa [#allocation11], 1
    %2352 = vsyncpa [#allocation14], 1

</llo_original>
